<compile_context>
chip_gen: v6e
topology: v6e:2x2x1
jax: 0.10.0
libtpu: 0.0.40
codegen_flags: <defaults>
</compile_context>

<pallas_src>
import functools

import jax
import jax.numpy as jnp
from jax import lax
from jax.experimental import pallas as pl
from jax.experimental.pallas import tpu as pltpu

# TODO(synk): ConvST3d source not provided; assuming LeakyReLU(0.2) for 'lrelu' and that
# conv_mode='3D' means a plain 3-D convolution (kernel 3, padding 1, given stride).
LRELU_SLOPE = 0.2
LANES = 128


def _round_up(x, m):
    return (x + m - 1) // m * m


# --------------------------------------------------------------------------------------
# Shared Pallas kernel: fused multi-tap matmul + bias + activation.
# --------------------------------------------------------------------------------------
def _fused_conv_kernel(x_ref, w_ref, b_ref, o_ref, *, taps, mc, act):
    """x_ref : (1, F, L, K)       bf16 activation rows (every tap is a unit-stride window).
       w_ref : (T, K, Coutp)      bf16 per-tap weights (Cout zero-padded to 128 lanes).
       b_ref : (1, Coutp)         f32 bias.
       o_ref : (1, F, Mp, Coutp)  lane-dense output rows (junk sliced off outside).
       taps  : static tuple of (row_offset, weight_row); mc: static M-chunk size (<=128)."""
    f_blk = x_ref.shape[1]
    mp = o_ref.shape[2]
    coutp = o_ref.shape[-1]
    for f in range(f_blk):                       # static unroll (few frames per step)
        for c in range(mp // mc):                # static unroll over <=128-row M chunks
            base = c * mc
            acc = jnp.zeros((mc, coutp), jnp.float32)
            for (off, widx) in taps:             # 1 or 9 MXU matmuls, f32 accum in vregs
                a = x_ref[0, f, pl.ds(off + base, mc), :]
                acc += jnp.dot(a, w_ref[widx], preferred_element_type=jnp.float32)
            acc = acc + b_ref[...]
            if act == "lrelu":
                acc = jnp.where(acc >= 0, acc, LRELU_SLOPE * acc)
            o_ref[0, f, pl.ds(base, mc), :] = acc.astype(o_ref.dtype)


# --------------------------------------------------------------------------------------
# Path A: full im2col (tiny-K stem / tiny-M deep layers) -> one fused matmul, K = 27*Cin.
# --------------------------------------------------------------------------------------
def _conv_im2col(x, w, b, stride, kernel_act, out_dtype):
    n, cin, d, h, wdim = x.shape
    cout = w.shape[0]
    sd, sh, sw = stride
    assert sd == 1, stride
    ho = (h + 2 - 3) // sh + 1
    wo = (wdim + 2 - 3) // sw + 1

    # layout plumbing (plain JAX): channels-last, pad, per-tap strided windows -> im2col
    x_cl = jnp.transpose(x, (0, 2, 3, 4, 1)).astype(jnp.bfloat16)      # (N, D, H, W, Cin)
    xp = jnp.pad(x_cl, ((0, 0), (1, 1), (1, 1), (1, 1), (0, 0)))
    cols = []
    for kd in range(3):
        for kh in range(3):
            for kw in range(3):
                cols.append(xp[:, kd:kd + d,
                               kh:kh + (ho - 1) * sh + 1:sh,
                               kw:kw + (wo - 1) * sw + 1:sw, :])
    kf = 27 * cin
    mt = n * d * ho * wo
    x_cols = jnp.concatenate(cols, axis=-1).reshape(mt, kf)            # (Mt, 27*Cin)

    # M blocking: grid blocks of <=512 rows, in-kernel chunks of <=128 rows.
    if mt <= 128:
        mtp = _round_up(mt, 8)
        mb = mc = mtp
    else:
        mtp = _round_up(mt, 512) if mt > 512 else _round_up(mt, 128)
        mb, mc = min(512, mtp), 128
    nblk = mtp // mb
    x_cols = jnp.pad(x_cols, ((0, mtp - mt), (0, 0))).reshape(nblk, 1, mb, kf)

    coutp = _round_up(max(cout, LANES), LANES)
    wf = jnp.transpose(w, (2, 3, 4, 1, 0)).reshape(1, kf, cout).astype(jnp.bfloat16)
    wf = jnp.pad(wf, ((0, 0), (0, 0), (0, coutp - cout)))
    bf = jnp.pad(b.astype(jnp.float32).reshape(1, cout), ((0, 0), (0, coutp - cout)))

    kern = functools.partial(_fused_conv_kernel, taps=((0, 0),), mc=mc, act=kernel_act)
    out_bytes = jnp.dtype(out_dtype).itemsize
    cost = pl.CostEstimate(flops=2 * mt * kf * cout, transcendentals=0,
                           bytes_accessed=x_cols.size * 2 + wf.size * 2 + bf.size * 4
                           + mt * cout * out_bytes)

    y = pl.pallas_call(
        kern,
        out_shape=jax.ShapeDtypeStruct((nblk, 1, mb, coutp), out_dtype),
        grid=(nblk,),
        in_specs=[
            pl.BlockSpec((1, 1, mb, kf), lambda i: (i, 0, 0, 0)),
            pl.BlockSpec((1, kf, coutp), lambda i: (0, 0, 0)),     # weights: resident
            pl.BlockSpec((1, coutp), lambda i: (0, 0)),            # bias: resident
        ],
        out_specs=pl.BlockSpec((1, 1, mb, coutp), lambda i: (i, 0, 0, 0)),
        compiler_params=pltpu.CompilerParams(dimension_semantics=("parallel",)),
        cost_estimate=cost,
    )(x_cols, wf, bf)

    y = y.reshape(mtp, coutp)[:mt, :cout].reshape(n, d, ho, wo, cout)
    return jnp.transpose(y, (0, 4, 1, 2, 3))


# --------------------------------------------------------------------------------------
# Path B: phased unit-stride 9-tap scheme with temporal fold (K = 3*Cin), no HBM im2col.
# --------------------------------------------------------------------------------------
def _conv_grouped(x, w, b, stride, kernel_act, out_dtype):
    n, cin, d, h, wdim = x.shape
    cout = w.shape[0]
    sd, sh, sw = stride
    assert sd == 1 and sh == sw and sh in (1, 2), stride
    ho = (h + 2 - 3) // sh + 1
    wo = (wdim + 2 - 3) // sw + 1

    # channels-last, zero-pad, phase-decompose (stride 2) -> unit-stride tap windows
    x_cl = jnp.transpose(x, (0, 2, 3, 4, 1)).astype(jnp.bfloat16)
    xp = jnp.pad(x_cl, ((0, 0), (1, 1), (1, 1), (1, 1), (0, 0)))
    if sh == 1:
        p, hh, ww = 1, h + 2, wdim + 2
        phased = xp[:, :, None]                                        # (N, Dp, 1, Hh, Ww, C)
    else:
        hp, wp = h + 2, wdim + 2
        if hp % 2:
            xp = jnp.pad(xp, ((0, 0), (0, 0), (0, 1), (0, 0), (0, 0)))
            hp += 1
        if wp % 2:
            xp = jnp.pad(xp, ((0, 0), (0, 0), (0, 0), (0, 1), (0, 0)))
            wp += 1
        p, hh, ww = 4, hp // 2, wp // 2
        phased = jnp.stack([xp[:, :, a::2, b::2, :] for a in (0, 1) for b in (0, 1)],
                           axis=2)                                     # (N, Dp, 4, Hh, Ww, C)

    # temporal fold: the 3 temporal taps of each output frame are concatenated along
    # channels, so the contraction is K = 3*Cin (one matmul per spatial tap, not three).
    l0 = p * hh * ww
    flat = phased.reshape(n, d + 2, l0, cin)
    x_grp = jnp.concatenate([flat[:, kd:kd + d] for kd in range(3)], axis=-1)  # (N,D,L0,3C)
    k = 3 * cin

    # static spatial tap table: (flat offset in the phased plane, weight row)
    taps = []
    for kh in range(3):
        for kw in range(3):
            if p == 1:
                off = kh * ww + kw
            else:
                off = ((kh & 1) * 2 + (kw & 1)) * (hh * ww) + (kh >> 1) * ww + (kw >> 1)
            taps.append((off, kh * 3 + kw))
    max_off = max(o for o, _ in taps)

    m_out = ho * ww                      # output rows per frame (ww-wo junk cols per row)
    if m_out <= 128:
        mp = mc = _round_up(m_out, 8)
    else:
        mp, mc = _round_up(m_out, 128), 128
    lflat = _round_up(max(l0, max_off + mp), 8)
    x_grp = jnp.pad(x_grp, ((0, 0), (0, 0), (0, lflat - l0), (0, 0)))

    # fold several frames into one grid step so each step streams >=128 rows on the MXU
    t_blk = 1
    for cand in range(d, 0, -1):
        if d % cand == 0 and cand * mp <= 512:
            t_blk = cand
            break

    coutp = _round_up(max(cout, LANES), LANES)
    wf = jnp.transpose(w, (3, 4, 2, 1, 0)).reshape(9, k, cout).astype(jnp.bfloat16)
    wf = jnp.pad(wf, ((0, 0), (0, 0), (0, coutp - cout)))
    bf = jnp.pad(b.astype(jnp.float32).reshape(1, cout), ((0, 0), (0, coutp - cout)))

    kern = functools.partial(_fused_conv_kernel, taps=tuple(taps), mc=mc, act=kernel_act)
    out_bytes = jnp.dtype(out_dtype).itemsize
    cost = pl.CostEstimate(flops=2 * n * d * ho * wo * 27 * cin * cout, transcendentals=0,
                           bytes_accessed=x_grp.size * 2 + wf.size * 2 + bf.size * 4
                           + n * d * m_out * cout * out_bytes)

    y = pl.pallas_call(
        kern,
        out_shape=jax.ShapeDtypeStruct((n, d, mp, coutp), out_dtype),
        grid=(n, d // t_blk),
        in_specs=[
            pl.BlockSpec((1, t_blk, lflat, k), lambda nn, tb: (nn, tb, 0, 0)),  # single pass
            pl.BlockSpec((9, k, coutp), lambda nn, tb: (0, 0, 0)),              # resident
            pl.BlockSpec((1, coutp), lambda nn, tb: (0, 0)),                    # resident
        ],
        out_specs=pl.BlockSpec((1, t_blk, mp, coutp), lambda nn, tb: (nn, tb, 0, 0)),
        compiler_params=pltpu.CompilerParams(
            dimension_semantics=("parallel", "parallel")),
        cost_estimate=cost,
    )(x_grp, wf, bf)

    y = y[:, :, :m_out].reshape(n, d, ho, ww, coutp)[:, :, :, :wo, :cout]
    return jnp.transpose(y, (0, 4, 1, 2, 3))


# --------------------------------------------------------------------------------------
# One ConvST3d layer (dispatch) and the full D4 forward.
# --------------------------------------------------------------------------------------
def convst3d_forward(x, w, b, stride, act, out_dtype=jnp.bfloat16):
    """3-D conv (k=3, pad=1, stride=(1,s,s)) + bias + activation; NCDHW in/out."""
    n, cin, d, h, wdim = x.shape
    _, sh, sw = stride
    ho = (h + 2 - 3) // sh + 1
    wo = (wdim + 2 - 3) // sw + 1
    kernel_act = "lrelu" if act == "lrelu" else "linear"
    if cin <= 4 or ho * wo <= 32:       # tiny-K stem or tiny-M deep layers -> full im2col
        y = _conv_im2col(x, w, b, stride, kernel_act, out_dtype)
    else:                               # mid-size layers -> phased 9-tap, K = 3*Cin
        y = _conv_grouped(x, w, b, stride, kernel_act, out_dtype)
    if act == "sigmoid":
        # exact sigmoid, applied in JAX on the real (unpadded) channels only
        y = jax.nn.sigmoid(y.astype(jnp.float32)).astype(out_dtype)
    return y


def _spectral_normalize(w, n_iter=5):
    # PyTorch spectral_norm forward semantics: W / sigma_max(W.reshape(Cout, -1)).
    wm = w.reshape(w.shape[0], -1)
    v = jnp.ones((wm.shape[1],), jnp.float32) / jnp.sqrt(wm.shape[1] * 1.0)
    for _ in range(n_iter):
        u = wm @ v
        u = u / (jnp.linalg.norm(u) + 1e-12)
        v = wm.T @ u
        v = v / (jnp.linalg.norm(v) + 1e-12)
    sigma = u @ (wm @ v)
    return w / sigma


def init_d4_params(key, ndf=16, nlayer=5):
    # Mirrors D4.__init__: conv1 (3->ndf, stride 1), nlayer-2 downsampling convs, convout.
    cfg = [(3, ndf, (1, 1, 1), "lrelu", True)]
    nin = ndf
    nout = ndf
    for i in range(nlayer - 2):
        nout = nin * 2 ** i
        cfg.append((nin, nout, (1, 2, 2), "lrelu", True))
        nin = nout
    cfg.append((nout, 1, (1, 2, 2), "sigmoid", False))

    params = []
    for (cin, cout, stride, act, spec) in cfg:
        key, kw_, kb_ = jax.random.split(key, 3)
        fan_in = cin * 27
        w = jax.random.normal(kw_, (cout, cin, 3, 3, 3), jnp.float32) * (2.0 / fan_in) ** 0.5
        b = jax.random.normal(kb_, (cout,), jnp.float32) * 0.01
        if spec:
            w = _spectral_normalize(w)
        params.append((w, b, stride, act))
    return params


def d4_forward(x, params):
    y = x
    for i, (w, b, stride, act) in enumerate(params):
        last = i == len(params) - 1
        # Intermediate activations stay bf16 (halves HBM traffic); final layer in f32.
        y = convst3d_forward(y, w, b, stride, act,
                             out_dtype=jnp.float32 if last else jnp.bfloat16)
    return y


def _reference_forward(x, params):
    # Pure-JAX f32 reference (lax conv) for correctness checking.
    y = x
    for (w, b, stride, act) in params:
        y = lax.conv_general_dilated(
            y, w, window_strides=stride, padding=[(1, 1)] * 3,
            dimension_numbers=("NCDHW", "OIDHW", "NCDHW"))
        y = y + b.reshape(1, -1, 1, 1, 1)
        if act == "lrelu":
            y = jnp.where(y >= 0, y, LRELU_SLOPE * y)
        else:
            y = jax.nn.sigmoid(y)
    return y


if __name__ == "__main__":
    key = jax.random.PRNGKey(0)
    kx, kp = jax.random.split(key)
    # (N, C=3, T, H, W)
    x = jax.random.normal(kx, (2, 3, 4, 16, 16), jnp.float32)
    params = init_d4_params(kp, ndf=16, nlayer=5)

    fwd = jax.jit(functools.partial(d4_forward, params=params))
    y = jax.block_until_ready(fwd(x))
    y_ref = jax.block_until_ready(_reference_forward(x, params))

    assert y.shape == (2, 1, 4, 1, 1), y.shape
    # bf16 matmul path vs f32 reference: loosened tolerance (outputs are post-sigmoid).
    err = float(jnp.max(jnp.abs(y.astype(jnp.float32) - y_ref)))
    assert jnp.allclose(y.astype(jnp.float32), y_ref, rtol=5e-2, atol=5e-2), err
    print("KERNEL_OK")
</pallas_src>

<mosaic_0001>
module attributes {stable_mosaic.version = 11 : i64} {
  func.func @_fused_conv_kernel(%arg0: i32, %arg1: memref<1x1x512x81xbf16, #tpu.memory_space<vmem>>, %arg2: memref<1x81x128xbf16, #tpu.memory_space<vmem>>, %arg3: memref<1x128xf32, #tpu.memory_space<vmem>>, %arg4: memref<1x1x512x128xbf16, #tpu.memory_space<vmem>>) attributes {dimension_semantics = [#tpu.dimension_semantics<parallel>], iteration_bounds = array<i64: 4>, scalar_prefetch = 0 : i64, scratch_operands = 0 : i64, tpu.core_type = #tpu.core_type<tc>, window_params = [{transform_indices = @transform_0, window_bounds = array<i64: 1, 1, 512, 81>}, {pipeline_mode = #tpu.pipeline_mode<synchronous>, transform_indices = @transform_1, window_bounds = array<i64: 1, 81, 128>}, {pipeline_mode = #tpu.pipeline_mode<synchronous>, transform_indices = @transform_2, window_bounds = array<i64: 1, 128>}, {transform_indices = @transform_3, window_bounds = array<i64: 1, 1, 512, 128>}]} {
    %cst = arith.constant 0.000000e+00 : f32
    %0 = vector.broadcast %cst : f32 to vector<128x128xf32>
    %c0 = arith.constant 0 : index
    %c0_0 = arith.constant 0 : index
    %c0_1 = arith.constant 0 : index
    %c0_2 = arith.constant 0 : index
    %1 = vector.load %arg1[%c0, %c0_0, %c0_1, %c0_2] : memref<1x1x512x81xbf16, #tpu.memory_space<vmem>>, vector<1x1x128x81xbf16>
    %2 = vector.shape_cast %1 : vector<1x1x128x81xbf16> to vector<128x81xbf16>
    %c0_3 = arith.constant 0 : index
    %c0_4 = arith.constant 0 : index
    %c0_5 = arith.constant 0 : index
    %3 = vector.load %arg2[%c0_3, %c0_4, %c0_5] : memref<1x81x128xbf16, #tpu.memory_space<vmem>>, vector<1x81x128xbf16>
    %4 = vector.shape_cast %3 : vector<1x81x128xbf16> to vector<81x128xbf16>
    %cst_6 = arith.constant dense<0.000000e+00> : vector<128x128xf32>
    %5 = tpu.matmul %2, %4, %cst_6 {dimension_numbers = #tpu.dot_dimension_numbers<[1], [0], [0], [1], [0, 0, 1, 1], [], []>} : vector<128x81xbf16>, vector<81x128xbf16>, vector<128x128xf32> -> vector<128x128xf32>
    %6 = arith.addf %0, %5 : vector<128x128xf32>
    %c0_7 = arith.constant 0 : index
    %c0_8 = arith.constant 0 : index
    %7 = vector.load %arg3[%c0_7, %c0_8] : memref<1x128xf32, #tpu.memory_space<vmem>>, vector<1x128xf32>
    %8 = vector.broadcast %7 : vector<1x128xf32> to vector<128x128xf32>
    %9 = arith.addf %6, %8 : vector<128x128xf32>
    %cst_9 = arith.constant 0.000000e+00 : f32
    %10 = vector.broadcast %cst_9 : f32 to vector<128x128xf32>
    %11 = arith.cmpf oge, %9, %10 : vector<128x128xf32>
    %cst_10 = arith.constant 2.000000e-01 : f32
    %12 = vector.broadcast %cst_10 : f32 to vector<128x128xf32>
    %13 = arith.mulf %12, %9 : vector<128x128xf32>
    %14 = arith.select %11, %9, %13 : vector<128x128xi1>, vector<128x128xf32>
    %15 = arith.truncf %14 : vector<128x128xf32> to vector<128x128xbf16>
    %c0_11 = arith.constant 0 : index
    %c0_12 = arith.constant 0 : index
    %c0_13 = arith.constant 0 : index
    %c0_14 = arith.constant 0 : index
    %16 = vector.load %arg4[%c0_11, %c0_12, %c0_13, %c0_14] : memref<1x1x512x128xbf16, #tpu.memory_space<vmem>>, vector<1x1x128x128xbf16>
    %17 = vector.shape_cast %16 : vector<1x1x128x128xbf16> to vector<128x128xbf16>
    %18 = vector.shape_cast %15 : vector<128x128xbf16> to vector<1x1x128x128xbf16>
    tpu.vector_store %arg4[%c0_11, %c0_12, %c0_13, %c0_14], %18 {strides = array<i32>} : memref<1x1x512x128xbf16, #tpu.memory_space<vmem>>, vector<1x1x128x128xbf16>,
    %cst_15 = arith.constant 0.000000e+00 : f32
    %19 = vector.broadcast %cst_15 : f32 to vector<128x128xf32>
    %c0_16 = arith.constant 0 : index
    %c0_17 = arith.constant 0 : index
    %c128 = arith.constant 128 : index
    %c0_18 = arith.constant 0 : index
    %20 = vector.load %arg1[%c0_16, %c0_17, %c128, %c0_18] : memref<1x1x512x81xbf16, #tpu.memory_space<vmem>>, vector<1x1x128x81xbf16>
    %21 = vector.shape_cast %20 : vector<1x1x128x81xbf16> to vector<128x81xbf16>
    %c0_19 = arith.constant 0 : index
    %c0_20 = arith.constant 0 : index
    %c0_21 = arith.constant 0 : index
    %22 = vector.load %arg2[%c0_19, %c0_20, %c0_21] : memref<1x81x128xbf16, #tpu.memory_space<vmem>>, vector<1x81x128xbf16>
    %23 = vector.shape_cast %22 : vector<1x81x128xbf16> to vector<81x128xbf16>
    %cst_22 = arith.constant dense<0.000000e+00> : vector<128x128xf32>
    %24 = tpu.matmul %21, %23, %cst_22 {dimension_numbers = #tpu.dot_dimension_numbers<[1], [0], [0], [1], [0, 0, 1, 1], [], []>} : vector<128x81xbf16>, vector<81x128xbf16>, vector<128x128xf32> -> vector<128x128xf32>
    %25 = arith.addf %19, %24 : vector<128x128xf32>
    %c0_23 = arith.constant 0 : index
    %c0_24 = arith.constant 0 : index
    %26 = vector.load %arg3[%c0_23, %c0_24] : memref<1x128xf32, #tpu.memory_space<vmem>>, vector<1x128xf32>
    %27 = vector.broadcast %26 : vector<1x128xf32> to vector<128x128xf32>
    %28 = arith.addf %25, %27 : vector<128x128xf32>
    %cst_25 = arith.constant 0.000000e+00 : f32
    %29 = vector.broadcast %cst_25 : f32 to vector<128x128xf32>
    %30 = arith.cmpf oge, %28, %29 : vector<128x128xf32>
    %cst_26 = arith.constant 2.000000e-01 : f32
    %31 = vector.broadcast %cst_26 : f32 to vector<128x128xf32>
    %32 = arith.mulf %31, %28 : vector<128x128xf32>
    %33 = arith.select %30, %28, %32 : vector<128x128xi1>, vector<128x128xf32>
    %34 = arith.truncf %33 : vector<128x128xf32> to vector<128x128xbf16>
    %c0_27 = arith.constant 0 : index
    %c0_28 = arith.constant 0 : index
    %c128_29 = arith.constant 128 : index
    %c0_30 = arith.constant 0 : index
    %35 = vector.load %arg4[%c0_27, %c0_28, %c128_29, %c0_30] : memref<1x1x512x128xbf16, #tpu.memory_space<vmem>>, vector<1x1x128x128xbf16>
    %36 = vector.shape_cast %35 : vector<1x1x128x128xbf16> to vector<128x128xbf16>
    %37 = vector.shape_cast %34 : vector<128x128xbf16> to vector<1x1x128x128xbf16>
    tpu.vector_store %arg4[%c0_27, %c0_28, %c128_29, %c0_30], %37 {strides = array<i32>} : memref<1x1x512x128xbf16, #tpu.memory_space<vmem>>, vector<1x1x128x128xbf16>,
    %cst_31 = arith.constant 0.000000e+00 : f32
    %38 = vector.broadcast %cst_31 : f32 to vector<128x128xf32>
    %c0_32 = arith.constant 0 : index
    %c0_33 = arith.constant 0 : index
    %c256 = arith.constant 256 : index
    %c0_34 = arith.constant 0 : index
    %39 = vector.load %arg1[%c0_32, %c0_33, %c256, %c0_34] : memref<1x1x512x81xbf16, #tpu.memory_space<vmem>>, vector<1x1x128x81xbf16>
    %40 = vector.shape_cast %39 : vector<1x1x128x81xbf16> to vector<128x81xbf16>
    %c0_35 = arith.constant 0 : index
    %c0_36 = arith.constant 0 : index
    %c0_37 = arith.constant 0 : index
    %41 = vector.load %arg2[%c0_35, %c0_36, %c0_37] : memref<1x81x128xbf16, #tpu.memory_space<vmem>>, vector<1x81x128xbf16>
    %42 = vector.shape_cast %41 : vector<1x81x128xbf16> to vector<81x128xbf16>
    %cst_38 = arith.constant dense<0.000000e+00> : vector<128x128xf32>
    %43 = tpu.matmul %40, %42, %cst_38 {dimension_numbers = #tpu.dot_dimension_numbers<[1], [0], [0], [1], [0, 0, 1, 1], [], []>} : vector<128x81xbf16>, vector<81x128xbf16>, vector<128x128xf32> -> vector<128x128xf32>
    %44 = arith.addf %38, %43 : vector<128x128xf32>
    %c0_39 = arith.constant 0 : index
    %c0_40 = arith.constant 0 : index
    %45 = vector.load %arg3[%c0_39, %c0_40] : memref<1x128xf32, #tpu.memory_space<vmem>>, vector<1x128xf32>
    %46 = vector.broadcast %45 : vector<1x128xf32> to vector<128x128xf32>
    %47 = arith.addf %44, %46 : vector<128x128xf32>
    %cst_41 = arith.constant 0.000000e+00 : f32
    %48 = vector.broadcast %cst_41 : f32 to vector<128x128xf32>
    %49 = arith.cmpf oge, %47, %48 : vector<128x128xf32>
    %cst_42 = arith.constant 2.000000e-01 : f32
    %50 = vector.broadcast %cst_42 : f32 to vector<128x128xf32>
    %51 = arith.mulf %50, %47 : vector<128x128xf32>
    %52 = arith.select %49, %47, %51 : vector<128x128xi1>, vector<128x128xf32>
    %53 = arith.truncf %52 : vector<128x128xf32> to vector<128x128xbf16>
    %c0_43 = arith.constant 0 : index
    %c0_44 = arith.constant 0 : index
    %c256_45 = arith.constant 256 : index
    %c0_46 = arith.constant 0 : index
    %54 = vector.load %arg4[%c0_43, %c0_44, %c256_45, %c0_46] : memref<1x1x512x128xbf16, #tpu.memory_space<vmem>>, vector<1x1x128x128xbf16>
    %55 = vector.shape_cast %54 : vector<1x1x128x128xbf16> to vector<128x128xbf16>
    %56 = vector.shape_cast %53 : vector<128x128xbf16> to vector<1x1x128x128xbf16>
    tpu.vector_store %arg4[%c0_43, %c0_44, %c256_45, %c0_46], %56 {strides = array<i32>} : memref<1x1x512x128xbf16, #tpu.memory_space<vmem>>, vector<1x1x128x128xbf16>,
    %cst_47 = arith.constant 0.000000e+00 : f32
    %57 = vector.broadcast %cst_47 : f32 to vector<128x128xf32>
    %c0_48 = arith.constant 0 : index
    %c0_49 = arith.constant 0 : index
    %c384 = arith.constant 384 : index
    %c0_50 = arith.constant 0 : index
    %58 = vector.load %arg1[%c0_48, %c0_49, %c384, %c0_50] : memref<1x1x512x81xbf16, #tpu.memory_space<vmem>>, vector<1x1x128x81xbf16>
    %59 = vector.shape_cast %58 : vector<1x1x128x81xbf16> to vector<128x81xbf16>
    %c0_51 = arith.constant 0 : index
    %c0_52 = arith.constant 0 : index
    %c0_53 = arith.constant 0 : index
    %60 = vector.load %arg2[%c0_51, %c0_52, %c0_53] : memref<1x81x128xbf16, #tpu.memory_space<vmem>>, vector<1x81x128xbf16>
    %61 = vector.shape_cast %60 : vector<1x81x128xbf16> to vector<81x128xbf16>
    %cst_54 = arith.constant dense<0.000000e+00> : vector<128x128xf32>
    %62 = tpu.matmul %59, %61, %cst_54 {dimension_numbers = #tpu.dot_dimension_numbers<[1], [0], [0], [1], [0, 0, 1, 1], [], []>} : vector<128x81xbf16>, vector<81x128xbf16>, vector<128x128xf32> -> vector<128x128xf32>
    %63 = arith.addf %57, %62 : vector<128x128xf32>
    %c0_55 = arith.constant 0 : index
    %c0_56 = arith.constant 0 : index
    %64 = vector.load %arg3[%c0_55, %c0_56] : memref<1x128xf32, #tpu.memory_space<vmem>>, vector<1x128xf32>
    %65 = vector.broadcast %64 : vector<1x128xf32> to vector<128x128xf32>
    %66 = arith.addf %63, %65 : vector<128x128xf32>
    %cst_57 = arith.constant 0.000000e+00 : f32
    %67 = vector.broadcast %cst_57 : f32 to vector<128x128xf32>
    %68 = arith.cmpf oge, %66, %67 : vector<128x128xf32>
    %cst_58 = arith.constant 2.000000e-01 : f32
    %69 = vector.broadcast %cst_58 : f32 to vector<128x128xf32>
    %70 = arith.mulf %69, %66 : vector<128x128xf32>
    %71 = arith.select %68, %66, %70 : vector<128x128xi1>, vector<128x128xf32>
    %72 = arith.truncf %71 : vector<128x128xf32> to vector<128x128xbf16>
    %c0_59 = arith.constant 0 : index
    %c0_60 = arith.constant 0 : index
    %c384_61 = arith.constant 384 : index
    %c0_62 = arith.constant 0 : index
    %73 = vector.load %arg4[%c0_59, %c0_60, %c384_61, %c0_62] : memref<1x1x512x128xbf16, #tpu.memory_space<vmem>>, vector<1x1x128x128xbf16>
    %74 = vector.shape_cast %73 : vector<1x1x128x128xbf16> to vector<128x128xbf16>
    %75 = vector.shape_cast %72 : vector<128x128xbf16> to vector<1x1x128x128xbf16>
    tpu.vector_store %arg4[%c0_59, %c0_60, %c384_61, %c0_62], %75 {strides = array<i32>} : memref<1x1x512x128xbf16, #tpu.memory_space<vmem>>, vector<1x1x128x128xbf16>,
    return
  }
  func.func @transform_0(%arg0: i32) -> (i32, i32, i32, i32) {
    %c0_i32 = arith.constant 0 : i32
    %c0_i32_0 = arith.constant 0 : i32
    %c0_i32_1 = arith.constant 0 : i32
    %c0_i32_2 = arith.constant 0 : i32
    return %arg0, %c0_i32, %c0_i32_0, %c0_i32_1 : i32, i32, i32, i32
  }
  func.func @transform_1(%arg0: i32) -> (i32, i32, i32) {
    %c0_i32 = arith.constant 0 : i32
    %c0_i32_0 = arith.constant 0 : i32
    %c0_i32_1 = arith.constant 0 : i32
    %c0_i32_2 = arith.constant 0 : i32
    return %c0_i32, %c0_i32_0, %c0_i32_1 : i32, i32, i32
  }
  func.func @transform_2(%arg0: i32) -> (i32, i32) {
    %c0_i32 = arith.constant 0 : i32
    %c0_i32_0 = arith.constant 0 : i32
    %c0_i32_1 = arith.constant 0 : i32
    return %c0_i32, %c0_i32_0 : i32, i32
  }
  func.func @transform_3(%arg0: i32) -> (i32, i32, i32, i32) {
    %c0_i32 = arith.constant 0 : i32
    %c0_i32_0 = arith.constant 0 : i32
    %c0_i32_1 = arith.constant 0 : i32
    %c0_i32_2 = arith.constant 0 : i32
    return %arg0, %c0_i32, %c0_i32_0, %c0_i32_1 : i32, i32, i32, i32
  }
}

module attributes {stable_mosaic.version = 11 : i64} {
  func.func @_fused_conv_kernel(%arg0: i32, %arg1: i32, %arg2: memref<1x4x328x48xbf16, #tpu.memory_space<vmem>>, %arg3: memref<9x48x128xbf16, #tpu.memory_space<vmem>>, %arg4: memref<1x128xf32, #tpu.memory_space<vmem>>, %arg5: memref<1x4x72x128xbf16, #tpu.memory_space<vmem>>) attributes {dimension_semantics = [#tpu.dimension_semantics<parallel>, #tpu.dimension_semantics<parallel>], iteration_bounds = array<i64: 2, 1>, scalar_prefetch = 0 : i64, scratch_operands = 0 : i64, tpu.core_type = #tpu.core_type<tc>, window_params = [{transform_indices = @transform_0, window_bounds = array<i64: 1, 4, 328, 48>}, {pipeline_mode = #tpu.pipeline_mode<synchronous>, transform_indices = @transform_1, window_bounds = array<i64: 9, 48, 128>}, {pipeline_mode = #tpu.pipeline_mode<synchronous>, transform_indices = @transform_2, window_bounds = array<i64: 1, 128>}, {transform_indices = @transform_3, window_bounds = array<i64: 1, 4, 72, 128>}]} {
    %cst = arith.constant 0.000000e+00 : f32
    %0 = vector.broadcast %cst : f32 to vector<72x128xf32>
    %c0 = arith.constant 0 : index
    %c0_0 = arith.constant 0 : index
    %c0_1 = arith.constant 0 : index
    %c0_2 = arith.constant 0 : index
    %1 = vector.load %arg2[%c0, %c0_0, %c0_1, %c0_2] : memref<1x4x328x48xbf16, #tpu.memory_space<vmem>>, vector<1x1x72x48xbf16>
    %2 = vector.shape_cast %1 : vector<1x1x72x48xbf16> to vector<72x48xbf16>
    %c0_3 = arith.constant 0 : index
    %c0_4 = arith.constant 0 : index
    %c0_5 = arith.constant 0 : index
    %3 = vector.load %arg3[%c0_3, %c0_4, %c0_5] : memref<9x48x128xbf16, #tpu.memory_space<vmem>>, vector<1x48x128xbf16>
    %4 = vector.shape_cast %3 : vector<1x48x128xbf16> to vector<48x128xbf16>
    %cst_6 = arith.constant dense<0.000000e+00> : vector<72x128xf32>
    %5 = tpu.matmul %2, %4, %cst_6 {dimension_numbers = #tpu.dot_dimension_numbers<[1], [0], [0], [1], [0, 0, 1, 1], [], []>} : vector<72x48xbf16>, vector<48x128xbf16>, vector<72x128xf32> -> vector<72x128xf32>
    %6 = arith.addf %0, %5 : vector<72x128xf32>
    %c0_7 = arith.constant 0 : index
    %c0_8 = arith.constant 0 : index
    %c81 = arith.constant 81 : index
    %c0_9 = arith.constant 0 : index
    %7 = vector.load %arg2[%c0_7, %c0_8, %c81, %c0_9] : memref<1x4x328x48xbf16, #tpu.memory_space<vmem>>, vector<1x1x72x48xbf16>
    %8 = vector.shape_cast %7 : vector<1x1x72x48xbf16> to vector<72x48xbf16>
    %c1 = arith.constant 1 : index
    %c0_10 = arith.constant 0 : index
    %c0_11 = arith.constant 0 : index
    %9 = vector.load %arg3[%c1, %c0_10, %c0_11] : memref<9x48x128xbf16, #tpu.memory_space<vmem>>, vector<1x48x128xbf16>
    %10 = vector.shape_cast %9 : vector<1x48x128xbf16> to vector<48x128xbf16>
    %cst_12 = arith.constant dense<0.000000e+00> : vector<72x128xf32>
    %11 = tpu.matmul %8, %10, %cst_12 {dimension_numbers = #tpu.dot_dimension_numbers<[1], [0], [0], [1], [0, 0, 1, 1], [], []>} : vector<72x48xbf16>, vector<48x128xbf16>, vector<72x128xf32> -> vector<72x128xf32>
    %12 = arith.addf %6, %11 : vector<72x128xf32>
    %c0_13 = arith.constant 0 : index
    %c0_14 = arith.constant 0 : index
    %c1_15 = arith.constant 1 : index
    %c0_16 = arith.constant 0 : index
    %13 = vector.load %arg2[%c0_13, %c0_14, %c1_15, %c0_16] : memref<1x4x328x48xbf16, #tpu.memory_space<vmem>>, vector<1x1x72x48xbf16>
    %14 = vector.shape_cast %13 : vector<1x1x72x48xbf16> to vector<72x48xbf16>
    %c2 = arith.constant 2 : index
    %c0_17 = arith.constant 0 : index
    %c0_18 = arith.constant 0 : index
    %15 = vector.load %arg3[%c2, %c0_17, %c0_18] : memref<9x48x128xbf16, #tpu.memory_space<vmem>>, vector<1x48x128xbf16>
    %16 = vector.shape_cast %15 : vector<1x48x128xbf16> to vector<48x128xbf16>
    %cst_19 = arith.constant dense<0.000000e+00> : vector<72x128xf32>
    %17 = tpu.matmul %14, %16, %cst_19 {dimension_numbers = #tpu.dot_dimension_numbers<[1], [0], [0], [1], [0, 0, 1, 1], [], []>} : vector<72x48xbf16>, vector<48x128xbf16>, vector<72x128xf32> -> vector<72x128xf32>
    %18 = arith.addf %12, %17 : vector<72x128xf32>
    %c0_20 = arith.constant 0 : index
    %c0_21 = arith.constant 0 : index
    %c162 = arith.constant 162 : index
    %c0_22 = arith.constant 0 : index
    %19 = vector.load %arg2[%c0_20, %c0_21, %c162, %c0_22] : memref<1x4x328x48xbf16, #tpu.memory_space<vmem>>, vector<1x1x72x48xbf16>
    %20 = vector.shape_cast %19 : vector<1x1x72x48xbf16> to vector<72x48xbf16>
    %c3 = arith.constant 3 : index
    %c0_23 = arith.constant 0 : index
    %c0_24 = arith.constant 0 : index
    %21 = vector.load %arg3[%c3, %c0_23, %c0_24] : memref<9x48x128xbf16, #tpu.memory_space<vmem>>, vector<1x48x128xbf16>
    %22 = vector.shape_cast %21 : vector<1x48x128xbf16> to vector<48x128xbf16>
    %cst_25 = arith.constant dense<0.000000e+00> : vector<72x128xf32>
    %23 = tpu.matmul %20, %22, %cst_25 {dimension_numbers = #tpu.dot_dimension_numbers<[1], [0], [0], [1], [0, 0, 1, 1], [], []>} : vector<72x48xbf16>, vector<48x128xbf16>, vector<72x128xf32> -> vector<72x128xf32>
    %24 = arith.addf %18, %23 : vector<72x128xf32>
    %c0_26 = arith.constant 0 : index
    %c0_27 = arith.constant 0 : index
    %c243 = arith.constant 243 : index
    %c0_28 = arith.constant 0 : index
    %25 = vector.load %arg2[%c0_26, %c0_27, %c243, %c0_28] : memref<1x4x328x48xbf16, #tpu.memory_space<vmem>>, vector<1x1x72x48xbf16>
    %26 = vector.shape_cast %25 : vector<1x1x72x48xbf16> to vector<72x48xbf16>
    %c4 = arith.constant 4 : index
    %c0_29 = arith.constant 0 : index
    %c0_30 = arith.constant 0 : index
    %27 = vector.load %arg3[%c4, %c0_29, %c0_30] : memref<9x48x128xbf16, #tpu.memory_space<vmem>>, vector<1x48x128xbf16>
    %28 = vector.shape_cast %27 : vector<1x48x128xbf16> to vector<48x128xbf16>
    %cst_31 = arith.constant dense<0.000000e+00> : vector<72x128xf32>
    %29 = tpu.matmul %26, %28, %cst_31 {dimension_numbers = #tpu.dot_dimension_numbers<[1], [0], [0], [1], [0, 0, 1, 1], [], []>} : vector<72x48xbf16>, vector<48x128xbf16>, vector<72x128xf32> -> vector<72x128xf32>
    %30 = arith.addf %24, %29 : vector<72x128xf32>
    %c0_32 = arith.constant 0 : index
    %c0_33 = arith.constant 0 : index
    %c163 = arith.constant 163 : index
    %c0_34 = arith.constant 0 : index
    %31 = vector.load %arg2[%c0_32, %c0_33, %c163, %c0_34] : memref<1x4x328x48xbf16, #tpu.memory_space<vmem>>, vector<1x1x72x48xbf16>
    %32 = vector.shape_cast %31 : vector<1x1x72x48xbf16> to vector<72x48xbf16>
    %c5 = arith.constant 5 : index
    %c0_35 = arith.constant 0 : index
    %c0_36 = arith.constant 0 : index
    %33 = vector.load %arg3[%c5, %c0_35, %c0_36] : memref<9x48x128xbf16, #tpu.memory_space<vmem>>, vector<1x48x128xbf16>
    %34 = vector.shape_cast %33 : vector<1x48x128xbf16> to vector<48x128xbf16>
    %cst_37 = arith.constant dense<0.000000e+00> : vector<72x128xf32>
    %35 = tpu.matmul %32, %34, %cst_37 {dimension_numbers = #tpu.dot_dimension_numbers<[1], [0], [0], [1], [0, 0, 1, 1], [], []>} : vector<72x48xbf16>, vector<48x128xbf16>, vector<72x128xf32> -> vector<72x128xf32>
    %36 = arith.addf %30, %35 : vector<72x128xf32>
    %c0_38 = arith.constant 0 : index
    %c0_39 = arith.constant 0 : index
    %c9 = arith.constant 9 : index
    %c0_40 = arith.constant 0 : index
    %37 = vector.load %arg2[%c0_38, %c0_39, %c9, %c0_40] : memref<1x4x328x48xbf16, #tpu.memory_space<vmem>>, vector<1x1x72x48xbf16>
    %38 = vector.shape_cast %37 : vector<1x1x72x48xbf16> to vector<72x48xbf16>
    %c6 = arith.constant 6 : index
    %c0_41 = arith.constant 0 : index
    %c0_42 = arith.constant 0 : index
    %39 = vector.load %arg3[%c6, %c0_41, %c0_42] : memref<9x48x128xbf16, #tpu.memory_space<vmem>>, vector<1x48x128xbf16>
    %40 = vector.shape_cast %39 : vector<1x48x128xbf16> to vector<48x128xbf16>
    %cst_43 = arith.constant dense<0.000000e+00> : vector<72x128xf32>
    %41 = tpu.matmul %38, %40, %cst_43 {dimension_numbers = #tpu.dot_dimension_numbers<[1], [0], [0], [1], [0, 0, 1, 1], [], []>} : vector<72x48xbf16>, vector<48x128xbf16>, vector<72x128xf32> -> vector<72x128xf32>
    %42 = arith.addf %36, %41 : vector<72x128xf32>
    %c0_44 = arith.constant 0 : index
    %c0_45 = arith.constant 0 : index
    %c90 = arith.constant 90 : index
    %c0_46 = arith.constant 0 : index
    %43 = vector.load %arg2[%c0_44, %c0_45, %c90, %c0_46] : memref<1x4x328x48xbf16, #tpu.memory_space<vmem>>, vector<1x1x72x48xbf16>
    %44 = vector.shape_cast %43 : vector<1x1x72x48xbf16> to vector<72x48xbf16>
    %c7 = arith.constant 7 : index
    %c0_47 = arith.constant 0 : index
    %c0_48 = arith.constant 0 : index
    %45 = vector.load %arg3[%c7, %c0_47, %c0_48] : memref<9x48x128xbf16, #tpu.memory_space<vmem>>, vector<1x48x128xbf16>
    %46 = vector.shape_cast %45 : vector<1x48x128xbf16> to vector<48x128xbf16>
    %cst_49 = arith.constant dense<0.000000e+00> : vector<72x128xf32>
    %47 = tpu.matmul %44, %46, %cst_49 {dimension_numbers = #tpu.dot_dimension_numbers<[1], [0], [0], [1], [0, 0, 1, 1], [], []>} : vector<72x48xbf16>, vector<48x128xbf16>, vector<72x128xf32> -> vector<72x128xf32>
    %48 = arith.addf %42, %47 : vector<72x128xf32>
    %c0_50 = arith.constant 0 : index
    %c0_51 = arith.constant 0 : index
    %c10 = arith.constant 10 : index
    %c0_52 = arith.constant 0 : index
    %49 = vector.load %arg2[%c0_50, %c0_51, %c10, %c0_52] : memref<1x4x328x48xbf16, #tpu.memory_space<vmem>>, vector<1x1x72x48xbf16>
    %50 = vector.shape_cast %49 : vector<1x1x72x48xbf16> to vector<72x48xbf16>
    %c8 = arith.constant 8 : index
    %c0_53 = arith.constant 0 : index
    %c0_54 = arith.constant 0 : index
    %51 = vector.load %arg3[%c8, %c0_53, %c0_54] : memref<9x48x128xbf16, #tpu.memory_space<vmem>>, vector<1x48x128xbf16>
    %52 = vector.shape_cast %51 : vector<1x48x128xbf16> to vector<48x128xbf16>
    %cst_55 = arith.constant dense<0.000000e+00> : vector<72x128xf32>
    %53 = tpu.matmul %50, %52, %cst_55 {dimension_numbers = #tpu.dot_dimension_numbers<[1], [0], [0], [1], [0, 0, 1, 1], [], []>} : vector<72x48xbf16>, vector<48x128xbf16>, vector<72x128xf32> -> vector<72x128xf32>
    %54 = arith.addf %48, %53 : vector<72x128xf32>
    %c0_56 = arith.constant 0 : index
    %c0_57 = arith.constant 0 : index
    %55 = vector.load %arg4[%c0_56, %c0_57] : memref<1x128xf32, #tpu.memory_space<vmem>>, vector<1x128xf32>
    %56 = vector.broadcast %55 : vector<1x128xf32> to vector<72x128xf32>
    %57 = arith.addf %54, %56 : vector<72x128xf32>
    %cst_58 = arith.constant 0.000000e+00 : f32
    %58 = vector.broadcast %cst_58 : f32 to vector<72x128xf32>
    %59 = arith.cmpf oge, %57, %58 : vector<72x128xf32>
    %cst_59 = arith.constant 2.000000e-01 : f32
    %60 = vector.broadcast %cst_59 : f32 to vector<72x128xf32>
    %61 = arith.mulf %60, %57 : vector<72x128xf32>
    %62 = arith.select %59, %57, %61 : vector<72x128xi1>, vector<72x128xf32>
    %63 = arith.truncf %62 : vector<72x128xf32> to vector<72x128xbf16>
    %c0_60 = arith.constant 0 : index
    %c0_61 = arith.constant 0 : index
    %c0_62 = arith.constant 0 : index
    %c0_63 = arith.constant 0 : index
    %64 = vector.load %arg5[%c0_60, %c0_61, %c0_62, %c0_63] : memref<1x4x72x128xbf16, #tpu.memory_space<vmem>>, vector<1x1x72x128xbf16>
    %65 = vector.shape_cast %64 : vector<1x1x72x128xbf16> to vector<72x128xbf16>
    %66 = vector.shape_cast %63 : vector<72x128xbf16> to vector<1x1x72x128xbf16>
    tpu.vector_store %arg5[%c0_60, %c0_61, %c0_62, %c0_63], %66 {strides = array<i32>} : memref<1x4x72x128xbf16, #tpu.memory_space<vmem>>, vector<1x1x72x128xbf16>,
    %cst_64 = arith.constant 0.000000e+00 : f32
    %67 = vector.broadcast %cst_64 : f32 to vector<72x128xf32>
    %c0_65 = arith.constant 0 : index
    %c1_66 = arith.constant 1 : index
    %c0_67 = arith.constant 0 : index
    %c0_68 = arith.constant 0 : index
    %68 = vector.load %arg2[%c0_65, %c1_66, %c0_67, %c0_68] : memref<1x4x328x48xbf16, #tpu.memory_space<vmem>>, vector<1x1x72x48xbf16>
    %69 = vector.shape_cast %68 : vector<1x1x72x48xbf16> to vector<72x48xbf16>
    %c0_69 = arith.constant 0 : index
    %c0_70 = arith.constant 0 : index
    %c0_71 = arith.constant 0 : index
    %70 = vector.load %arg3[%c0_69, %c0_70, %c0_71] : memref<9x48x128xbf16, #tpu.memory_space<vmem>>, vector<1x48x128xbf16>
    %71 = vector.shape_cast %70 : vector<1x48x128xbf16> to vector<48x128xbf16>
    %cst_72 = arith.constant dense<0.000000e+00> : vector<72x128xf32>
    %72 = tpu.matmul %69, %71, %cst_72 {dimension_numbers = #tpu.dot_dimension_numbers<[1], [0], [0], [1], [0, 0, 1, 1], [], []>} : vector<72x48xbf16>, vector<48x128xbf16>, vector<72x128xf32> -> vector<72x128xf32>
    %73 = arith.addf %67, %72 : vector<72x128xf32>
    %c0_73 = arith.constant 0 : index
    %c1_74 = arith.constant 1 : index
    %c81_75 = arith.constant 81 : index
    %c0_76 = arith.constant 0 : index
    %74 = vector.load %arg2[%c0_73, %c1_74, %c81_75, %c0_76] : memref<1x4x328x48xbf16, #tpu.memory_space<vmem>>, vector<1x1x72x48xbf16>
    %75 = vector.shape_cast %74 : vector<1x1x72x48xbf16> to vector<72x48xbf16>
    %c1_77 = arith.constant 1 : index
    %c0_78 = arith.constant 0 : index
    %c0_79 = arith.constant 0 : index
    %76 = vector.load %arg3[%c1_77, %c0_78, %c0_79] : memref<9x48x128xbf16, #tpu.memory_space<vmem>>, vector<1x48x128xbf16>
    %77 = vector.shape_cast %76 : vector<1x48x128xbf16> to vector<48x128xbf16>
    %cst_80 = arith.constant dense<0.000000e+00> : vector<72x128xf32>
    %78 = tpu.matmul %75, %77, %cst_80 {dimension_numbers = #tpu.dot_dimension_numbers<[1], [0], [0], [1], [0, 0, 1, 1], [], []>} : vector<72x48xbf16>, vector<48x128xbf16>, vector<72x128xf32> -> vector<72x128xf32>
    %79 = arith.addf %73, %78 : vector<72x128xf32>
    %c0_81 = arith.constant 0 : index
    %c1_82 = arith.constant 1 : index
    %c1_83 = arith.constant 1 : index
    %c0_84 = arith.constant 0 : index
    %80 = vector.load %arg2[%c0_81, %c1_82, %c1_83, %c0_84] : memref<1x4x328x48xbf16, #tpu.memory_space<vmem>>, vector<1x1x72x48xbf16>
    %81 = vector.shape_cast %80 : vector<1x1x72x48xbf16> to vector<72x48xbf16>
    %c2_85 = arith.constant 2 : index
    %c0_86 = arith.constant 0 : index
    %c0_87 = arith.constant 0 : index
    %82 = vector.load %arg3[%c2_85, %c0_86, %c0_87] : memref<9x48x128xbf16, #tpu.memory_space<vmem>>, vector<1x48x128xbf16>
    %83 = vector.shape_cast %82 : vector<1x48x128xbf16> to vector<48x128xbf16>
    %cst_88 = arith.constant dense<0.000000e+00> : vector<72x128xf32>
    %84 = tpu.matmul %81, %83, %cst_88 {dimension_numbers = #tpu.dot_dimension_numbers<[1], [0], [0], [1], [0, 0, 1, 1], [], []>} : vector<72x48xbf16>, vector<48x128xbf16>, vector<72x128xf32> -> vector<72x128xf32>
    %85 = arith.addf %79, %84 : vector<72x128xf32>
    %c0_89 = arith.constant 0 : index
    %c1_90 = arith.constant 1 : index
    %c162_91 = arith.constant 162 : index
    %c0_92 = arith.constant 0 : index
    %86 = vector.load %arg2[%c0_89, %c1_90, %c162_91, %c0_92] : memref<1x4x328x48xbf16, #tpu.memory_space<vmem>>, vector<1x1x72x48xbf16>
    %87 = vector.shape_cast %86 : vector<1x1x72x48xbf16> to vector<72x48xbf16>
    %c3_93 = arith.constant 3 : index
    %c0_94 = arith.constant 0 : index
    %c0_95 = arith.constant 0 : index
    %88 = vector.load %arg3[%c3_93, %c0_94, %c0_95] : memref<9x48x128xbf16, #tpu.memory_space<vmem>>, vector<1x48x128xbf16>
    %89 = vector.shape_cast %88 : vector<1x48x128xbf16> to vector<48x128xbf16>
    %cst_96 = arith.constant dense<0.000000e+00> : vector<72x128xf32>
    %90 = tpu.matmul %87, %89, %cst_96 {dimension_numbers = #tpu.dot_dimension_numbers<[1], [0], [0], [1], [0, 0, 1, 1], [], []>} : vector<72x48xbf16>, vector<48x128xbf16>, vector<72x128xf32> -> vector<72x128xf32>
    %91 = arith.addf %85, %90 : vector<72x128xf32>
    %c0_97 = arith.constant 0 : index
    %c1_98 = arith.constant 1 : index
    %c243_99 = arith.constant 243 : index
    %c0_100 = arith.constant 0 : index
    %92 = vector.load %arg2[%c0_97, %c1_98, %c243_99, %c0_100] : memref<1x4x328x48xbf16, #tpu.memory_space<vmem>>, vector<1x1x72x48xbf16>
    %93 = vector.shape_cast %92 : vector<1x1x72x48xbf16> to vector<72x48xbf16>
    %c4_101 = arith.constant 4 : index
    %c0_102 = arith.constant 0 : index
    %c0_103 = arith.constant 0 : index
    %94 = vector.load %arg3[%c4_101, %c0_102, %c0_103] : memref<9x48x128xbf16, #tpu.memory_space<vmem>>, vector<1x48x128xbf16>
    %95 = vector.shape_cast %94 : vector<1x48x128xbf16> to vector<48x128xbf16>
    %cst_104 = arith.constant dense<0.000000e+00> : vector<72x128xf32>
    %96 = tpu.matmul %93, %95, %cst_104 {dimension_numbers = #tpu.dot_dimension_numbers<[1], [0], [0], [1], [0, 0, 1, 1], [], []>} : vector<72x48xbf16>, vector<48x128xbf16>, vector<72x128xf32> -> vector<72x128xf32>
    %97 = arith.addf %91, %96 : vector<72x128xf32>
    %c0_105 = arith.constant 0 : index
    %c1_106 = arith.constant 1 : index
    %c163_107 = arith.constant 163 : index
    %c0_108 = arith.constant 0 : index
    %98 = vector.load %arg2[%c0_105, %c1_106, %c163_107, %c0_108] : memref<1x4x328x48xbf16, #tpu.memory_space<vmem>>, vector<1x1x72x48xbf16>
    %99 = vector.shape_cast %98 : vector<1x1x72x48xbf16> to vector<72x48xbf16>
    %c5_109 = arith.constant 5 : index
    %c0_110 = arith.constant 0 : index
    %c0_111 = arith.constant 0 : index
    %100 = vector.load %arg3[%c5_109, %c0_110, %c0_111] : memref<9x48x128xbf16, #tpu.memory_space<vmem>>, vector<1x48x128xbf16>
    %101 = vector.shape_cast %100 : vector<1x48x128xbf16> to vector<48x128xbf16>
    %cst_112 = arith.constant dense<0.000000e+00> : vector<72x128xf32>
    %102 = tpu.matmul %99, %101, %cst_112 {dimension_numbers = #tpu.dot_dimension_numbers<[1], [0], [0], [1], [0, 0, 1, 1], [], []>} : vector<72x48xbf16>, vector<48x128xbf16>, vector<72x128xf32> -> vector<72x128xf32>
    %103 = arith.addf %97, %102 : vector<72x128xf32>
    %c0_113 = arith.constant 0 : index
    %c1_114 = arith.constant 1 : index
    %c9_115 = arith.constant 9 : index
    %c0_116 = arith.constant 0 : index
    %104 = vector.load %arg2[%c0_113, %c1_114, %c9_115, %c0_116] : memref<1x4x328x48xbf16, #tpu.memory_space<vmem>>, vector<1x1x72x48xbf16>
    %105 = vector.shape_cast %104 : vector<1x1x72x48xbf16> to vector<72x48xbf16>
    %c6_117 = arith.constant 6 : index
    %c0_118 = arith.constant 0 : index
    %c0_119 = arith.constant 0 : index
    %106 = vector.load %arg3[%c6_117, %c0_118, %c0_119] : memref<9x48x128xbf16, #tpu.memory_space<vmem>>, vector<1x48x128xbf16>
    %107 = vector.shape_cast %106 : vector<1x48x128xbf16> to vector<48x128xbf16>
    %cst_120 = arith.constant dense<0.000000e+00> : vector<72x128xf32>
    %108 = tpu.matmul %105, %107, %cst_120 {dimension_numbers = #tpu.dot_dimension_numbers<[1], [0], [0], [1], [0, 0, 1, 1], [], []>} : vector<72x48xbf16>, vector<48x128xbf16>, vector<72x128xf32> -> vector<72x128xf32>
    %109 = arith.addf %103, %108 : vector<72x128xf32>
    %c0_121 = arith.constant 0 : index
    %c1_122 = arith.constant 1 : index
    %c90_123 = arith.constant 90 : index
    %c0_124 = arith.constant 0 : index
    %110 = vector.load %arg2[%c0_121, %c1_122, %c90_123, %c0_124] : memref<1x4x328x48xbf16, #tpu.memory_space<vmem>>, vector<1x1x72x48xbf16>
    %111 = vector.shape_cast %110 : vector<1x1x72x48xbf16> to vector<72x48xbf16>
    %c7_125 = arith.constant 7 : index
    %c0_126 = arith.constant 0 : index
    %c0_127 = arith.constant 0 : index
    %112 = vector.load %arg3[%c7_125, %c0_126, %c0_127] : memref<9x48x128xbf16, #tpu.memory_space<vmem>>, vector<1x48x128xbf16>
    %113 = vector.shape_cast %112 : vector<1x48x128xbf16> to vector<48x128xbf16>
    %cst_128 = arith.constant dense<0.000000e+00> : vector<72x128xf32>
    %114 = tpu.matmul %111, %113, %cst_128 {dimension_numbers = #tpu.dot_dimension_numbers<[1], [0], [0], [1], [0, 0, 1, 1], [], []>} : vector<72x48xbf16>, vector<48x128xbf16>, vector<72x128xf32> -> vector<72x128xf32>
    %115 = arith.addf %109, %114 : vector<72x128xf32>
    %c0_129 = arith.constant 0 : index
    %c1_130 = arith.constant 1 : index
    %c10_131 = arith.constant 10 : index
    %c0_132 = arith.constant 0 : index
    %116 = vector.load %arg2[%c0_129, %c1_130, %c10_131, %c0_132] : memref<1x4x328x48xbf16, #tpu.memory_space<vmem>>, vector<1x1x72x48xbf16>
    %117 = vector.shape_cast %116 : vector<1x1x72x48xbf16> to vector<72x48xbf16>
    %c8_133 = arith.constant 8 : index
    %c0_134 = arith.constant 0 : index
    %c0_135 = arith.constant 0 : index
    %118 = vector.load %arg3[%c8_133, %c0_134, %c0_135] : memref<9x48x128xbf16, #tpu.memory_space<vmem>>, vector<1x48x128xbf16>
    %119 = vector.shape_cast %118 : vector<1x48x128xbf16> to vector<48x128xbf16>
    %cst_136 = arith.constant dense<0.000000e+00> : vector<72x128xf32>
    %120 = tpu.matmul %117, %119, %cst_136 {dimension_numbers = #tpu.dot_dimension_numbers<[1], [0], [0], [1], [0, 0, 1, 1], [], []>} : vector<72x48xbf16>, vector<48x128xbf16>, vector<72x128xf32> -> vector<72x128xf32>
    %121 = arith.addf %115, %120 : vector<72x128xf32>
    %c0_137 = arith.constant 0 : index
    %c0_138 = arith.constant 0 : index
    %122 = vector.load %arg4[%c0_137, %c0_138] : memref<1x128xf32, #tpu.memory_space<vmem>>, vector<1x128xf32>
    %123 = vector.broadcast %122 : vector<1x128xf32> to vector<72x128xf32>
    %124 = arith.addf %121, %123 : vector<72x128xf32>
    %cst_139 = arith.constant 0.000000e+00 : f32
    %125 = vector.broadcast %cst_139 : f32 to vector<72x128xf32>
    %126 = arith.cmpf oge, %124, %125 : vector<72x128xf32>
    %cst_140 = arith.constant 2.000000e-01 : f32
    %127 = vector.broadcast %cst_140 : f32 to vector<72x128xf32>
    %128 = arith.mulf %127, %124 : vector<72x128xf32>
    %129 = arith.select %126, %124, %128 : vector<72x128xi1>, vector<72x128xf32>
    %130 = arith.truncf %129 : vector<72x128xf32> to vector<72x128xbf16>
    %c0_141 = arith.constant 0 : index
    %c1_142 = arith.constant 1 : index
    %c0_143 = arith.constant 0 : index
    %c0_144 = arith.constant 0 : index
    %131 = vector.load %arg5[%c0_141, %c1_142, %c0_143, %c0_144] : memref<1x4x72x128xbf16, #tpu.memory_space<vmem>>, vector<1x1x72x128xbf16>
    %132 = vector.shape_cast %131 : vector<1x1x72x128xbf16> to vector<72x128xbf16>
    %133 = vector.shape_cast %130 : vector<72x128xbf16> to vector<1x1x72x128xbf16>
    tpu.vector_store %arg5[%c0_141, %c1_142, %c0_143, %c0_144], %133 {strides = array<i32>} : memref<1x4x72x128xbf16, #tpu.memory_space<vmem>>, vector<1x1x72x128xbf16>,
    %cst_145 = arith.constant 0.000000e+00 : f32
    %134 = vector.broadcast %cst_145 : f32 to vector<72x128xf32>
    %c0_146 = arith.constant 0 : index
    %c2_147 = arith.constant 2 : index
    %c0_148 = arith.constant 0 : index
    %c0_149 = arith.constant 0 : index
    %135 = vector.load %arg2[%c0_146, %c2_147, %c0_148, %c0_149] : memref<1x4x328x48xbf16, #tpu.memory_space<vmem>>, vector<1x1x72x48xbf16>
    %136 = vector.shape_cast %135 : vector<1x1x72x48xbf16> to vector<72x48xbf16>
    %c0_150 = arith.constant 0 : index
    %c0_151 = arith.constant 0 : index
    %c0_152 = arith.constant 0 : index
    %137 = vector.load %arg3[%c0_150, %c0_151, %c0_152] : memref<9x48x128xbf16, #tpu.memory_space<vmem>>, vector<1x48x128xbf16>
    %138 = vector.shape_cast %137 : vector<1x48x128xbf16> to vector<48x128xbf16>
    %cst_153 = arith.constant dense<0.000000e+00> : vector<72x128xf32>
    %139 = tpu.matmul %136, %138, %cst_153 {dimension_numbers = #tpu.dot_dimension_numbers<[1], [0], [0], [1], [0, 0, 1, 1], [], []>} : vector<72x48xbf16>, vector<48x128xbf16>, vector<72x128xf32> -> vector<72x128xf32>
    %140 = arith.addf %134, %139 : vector<72x128xf32>
    %c0_154 = arith.constant 0 : index
    %c2_155 = arith.constant 2 : index
    %c81_156 = arith.constant 81 : index
    %c0_157 = arith.constant 0 : index
    %141 = vector.load %arg2[%c0_154, %c2_155, %c81_156, %c0_157] : memref<1x4x328x48xbf16, #tpu.memory_space<vmem>>, vector<1x1x72x48xbf16>
    %142 = vector.shape_cast %141 : vector<1x1x72x48xbf16> to vector<72x48xbf16>
    %c1_158 = arith.constant 1 : index
    %c0_159 = arith.constant 0 : index
    %c0_160 = arith.constant 0 : index
    %143 = vector.load %arg3[%c1_158, %c0_159, %c0_160] : memref<9x48x128xbf16, #tpu.memory_space<vmem>>, vector<1x48x128xbf16>
    %144 = vector.shape_cast %143 : vector<1x48x128xbf16> to vector<48x128xbf16>
    %cst_161 = arith.constant dense<0.000000e+00> : vector<72x128xf32>
    %145 = tpu.matmul %142, %144, %cst_161 {dimension_numbers = #tpu.dot_dimension_numbers<[1], [0], [0], [1], [0, 0, 1, 1], [], []>} : vector<72x48xbf16>, vector<48x128xbf16>, vector<72x128xf32> -> vector<72x128xf32>
    %146 = arith.addf %140, %145 : vector<72x128xf32>
    %c0_162 = arith.constant 0 : index
    %c2_163 = arith.constant 2 : index
    %c1_164 = arith.constant 1 : index
    %c0_165 = arith.constant 0 : index
    %147 = vector.load %arg2[%c0_162, %c2_163, %c1_164, %c0_165] : memref<1x4x328x48xbf16, #tpu.memory_space<vmem>>, vector<1x1x72x48xbf16>
    %148 = vector.shape_cast %147 : vector<1x1x72x48xbf16> to vector<72x48xbf16>
    %c2_166 = arith.constant 2 : index
    %c0_167 = arith.constant 0 : index
    %c0_168 = arith.constant 0 : index
    %149 = vector.load %arg3[%c2_166, %c0_167, %c0_168] : memref<9x48x128xbf16, #tpu.memory_space<vmem>>, vector<1x48x128xbf16>
    %150 = vector.shape_cast %149 : vector<1x48x128xbf16> to vector<48x128xbf16>
    %cst_169 = arith.constant dense<0.000000e+00> : vector<72x128xf32>
    %151 = tpu.matmul %148, %150, %cst_169 {dimension_numbers = #tpu.dot_dimension_numbers<[1], [0], [0], [1], [0, 0, 1, 1], [], []>} : vector<72x48xbf16>, vector<48x128xbf16>, vector<72x128xf32> -> vector<72x128xf32>
    %152 = arith.addf %146, %151 : vector<72x128xf32>
    %c0_170 = arith.constant 0 : index
    %c2_171 = arith.constant 2 : index
    %c162_172 = arith.constant 162 : index
    %c0_173 = arith.constant 0 : index
    %153 = vector.load %arg2[%c0_170, %c2_171, %c162_172, %c0_173] : memref<1x4x328x48xbf16, #tpu.memory_space<vmem>>, vector<1x1x72x48xbf16>
    %154 = vector.shape_cast %153 : vector<1x1x72x48xbf16> to vector<72x48xbf16>
    %c3_174 = arith.constant 3 : index
    %c0_175 = arith.constant 0 : index
    %c0_176 = arith.constant 0 : index
    %155 = vector.load %arg3[%c3_174, %c0_175, %c0_176] : memref<9x48x128xbf16, #tpu.memory_space<vmem>>, vector<1x48x128xbf16>
    %156 = vector.shape_cast %155 : vector<1x48x128xbf16> to vector<48x128xbf16>
    %cst_177 = arith.constant dense<0.000000e+00> : vector<72x128xf32>
    %157 = tpu.matmul %154, %156, %cst_177 {dimension_numbers = #tpu.dot_dimension_numbers<[1], [0], [0], [1], [0, 0, 1, 1], [], []>} : vector<72x48xbf16>, vector<48x128xbf16>, vector<72x128xf32> -> vector<72x128xf32>
    %158 = arith.addf %152, %157 : vector<72x128xf32>
    %c0_178 = arith.constant 0 : index
    %c2_179 = arith.constant 2 : index
    %c243_180 = arith.constant 243 : index
    %c0_181 = arith.constant 0 : index
    %159 = vector.load %arg2[%c0_178, %c2_179, %c243_180, %c0_181] : memref<1x4x328x48xbf16, #tpu.memory_space<vmem>>, vector<1x1x72x48xbf16>
    %160 = vector.shape_cast %159 : vector<1x1x72x48xbf16> to vector<72x48xbf16>
    %c4_182 = arith.constant 4 : index
    %c0_183 = arith.constant 0 : index
    %c0_184 = arith.constant 0 : index
    %161 = vector.load %arg3[%c4_182, %c0_183, %c0_184] : memref<9x48x128xbf16, #tpu.memory_space<vmem>>, vector<1x48x128xbf16>
    %162 = vector.shape_cast %161 : vector<1x48x128xbf16> to vector<48x128xbf16>
    %cst_185 = arith.constant dense<0.000000e+00> : vector<72x128xf32>
    %163 = tpu.matmul %160, %162, %cst_185 {dimension_numbers = #tpu.dot_dimension_numbers<[1], [0], [0], [1], [0, 0, 1, 1], [], []>} : vector<72x48xbf16>, vector<48x128xbf16>, vector<72x128xf32> -> vector<72x128xf32>
    %164 = arith.addf %158, %163 : vector<72x128xf32>
    %c0_186 = arith.constant 0 : index
    %c2_187 = arith.constant 2 : index
    %c163_188 = arith.constant 163 : index
    %c0_189 = arith.constant 0 : index
    %165 = vector.load %arg2[%c0_186, %c2_187, %c163_188, %c0_189] : memref<1x4x328x48xbf16, #tpu.memory_space<vmem>>, vector<1x1x72x48xbf16>
    %166 = vector.shape_cast %165 : vector<1x1x72x48xbf16> to vector<72x48xbf16>
    %c5_190 = arith.constant 5 : index
    %c0_191 = arith.constant 0 : index
    %c0_192 = arith.constant 0 : index
    %167 = vector.load %arg3[%c5_190, %c0_191, %c0_192] : memref<9x48x128xbf16, #tpu.memory_space<vmem>>, vector<1x48x128xbf16>
    %168 = vector.shape_cast %167 : vector<1x48x128xbf16> to vector<48x128xbf16>
    %cst_193 = arith.constant dense<0.000000e+00> : vector<72x128xf32>
    %169 = tpu.matmul %166, %168, %cst_193 {dimension_numbers = #tpu.dot_dimension_numbers<[1], [0], [0], [1], [0, 0, 1, 1], [], []>} : vector<72x48xbf16>, vector<48x128xbf16>, vector<72x128xf32> -> vector<72x128xf32>
    %170 = arith.addf %164, %169 : vector<72x128xf32>
    %c0_194 = arith.constant 0 : index
    %c2_195 = arith.constant 2 : index
    %c9_196 = arith.constant 9 : index
    %c0_197 = arith.constant 0 : index
    %171 = vector.load %arg2[%c0_194, %c2_195, %c9_196, %c0_197] : memref<1x4x328x48xbf16, #tpu.memory_space<vmem>>, vector<1x1x72x48xbf16>
    %172 = vector.shape_cast %171 : vector<1x1x72x48xbf16> to vector<72x48xbf16>
    %c6_198 = arith.constant 6 : index
    %c0_199 = arith.constant 0 : index
    %c0_200 = arith.constant 0 : index
    %173 = vector.load %arg3[%c6_198, %c0_199, %c0_200] : memref<9x48x128xbf16, #tpu.memory_space<vmem>>, vector<1x48x128xbf16>
    %174 = vector.shape_cast %173 : vector<1x48x128xbf16> to vector<48x128xbf16>
    %cst_201 = arith.constant dense<0.000000e+00> : vector<72x128xf32>
    %175 = tpu.matmul %172, %174, %cst_201 {dimension_numbers = #tpu.dot_dimension_numbers<[1], [0], [0], [1], [0, 0, 1, 1], [], []>} : vector<72x48xbf16>, vector<48x128xbf16>, vector<72x128xf32> -> vector<72x128xf32>
    %176 = arith.addf %170, %175 : vector<72x128xf32>
    %c0_202 = arith.constant 0 : index
    %c2_203 = arith.constant 2 : index
    %c90_204 = arith.constant 90 : index
    %c0_205 = arith.constant 0 : index
    %177 = vector.load %arg2[%c0_202, %c2_203, %c90_204, %c0_205] : memref<1x4x328x48xbf16, #tpu.memory_space<vmem>>, vector<1x1x72x48xbf16>
    %178 = vector.shape_cast %177 : vector<1x1x72x48xbf16> to vector<72x48xbf16>
    %c7_206 = arith.constant 7 : index
    %c0_207 = arith.constant 0 : index
    %c0_208 = arith.constant 0 : index
    %179 = vector.load %arg3[%c7_206, %c0_207, %c0_208] : memref<9x48x128xbf16, #tpu.memory_space<vmem>>, vector<1x48x128xbf16>
    %180 = vector.shape_cast %179 : vector<1x48x128xbf16> to vector<48x128xbf16>
    %cst_209 = arith.constant dense<0.000000e+00> : vector<72x128xf32>
    %181 = tpu.matmul %178, %180, %cst_209 {dimension_numbers = #tpu.dot_dimension_numbers<[1], [0], [0], [1], [0, 0, 1, 1], [], []>} : vector<72x48xbf16>, vector<48x128xbf16>, vector<72x128xf32> -> vector<72x128xf32>
    %182 = arith.addf %176, %181 : vector<72x128xf32>
    %c0_210 = arith.constant 0 : index
    %c2_211 = arith.constant 2 : index
    %c10_212 = arith.constant 10 : index
    %c0_213 = arith.constant 0 : index
    %183 = vector.load %arg2[%c0_210, %c2_211, %c10_212, %c0_213] : memref<1x4x328x48xbf16, #tpu.memory_space<vmem>>, vector<1x1x72x48xbf16>
    %184 = vector.shape_cast %183 : vector<1x1x72x48xbf16> to vector<72x48xbf16>
    %c8_214 = arith.constant 8 : index
    %c0_215 = arith.constant 0 : index
    %c0_216 = arith.constant 0 : index
    %185 = vector.load %arg3[%c8_214, %c0_215, %c0_216] : memref<9x48x128xbf16, #tpu.memory_space<vmem>>, vector<1x48x128xbf16>
    %186 = vector.shape_cast %185 : vector<1x48x128xbf16> to vector<48x128xbf16>
    %cst_217 = arith.constant dense<0.000000e+00> : vector<72x128xf32>
    %187 = tpu.matmul %184, %186, %cst_217 {dimension_numbers = #tpu.dot_dimension_numbers<[1], [0], [0], [1], [0, 0, 1, 1], [], []>} : vector<72x48xbf16>, vector<48x128xbf16>, vector<72x128xf32> -> vector<72x128xf32>
    %188 = arith.addf %182, %187 : vector<72x128xf32>
    %c0_218 = arith.constant 0 : index
    %c0_219 = arith.constant 0 : index
    %189 = vector.load %arg4[%c0_218, %c0_219] : memref<1x128xf32, #tpu.memory_space<vmem>>, vector<1x128xf32>
    %190 = vector.broadcast %189 : vector<1x128xf32> to vector<72x128xf32>
    %191 = arith.addf %188, %190 : vector<72x128xf32>
    %cst_220 = arith.constant 0.000000e+00 : f32
    %192 = vector.broadcast %cst_220 : f32 to vector<72x128xf32>
    %193 = arith.cmpf oge, %191, %192 : vector<72x128xf32>
    %cst_221 = arith.constant 2.000000e-01 : f32
    %194 = vector.broadcast %cst_221 : f32 to vector<72x128xf32>
    %195 = arith.mulf %194, %191 : vector<72x128xf32>
    %196 = arith.select %193, %191, %195 : vector<72x128xi1>, vector<72x128xf32>
    %197 = arith.truncf %196 : vector<72x128xf32> to vector<72x128xbf16>
    %c0_222 = arith.constant 0 : index
    %c2_223 = arith.constant 2 : index
    %c0_224 = arith.constant 0 : index
    %c0_225 = arith.constant 0 : index
    %198 = vector.load %arg5[%c0_222, %c2_223, %c0_224, %c0_225] : memref<1x4x72x128xbf16, #tpu.memory_space<vmem>>, vector<1x1x72x128xbf16>
    %199 = vector.shape_cast %198 : vector<1x1x72x128xbf16> to vector<72x128xbf16>
    %200 = vector.shape_cast %197 : vector<72x128xbf16> to vector<1x1x72x128xbf16>
    tpu.vector_store %arg5[%c0_222, %c2_223, %c0_224, %c0_225], %200 {strides = array<i32>} : memref<1x4x72x128xbf16, #tpu.memory_space<vmem>>, vector<1x1x72x128xbf16>,
    %cst_226 = arith.constant 0.000000e+00 : f32
    %201 = vector.broadcast %cst_226 : f32 to vector<72x128xf32>
    %c0_227 = arith.constant 0 : index
    %c3_228 = arith.constant 3 : index
    %c0_229 = arith.constant 0 : index
    %c0_230 = arith.constant 0 : index
    %202 = vector.load %arg2[%c0_227, %c3_228, %c0_229, %c0_230] : memref<1x4x328x48xbf16, #tpu.memory_space<vmem>>, vector<1x1x72x48xbf16>
    %203 = vector.shape_cast %202 : vector<1x1x72x48xbf16> to vector<72x48xbf16>
    %c0_231 = arith.constant 0 : index
    %c0_232 = arith.constant 0 : index
    %c0_233 = arith.constant 0 : index
    %204 = vector.load %arg3[%c0_231, %c0_232, %c0_233] : memref<9x48x128xbf16, #tpu.memory_space<vmem>>, vector<1x48x128xbf16>
    %205 = vector.shape_cast %204 : vector<1x48x128xbf16> to vector<48x128xbf16>
    %cst_234 = arith.constant dense<0.000000e+00> : vector<72x128xf32>
    %206 = tpu.matmul %203, %205, %cst_234 {dimension_numbers = #tpu.dot_dimension_numbers<[1], [0], [0], [1], [0, 0, 1, 1], [], []>} : vector<72x48xbf16>, vector<48x128xbf16>, vector<72x128xf32> -> vector<72x128xf32>
    %207 = arith.addf %201, %206 : vector<72x128xf32>
    %c0_235 = arith.constant 0 : index
    %c3_236 = arith.constant 3 : index
    %c81_237 = arith.constant 81 : index
    %c0_238 = arith.constant 0 : index
    %208 = vector.load %arg2[%c0_235, %c3_236, %c81_237, %c0_238] : memref<1x4x328x48xbf16, #tpu.memory_space<vmem>>, vector<1x1x72x48xbf16>
    %209 = vector.shape_cast %208 : vector<1x1x72x48xbf16> to vector<72x48xbf16>
    %c1_239 = arith.constant 1 : index
    %c0_240 = arith.constant 0 : index
    %c0_241 = arith.constant 0 : index
    %210 = vector.load %arg3[%c1_239, %c0_240, %c0_241] : memref<9x48x128xbf16, #tpu.memory_space<vmem>>, vector<1x48x128xbf16>
    %211 = vector.shape_cast %210 : vector<1x48x128xbf16> to vector<48x128xbf16>
    %cst_242 = arith.constant dense<0.000000e+00> : vector<72x128xf32>
    %212 = tpu.matmul %209, %211, %cst_242 {dimension_numbers = #tpu.dot_dimension_numbers<[1], [0], [0], [1], [0, 0, 1, 1], [], []>} : vector<72x48xbf16>, vector<48x128xbf16>, vector<72x128xf32> -> vector<72x128xf32>
    %213 = arith.addf %207, %212 : vector<72x128xf32>
    %c0_243 = arith.constant 0 : index
    %c3_244 = arith.constant 3 : index
    %c1_245 = arith.constant 1 : index
    %c0_246 = arith.constant 0 : index
    %214 = vector.load %arg2[%c0_243, %c3_244, %c1_245, %c0_246] : memref<1x4x328x48xbf16, #tpu.memory_space<vmem>>, vector<1x1x72x48xbf16>
    %215 = vector.shape_cast %214 : vector<1x1x72x48xbf16> to vector<72x48xbf16>
    %c2_247 = arith.constant 2 : index
    %c0_248 = arith.constant 0 : index
    %c0_249 = arith.constant 0 : index
    %216 = vector.load %arg3[%c2_247, %c0_248, %c0_249] : memref<9x48x128xbf16, #tpu.memory_space<vmem>>, vector<1x48x128xbf16>
    %217 = vector.shape_cast %216 : vector<1x48x128xbf16> to vector<48x128xbf16>
    %cst_250 = arith.constant dense<0.000000e+00> : vector<72x128xf32>
    %218 = tpu.matmul %215, %217, %cst_250 {dimension_numbers = #tpu.dot_dimension_numbers<[1], [0], [0], [1], [0, 0, 1, 1], [], []>} : vector<72x48xbf16>, vector<48x128xbf16>, vector<72x128xf32> -> vector<72x128xf32>
    %219 = arith.addf %213, %218 : vector<72x128xf32>
    %c0_251 = arith.constant 0 : index
    %c3_252 = arith.constant 3 : index
    %c162_253 = arith.constant 162 : index
    %c0_254 = arith.constant 0 : index
    %220 = vector.load %arg2[%c0_251, %c3_252, %c162_253, %c0_254] : memref<1x4x328x48xbf16, #tpu.memory_space<vmem>>, vector<1x1x72x48xbf16>
    %221 = vector.shape_cast %220 : vector<1x1x72x48xbf16> to vector<72x48xbf16>
    %c3_255 = arith.constant 3 : index
    %c0_256 = arith.constant 0 : index
    %c0_257 = arith.constant 0 : index
    %222 = vector.load %arg3[%c3_255, %c0_256, %c0_257] : memref<9x48x128xbf16, #tpu.memory_space<vmem>>, vector<1x48x128xbf16>
    %223 = vector.shape_cast %222 : vector<1x48x128xbf16> to vector<48x128xbf16>
    %cst_258 = arith.constant dense<0.000000e+00> : vector<72x128xf32>
    %224 = tpu.matmul %221, %223, %cst_258 {dimension_numbers = #tpu.dot_dimension_numbers<[1], [0], [0], [1], [0, 0, 1, 1], [], []>} : vector<72x48xbf16>, vector<48x128xbf16>, vector<72x128xf32> -> vector<72x128xf32>
    %225 = arith.addf %219, %224 : vector<72x128xf32>
    %c0_259 = arith.constant 0 : index
    %c3_260 = arith.constant 3 : index
    %c243_261 = arith.constant 243 : index
    %c0_262 = arith.constant 0 : index
    %226 = vector.load %arg2[%c0_259, %c3_260, %c243_261, %c0_262] : memref<1x4x328x48xbf16, #tpu.memory_space<vmem>>, vector<1x1x72x48xbf16>
    %227 = vector.shape_cast %226 : vector<1x1x72x48xbf16> to vector<72x48xbf16>
    %c4_263 = arith.constant 4 : index
    %c0_264 = arith.constant 0 : index
    %c0_265 = arith.constant 0 : index
    %228 = vector.load %arg3[%c4_263, %c0_264, %c0_265] : memref<9x48x128xbf16, #tpu.memory_space<vmem>>, vector<1x48x128xbf16>
    %229 = vector.shape_cast %228 : vector<1x48x128xbf16> to vector<48x128xbf16>
    %cst_266 = arith.constant dense<0.000000e+00> : vector<72x128xf32>
    %230 = tpu.matmul %227, %229, %cst_266 {dimension_numbers = #tpu.dot_dimension_numbers<[1], [0], [0], [1], [0, 0, 1, 1], [], []>} : vector<72x48xbf16>, vector<48x128xbf16>, vector<72x128xf32> -> vector<72x128xf32>
    %231 = arith.addf %225, %230 : vector<72x128xf32>
    %c0_267 = arith.constant 0 : index
    %c3_268 = arith.constant 3 : index
    %c163_269 = arith.constant 163 : index
    %c0_270 = arith.constant 0 : index
    %232 = vector.load %arg2[%c0_267, %c3_268, %c163_269, %c0_270] : memref<1x4x328x48xbf16, #tpu.memory_space<vmem>>, vector<1x1x72x48xbf16>
    %233 = vector.shape_cast %232 : vector<1x1x72x48xbf16> to vector<72x48xbf16>
    %c5_271 = arith.constant 5 : index
    %c0_272 = arith.constant 0 : index
    %c0_273 = arith.constant 0 : index
    %234 = vector.load %arg3[%c5_271, %c0_272, %c0_273] : memref<9x48x128xbf16, #tpu.memory_space<vmem>>, vector<1x48x128xbf16>
    %235 = vector.shape_cast %234 : vector<1x48x128xbf16> to vector<48x128xbf16>
    %cst_274 = arith.constant dense<0.000000e+00> : vector<72x128xf32>
    %236 = tpu.matmul %233, %235, %cst_274 {dimension_numbers = #tpu.dot_dimension_numbers<[1], [0], [0], [1], [0, 0, 1, 1], [], []>} : vector<72x48xbf16>, vector<48x128xbf16>, vector<72x128xf32> -> vector<72x128xf32>
    %237 = arith.addf %231, %236 : vector<72x128xf32>
    %c0_275 = arith.constant 0 : index
    %c3_276 = arith.constant 3 : index
    %c9_277 = arith.constant 9 : index
    %c0_278 = arith.constant 0 : index
    %238 = vector.load %arg2[%c0_275, %c3_276, %c9_277, %c0_278] : memref<1x4x328x48xbf16, #tpu.memory_space<vmem>>, vector<1x1x72x48xbf16>
    %239 = vector.shape_cast %238 : vector<1x1x72x48xbf16> to vector<72x48xbf16>
    %c6_279 = arith.constant 6 : index
    %c0_280 = arith.constant 0 : index
    %c0_281 = arith.constant 0 : index
    %240 = vector.load %arg3[%c6_279, %c0_280, %c0_281] : memref<9x48x128xbf16, #tpu.memory_space<vmem>>, vector<1x48x128xbf16>
    %241 = vector.shape_cast %240 : vector<1x48x128xbf16> to vector<48x128xbf16>
    %cst_282 = arith.constant dense<0.000000e+00> : vector<72x128xf32>
    %242 = tpu.matmul %239, %241, %cst_282 {dimension_numbers = #tpu.dot_dimension_numbers<[1], [0], [0], [1], [0, 0, 1, 1], [], []>} : vector<72x48xbf16>, vector<48x128xbf16>, vector<72x128xf32> -> vector<72x128xf32>
    %243 = arith.addf %237, %242 : vector<72x128xf32>
    %c0_283 = arith.constant 0 : index
    %c3_284 = arith.constant 3 : index
    %c90_285 = arith.constant 90 : index
    %c0_286 = arith.constant 0 : index
    %244 = vector.load %arg2[%c0_283, %c3_284, %c90_285, %c0_286] : memref<1x4x328x48xbf16, #tpu.memory_space<vmem>>, vector<1x1x72x48xbf16>
    %245 = vector.shape_cast %244 : vector<1x1x72x48xbf16> to vector<72x48xbf16>
    %c7_287 = arith.constant 7 : index
    %c0_288 = arith.constant 0 : index
    %c0_289 = arith.constant 0 : index
    %246 = vector.load %arg3[%c7_287, %c0_288, %c0_289] : memref<9x48x128xbf16, #tpu.memory_space<vmem>>, vector<1x48x128xbf16>
    %247 = vector.shape_cast %246 : vector<1x48x128xbf16> to vector<48x128xbf16>
    %cst_290 = arith.constant dense<0.000000e+00> : vector<72x128xf32>
    %248 = tpu.matmul %245, %247, %cst_290 {dimension_numbers = #tpu.dot_dimension_numbers<[1], [0], [0], [1], [0, 0, 1, 1], [], []>} : vector<72x48xbf16>, vector<48x128xbf16>, vector<72x128xf32> -> vector<72x128xf32>
    %249 = arith.addf %243, %248 : vector<72x128xf32>
    %c0_291 = arith.constant 0 : index
    %c3_292 = arith.constant 3 : index
    %c10_293 = arith.constant 10 : index
    %c0_294 = arith.constant 0 : index
    %250 = vector.load %arg2[%c0_291, %c3_292, %c10_293, %c0_294] : memref<1x4x328x48xbf16, #tpu.memory_space<vmem>>, vector<1x1x72x48xbf16>
    %251 = vector.shape_cast %250 : vector<1x1x72x48xbf16> to vector<72x48xbf16>
    %c8_295 = arith.constant 8 : index
    %c0_296 = arith.constant 0 : index
    %c0_297 = arith.constant 0 : index
    %252 = vector.load %arg3[%c8_295, %c0_296, %c0_297] : memref<9x48x128xbf16, #tpu.memory_space<vmem>>, vector<1x48x128xbf16>
    %253 = vector.shape_cast %252 : vector<1x48x128xbf16> to vector<48x128xbf16>
    %cst_298 = arith.constant dense<0.000000e+00> : vector<72x128xf32>
    %254 = tpu.matmul %251, %253, %cst_298 {dimension_numbers = #tpu.dot_dimension_numbers<[1], [0], [0], [1], [0, 0, 1, 1], [], []>} : vector<72x48xbf16>, vector<48x128xbf16>, vector<72x128xf32> -> vector<72x128xf32>
    %255 = arith.addf %249, %254 : vector<72x128xf32>
    %c0_299 = arith.constant 0 : index
    %c0_300 = arith.constant 0 : index
    %256 = vector.load %arg4[%c0_299, %c0_300] : memref<1x128xf32, #tpu.memory_space<vmem>>, vector<1x128xf32>
    %257 = vector.broadcast %256 : vector<1x128xf32> to vector<72x128xf32>
    %258 = arith.addf %255, %257 : vector<72x128xf32>
    %cst_301 = arith.constant 0.000000e+00 : f32
    %259 = vector.broadcast %cst_301 : f32 to vector<72x128xf32>
    %260 = arith.cmpf oge, %258, %259 : vector<72x128xf32>
    %cst_302 = arith.constant 2.000000e-01 : f32
    %261 = vector.broadcast %cst_302 : f32 to vector<72x128xf32>
    %262 = arith.mulf %261, %258 : vector<72x128xf32>
    %263 = arith.select %260, %258, %262 : vector<72x128xi1>, vector<72x128xf32>
    %264 = arith.truncf %263 : vector<72x128xf32> to vector<72x128xbf16>
    %c0_303 = arith.constant 0 : index
    %c3_304 = arith.constant 3 : index
    %c0_305 = arith.constant 0 : index
    %c0_306 = arith.constant 0 : index
    %265 = vector.load %arg5[%c0_303, %c3_304, %c0_305, %c0_306] : memref<1x4x72x128xbf16, #tpu.memory_space<vmem>>, vector<1x1x72x128xbf16>
    %266 = vector.shape_cast %265 : vector<1x1x72x128xbf16> to vector<72x128xbf16>
    %267 = vector.shape_cast %264 : vector<72x128xbf16> to vector<1x1x72x128xbf16>
    tpu.vector_store %arg5[%c0_303, %c3_304, %c0_305, %c0_306], %267 {strides = array<i32>} : memref<1x4x72x128xbf16, #tpu.memory_space<vmem>>, vector<1x1x72x128xbf16>,
    return
  }
  func.func @transform_0(%arg0: i32, %arg1: i32) -> (i32, i32, i32, i32) {
    %c0_i32 = arith.constant 0 : i32
    %c0_i32_0 = arith.constant 0 : i32
    %c0_i32_1 = arith.constant 0 : i32
    return %arg0, %arg1, %c0_i32, %c0_i32_0 : i32, i32, i32, i32
  }
  func.func @transform_1(%arg0: i32, %arg1: i32) -> (i32, i32, i32) {
    %c0_i32 = arith.constant 0 : i32
    %c0_i32_0 = arith.constant 0 : i32
    %c0_i32_1 = arith.constant 0 : i32
    %c0_i32_2 = arith.constant 0 : i32
    return %c0_i32, %c0_i32_0, %c0_i32_1 : i32, i32, i32
  }
  func.func @transform_2(%arg0: i32, %arg1: i32) -> (i32, i32) {
    %c0_i32 = arith.constant 0 : i32
    %c0_i32_0 = arith.constant 0 : i32
    %c0_i32_1 = arith.constant 0 : i32
    return %c0_i32, %c0_i32_0 : i32, i32
  }
  func.func @transform_3(%arg0: i32, %arg1: i32) -> (i32, i32, i32, i32) {
    %c0_i32 = arith.constant 0 : i32
    %c0_i32_0 = arith.constant 0 : i32
    %c0_i32_1 = arith.constant 0 : i32
    return %arg0, %arg1, %c0_i32, %c0_i32_0 : i32, i32, i32, i32
  }
}

module attributes {stable_mosaic.version = 11 : i64} {
  func.func @_fused_conv_kernel(%arg0: i32, %arg1: memref<1x1x128x432xbf16, #tpu.memory_space<vmem>>, %arg2: memref<1x432x128xbf16, #tpu.memory_space<vmem>>, %arg3: memref<1x128xf32, #tpu.memory_space<vmem>>, %arg4: memref<1x1x128x128xbf16, #tpu.memory_space<vmem>>) attributes {dimension_semantics = [#tpu.dimension_semantics<parallel>], iteration_bounds = array<i64: 1>, scalar_prefetch = 0 : i64, scratch_operands = 0 : i64, tpu.core_type = #tpu.core_type<tc>, window_params = [{transform_indices = @transform_0, window_bounds = array<i64: 1, 1, 128, 432>}, {pipeline_mode = #tpu.pipeline_mode<synchronous>, transform_indices = @transform_1, window_bounds = array<i64: 1, 432, 128>}, {pipeline_mode = #tpu.pipeline_mode<synchronous>, transform_indices = @transform_2, window_bounds = array<i64: 1, 128>}, {transform_indices = @transform_3, window_bounds = array<i64: 1, 1, 128, 128>}]} {
    %cst = arith.constant 0.000000e+00 : f32
    %0 = vector.broadcast %cst : f32 to vector<128x128xf32>
    %c0 = arith.constant 0 : index
    %c0_0 = arith.constant 0 : index
    %c0_1 = arith.constant 0 : index
    %c0_2 = arith.constant 0 : index
    %1 = vector.load %arg1[%c0, %c0_0, %c0_1, %c0_2] : memref<1x1x128x432xbf16, #tpu.memory_space<vmem>>, vector<1x1x128x432xbf16>
    %2 = vector.shape_cast %1 : vector<1x1x128x432xbf16> to vector<128x432xbf16>
    %c0_3 = arith.constant 0 : index
    %c0_4 = arith.constant 0 : index
    %c0_5 = arith.constant 0 : index
    %3 = vector.load %arg2[%c0_3, %c0_4, %c0_5] : memref<1x432x128xbf16, #tpu.memory_space<vmem>>, vector<1x432x128xbf16>
    %4 = vector.shape_cast %3 : vector<1x432x128xbf16> to vector<432x128xbf16>
    %cst_6 = arith.constant dense<0.000000e+00> : vector<128x128xf32>
    %5 = tpu.matmul %2, %4, %cst_6 {dimension_numbers = #tpu.dot_dimension_numbers<[1], [0], [0], [1], [0, 0, 1, 1], [], []>} : vector<128x432xbf16>, vector<432x128xbf16>, vector<128x128xf32> -> vector<128x128xf32>
    %6 = arith.addf %0, %5 : vector<128x128xf32>
    %c0_7 = arith.constant 0 : index
    %c0_8 = arith.constant 0 : index
    %7 = vector.load %arg3[%c0_7, %c0_8] : memref<1x128xf32, #tpu.memory_space<vmem>>, vector<1x128xf32>
    %8 = vector.broadcast %7 : vector<1x128xf32> to vector<128x128xf32>
    %9 = arith.addf %6, %8 : vector<128x128xf32>
    %cst_9 = arith.constant 0.000000e+00 : f32
    %10 = vector.broadcast %cst_9 : f32 to vector<128x128xf32>
    %11 = arith.cmpf oge, %9, %10 : vector<128x128xf32>
    %cst_10 = arith.constant 2.000000e-01 : f32
    %12 = vector.broadcast %cst_10 : f32 to vector<128x128xf32>
    %13 = arith.mulf %12, %9 : vector<128x128xf32>
    %14 = arith.select %11, %9, %13 : vector<128x128xi1>, vector<128x128xf32>
    %15 = arith.truncf %14 : vector<128x128xf32> to vector<128x128xbf16>
    %c0_11 = arith.constant 0 : index
    %c0_12 = arith.constant 0 : index
    %c0_13 = arith.constant 0 : index
    %c0_14 = arith.constant 0 : index
    %16 = vector.load %arg4[%c0_11, %c0_12, %c0_13, %c0_14] : memref<1x1x128x128xbf16, #tpu.memory_space<vmem>>, vector<1x1x128x128xbf16>
    %17 = vector.shape_cast %16 : vector<1x1x128x128xbf16> to vector<128x128xbf16>
    %18 = vector.shape_cast %15 : vector<128x128xbf16> to vector<1x1x128x128xbf16>
    tpu.vector_store %arg4[%c0_11, %c0_12, %c0_13, %c0_14], %18 {strides = array<i32>} : memref<1x1x128x128xbf16, #tpu.memory_space<vmem>>, vector<1x1x128x128xbf16>,
    return
  }
  func.func @transform_0(%arg0: i32) -> (i32, i32, i32, i32) {
    %c0_i32 = arith.constant 0 : i32
    %c0_i32_0 = arith.constant 0 : i32
    %c0_i32_1 = arith.constant 0 : i32
    %c0_i32_2 = arith.constant 0 : i32
    return %arg0, %c0_i32, %c0_i32_0, %c0_i32_1 : i32, i32, i32, i32
  }
  func.func @transform_1(%arg0: i32) -> (i32, i32, i32) {
    %c0_i32 = arith.constant 0 : i32
    %c0_i32_0 = arith.constant 0 : i32
    %c0_i32_1 = arith.constant 0 : i32
    %c0_i32_2 = arith.constant 0 : i32
    return %c0_i32, %c0_i32_0, %c0_i32_1 : i32, i32, i32
  }
  func.func @transform_2(%arg0: i32) -> (i32, i32) {
    %c0_i32 = arith.constant 0 : i32
    %c0_i32_0 = arith.constant 0 : i32
    %c0_i32_1 = arith.constant 0 : i32
    return %c0_i32, %c0_i32_0 : i32, i32
  }
  func.func @transform_3(%arg0: i32) -> (i32, i32, i32, i32) {
    %c0_i32 = arith.constant 0 : i32
    %c0_i32_0 = arith.constant 0 : i32
    %c0_i32_1 = arith.constant 0 : i32
    %c0_i32_2 = arith.constant 0 : i32
    return %arg0, %c0_i32, %c0_i32_0, %c0_i32_1 : i32, i32, i32, i32
  }
}

module attributes {stable_mosaic.version = 11 : i64} {
  func.func @_fused_conv_kernel(%arg0: i32, %arg1: memref<1x1x32x864xbf16, #tpu.memory_space<vmem>>, %arg2: memref<1x864x128xbf16, #tpu.memory_space<vmem>>, %arg3: memref<1x128xf32, #tpu.memory_space<vmem>>, %arg4: memref<1x1x32x128xbf16, #tpu.memory_space<vmem>>) attributes {dimension_semantics = [#tpu.dimension_semantics<parallel>], iteration_bounds = array<i64: 1>, scalar_prefetch = 0 : i64, scratch_operands = 0 : i64, tpu.core_type = #tpu.core_type<tc>, window_params = [{transform_indices = @transform_0, window_bounds = array<i64: 1, 1, 32, 864>}, {pipeline_mode = #tpu.pipeline_mode<synchronous>, transform_indices = @transform_1, window_bounds = array<i64: 1, 864, 128>}, {pipeline_mode = #tpu.pipeline_mode<synchronous>, transform_indices = @transform_2, window_bounds = array<i64: 1, 128>}, {transform_indices = @transform_3, window_bounds = array<i64: 1, 1, 32, 128>}]} {
    %cst = arith.constant 0.000000e+00 : f32
    %0 = vector.broadcast %cst : f32 to vector<32x128xf32>
    %c0 = arith.constant 0 : index
    %c0_0 = arith.constant 0 : index
    %c0_1 = arith.constant 0 : index
    %c0_2 = arith.constant 0 : index
    %1 = vector.load %arg1[%c0, %c0_0, %c0_1, %c0_2] : memref<1x1x32x864xbf16, #tpu.memory_space<vmem>>, vector<1x1x32x864xbf16>
    %2 = vector.shape_cast %1 : vector<1x1x32x864xbf16> to vector<32x864xbf16>
    %c0_3 = arith.constant 0 : index
    %c0_4 = arith.constant 0 : index
    %c0_5 = arith.constant 0 : index
    %3 = vector.load %arg2[%c0_3, %c0_4, %c0_5] : memref<1x864x128xbf16, #tpu.memory_space<vmem>>, vector<1x864x128xbf16>
    %4 = vector.shape_cast %3 : vector<1x864x128xbf16> to vector<864x128xbf16>
    %cst_6 = arith.constant dense<0.000000e+00> : vector<32x128xf32>
    %5 = tpu.matmul %2, %4, %cst_6 {dimension_numbers = #tpu.dot_dimension_numbers<[1], [0], [0], [1], [0, 0, 1, 1], [], []>} : vector<32x864xbf16>, vector<864x128xbf16>, vector<32x128xf32> -> vector<32x128xf32>
    %6 = arith.addf %0, %5 : vector<32x128xf32>
    %c0_7 = arith.constant 0 : index
    %c0_8 = arith.constant 0 : index
    %7 = vector.load %arg3[%c0_7, %c0_8] : memref<1x128xf32, #tpu.memory_space<vmem>>, vector<1x128xf32>
    %8 = vector.broadcast %7 : vector<1x128xf32> to vector<32x128xf32>
    %9 = arith.addf %6, %8 : vector<32x128xf32>
    %cst_9 = arith.constant 0.000000e+00 : f32
    %10 = vector.broadcast %cst_9 : f32 to vector<32x128xf32>
    %11 = arith.cmpf oge, %9, %10 : vector<32x128xf32>
    %cst_10 = arith.constant 2.000000e-01 : f32
    %12 = vector.broadcast %cst_10 : f32 to vector<32x128xf32>
    %13 = arith.mulf %12, %9 : vector<32x128xf32>
    %14 = arith.select %11, %9, %13 : vector<32x128xi1>, vector<32x128xf32>
    %15 = arith.truncf %14 : vector<32x128xf32> to vector<32x128xbf16>
    %c0_11 = arith.constant 0 : index
    %c0_12 = arith.constant 0 : index
    %c0_13 = arith.constant 0 : index
    %c0_14 = arith.constant 0 : index
    %16 = vector.load %arg4[%c0_11, %c0_12, %c0_13, %c0_14] : memref<1x1x32x128xbf16, #tpu.memory_space<vmem>>, vector<1x1x32x128xbf16>
    %17 = vector.shape_cast %16 : vector<1x1x32x128xbf16> to vector<32x128xbf16>
    %18 = vector.shape_cast %15 : vector<32x128xbf16> to vector<1x1x32x128xbf16>
    tpu.vector_store %arg4[%c0_11, %c0_12, %c0_13, %c0_14], %18 {strides = array<i32>} : memref<1x1x32x128xbf16, #tpu.memory_space<vmem>>, vector<1x1x32x128xbf16>,
    return
  }
  func.func @transform_0(%arg0: i32) -> (i32, i32, i32, i32) {
    %c0_i32 = arith.constant 0 : i32
    %c0_i32_0 = arith.constant 0 : i32
    %c0_i32_1 = arith.constant 0 : i32
    %c0_i32_2 = arith.constant 0 : i32
    return %arg0, %c0_i32, %c0_i32_0, %c0_i32_1 : i32, i32, i32, i32
  }
  func.func @transform_1(%arg0: i32) -> (i32, i32, i32) {
    %c0_i32 = arith.constant 0 : i32
    %c0_i32_0 = arith.constant 0 : i32
    %c0_i32_1 = arith.constant 0 : i32
    %c0_i32_2 = arith.constant 0 : i32
    return %c0_i32, %c0_i32_0, %c0_i32_1 : i32, i32, i32
  }
  func.func @transform_2(%arg0: i32) -> (i32, i32) {
    %c0_i32 = arith.constant 0 : i32
    %c0_i32_0 = arith.constant 0 : i32
    %c0_i32_1 = arith.constant 0 : i32
    return %c0_i32, %c0_i32_0 : i32, i32
  }
  func.func @transform_3(%arg0: i32) -> (i32, i32, i32, i32) {
    %c0_i32 = arith.constant 0 : i32
    %c0_i32_0 = arith.constant 0 : i32
    %c0_i32_1 = arith.constant 0 : i32
    %c0_i32_2 = arith.constant 0 : i32
    return %arg0, %c0_i32, %c0_i32_0, %c0_i32_1 : i32, i32, i32, i32
  }
}

module attributes {stable_mosaic.version = 11 : i64} {
  func.func @_fused_conv_kernel(%arg0: i32, %arg1: memref<1x1x8x3456xbf16, #tpu.memory_space<vmem>>, %arg2: memref<1x3456x128xbf16, #tpu.memory_space<vmem>>, %arg3: memref<1x128xf32, #tpu.memory_space<vmem>>, %arg4: memref<1x1x8x128xf32, #tpu.memory_space<vmem>>) attributes {dimension_semantics = [#tpu.dimension_semantics<parallel>], iteration_bounds = array<i64: 1>, scalar_prefetch = 0 : i64, scratch_operands = 0 : i64, tpu.core_type = #tpu.core_type<tc>, window_params = [{transform_indices = @transform_0, window_bounds = array<i64: 1, 1, 8, 3456>}, {pipeline_mode = #tpu.pipeline_mode<synchronous>, transform_indices = @transform_1, window_bounds = array<i64: 1, 3456, 128>}, {pipeline_mode = #tpu.pipeline_mode<synchronous>, transform_indices = @transform_2, window_bounds = array<i64: 1, 128>}, {transform_indices = @transform_3, window_bounds = array<i64: 1, 1, 8, 128>}]} {
    %cst = arith.constant 0.000000e+00 : f32
    %0 = vector.broadcast %cst : f32 to vector<8x128xf32>
    %c0 = arith.constant 0 : index
    %c0_0 = arith.constant 0 : index
    %c0_1 = arith.constant 0 : index
    %c0_2 = arith.constant 0 : index
    %1 = vector.load %arg1[%c0, %c0_0, %c0_1, %c0_2] : memref<1x1x8x3456xbf16, #tpu.memory_space<vmem>>, vector<1x1x8x3456xbf16>
    %2 = vector.shape_cast %1 : vector<1x1x8x3456xbf16> to vector<8x3456xbf16>
    %c0_3 = arith.constant 0 : index
    %c0_4 = arith.constant 0 : index
    %c0_5 = arith.constant 0 : index
    %3 = vector.load %arg2[%c0_3, %c0_4, %c0_5] : memref<1x3456x128xbf16, #tpu.memory_space<vmem>>, vector<1x3456x128xbf16>
    %4 = vector.shape_cast %3 : vector<1x3456x128xbf16> to vector<3456x128xbf16>
    %cst_6 = arith.constant dense<0.000000e+00> : vector<8x128xf32>
    %5 = tpu.matmul %2, %4, %cst_6 {dimension_numbers = #tpu.dot_dimension_numbers<[1], [0], [0], [1], [0, 0, 1, 1], [], []>} : vector<8x3456xbf16>, vector<3456x128xbf16>, vector<8x128xf32> -> vector<8x128xf32>
    %6 = arith.addf %0, %5 : vector<8x128xf32>
    %c0_7 = arith.constant 0 : index
    %c0_8 = arith.constant 0 : index
    %7 = vector.load %arg3[%c0_7, %c0_8] : memref<1x128xf32, #tpu.memory_space<vmem>>, vector<1x128xf32>
    %8 = vector.broadcast %7 : vector<1x128xf32> to vector<8x128xf32>
    %9 = arith.addf %6, %8 : vector<8x128xf32>
    %c0_9 = arith.constant 0 : index
    %c0_10 = arith.constant 0 : index
    %c0_11 = arith.constant 0 : index
    %c0_12 = arith.constant 0 : index
    %10 = vector.load %arg4[%c0_9, %c0_10, %c0_11, %c0_12] : memref<1x1x8x128xf32, #tpu.memory_space<vmem>>, vector<1x1x8x128xf32>
    %11 = vector.shape_cast %10 : vector<1x1x8x128xf32> to vector<8x128xf32>
    %12 = vector.shape_cast %9 : vector<8x128xf32> to vector<1x1x8x128xf32>
    tpu.vector_store %arg4[%c0_9, %c0_10, %c0_11, %c0_12], %12 {strides = array<i32>} : memref<1x1x8x128xf32, #tpu.memory_space<vmem>>, vector<1x1x8x128xf32>,
    return
  }
  func.func @transform_0(%arg0: i32) -> (i32, i32, i32, i32) {
    %c0_i32 = arith.constant 0 : i32
    %c0_i32_0 = arith.constant 0 : i32
    %c0_i32_1 = arith.constant 0 : i32
    %c0_i32_2 = arith.constant 0 : i32
    return %arg0, %c0_i32, %c0_i32_0, %c0_i32_1 : i32, i32, i32, i32
  }
  func.func @transform_1(%arg0: i32) -> (i32, i32, i32) {
    %c0_i32 = arith.constant 0 : i32
    %c0_i32_0 = arith.constant 0 : i32
    %c0_i32_1 = arith.constant 0 : i32
    %c0_i32_2 = arith.constant 0 : i32
    return %c0_i32, %c0_i32_0, %c0_i32_1 : i32, i32, i32
  }
  func.func @transform_2(%arg0: i32) -> (i32, i32) {
    %c0_i32 = arith.constant 0 : i32
    %c0_i32_0 = arith.constant 0 : i32
    %c0_i32_1 = arith.constant 0 : i32
    return %c0_i32, %c0_i32_0 : i32, i32
  }
  func.func @transform_3(%arg0: i32) -> (i32, i32, i32, i32) {
    %c0_i32 = arith.constant 0 : i32
    %c0_i32_0 = arith.constant 0 : i32
    %c0_i32_1 = arith.constant 0 : i32
    %c0_i32_2 = arith.constant 0 : i32
    return %arg0, %c0_i32, %c0_i32_0, %c0_i32_1 : i32, i32, i32, i32
  }
}

</mosaic_0001>

<llo_original>
// kernel: d4_forward.5
$region0: #{d4_forward.5}
  #allocation0 [shape = 'u32[]', space=smem, size = 0x4, offset = 0x4, fixed_abs, tag = 'smem constant byte address 0x4 - core index']
  #allocation1 [shape = 'u32[144,128]{1,0:T(1,128)}', space=vmem, size = 0x12000, scoped, tag = 'internal scratch']
  %s0 = inlined_call_operand.vmem [shape: bf16[4,1,512,81], index: 0, kind: input, shape index: {}]
  %s1 = inlined_call_operand.vmem [shape: bf16[1,81,128], index: 1, kind: input, shape index: {}]
  %s2 = inlined_call_operand.vmem [shape: f32[1,128], index: 2, kind: input, shape index: {}]
  %s3 = inlined_call_operand.vmem [shape: bf16[4,1,512,128], index: 3, kind: output, shape index: {}]
  %s4 = sld [smem:[#allocation0]]
  $region45: #{d4_forward.5} parent=0
    _
  %s6 = ssub.s32 1, %s4
  %s7 = scalar_select 0, %s6, %s4
  loop: start=0, step=1, limit=6
  $region2: #{d4_forward.5} parent=0 // loop_pre_header
    _
  $region3: #{d4_forward.5} parent=0 // loop_header
    %s9 = sphi 0, %s13
    %p10 = scmp.ge.s32.totalorder %s9, 6
    %s19 = sphi 0, %s21
    %s22 = sphi 0, %s19
    %s23 = sphi 0, %s22
    %s39 = sphi 0, %s23
    %s43 = sphi 0, %s43
    %s45 = sphi 0, %s43
    %s46 = sphi 0, %s45
    %s60 = sphi 0, %s46
    %s64 = sphi 0, %s64
    %s66 = sphi 0, %s64
    %s67 = sphi 0, %s66
    %s81 = sphi 0, %s67
    %s87 = sphi 0, %s89
    %s90 = sphi 0, %s87
    %s91 = sphi 0, %s90
    %s107 = sphi 0, %s91
  $region4: #{d4_forward.5} parent=0 // loop_header_branch
    %12 = sbr.rel (%p10) target = $region8
  $region5: #{d4_forward.5} parent=0 // loop_body
    %s14 = ssub.s32 %s9, 1
    %s15 = ssub.s32 %s9, 2
    %s16 = sadd.s32 %s9, 1
    %s17 = ssub.s32 %s9, %s16
    %p18 = scmp.eq.s32.totalorder %s17, 0
    %s20 = sadd.s32 %s19, 1
    %s21 = scalar_select %p18, %s19, %s20
    %p24 = pneg %p18
    %p25 = scmp.eq.s32.totalorder %s9, 3
    %p26 = por %p24, %p25
    %p27 = scmp.ne.s32.totalorder %s19, %s22
    %p28 = scmp.eq.s32.totalorder %s9, 0
    %p29 = por %p27, %p28
    %p30 = scmp.ne.s32.totalorder %s19, %s22
    %p31 = scmp.eq.s32.totalorder %s14, 3
    %p32 = por %p30, %p31
    %p33 = scmp.ne.s32.totalorder %s22, %s23
    %p34 = scmp.eq.s32.totalorder %s14, 0
    %p35 = por %p33, %p34
    %p36 = scmp.ne.s32.totalorder %s22, %s23
    %p37 = scmp.eq.s32.totalorder %s15, 3
    %p38 = por %p36, %p37
    %p40 = scmp.ne.s32.totalorder %s23, %s39
    %p41 = scmp.eq.s32.totalorder %s15, 0
    %p42 = por %p40, %p41
    %s44 = sadd.s32 %s43, 1
    %p47 = scmp.eq.s32.totalorder %s9, 3
    %p48 = scmp.ne.s32.totalorder %s43, %s45
    %p49 = scmp.eq.s32.totalorder %s9, 0
    %p50 = por %p48, %p49
    %p51 = scmp.ne.s32.totalorder %s43, %s45
    %p52 = scmp.eq.s32.totalorder %s14, 3
    %p53 = por %p51, %p52
    %p54 = scmp.ne.s32.totalorder %s45, %s46
    %p55 = scmp.eq.s32.totalorder %s14, 0
    %p56 = por %p54, %p55
    %p57 = scmp.ne.s32.totalorder %s45, %s46
    %p58 = scmp.eq.s32.totalorder %s15, 3
    %p59 = por %p57, %p58
    %p61 = scmp.ne.s32.totalorder %s46, %s60
    %p62 = scmp.eq.s32.totalorder %s15, 0
    %p63 = por %p61, %p62
    %s65 = sadd.s32 %s64, 1
    %p68 = scmp.eq.s32.totalorder %s9, 3
    %p69 = scmp.ne.s32.totalorder %s64, %s66
    %p70 = scmp.eq.s32.totalorder %s9, 0
    %p71 = por %p69, %p70
    %p72 = scmp.ne.s32.totalorder %s64, %s66
    %p73 = scmp.eq.s32.totalorder %s14, 3
    %p74 = por %p72, %p73
    %p75 = scmp.ne.s32.totalorder %s66, %s67
    %p76 = scmp.eq.s32.totalorder %s14, 0
    %p77 = por %p75, %p76
    %p78 = scmp.ne.s32.totalorder %s66, %s67
    %p79 = scmp.eq.s32.totalorder %s15, 3
    %p80 = por %p78, %p79
    %p82 = scmp.ne.s32.totalorder %s67, %s81
    %p83 = scmp.eq.s32.totalorder %s15, 0
    %p84 = por %p82, %p83
    %s85 = ssub.s32 %s9, %s16
    %p86 = scmp.eq.s32.totalorder %s85, 0
    %s88 = sadd.s32 %s87, 1
    %s89 = scalar_select %p86, %s87, %s88
    %p92 = pneg %p86
    %p93 = scmp.eq.s32.totalorder %s9, 3
    %p94 = por %p92, %p93
    %p95 = scmp.ne.s32.totalorder %s87, %s90
    %p96 = scmp.eq.s32.totalorder %s9, 0
    %p97 = por %p95, %p96
    %p98 = scmp.ne.s32.totalorder %s87, %s90
    %p99 = scmp.eq.s32.totalorder %s14, 3
    %p100 = por %p98, %p99
    %p101 = scmp.ne.s32.totalorder %s90, %s91
    %p102 = scmp.eq.s32.totalorder %s14, 0
    %p103 = por %p101, %p102
    %p104 = scmp.ne.s32.totalorder %s90, %s91
    %p105 = scmp.eq.s32.totalorder %s15, 3
    %p106 = por %p104, %p105
    %p108 = scmp.ne.s32.totalorder %s91, %s107
    %p109 = scmp.eq.s32.totalorder %s15, 0
    %p110 = por %p108, %p109
    %p111 = scmp.le.s32.totalorder 1, %s9
    %p112 = scmp.lt.s32.totalorder %s9, 5
    %p113 = pnand %p111, %p112
    %p114 = pneg %p113
    // Predicated region
    $region9: #{d4_forward.5} parent=5 // pred_check
      _
    $region10: #{d4_forward.5} parent=5 // pred_check_branch
      %116 = sbr.rel (%p113) target = $region12
    $region11: #{d4_forward.5} parent=5 // pred_region
      %s117 = ssub.s32 %s9, 1
      // Predicated region
      $region13: #{d4_forward.5} parent=11 // pred_check
        %p118 = pneg %p56
      $region14: #{d4_forward.5} parent=11 // pred_check_branch
        %120 = sbr.rel (%p118) target = $region16
      $region15: #{d4_forward.5} parent=11 // pred_region
        _
      $region16: #{d4_forward.5} parent=11 // pred_fallthru
        _
      // Predicated region
      $region17: #{d4_forward.5} parent=11 // pred_check
        %p121 = pneg %p77
      $region18: #{d4_forward.5} parent=11 // pred_check_branch
        %123 = sbr.rel (%p121) target = $region20
      $region19: #{d4_forward.5} parent=11 // pred_region
        _
      $region20: #{d4_forward.5} parent=11 // pred_fallthru
        _
    $region12: #{d4_forward.5} parent=5 // pred_fallthru
      _
    %p124 = scmp.lt.s32.totalorder %s9, 4
    // Predicated region
    $region21: #{d4_forward.5} parent=5 // pred_check
      %p125 = pneg %p124
    $region22: #{d4_forward.5} parent=5 // pred_check_branch
      %127 = sbr.rel (%p125) target = $region24
    $region23: #{d4_forward.5} parent=5 // pred_region
      // Predicated region
      $region25: #{d4_forward.5} parent=23 // pred_check
        %p128 = pneg %p29
      $region26: #{d4_forward.5} parent=23 // pred_check_branch
        %130 = sbr.rel (%p128) target = $region28
      $region27: #{d4_forward.5} parent=23 // pred_region
        %p131 = scmp.lt.s32.totalorder %s9, 3
        %s132 = scalar_select %p131, %s9, 3
        %s133 = smul.addr %s132, 64
        %s134 = smul.addr %s133, 4
        %s135 = scalar_lea.vmem %s0, %s134
      $region28: #{d4_forward.5} parent=23 // pred_fallthru
        _
    $region24: #{d4_forward.5} parent=5 // pred_fallthru
      _
    %p136 = scmp.le.s32.totalorder 1, %s9
    %p137 = scmp.lt.s32.totalorder %s9, 5
    %p138 = pnand %p136, %p137
    %p139 = pneg %p138
    // Predicated region
    $region29: #{d4_forward.5} parent=5 // pred_check
      _
    $region30: #{d4_forward.5} parent=5 // pred_check_branch
      %141 = sbr.rel (%p138) target = $region32
    $region31: #{d4_forward.5} parent=5 // pred_region
      %s142 = ssub.s32 %s9, 1
      %p143 = scmp.lt.s32.totalorder %s14, 3
      %s144 = scalar_select %p143, %s14, 3
      %s145 = smul.addr %s144, 64
      %s146 = smul.addr %s145, 4
      %s147 = scalar_lea.vmem %s0, %s146
      %p148 = pneg %p35
      %p149 = pneg %p32
      %p150 = pneg %p56
      %p151 = pneg %p53
      %p152 = pneg %p77
      %p153 = pneg %p74
      %p154 = pneg %p103
      %p155 = pneg %p100
      %p156 = scmp.lt.s32.totalorder %s14, 3
      %s157 = scalar_select %p156, %s14, 3
      %s158 = smul.addr %s157, 64
      %s159 = smul.addr %s158, 4
      %s160 = scalar_lea.vmem %s3, %s159
      %p161 = scmp.lt.s32.totalorder %s14, 3
      %s162 = scalar_select %p161, %s14, 3
      %s163 = smul.addr %s162, 64
      %s164 = smul.addr %s163, 4
      %s165 = scalar_lea.vmem %s0, %s164
      %p166 = scmp.lt.s32.totalorder %s14, 3
      %s167 = scalar_select %p166, %s14, 3
      %s168 = smul.addr %s167, 64
      %s169 = smul.addr %s168, 4
      %s170 = scalar_lea.vmem %s3, %s169
      %v172 = vld [vmem:[%s165] sm:$0xf]
      %v173 = vld [vmem:[%s165 + $0x4] sm:$0xf]
      %v174 = vld [vmem:[%s165 + $0x8] sm:$0xf]
      %v175 = vld [vmem:[%s165 + $0xc] sm:$0xf]
      %v176 = vld [vmem:[%s165 + $0x10] sm:$0xf]
      %v177 = vld [vmem:[%s165 + $0x14] sm:$0xf]
      %v178 = vld [vmem:[%s165 + $0x18] sm:$0xf]
      %v179 = vld [vmem:[%s165 + $0x1c] sm:$0xf]
      %v180 = vld [vmem:[%s165 + $0x20] sm:$0xf]
      %v181 = vld [vmem:[%s165 + $0x24] sm:$0xf]
      %v182 = vld [vmem:[%s165 + $0x28] sm:$0xf]
      %v183 = vld [vmem:[%s165 + $0x2c] sm:$0xf]
      %v184 = vld [vmem:[%s165 + $0x30] sm:$0xf]
      %v185 = vld [vmem:[%s165 + $0x34] sm:$0xf]
      %v186 = vld [vmem:[%s165 + $0x38] sm:$0xf]
      %v187 = vld [vmem:[%s165 + $0x3c] sm:$0xf]
      %v188 = vld [vmem:[%s1] sm:$0xf]
      %v189 = vld [vmem:[%s1 + $0x4] sm:$0xf]
      %v190 = vld [vmem:[%s1 + $0x8] sm:$0xf]
      %v191 = vld [vmem:[%s1 + $0xc] sm:$0xf]
      %v192 = vld [vmem:[%s1 + $0x10] sm:$0xf]
      %v193 = vld [vmem:[%s1 + $0x14] sm:$0xf]
      %v194 = vld [vmem:[%s1 + $0x18] sm:$0xf]
      %v195 = vld [vmem:[%s1 + $0x1c] sm:$0xf]
      %v196 = vld [vmem:[%s1 + $0x20] sm:$0xf]
      %v197 = vld [vmem:[%s1 + $0x24] sm:$0xf]
      %v198 = vld [vmem:[%s1 + $0x28] sm:$0x1]
      %v199 = vld [vmem:[%s2] sm:$0x1]
      %v201 = vlaneseq
      %v202 = vshrl.u32 %v201, 7
      %v203 = vsub.s32 0, %v202
      %v204 = vrot.slane %v199, %v203
      %v222 = vunpack.c.l.b16 %v172
      %v223 = vunpack.c.l.b16 %v173
      %v224 = vunpack.c.l.b16 %v174
      %v225 = vunpack.c.l.b16 %v175
      %v226 = vunpack.c.l.b16 %v176
      %v227 = vunpack.c.l.b16 %v177
      %v228 = vunpack.c.l.b16 %v178
      %v229 = vunpack.c.l.b16 %v179
      %v230 = vunpack.c.l.b16 %v180
      %v231 = vunpack.c.l.b16 %v181
      %v232 = vunpack.c.l.b16 %v182
      %v233 = vunpack.c.l.b16 %v183
      %v234 = vunpack.c.l.b16 %v184
      %v235 = vunpack.c.l.b16 %v185
      %v236 = vunpack.c.l.b16 %v186
      %v237 = vunpack.c.l.b16 %v187
      %v238 = vpack.c.b16 %v223, %v222
      %v239 = vpack.c.b16 %v225, %v224
      %v240 = vpack.c.b16 %v227, %v226
      %v241 = vpack.c.b16 %v229, %v228
      %v242 = vpack.c.b16 %v231, %v230
      %v243 = vpack.c.b16 %v233, %v232
      %v244 = vpack.c.b16 %v235, %v234
      %v245 = vpack.c.b16 %v237, %v236
      %v257 = vunpack.c.l.b16 %v188
      %v258 = vunpack.c.l.b16 %v189
      %v259 = vunpack.c.l.b16 %v190
      %v260 = vunpack.c.l.b16 %v191
      %v261 = vunpack.c.l.b16 %v192
      %v262 = vunpack.c.l.b16 %v193
      %v263 = vunpack.c.l.b16 %v194
      %v264 = vunpack.c.l.b16 %v195
      %v265 = vunpack.c.l.b16 %v196
      %v266 = vunpack.c.l.b16 %v197
      %v267 = vunpack.c.l.b16 %v198
      %v268 = vpack.c.b16 %v258, %v257
      %v269 = vpack.c.b16 %v260, %v259
      %v270 = vpack.c.b16 %v262, %v261
      %v271 = vpack.c.b16 %v264, %v263
      %v272 = vpack.c.b16 %v266, %v265
      %v273 = vpack.c.b16 %v267, %v267
      %vm279 = vcmask 662528
      %v281 = vsel %vm279, %v238, 0
      %v284 = vsel %vm279, %v239, 0
      %v287 = vsel %vm279, %v240, 0
      %v290 = vsel %vm279, %v241, 0
      %v293 = vsel %vm279, %v242, 0
      %v296 = vsel %vm279, %v243, 0
      %v299 = vsel %vm279, %v244, 0
      %v302 = vsel %vm279, %v245, 0
      %vm304 = vcmask 1040384
      %v305 = vsel 0, 4294967295, 65535
      %v306 = vsel %vm304, %v305, 0
      %v308 = vand.u32 %v273, %v306
      %310 = vmatprep.subr.bf16.mxu0 0
      %311 = vmatpush1.bf16.msra.mxu0 0
      %312 = vmatprep.subr.bf16.mxu0 0
      %313 = vmatpush1.bf16.msra.mxu0 0
      %314 = vmatprep.subr.bf16.mxu0 0
      %315 = vmatpush1.bf16.msra.mxu0 %v308
      %316 = vmatprep.subr.bf16.mxu0 0
      %317 = vmatpush1.bf16.msra.mxu0 %v272
      %318 = vmatprep.subr.bf16.mxu0 0
      %319 = vmatpush1.bf16.msra.mxu0 %v271
      %320 = vmatprep.subr.bf16.mxu0 0
      %321 = vmatpush1.bf16.msra.mxu0 %v270
      %322 = vmatprep.subr.bf16.mxu0 0
      %323 = vmatpush1.bf16.msra.mxu0 %v269
      %324 = vmatprep.subr.bf16.mxu0 0
      %325 = vmatpush1.bf16.msra.mxu0 %v268
      %326 = vmatprep.subr.bf16.mxu0 0
      %327 = vmatpush2.bf16.msra.mxu0 0
      %328 = vmatprep.subr.bf16.mxu0 0
      %329 = vmatpush2.bf16.msra.mxu0 0
      %330 = vmatprep.subr.bf16.mxu0 0
      %331 = vmatpush2.bf16.msra.mxu0 0
      %332 = vmatprep.subr.bf16.mxu0 0
      %333 = vmatpush2.bf16.msra.mxu0 0
      %334 = vmatprep.subr.bf16.mxu0 0
      %335 = vmatpush2.bf16.msra.mxu0 0
      %336 = vmatprep.subr.bf16.mxu0 0
      %337 = vmatpush2.bf16.msra.mxu0 0
      %338 = vmatprep.subr.bf16.mxu0 0
      %339 = vmatpush2.bf16.msra.mxu0 0
      %340 = vmatprep.subr.bf16.mxu0 0
      %341 = vmatpush2.bf16.msra.mxu0 0
      %342 = vmatprep.mubr.bf16.mxu0 0
      %343 = vmatmul.mubr.bf16.gmra.mxu0 %v281
      %v344 = vpop.f32.mrf.mxu0
      %v345 = vadd.f32 %v204, %v344
      %v346 = vpop.f32.mrf.mxu0
      %v347 = vpop.f32.mrf.mxu0
      %v348 = vadd.f32 %v204, %v347
      %v349 = vpop.f32.mrf.mxu0
      %350 = vmatprep.mubr.bf16.mxu0 0
      %351 = vmatmul.mubr.bf16.gmra.mxu0 %v284
      %v352 = vpop.f32.mrf.mxu0
      %v353 = vadd.f32 %v204, %v352
      %v354 = vpop.f32.mrf.mxu0
      %v355 = vpop.f32.mrf.mxu0
      %v356 = vadd.f32 %v204, %v355
      %v357 = vpop.f32.mrf.mxu0
      %358 = vmatprep.mubr.bf16.mxu0 0
      %359 = vmatmul.mubr.bf16.gmra.mxu0 %v287
      %v360 = vpop.f32.mrf.mxu0
      %v361 = vadd.f32 %v204, %v360
      %v362 = vpop.f32.mrf.mxu0
      %v363 = vpop.f32.mrf.mxu0
      %v364 = vadd.f32 %v204, %v363
      %v365 = vpop.f32.mrf.mxu0
      %366 = vmatprep.mubr.bf16.mxu0 0
      %367 = vmatmul.mubr.bf16.gmra.mxu0 %v290
      %v368 = vpop.f32.mrf.mxu0
      %v369 = vadd.f32 %v204, %v368
      %v370 = vpop.f32.mrf.mxu0
      %v371 = vpop.f32.mrf.mxu0
      %v372 = vadd.f32 %v204, %v371
      %v373 = vpop.f32.mrf.mxu0
      %374 = vmatprep.mubr.bf16.mxu0 0
      %375 = vmatmul.mubr.bf16.gmra.mxu0 %v293
      %v376 = vpop.f32.mrf.mxu0
      %v377 = vadd.f32 %v204, %v376
      %v378 = vpop.f32.mrf.mxu0
      %v379 = vpop.f32.mrf.mxu0
      %v380 = vadd.f32 %v204, %v379
      %v381 = vpop.f32.mrf.mxu0
      %382 = vmatprep.mubr.bf16.mxu0 0
      %383 = vmatmul.mubr.bf16.gmra.mxu0 %v296
      %v384 = vpop.f32.mrf.mxu0
      %v385 = vadd.f32 %v204, %v384
      %v386 = vpop.f32.mrf.mxu0
      %v387 = vpop.f32.mrf.mxu0
      %v388 = vadd.f32 %v204, %v387
      %v389 = vpop.f32.mrf.mxu0
      %390 = vmatprep.mubr.bf16.mxu0 0
      %391 = vmatmul.mubr.bf16.gmra.mxu0 %v299
      %v392 = vpop.f32.mrf.mxu0
      %v393 = vadd.f32 %v204, %v392
      %v394 = vpop.f32.mrf.mxu0
      %v395 = vpop.f32.mrf.mxu0
      %v396 = vadd.f32 %v204, %v395
      %v397 = vpop.f32.mrf.mxu0
      %398 = vmatprep.mubr.bf16.mxu0 0
      %399 = vmatmul.mubr.bf16.gmra.mxu0 %v302
      %v400 = vpop.f32.mrf.mxu0
      %v401 = vadd.f32 %v204, %v400
      %v402 = vpop.f32.mrf.mxu0
      %v403 = vpop.f32.mrf.mxu0
      %v404 = vadd.f32 %v204, %v403
      %v405 = vpop.f32.mrf.mxu0
      %406 = vdwg.mxu0
      %vm407 = vcmp.ge.f32.partialorder %v345, 0.0
      %vm408 = vcmp.ge.f32.partialorder %v348, 0.0
      %vm409 = vcmp.ge.f32.partialorder %v353, 0.0
      %vm410 = vcmp.ge.f32.partialorder %v356, 0.0
      %vm411 = vcmp.ge.f32.partialorder %v361, 0.0
      %vm412 = vcmp.ge.f32.partialorder %v364, 0.0
      %vm413 = vcmp.ge.f32.partialorder %v369, 0.0
      %vm414 = vcmp.ge.f32.partialorder %v372, 0.0
      %vm415 = vcmp.ge.f32.partialorder %v377, 0.0
      %vm416 = vcmp.ge.f32.partialorder %v380, 0.0
      %vm417 = vcmp.ge.f32.partialorder %v385, 0.0
      %vm418 = vcmp.ge.f32.partialorder %v388, 0.0
      %vm419 = vcmp.ge.f32.partialorder %v393, 0.0
      %vm420 = vcmp.ge.f32.partialorder %v396, 0.0
      %vm421 = vcmp.ge.f32.partialorder %v401, 0.0
      %vm422 = vcmp.ge.f32.partialorder %v404, 0.0
      %v423 = vmul.f32 %v345, 0.2
      %v424 = vmul.f32 %v348, 0.2
      %v425 = vmul.f32 %v353, 0.2
      %v426 = vmul.f32 %v356, 0.2
      %v427 = vmul.f32 %v361, 0.2
      %v428 = vmul.f32 %v364, 0.2
      %v429 = vmul.f32 %v369, 0.2
      %v430 = vmul.f32 %v372, 0.2
      %v431 = vmul.f32 %v377, 0.2
      %v432 = vmul.f32 %v380, 0.2
      %v433 = vmul.f32 %v385, 0.2
      %v434 = vmul.f32 %v388, 0.2
      %v435 = vmul.f32 %v393, 0.2
      %v436 = vmul.f32 %v396, 0.2
      %v437 = vmul.f32 %v401, 0.2
      %v438 = vmul.f32 %v404, 0.2
      %v439 = vsel %vm407, %v345, %v423
      %v440 = vsel %vm408, %v348, %v424
      %v441 = vsel %vm409, %v353, %v425
      %v442 = vsel %vm410, %v356, %v426
      %v443 = vsel %vm411, %v361, %v427
      %v444 = vsel %vm412, %v364, %v428
      %v445 = vsel %vm413, %v369, %v429
      %v446 = vsel %vm414, %v372, %v430
      %v447 = vsel %vm415, %v377, %v431
      %v448 = vsel %vm416, %v380, %v432
      %v449 = vsel %vm417, %v385, %v433
      %v450 = vsel %vm418, %v388, %v434
      %v451 = vsel %vm419, %v393, %v435
      %v452 = vsel %vm420, %v396, %v436
      %v453 = vsel %vm421, %v401, %v437
      %v454 = vsel %vm422, %v404, %v438
      %v455 = vpack.c.bf16 %v440, %v439
      %v456 = vpack.c.bf16 %v442, %v441
      %v457 = vpack.c.bf16 %v444, %v443
      %v458 = vpack.c.bf16 %v446, %v445
      %v459 = vpack.c.bf16 %v448, %v447
      %v460 = vpack.c.bf16 %v450, %v449
      %v461 = vpack.c.bf16 %v452, %v451
      %v462 = vpack.c.bf16 %v454, %v453
      %v471 = vunpack.c.l.b16 %v455
      %v472 = vunpack.c.h.b16 %v455
      %v473 = vunpack.c.l.b16 %v456
      %v474 = vunpack.c.h.b16 %v456
      %v475 = vunpack.c.l.b16 %v457
      %v476 = vunpack.c.h.b16 %v457
      %v477 = vunpack.c.l.b16 %v458
      %v478 = vunpack.c.h.b16 %v458
      %v479 = vunpack.c.l.b16 %v459
      %v480 = vunpack.c.h.b16 %v459
      %v481 = vunpack.c.l.b16 %v460
      %v482 = vunpack.c.h.b16 %v460
      %v483 = vunpack.c.l.b16 %v461
      %v484 = vunpack.c.h.b16 %v461
      %v485 = vunpack.c.l.b16 %v462
      %v486 = vunpack.c.h.b16 %v462
      %v487 = vpack.c.b16 %v471, %v471
      %v488 = vpack.c.b16 %v472, %v472
      %v489 = vpack.c.b16 %v473, %v473
      %v490 = vpack.c.b16 %v474, %v474
      %v491 = vpack.c.b16 %v475, %v475
      %v492 = vpack.c.b16 %v476, %v476
      %v493 = vpack.c.b16 %v477, %v477
      %v494 = vpack.c.b16 %v478, %v478
      %v495 = vpack.c.b16 %v479, %v479
      %v496 = vpack.c.b16 %v480, %v480
      %v497 = vpack.c.b16 %v481, %v481
      %v498 = vpack.c.b16 %v482, %v482
      %v499 = vpack.c.b16 %v483, %v483
      %v500 = vpack.c.b16 %v484, %v484
      %v501 = vpack.c.b16 %v485, %v485
      %v502 = vpack.c.b16 %v486, %v486
      %519 = vst [vmem:[%s170] sm:$0xf] %v487
      %520 = vst [vmem:[%s170 + $0x4] sm:$0xf] %v488
      %521 = vst [vmem:[%s170 + $0x8] sm:$0xf] %v489
      %522 = vst [vmem:[%s170 + $0xc] sm:$0xf] %v490
      %523 = vst [vmem:[%s170 + $0x10] sm:$0xf] %v491
      %524 = vst [vmem:[%s170 + $0x14] sm:$0xf] %v492
      %525 = vst [vmem:[%s170 + $0x18] sm:$0xf] %v493
      %526 = vst [vmem:[%s170 + $0x1c] sm:$0xf] %v494
      %527 = vst [vmem:[%s170 + $0x20] sm:$0xf] %v495
      %528 = vst [vmem:[%s170 + $0x24] sm:$0xf] %v496
      %529 = vst [vmem:[%s170 + $0x28] sm:$0xf] %v497
      %530 = vst [vmem:[%s170 + $0x2c] sm:$0xf] %v498
      %531 = vst [vmem:[%s170 + $0x30] sm:$0xf] %v499
      %532 = vst [vmem:[%s170 + $0x34] sm:$0xf] %v500
      %533 = vst [vmem:[%s170 + $0x38] sm:$0xf] %v501
      %534 = vst [vmem:[%s170 + $0x3c] sm:$0xf] %v502
      %v535 = vld [vmem:[%s165 + $0x40] sm:$0xf]
      %v536 = vld [vmem:[%s165 + $0x44] sm:$0xf]
      %v537 = vld [vmem:[%s165 + $0x48] sm:$0xf]
      %v538 = vld [vmem:[%s165 + $0x4c] sm:$0xf]
      %v539 = vld [vmem:[%s165 + $0x50] sm:$0xf]
      %v540 = vld [vmem:[%s165 + $0x54] sm:$0xf]
      %v541 = vld [vmem:[%s165 + $0x58] sm:$0xf]
      %v542 = vld [vmem:[%s165 + $0x5c] sm:$0xf]
      %v543 = vld [vmem:[%s165 + $0x60] sm:$0xf]
      %v544 = vld [vmem:[%s165 + $0x64] sm:$0xf]
      %v545 = vld [vmem:[%s165 + $0x68] sm:$0xf]
      %v546 = vld [vmem:[%s165 + $0x6c] sm:$0xf]
      %v547 = vld [vmem:[%s165 + $0x70] sm:$0xf]
      %v548 = vld [vmem:[%s165 + $0x74] sm:$0xf]
      %v549 = vld [vmem:[%s165 + $0x78] sm:$0xf]
      %v550 = vld [vmem:[%s165 + $0x7c] sm:$0xf]
      %v551 = vld [vmem:[%s1] sm:$0xf]
      %v552 = vld [vmem:[%s1 + $0x4] sm:$0xf]
      %v553 = vld [vmem:[%s1 + $0x8] sm:$0xf]
      %v554 = vld [vmem:[%s1 + $0xc] sm:$0xf]
      %v555 = vld [vmem:[%s1 + $0x10] sm:$0xf]
      %v556 = vld [vmem:[%s1 + $0x14] sm:$0xf]
      %v557 = vld [vmem:[%s1 + $0x18] sm:$0xf]
      %v558 = vld [vmem:[%s1 + $0x1c] sm:$0xf]
      %v559 = vld [vmem:[%s1 + $0x20] sm:$0xf]
      %v560 = vld [vmem:[%s1 + $0x24] sm:$0xf]
      %v561 = vld [vmem:[%s1 + $0x28] sm:$0x1]
      %v562 = vld [vmem:[%s2] sm:$0x1]
      %v564 = vlaneseq
      %v565 = vshrl.u32 %v564, 7
      %v566 = vsub.s32 0, %v565
      %v567 = vrot.slane %v562, %v566
      %v585 = vunpack.c.l.b16 %v535
      %v586 = vunpack.c.l.b16 %v536
      %v587 = vunpack.c.l.b16 %v537
      %v588 = vunpack.c.l.b16 %v538
      %v589 = vunpack.c.l.b16 %v539
      %v590 = vunpack.c.l.b16 %v540
      %v591 = vunpack.c.l.b16 %v541
      %v592 = vunpack.c.l.b16 %v542
      %v593 = vunpack.c.l.b16 %v543
      %v594 = vunpack.c.l.b16 %v544
      %v595 = vunpack.c.l.b16 %v545
      %v596 = vunpack.c.l.b16 %v546
      %v597 = vunpack.c.l.b16 %v547
      %v598 = vunpack.c.l.b16 %v548
      %v599 = vunpack.c.l.b16 %v549
      %v600 = vunpack.c.l.b16 %v550
      %v601 = vpack.c.b16 %v586, %v585
      %v602 = vpack.c.b16 %v588, %v587
      %v603 = vpack.c.b16 %v590, %v589
      %v604 = vpack.c.b16 %v592, %v591
      %v605 = vpack.c.b16 %v594, %v593
      %v606 = vpack.c.b16 %v596, %v595
      %v607 = vpack.c.b16 %v598, %v597
      %v608 = vpack.c.b16 %v600, %v599
      %v620 = vunpack.c.l.b16 %v551
      %v621 = vunpack.c.l.b16 %v552
      %v622 = vunpack.c.l.b16 %v553
      %v623 = vunpack.c.l.b16 %v554
      %v624 = vunpack.c.l.b16 %v555
      %v625 = vunpack.c.l.b16 %v556
      %v626 = vunpack.c.l.b16 %v557
      %v627 = vunpack.c.l.b16 %v558
      %v628 = vunpack.c.l.b16 %v559
      %v629 = vunpack.c.l.b16 %v560
      %v630 = vunpack.c.l.b16 %v561
      %v631 = vpack.c.b16 %v621, %v620
      %v632 = vpack.c.b16 %v623, %v622
      %v633 = vpack.c.b16 %v625, %v624
      %v634 = vpack.c.b16 %v627, %v626
      %v635 = vpack.c.b16 %v629, %v628
      %v636 = vpack.c.b16 %v630, %v630
      %v643 = vsel %vm279, %v601, 0
      %v646 = vsel %vm279, %v602, 0
      %v649 = vsel %vm279, %v603, 0
      %v652 = vsel %vm279, %v604, 0
      %v655 = vsel %vm279, %v605, 0
      %v658 = vsel %vm279, %v606, 0
      %v661 = vsel %vm279, %v607, 0
      %v664 = vsel %vm279, %v608, 0
      %v667 = vand.u32 %v636, %v306
      %669 = vmatprep.subr.bf16.mxu0 0
      %670 = vmatpush1.bf16.msra.mxu0 0
      %671 = vmatprep.subr.bf16.mxu0 0
      %672 = vmatpush1.bf16.msra.mxu0 0
      %673 = vmatprep.subr.bf16.mxu0 0
      %674 = vmatpush1.bf16.msra.mxu0 %v667
      %675 = vmatprep.subr.bf16.mxu0 0
      %676 = vmatpush1.bf16.msra.mxu0 %v635
      %677 = vmatprep.subr.bf16.mxu0 0
      %678 = vmatpush1.bf16.msra.mxu0 %v634
      %679 = vmatprep.subr.bf16.mxu0 0
      %680 = vmatpush1.bf16.msra.mxu0 %v633
      %681 = vmatprep.subr.bf16.mxu0 0
      %682 = vmatpush1.bf16.msra.mxu0 %v632
      %683 = vmatprep.subr.bf16.mxu0 0
      %684 = vmatpush1.bf16.msra.mxu0 %v631
      %685 = vmatprep.subr.bf16.mxu0 0
      %686 = vmatpush2.bf16.msra.mxu0 0
      %687 = vmatprep.subr.bf16.mxu0 0
      %688 = vmatpush2.bf16.msra.mxu0 0
      %689 = vmatprep.subr.bf16.mxu0 0
      %690 = vmatpush2.bf16.msra.mxu0 0
      %691 = vmatprep.subr.bf16.mxu0 0
      %692 = vmatpush2.bf16.msra.mxu0 0
      %693 = vmatprep.subr.bf16.mxu0 0
      %694 = vmatpush2.bf16.msra.mxu0 0
      %695 = vmatprep.subr.bf16.mxu0 0
      %696 = vmatpush2.bf16.msra.mxu0 0
      %697 = vmatprep.subr.bf16.mxu0 0
      %698 = vmatpush2.bf16.msra.mxu0 0
      %699 = vmatprep.subr.bf16.mxu0 0
      %700 = vmatpush2.bf16.msra.mxu0 0
      %701 = vmatprep.mubr.bf16.mxu0 0
      %702 = vmatmul.mubr.bf16.gmra.mxu0 %v643
      %v703 = vpop.f32.mrf.mxu0
      %v704 = vadd.f32 %v567, %v703
      %v705 = vpop.f32.mrf.mxu0
      %v706 = vpop.f32.mrf.mxu0
      %v707 = vadd.f32 %v567, %v706
      %v708 = vpop.f32.mrf.mxu0
      %709 = vmatprep.mubr.bf16.mxu0 0
      %710 = vmatmul.mubr.bf16.gmra.mxu0 %v646
      %v711 = vpop.f32.mrf.mxu0
      %v712 = vadd.f32 %v567, %v711
      %v713 = vpop.f32.mrf.mxu0
      %v714 = vpop.f32.mrf.mxu0
      %v715 = vadd.f32 %v567, %v714
      %v716 = vpop.f32.mrf.mxu0
      %717 = vmatprep.mubr.bf16.mxu0 0
      %718 = vmatmul.mubr.bf16.gmra.mxu0 %v649
      %v719 = vpop.f32.mrf.mxu0
      %v720 = vadd.f32 %v567, %v719
      %v721 = vpop.f32.mrf.mxu0
      %v722 = vpop.f32.mrf.mxu0
      %v723 = vadd.f32 %v567, %v722
      %v724 = vpop.f32.mrf.mxu0
      %725 = vmatprep.mubr.bf16.mxu0 0
      %726 = vmatmul.mubr.bf16.gmra.mxu0 %v652
      %v727 = vpop.f32.mrf.mxu0
      %v728 = vadd.f32 %v567, %v727
      %v729 = vpop.f32.mrf.mxu0
      %v730 = vpop.f32.mrf.mxu0
      %v731 = vadd.f32 %v567, %v730
      %v732 = vpop.f32.mrf.mxu0
      %733 = vmatprep.mubr.bf16.mxu0 0
      %734 = vmatmul.mubr.bf16.gmra.mxu0 %v655
      %v735 = vpop.f32.mrf.mxu0
      %v736 = vadd.f32 %v567, %v735
      %v737 = vpop.f32.mrf.mxu0
      %v738 = vpop.f32.mrf.mxu0
      %v739 = vadd.f32 %v567, %v738
      %v740 = vpop.f32.mrf.mxu0
      %741 = vmatprep.mubr.bf16.mxu0 0
      %742 = vmatmul.mubr.bf16.gmra.mxu0 %v658
      %v743 = vpop.f32.mrf.mxu0
      %v744 = vadd.f32 %v567, %v743
      %v745 = vpop.f32.mrf.mxu0
      %v746 = vpop.f32.mrf.mxu0
      %v747 = vadd.f32 %v567, %v746
      %v748 = vpop.f32.mrf.mxu0
      %749 = vmatprep.mubr.bf16.mxu0 0
      %750 = vmatmul.mubr.bf16.gmra.mxu0 %v661
      %v751 = vpop.f32.mrf.mxu0
      %v752 = vadd.f32 %v567, %v751
      %v753 = vpop.f32.mrf.mxu0
      %v754 = vpop.f32.mrf.mxu0
      %v755 = vadd.f32 %v567, %v754
      %v756 = vpop.f32.mrf.mxu0
      %757 = vmatprep.mubr.bf16.mxu0 0
      %758 = vmatmul.mubr.bf16.gmra.mxu0 %v664
      %v759 = vpop.f32.mrf.mxu0
      %v760 = vadd.f32 %v567, %v759
      %v761 = vpop.f32.mrf.mxu0
      %v762 = vpop.f32.mrf.mxu0
      %v763 = vadd.f32 %v567, %v762
      %v764 = vpop.f32.mrf.mxu0
      %765 = vdwg.mxu0
      %vm766 = vcmp.ge.f32.partialorder %v704, 0.0
      %vm767 = vcmp.ge.f32.partialorder %v707, 0.0
      %vm768 = vcmp.ge.f32.partialorder %v712, 0.0
      %vm769 = vcmp.ge.f32.partialorder %v715, 0.0
      %vm770 = vcmp.ge.f32.partialorder %v720, 0.0
      %vm771 = vcmp.ge.f32.partialorder %v723, 0.0
      %vm772 = vcmp.ge.f32.partialorder %v728, 0.0
      %vm773 = vcmp.ge.f32.partialorder %v731, 0.0
      %vm774 = vcmp.ge.f32.partialorder %v736, 0.0
      %vm775 = vcmp.ge.f32.partialorder %v739, 0.0
      %vm776 = vcmp.ge.f32.partialorder %v744, 0.0
      %vm777 = vcmp.ge.f32.partialorder %v747, 0.0
      %vm778 = vcmp.ge.f32.partialorder %v752, 0.0
      %vm779 = vcmp.ge.f32.partialorder %v755, 0.0
      %vm780 = vcmp.ge.f32.partialorder %v760, 0.0
      %vm781 = vcmp.ge.f32.partialorder %v763, 0.0
      %v782 = vmul.f32 %v704, 0.2
      %v783 = vmul.f32 %v707, 0.2
      %v784 = vmul.f32 %v712, 0.2
      %v785 = vmul.f32 %v715, 0.2
      %v786 = vmul.f32 %v720, 0.2
      %v787 = vmul.f32 %v723, 0.2
      %v788 = vmul.f32 %v728, 0.2
      %v789 = vmul.f32 %v731, 0.2
      %v790 = vmul.f32 %v736, 0.2
      %v791 = vmul.f32 %v739, 0.2
      %v792 = vmul.f32 %v744, 0.2
      %v793 = vmul.f32 %v747, 0.2
      %v794 = vmul.f32 %v752, 0.2
      %v795 = vmul.f32 %v755, 0.2
      %v796 = vmul.f32 %v760, 0.2
      %v797 = vmul.f32 %v763, 0.2
      %v798 = vsel %vm766, %v704, %v782
      %v799 = vsel %vm767, %v707, %v783
      %v800 = vsel %vm768, %v712, %v784
      %v801 = vsel %vm769, %v715, %v785
      %v802 = vsel %vm770, %v720, %v786
      %v803 = vsel %vm771, %v723, %v787
      %v804 = vsel %vm772, %v728, %v788
      %v805 = vsel %vm773, %v731, %v789
      %v806 = vsel %vm774, %v736, %v790
      %v807 = vsel %vm775, %v739, %v791
      %v808 = vsel %vm776, %v744, %v792
      %v809 = vsel %vm777, %v747, %v793
      %v810 = vsel %vm778, %v752, %v794
      %v811 = vsel %vm779, %v755, %v795
      %v812 = vsel %vm780, %v760, %v796
      %v813 = vsel %vm781, %v763, %v797
      %v814 = vpack.c.bf16 %v799, %v798
      %v815 = vpack.c.bf16 %v801, %v800
      %v816 = vpack.c.bf16 %v803, %v802
      %v817 = vpack.c.bf16 %v805, %v804
      %v818 = vpack.c.bf16 %v807, %v806
      %v819 = vpack.c.bf16 %v809, %v808
      %v820 = vpack.c.bf16 %v811, %v810
      %v821 = vpack.c.bf16 %v813, %v812
      %v830 = vunpack.c.l.b16 %v814
      %v831 = vunpack.c.h.b16 %v814
      %v832 = vunpack.c.l.b16 %v815
      %v833 = vunpack.c.h.b16 %v815
      %v834 = vunpack.c.l.b16 %v816
      %v835 = vunpack.c.h.b16 %v816
      %v836 = vunpack.c.l.b16 %v817
      %v837 = vunpack.c.h.b16 %v817
      %v838 = vunpack.c.l.b16 %v818
      %v839 = vunpack.c.h.b16 %v818
      %v840 = vunpack.c.l.b16 %v819
      %v841 = vunpack.c.h.b16 %v819
      %v842 = vunpack.c.l.b16 %v820
      %v843 = vunpack.c.h.b16 %v820
      %v844 = vunpack.c.l.b16 %v821
      %v845 = vunpack.c.h.b16 %v821
      %v846 = vpack.c.b16 %v830, %v830
      %v847 = vpack.c.b16 %v831, %v831
      %v848 = vpack.c.b16 %v832, %v832
      %v849 = vpack.c.b16 %v833, %v833
      %v850 = vpack.c.b16 %v834, %v834
      %v851 = vpack.c.b16 %v835, %v835
      %v852 = vpack.c.b16 %v836, %v836
      %v853 = vpack.c.b16 %v837, %v837
      %v854 = vpack.c.b16 %v838, %v838
      %v855 = vpack.c.b16 %v839, %v839
      %v856 = vpack.c.b16 %v840, %v840
      %v857 = vpack.c.b16 %v841, %v841
      %v858 = vpack.c.b16 %v842, %v842
      %v859 = vpack.c.b16 %v843, %v843
      %v860 = vpack.c.b16 %v844, %v844
      %v861 = vpack.c.b16 %v845, %v845
      %878 = vst [vmem:[%s170 + $0x40] sm:$0xf] %v846
      %879 = vst [vmem:[%s170 + $0x44] sm:$0xf] %v847
      %880 = vst [vmem:[%s170 + $0x48] sm:$0xf] %v848
      %881 = vst [vmem:[%s170 + $0x4c] sm:$0xf] %v849
      %882 = vst [vmem:[%s170 + $0x50] sm:$0xf] %v850
      %883 = vst [vmem:[%s170 + $0x54] sm:$0xf] %v851
      %884 = vst [vmem:[%s170 + $0x58] sm:$0xf] %v852
      %885 = vst [vmem:[%s170 + $0x5c] sm:$0xf] %v853
      %886 = vst [vmem:[%s170 + $0x60] sm:$0xf] %v854
      %887 = vst [vmem:[%s170 + $0x64] sm:$0xf] %v855
      %888 = vst [vmem:[%s170 + $0x68] sm:$0xf] %v856
      %889 = vst [vmem:[%s170 + $0x6c] sm:$0xf] %v857
      %890 = vst [vmem:[%s170 + $0x70] sm:$0xf] %v858
      %891 = vst [vmem:[%s170 + $0x74] sm:$0xf] %v859
      %892 = vst [vmem:[%s170 + $0x78] sm:$0xf] %v860
      %893 = vst [vmem:[%s170 + $0x7c] sm:$0xf] %v861
      %v894 = vld [vmem:[%s165 + $0x80] sm:$0xf]
      %v895 = vld [vmem:[%s165 + $0x84] sm:$0xf]
      %v896 = vld [vmem:[%s165 + $0x88] sm:$0xf]
      %v897 = vld [vmem:[%s165 + $0x8c] sm:$0xf]
      %v898 = vld [vmem:[%s165 + $0x90] sm:$0xf]
      %v899 = vld [vmem:[%s165 + $0x94] sm:$0xf]
      %v900 = vld [vmem:[%s165 + $0x98] sm:$0xf]
      %v901 = vld [vmem:[%s165 + $0x9c] sm:$0xf]
      %v902 = vld [vmem:[%s165 + $0xa0] sm:$0xf]
      %v903 = vld [vmem:[%s165 + $0xa4] sm:$0xf]
      %v904 = vld [vmem:[%s165 + $0xa8] sm:$0xf]
      %v905 = vld [vmem:[%s165 + $0xac] sm:$0xf]
      %v906 = vld [vmem:[%s165 + $0xb0] sm:$0xf]
      %v907 = vld [vmem:[%s165 + $0xb4] sm:$0xf]
      %v908 = vld [vmem:[%s165 + $0xb8] sm:$0xf]
      %v909 = vld [vmem:[%s165 + $0xbc] sm:$0xf]
      %v910 = vld [vmem:[%s1] sm:$0xf]
      %v911 = vld [vmem:[%s1 + $0x4] sm:$0xf]
      %v912 = vld [vmem:[%s1 + $0x8] sm:$0xf]
      %v913 = vld [vmem:[%s1 + $0xc] sm:$0xf]
      %v914 = vld [vmem:[%s1 + $0x10] sm:$0xf]
      %v915 = vld [vmem:[%s1 + $0x14] sm:$0xf]
      %v916 = vld [vmem:[%s1 + $0x18] sm:$0xf]
      %v917 = vld [vmem:[%s1 + $0x1c] sm:$0xf]
      %v918 = vld [vmem:[%s1 + $0x20] sm:$0xf]
      %v919 = vld [vmem:[%s1 + $0x24] sm:$0xf]
      %v920 = vld [vmem:[%s1 + $0x28] sm:$0x1]
      %v921 = vld [vmem:[%s2] sm:$0x1]
      %v923 = vlaneseq
      %v924 = vshrl.u32 %v923, 7
      %v925 = vsub.s32 0, %v924
      %v926 = vrot.slane %v921, %v925
      %v944 = vunpack.c.l.b16 %v894
      %v945 = vunpack.c.l.b16 %v895
      %v946 = vunpack.c.l.b16 %v896
      %v947 = vunpack.c.l.b16 %v897
      %v948 = vunpack.c.l.b16 %v898
      %v949 = vunpack.c.l.b16 %v899
      %v950 = vunpack.c.l.b16 %v900
      %v951 = vunpack.c.l.b16 %v901
      %v952 = vunpack.c.l.b16 %v902
      %v953 = vunpack.c.l.b16 %v903
      %v954 = vunpack.c.l.b16 %v904
      %v955 = vunpack.c.l.b16 %v905
      %v956 = vunpack.c.l.b16 %v906
      %v957 = vunpack.c.l.b16 %v907
      %v958 = vunpack.c.l.b16 %v908
      %v959 = vunpack.c.l.b16 %v909
      %v960 = vpack.c.b16 %v945, %v944
      %v961 = vpack.c.b16 %v947, %v946
      %v962 = vpack.c.b16 %v949, %v948
      %v963 = vpack.c.b16 %v951, %v950
      %v964 = vpack.c.b16 %v953, %v952
      %v965 = vpack.c.b16 %v955, %v954
      %v966 = vpack.c.b16 %v957, %v956
      %v967 = vpack.c.b16 %v959, %v958
      %v979 = vunpack.c.l.b16 %v910
      %v980 = vunpack.c.l.b16 %v911
      %v981 = vunpack.c.l.b16 %v912
      %v982 = vunpack.c.l.b16 %v913
      %v983 = vunpack.c.l.b16 %v914
      %v984 = vunpack.c.l.b16 %v915
      %v985 = vunpack.c.l.b16 %v916
      %v986 = vunpack.c.l.b16 %v917
      %v987 = vunpack.c.l.b16 %v918
      %v988 = vunpack.c.l.b16 %v919
      %v989 = vunpack.c.l.b16 %v920
      %v990 = vpack.c.b16 %v980, %v979
      %v991 = vpack.c.b16 %v982, %v981
      %v992 = vpack.c.b16 %v984, %v983
      %v993 = vpack.c.b16 %v986, %v985
      %v994 = vpack.c.b16 %v988, %v987
      %v995 = vpack.c.b16 %v989, %v989
      %v1002 = vsel %vm279, %v960, 0
      %v1005 = vsel %vm279, %v961, 0
      %v1008 = vsel %vm279, %v962, 0
      %v1011 = vsel %vm279, %v963, 0
      %v1014 = vsel %vm279, %v964, 0
      %v1017 = vsel %vm279, %v965, 0
      %v1020 = vsel %vm279, %v966, 0
      %v1023 = vsel %vm279, %v967, 0
      %v1026 = vand.u32 %v995, %v306
      %1028 = vmatprep.subr.bf16.mxu0 0
      %1029 = vmatpush1.bf16.msra.mxu0 0
      %1030 = vmatprep.subr.bf16.mxu0 0
      %1031 = vmatpush1.bf16.msra.mxu0 0
      %1032 = vmatprep.subr.bf16.mxu0 0
      %1033 = vmatpush1.bf16.msra.mxu0 %v1026
      %1034 = vmatprep.subr.bf16.mxu0 0
      %1035 = vmatpush1.bf16.msra.mxu0 %v994
      %1036 = vmatprep.subr.bf16.mxu0 0
      %1037 = vmatpush1.bf16.msra.mxu0 %v993
      %1038 = vmatprep.subr.bf16.mxu0 0
      %1039 = vmatpush1.bf16.msra.mxu0 %v992
      %1040 = vmatprep.subr.bf16.mxu0 0
      %1041 = vmatpush1.bf16.msra.mxu0 %v991
      %1042 = vmatprep.subr.bf16.mxu0 0
      %1043 = vmatpush1.bf16.msra.mxu0 %v990
      %1044 = vmatprep.subr.bf16.mxu0 0
      %1045 = vmatpush2.bf16.msra.mxu0 0
      %1046 = vmatprep.subr.bf16.mxu0 0
      %1047 = vmatpush2.bf16.msra.mxu0 0
      %1048 = vmatprep.subr.bf16.mxu0 0
      %1049 = vmatpush2.bf16.msra.mxu0 0
      %1050 = vmatprep.subr.bf16.mxu0 0
      %1051 = vmatpush2.bf16.msra.mxu0 0
      %1052 = vmatprep.subr.bf16.mxu0 0
      %1053 = vmatpush2.bf16.msra.mxu0 0
      %1054 = vmatprep.subr.bf16.mxu0 0
      %1055 = vmatpush2.bf16.msra.mxu0 0
      %1056 = vmatprep.subr.bf16.mxu0 0
      %1057 = vmatpush2.bf16.msra.mxu0 0
      %1058 = vmatprep.subr.bf16.mxu0 0
      %1059 = vmatpush2.bf16.msra.mxu0 0
      %1060 = vmatprep.mubr.bf16.mxu0 0
      %1061 = vmatmul.mubr.bf16.gmra.mxu0 %v1002
      %v1062 = vpop.f32.mrf.mxu0
      %v1063 = vadd.f32 %v926, %v1062
      %v1064 = vpop.f32.mrf.mxu0
      %v1065 = vpop.f32.mrf.mxu0
      %v1066 = vadd.f32 %v926, %v1065
      %v1067 = vpop.f32.mrf.mxu0
      %1068 = vmatprep.mubr.bf16.mxu0 0
      %1069 = vmatmul.mubr.bf16.gmra.mxu0 %v1005
      %v1070 = vpop.f32.mrf.mxu0
      %v1071 = vadd.f32 %v926, %v1070
      %v1072 = vpop.f32.mrf.mxu0
      %v1073 = vpop.f32.mrf.mxu0
      %v1074 = vadd.f32 %v926, %v1073
      %v1075 = vpop.f32.mrf.mxu0
      %1076 = vmatprep.mubr.bf16.mxu0 0
      %1077 = vmatmul.mubr.bf16.gmra.mxu0 %v1008
      %v1078 = vpop.f32.mrf.mxu0
      %v1079 = vadd.f32 %v926, %v1078
      %v1080 = vpop.f32.mrf.mxu0
      %v1081 = vpop.f32.mrf.mxu0
      %v1082 = vadd.f32 %v926, %v1081
      %v1083 = vpop.f32.mrf.mxu0
      %1084 = vmatprep.mubr.bf16.mxu0 0
      %1085 = vmatmul.mubr.bf16.gmra.mxu0 %v1011
      %v1086 = vpop.f32.mrf.mxu0
      %v1087 = vadd.f32 %v926, %v1086
      %v1088 = vpop.f32.mrf.mxu0
      %v1089 = vpop.f32.mrf.mxu0
      %v1090 = vadd.f32 %v926, %v1089
      %v1091 = vpop.f32.mrf.mxu0
      %1092 = vmatprep.mubr.bf16.mxu0 0
      %1093 = vmatmul.mubr.bf16.gmra.mxu0 %v1014
      %v1094 = vpop.f32.mrf.mxu0
      %v1095 = vadd.f32 %v926, %v1094
      %v1096 = vpop.f32.mrf.mxu0
      %v1097 = vpop.f32.mrf.mxu0
      %v1098 = vadd.f32 %v926, %v1097
      %v1099 = vpop.f32.mrf.mxu0
      %1100 = vmatprep.mubr.bf16.mxu0 0
      %1101 = vmatmul.mubr.bf16.gmra.mxu0 %v1017
      %v1102 = vpop.f32.mrf.mxu0
      %v1103 = vadd.f32 %v926, %v1102
      %v1104 = vpop.f32.mrf.mxu0
      %v1105 = vpop.f32.mrf.mxu0
      %v1106 = vadd.f32 %v926, %v1105
      %v1107 = vpop.f32.mrf.mxu0
      %1108 = vmatprep.mubr.bf16.mxu0 0
      %1109 = vmatmul.mubr.bf16.gmra.mxu0 %v1020
      %v1110 = vpop.f32.mrf.mxu0
      %v1111 = vadd.f32 %v926, %v1110
      %v1112 = vpop.f32.mrf.mxu0
      %v1113 = vpop.f32.mrf.mxu0
      %v1114 = vadd.f32 %v926, %v1113
      %v1115 = vpop.f32.mrf.mxu0
      %1116 = vmatprep.mubr.bf16.mxu0 0
      %1117 = vmatmul.mubr.bf16.gmra.mxu0 %v1023
      %v1118 = vpop.f32.mrf.mxu0
      %v1119 = vadd.f32 %v926, %v1118
      %v1120 = vpop.f32.mrf.mxu0
      %v1121 = vpop.f32.mrf.mxu0
      %v1122 = vadd.f32 %v926, %v1121
      %v1123 = vpop.f32.mrf.mxu0
      %1124 = vdwg.mxu0
      %vm1125 = vcmp.ge.f32.partialorder %v1063, 0.0
      %vm1126 = vcmp.ge.f32.partialorder %v1066, 0.0
      %vm1127 = vcmp.ge.f32.partialorder %v1071, 0.0
      %vm1128 = vcmp.ge.f32.partialorder %v1074, 0.0
      %vm1129 = vcmp.ge.f32.partialorder %v1079, 0.0
      %vm1130 = vcmp.ge.f32.partialorder %v1082, 0.0
      %vm1131 = vcmp.ge.f32.partialorder %v1087, 0.0
      %vm1132 = vcmp.ge.f32.partialorder %v1090, 0.0
      %vm1133 = vcmp.ge.f32.partialorder %v1095, 0.0
      %vm1134 = vcmp.ge.f32.partialorder %v1098, 0.0
      %vm1135 = vcmp.ge.f32.partialorder %v1103, 0.0
      %vm1136 = vcmp.ge.f32.partialorder %v1106, 0.0
      %vm1137 = vcmp.ge.f32.partialorder %v1111, 0.0
      %vm1138 = vcmp.ge.f32.partialorder %v1114, 0.0
      %vm1139 = vcmp.ge.f32.partialorder %v1119, 0.0
      %vm1140 = vcmp.ge.f32.partialorder %v1122, 0.0
      %v1141 = vmul.f32 %v1063, 0.2
      %v1142 = vmul.f32 %v1066, 0.2
      %v1143 = vmul.f32 %v1071, 0.2
      %v1144 = vmul.f32 %v1074, 0.2
      %v1145 = vmul.f32 %v1079, 0.2
      %v1146 = vmul.f32 %v1082, 0.2
      %v1147 = vmul.f32 %v1087, 0.2
      %v1148 = vmul.f32 %v1090, 0.2
      %v1149 = vmul.f32 %v1095, 0.2
      %v1150 = vmul.f32 %v1098, 0.2
      %v1151 = vmul.f32 %v1103, 0.2
      %v1152 = vmul.f32 %v1106, 0.2
      %v1153 = vmul.f32 %v1111, 0.2
      %v1154 = vmul.f32 %v1114, 0.2
      %v1155 = vmul.f32 %v1119, 0.2
      %v1156 = vmul.f32 %v1122, 0.2
      %v1157 = vsel %vm1125, %v1063, %v1141
      %v1158 = vsel %vm1126, %v1066, %v1142
      %v1159 = vsel %vm1127, %v1071, %v1143
      %v1160 = vsel %vm1128, %v1074, %v1144
      %v1161 = vsel %vm1129, %v1079, %v1145
      %v1162 = vsel %vm1130, %v1082, %v1146
      %v1163 = vsel %vm1131, %v1087, %v1147
      %v1164 = vsel %vm1132, %v1090, %v1148
      %v1165 = vsel %vm1133, %v1095, %v1149
      %v1166 = vsel %vm1134, %v1098, %v1150
      %v1167 = vsel %vm1135, %v1103, %v1151
      %v1168 = vsel %vm1136, %v1106, %v1152
      %v1169 = vsel %vm1137, %v1111, %v1153
      %v1170 = vsel %vm1138, %v1114, %v1154
      %v1171 = vsel %vm1139, %v1119, %v1155
      %v1172 = vsel %vm1140, %v1122, %v1156
      %v1173 = vpack.c.bf16 %v1158, %v1157
      %v1174 = vpack.c.bf16 %v1160, %v1159
      %v1175 = vpack.c.bf16 %v1162, %v1161
      %v1176 = vpack.c.bf16 %v1164, %v1163
      %v1177 = vpack.c.bf16 %v1166, %v1165
      %v1178 = vpack.c.bf16 %v1168, %v1167
      %v1179 = vpack.c.bf16 %v1170, %v1169
      %v1180 = vpack.c.bf16 %v1172, %v1171
      %v1189 = vunpack.c.l.b16 %v1173
      %v1190 = vunpack.c.h.b16 %v1173
      %v1191 = vunpack.c.l.b16 %v1174
      %v1192 = vunpack.c.h.b16 %v1174
      %v1193 = vunpack.c.l.b16 %v1175
      %v1194 = vunpack.c.h.b16 %v1175
      %v1195 = vunpack.c.l.b16 %v1176
      %v1196 = vunpack.c.h.b16 %v1176
      %v1197 = vunpack.c.l.b16 %v1177
      %v1198 = vunpack.c.h.b16 %v1177
      %v1199 = vunpack.c.l.b16 %v1178
      %v1200 = vunpack.c.h.b16 %v1178
      %v1201 = vunpack.c.l.b16 %v1179
      %v1202 = vunpack.c.h.b16 %v1179
      %v1203 = vunpack.c.l.b16 %v1180
      %v1204 = vunpack.c.h.b16 %v1180
      %v1205 = vpack.c.b16 %v1189, %v1189
      %v1206 = vpack.c.b16 %v1190, %v1190
      %v1207 = vpack.c.b16 %v1191, %v1191
      %v1208 = vpack.c.b16 %v1192, %v1192
      %v1209 = vpack.c.b16 %v1193, %v1193
      %v1210 = vpack.c.b16 %v1194, %v1194
      %v1211 = vpack.c.b16 %v1195, %v1195
      %v1212 = vpack.c.b16 %v1196, %v1196
      %v1213 = vpack.c.b16 %v1197, %v1197
      %v1214 = vpack.c.b16 %v1198, %v1198
      %v1215 = vpack.c.b16 %v1199, %v1199
      %v1216 = vpack.c.b16 %v1200, %v1200
      %v1217 = vpack.c.b16 %v1201, %v1201
      %v1218 = vpack.c.b16 %v1202, %v1202
      %v1219 = vpack.c.b16 %v1203, %v1203
      %v1220 = vpack.c.b16 %v1204, %v1204
      %1237 = vst [vmem:[%s170 + $0x80] sm:$0xf] %v1205
      %1238 = vst [vmem:[%s170 + $0x84] sm:$0xf] %v1206
      %1239 = vst [vmem:[%s170 + $0x88] sm:$0xf] %v1207
      %1240 = vst [vmem:[%s170 + $0x8c] sm:$0xf] %v1208
      %1241 = vst [vmem:[%s170 + $0x90] sm:$0xf] %v1209
      %1242 = vst [vmem:[%s170 + $0x94] sm:$0xf] %v1210
      %1243 = vst [vmem:[%s170 + $0x98] sm:$0xf] %v1211
      %1244 = vst [vmem:[%s170 + $0x9c] sm:$0xf] %v1212
      %1245 = vst [vmem:[%s170 + $0xa0] sm:$0xf] %v1213
      %1246 = vst [vmem:[%s170 + $0xa4] sm:$0xf] %v1214
      %1247 = vst [vmem:[%s170 + $0xa8] sm:$0xf] %v1215
      %1248 = vst [vmem:[%s170 + $0xac] sm:$0xf] %v1216
      %1249 = vst [vmem:[%s170 + $0xb0] sm:$0xf] %v1217
      %1250 = vst [vmem:[%s170 + $0xb4] sm:$0xf] %v1218
      %1251 = vst [vmem:[%s170 + $0xb8] sm:$0xf] %v1219
      %1252 = vst [vmem:[%s170 + $0xbc] sm:$0xf] %v1220
      %v1253 = vld [vmem:[%s165 + $0xc0] sm:$0xf]
      %v1254 = vld [vmem:[%s165 + $0xc4] sm:$0xf]
      %v1255 = vld [vmem:[%s165 + $0xc8] sm:$0xf]
      %v1256 = vld [vmem:[%s165 + $0xcc] sm:$0xf]
      %v1257 = vld [vmem:[%s165 + $0xd0] sm:$0xf]
      %v1258 = vld [vmem:[%s165 + $0xd4] sm:$0xf]
      %v1259 = vld [vmem:[%s165 + $0xd8] sm:$0xf]
      %v1260 = vld [vmem:[%s165 + $0xdc] sm:$0xf]
      %v1261 = vld [vmem:[%s165 + $0xe0] sm:$0xf]
      %v1262 = vld [vmem:[%s165 + $0xe4] sm:$0xf]
      %v1263 = vld [vmem:[%s165 + $0xe8] sm:$0xf]
      %v1264 = vld [vmem:[%s165 + $0xec] sm:$0xf]
      %v1265 = vld [vmem:[%s165 + $0xf0] sm:$0xf]
      %v1266 = vld [vmem:[%s165 + $0xf4] sm:$0xf]
      %v1267 = vld [vmem:[%s165 + $0xf8] sm:$0xf]
      %v1268 = vld [vmem:[%s165 + $0xfc] sm:$0xf]
      %v1269 = vld [vmem:[%s1] sm:$0xf]
      %v1270 = vld [vmem:[%s1 + $0x4] sm:$0xf]
      %v1271 = vld [vmem:[%s1 + $0x8] sm:$0xf]
      %v1272 = vld [vmem:[%s1 + $0xc] sm:$0xf]
      %v1273 = vld [vmem:[%s1 + $0x10] sm:$0xf]
      %v1274 = vld [vmem:[%s1 + $0x14] sm:$0xf]
      %v1275 = vld [vmem:[%s1 + $0x18] sm:$0xf]
      %v1276 = vld [vmem:[%s1 + $0x1c] sm:$0xf]
      %v1277 = vld [vmem:[%s1 + $0x20] sm:$0xf]
      %v1278 = vld [vmem:[%s1 + $0x24] sm:$0xf]
      %v1279 = vld [vmem:[%s1 + $0x28] sm:$0x1]
      %v1280 = vld [vmem:[%s2] sm:$0x1]
      %v1282 = vlaneseq
      %v1283 = vshrl.u32 %v1282, 7
      %v1284 = vsub.s32 0, %v1283
      %v1285 = vrot.slane %v1280, %v1284
      %v1303 = vunpack.c.l.b16 %v1253
      %v1304 = vunpack.c.l.b16 %v1254
      %v1305 = vunpack.c.l.b16 %v1255
      %v1306 = vunpack.c.l.b16 %v1256
      %v1307 = vunpack.c.l.b16 %v1257
      %v1308 = vunpack.c.l.b16 %v1258
      %v1309 = vunpack.c.l.b16 %v1259
      %v1310 = vunpack.c.l.b16 %v1260
      %v1311 = vunpack.c.l.b16 %v1261
      %v1312 = vunpack.c.l.b16 %v1262
      %v1313 = vunpack.c.l.b16 %v1263
      %v1314 = vunpack.c.l.b16 %v1264
      %v1315 = vunpack.c.l.b16 %v1265
      %v1316 = vunpack.c.l.b16 %v1266
      %v1317 = vunpack.c.l.b16 %v1267
      %v1318 = vunpack.c.l.b16 %v1268
      %v1319 = vpack.c.b16 %v1304, %v1303
      %v1320 = vpack.c.b16 %v1306, %v1305
      %v1321 = vpack.c.b16 %v1308, %v1307
      %v1322 = vpack.c.b16 %v1310, %v1309
      %v1323 = vpack.c.b16 %v1312, %v1311
      %v1324 = vpack.c.b16 %v1314, %v1313
      %v1325 = vpack.c.b16 %v1316, %v1315
      %v1326 = vpack.c.b16 %v1318, %v1317
      %v1338 = vunpack.c.l.b16 %v1269
      %v1339 = vunpack.c.l.b16 %v1270
      %v1340 = vunpack.c.l.b16 %v1271
      %v1341 = vunpack.c.l.b16 %v1272
      %v1342 = vunpack.c.l.b16 %v1273
      %v1343 = vunpack.c.l.b16 %v1274
      %v1344 = vunpack.c.l.b16 %v1275
      %v1345 = vunpack.c.l.b16 %v1276
      %v1346 = vunpack.c.l.b16 %v1277
      %v1347 = vunpack.c.l.b16 %v1278
      %v1348 = vunpack.c.l.b16 %v1279
      %v1349 = vpack.c.b16 %v1339, %v1338
      %v1350 = vpack.c.b16 %v1341, %v1340
      %v1351 = vpack.c.b16 %v1343, %v1342
      %v1352 = vpack.c.b16 %v1345, %v1344
      %v1353 = vpack.c.b16 %v1347, %v1346
      %v1354 = vpack.c.b16 %v1348, %v1348
      %v1361 = vsel %vm279, %v1319, 0
      %v1364 = vsel %vm279, %v1320, 0
      %v1367 = vsel %vm279, %v1321, 0
      %v1370 = vsel %vm279, %v1322, 0
      %v1373 = vsel %vm279, %v1323, 0
      %v1376 = vsel %vm279, %v1324, 0
      %v1379 = vsel %vm279, %v1325, 0
      %v1382 = vsel %vm279, %v1326, 0
      %v1385 = vand.u32 %v1354, %v306
      %1387 = vmatprep.subr.bf16.mxu0 0
      %1388 = vmatpush1.bf16.msra.mxu0 0
      %1389 = vmatprep.subr.bf16.mxu0 0
      %1390 = vmatpush1.bf16.msra.mxu0 0
      %1391 = vmatprep.subr.bf16.mxu0 0
      %1392 = vmatpush1.bf16.msra.mxu0 %v1385
      %1393 = vmatprep.subr.bf16.mxu0 0
      %1394 = vmatpush1.bf16.msra.mxu0 %v1353
      %1395 = vmatprep.subr.bf16.mxu0 0
      %1396 = vmatpush1.bf16.msra.mxu0 %v1352
      %1397 = vmatprep.subr.bf16.mxu0 0
      %1398 = vmatpush1.bf16.msra.mxu0 %v1351
      %1399 = vmatprep.subr.bf16.mxu0 0
      %1400 = vmatpush1.bf16.msra.mxu0 %v1350
      %1401 = vmatprep.subr.bf16.mxu0 0
      %1402 = vmatpush1.bf16.msra.mxu0 %v1349
      %1403 = vmatprep.subr.bf16.mxu0 0
      %1404 = vmatpush2.bf16.msra.mxu0 0
      %1405 = vmatprep.subr.bf16.mxu0 0
      %1406 = vmatpush2.bf16.msra.mxu0 0
      %1407 = vmatprep.subr.bf16.mxu0 0
      %1408 = vmatpush2.bf16.msra.mxu0 0
      %1409 = vmatprep.subr.bf16.mxu0 0
      %1410 = vmatpush2.bf16.msra.mxu0 0
      %1411 = vmatprep.subr.bf16.mxu0 0
      %1412 = vmatpush2.bf16.msra.mxu0 0
      %1413 = vmatprep.subr.bf16.mxu0 0
      %1414 = vmatpush2.bf16.msra.mxu0 0
      %1415 = vmatprep.subr.bf16.mxu0 0
      %1416 = vmatpush2.bf16.msra.mxu0 0
      %1417 = vmatprep.subr.bf16.mxu0 0
      %1418 = vmatpush2.bf16.msra.mxu0 0
      %1419 = vmatprep.mubr.bf16.mxu0 0
      %1420 = vmatmul.mubr.bf16.gmra.mxu0 %v1361
      %v1421 = vpop.f32.mrf.mxu0
      %v1422 = vadd.f32 %v1285, %v1421
      %v1423 = vpop.f32.mrf.mxu0
      %v1424 = vpop.f32.mrf.mxu0
      %v1425 = vadd.f32 %v1285, %v1424
      %v1426 = vpop.f32.mrf.mxu0
      %1427 = vmatprep.mubr.bf16.mxu0 0
      %1428 = vmatmul.mubr.bf16.gmra.mxu0 %v1364
      %v1429 = vpop.f32.mrf.mxu0
      %v1430 = vadd.f32 %v1285, %v1429
      %v1431 = vpop.f32.mrf.mxu0
      %v1432 = vpop.f32.mrf.mxu0
      %v1433 = vadd.f32 %v1285, %v1432
      %v1434 = vpop.f32.mrf.mxu0
      %1435 = vmatprep.mubr.bf16.mxu0 0
      %1436 = vmatmul.mubr.bf16.gmra.mxu0 %v1367
      %v1437 = vpop.f32.mrf.mxu0
      %v1438 = vadd.f32 %v1285, %v1437
      %v1439 = vpop.f32.mrf.mxu0
      %v1440 = vpop.f32.mrf.mxu0
      %v1441 = vadd.f32 %v1285, %v1440
      %v1442 = vpop.f32.mrf.mxu0
      %1443 = vmatprep.mubr.bf16.mxu0 0
      %1444 = vmatmul.mubr.bf16.gmra.mxu0 %v1370
      %v1445 = vpop.f32.mrf.mxu0
      %v1446 = vadd.f32 %v1285, %v1445
      %v1447 = vpop.f32.mrf.mxu0
      %v1448 = vpop.f32.mrf.mxu0
      %v1449 = vadd.f32 %v1285, %v1448
      %v1450 = vpop.f32.mrf.mxu0
      %1451 = vmatprep.mubr.bf16.mxu0 0
      %1452 = vmatmul.mubr.bf16.gmra.mxu0 %v1373
      %v1453 = vpop.f32.mrf.mxu0
      %v1454 = vadd.f32 %v1285, %v1453
      %v1455 = vpop.f32.mrf.mxu0
      %v1456 = vpop.f32.mrf.mxu0
      %v1457 = vadd.f32 %v1285, %v1456
      %v1458 = vpop.f32.mrf.mxu0
      %1459 = vmatprep.mubr.bf16.mxu0 0
      %1460 = vmatmul.mubr.bf16.gmra.mxu0 %v1376
      %v1461 = vpop.f32.mrf.mxu0
      %v1462 = vadd.f32 %v1285, %v1461
      %v1463 = vpop.f32.mrf.mxu0
      %v1464 = vpop.f32.mrf.mxu0
      %v1465 = vadd.f32 %v1285, %v1464
      %v1466 = vpop.f32.mrf.mxu0
      %1467 = vmatprep.mubr.bf16.mxu0 0
      %1468 = vmatmul.mubr.bf16.gmra.mxu0 %v1379
      %v1469 = vpop.f32.mrf.mxu0
      %v1470 = vadd.f32 %v1285, %v1469
      %v1471 = vpop.f32.mrf.mxu0
      %v1472 = vpop.f32.mrf.mxu0
      %v1473 = vadd.f32 %v1285, %v1472
      %v1474 = vpop.f32.mrf.mxu0
      %1475 = vmatprep.mubr.bf16.mxu0 0
      %1476 = vmatmul.mubr.bf16.gmra.mxu0 %v1382
      %v1477 = vpop.f32.mrf.mxu0
      %v1478 = vadd.f32 %v1285, %v1477
      %v1479 = vpop.f32.mrf.mxu0
      %v1480 = vpop.f32.mrf.mxu0
      %v1481 = vadd.f32 %v1285, %v1480
      %v1482 = vpop.f32.mrf.mxu0
      %1483 = vdwg.mxu0
      %vm1484 = vcmp.ge.f32.partialorder %v1422, 0.0
      %vm1485 = vcmp.ge.f32.partialorder %v1425, 0.0
      %vm1486 = vcmp.ge.f32.partialorder %v1430, 0.0
      %vm1487 = vcmp.ge.f32.partialorder %v1433, 0.0
      %vm1488 = vcmp.ge.f32.partialorder %v1438, 0.0
      %vm1489 = vcmp.ge.f32.partialorder %v1441, 0.0
      %vm1490 = vcmp.ge.f32.partialorder %v1446, 0.0
      %vm1491 = vcmp.ge.f32.partialorder %v1449, 0.0
      %vm1492 = vcmp.ge.f32.partialorder %v1454, 0.0
      %vm1493 = vcmp.ge.f32.partialorder %v1457, 0.0
      %vm1494 = vcmp.ge.f32.partialorder %v1462, 0.0
      %vm1495 = vcmp.ge.f32.partialorder %v1465, 0.0
      %vm1496 = vcmp.ge.f32.partialorder %v1470, 0.0
      %vm1497 = vcmp.ge.f32.partialorder %v1473, 0.0
      %vm1498 = vcmp.ge.f32.partialorder %v1478, 0.0
      %vm1499 = vcmp.ge.f32.partialorder %v1481, 0.0
      %v1500 = vmul.f32 %v1422, 0.2
      %v1501 = vmul.f32 %v1425, 0.2
      %v1502 = vmul.f32 %v1430, 0.2
      %v1503 = vmul.f32 %v1433, 0.2
      %v1504 = vmul.f32 %v1438, 0.2
      %v1505 = vmul.f32 %v1441, 0.2
      %v1506 = vmul.f32 %v1446, 0.2
      %v1507 = vmul.f32 %v1449, 0.2
      %v1508 = vmul.f32 %v1454, 0.2
      %v1509 = vmul.f32 %v1457, 0.2
      %v1510 = vmul.f32 %v1462, 0.2
      %v1511 = vmul.f32 %v1465, 0.2
      %v1512 = vmul.f32 %v1470, 0.2
      %v1513 = vmul.f32 %v1473, 0.2
      %v1514 = vmul.f32 %v1478, 0.2
      %v1515 = vmul.f32 %v1481, 0.2
      %v1516 = vsel %vm1484, %v1422, %v1500
      %v1517 = vsel %vm1485, %v1425, %v1501
      %v1518 = vsel %vm1486, %v1430, %v1502
      %v1519 = vsel %vm1487, %v1433, %v1503
      %v1520 = vsel %vm1488, %v1438, %v1504
      %v1521 = vsel %vm1489, %v1441, %v1505
      %v1522 = vsel %vm1490, %v1446, %v1506
      %v1523 = vsel %vm1491, %v1449, %v1507
      %v1524 = vsel %vm1492, %v1454, %v1508
      %v1525 = vsel %vm1493, %v1457, %v1509
      %v1526 = vsel %vm1494, %v1462, %v1510
      %v1527 = vsel %vm1495, %v1465, %v1511
      %v1528 = vsel %vm1496, %v1470, %v1512
      %v1529 = vsel %vm1497, %v1473, %v1513
      %v1530 = vsel %vm1498, %v1478, %v1514
      %v1531 = vsel %vm1499, %v1481, %v1515
      %v1532 = vpack.c.bf16 %v1517, %v1516
      %v1533 = vpack.c.bf16 %v1519, %v1518
      %v1534 = vpack.c.bf16 %v1521, %v1520
      %v1535 = vpack.c.bf16 %v1523, %v1522
      %v1536 = vpack.c.bf16 %v1525, %v1524
      %v1537 = vpack.c.bf16 %v1527, %v1526
      %v1538 = vpack.c.bf16 %v1529, %v1528
      %v1539 = vpack.c.bf16 %v1531, %v1530
      %v1548 = vunpack.c.l.b16 %v1532
      %v1549 = vunpack.c.h.b16 %v1532
      %v1550 = vunpack.c.l.b16 %v1533
      %v1551 = vunpack.c.h.b16 %v1533
      %v1552 = vunpack.c.l.b16 %v1534
      %v1553 = vunpack.c.h.b16 %v1534
      %v1554 = vunpack.c.l.b16 %v1535
      %v1555 = vunpack.c.h.b16 %v1535
      %v1556 = vunpack.c.l.b16 %v1536
      %v1557 = vunpack.c.h.b16 %v1536
      %v1558 = vunpack.c.l.b16 %v1537
      %v1559 = vunpack.c.h.b16 %v1537
      %v1560 = vunpack.c.l.b16 %v1538
      %v1561 = vunpack.c.h.b16 %v1538
      %v1562 = vunpack.c.l.b16 %v1539
      %v1563 = vunpack.c.h.b16 %v1539
      %v1564 = vpack.c.b16 %v1548, %v1548
      %v1565 = vpack.c.b16 %v1549, %v1549
      %v1566 = vpack.c.b16 %v1550, %v1550
      %v1567 = vpack.c.b16 %v1551, %v1551
      %v1568 = vpack.c.b16 %v1552, %v1552
      %v1569 = vpack.c.b16 %v1553, %v1553
      %v1570 = vpack.c.b16 %v1554, %v1554
      %v1571 = vpack.c.b16 %v1555, %v1555
      %v1572 = vpack.c.b16 %v1556, %v1556
      %v1573 = vpack.c.b16 %v1557, %v1557
      %v1574 = vpack.c.b16 %v1558, %v1558
      %v1575 = vpack.c.b16 %v1559, %v1559
      %v1576 = vpack.c.b16 %v1560, %v1560
      %v1577 = vpack.c.b16 %v1561, %v1561
      %v1578 = vpack.c.b16 %v1562, %v1562
      %v1579 = vpack.c.b16 %v1563, %v1563
      %1596 = vst [vmem:[%s170 + $0xc0] sm:$0xf] %v1564
      %1597 = vst [vmem:[%s170 + $0xc4] sm:$0xf] %v1565
      %1598 = vst [vmem:[%s170 + $0xc8] sm:$0xf] %v1566
      %1599 = vst [vmem:[%s170 + $0xcc] sm:$0xf] %v1567
      %1600 = vst [vmem:[%s170 + $0xd0] sm:$0xf] %v1568
      %1601 = vst [vmem:[%s170 + $0xd4] sm:$0xf] %v1569
      %1602 = vst [vmem:[%s170 + $0xd8] sm:$0xf] %v1570
      %1603 = vst [vmem:[%s170 + $0xdc] sm:$0xf] %v1571
      %1604 = vst [vmem:[%s170 + $0xe0] sm:$0xf] %v1572
      %1605 = vst [vmem:[%s170 + $0xe4] sm:$0xf] %v1573
      %1606 = vst [vmem:[%s170 + $0xe8] sm:$0xf] %v1574
      %1607 = vst [vmem:[%s170 + $0xec] sm:$0xf] %v1575
      %1608 = vst [vmem:[%s170 + $0xf0] sm:$0xf] %v1576
      %1609 = vst [vmem:[%s170 + $0xf4] sm:$0xf] %v1577
      %1610 = vst [vmem:[%s170 + $0xf8] sm:$0xf] %v1578
      %1611 = vst [vmem:[%s170 + $0xfc] sm:$0xf] %v1579
      %p1612 = scmp.lt.s32.totalorder %s14, 3
      %s1613 = scalar_select %p1612, %s14, 3
      %s1614 = smul.addr %s1613, 64
      %s1615 = smul.addr %s1614, 4
      %s1616 = scalar_lea.vmem %s3, %s1615
      // Predicated region
      $region33: #{d4_forward.5} parent=31 // pred_check
        %p1617 = pneg %p100
      $region34: #{d4_forward.5} parent=31 // pred_check_branch
        %1619 = sbr.rel (%p1617) target = $region36
      $region35: #{d4_forward.5} parent=31 // pred_region
        _
      $region36: #{d4_forward.5} parent=31 // pred_fallthru
        _
    $region32: #{d4_forward.5} parent=5 // pred_fallthru
      _
    %p1620 = scmp.le.s32.totalorder 2, %s9
    // Predicated region
    $region37: #{d4_forward.5} parent=5 // pred_check
      %p1621 = pneg %p1620
    $region38: #{d4_forward.5} parent=5 // pred_check_branch
      %1623 = sbr.rel (%p1621) target = $region40
    $region39: #{d4_forward.5} parent=5 // pred_region
      %s1624 = ssub.s32 %s9, 2
      // Predicated region
      $region41: #{d4_forward.5} parent=39 // pred_check
        %p1625 = pneg %p106
      $region42: #{d4_forward.5} parent=39 // pred_check_branch
        %1627 = sbr.rel (%p1625) target = $region44
      $region43: #{d4_forward.5} parent=39 // pred_region
        %p1628 = scmp.lt.s32.totalorder %s15, 3
        %s1629 = scalar_select %p1628, %s15, 3
        %s1630 = smul.addr %s1629, 64
        %s1631 = smul.addr %s1630, 4
        %s1632 = scalar_lea.vmem %s3, %s1631
      $region44: #{d4_forward.5} parent=39 // pred_fallthru
        _
    $region40: #{d4_forward.5} parent=5 // pred_fallthru
      _
  $region6: #{d4_forward.5} parent=0 // loop_footer
    %s13 = sadd.s32 1, %s9
  $region7: #{d4_forward.5} parent=0 // loop_footer_branch
    %8 = sbr.rel target = $region3
  $region8: #{d4_forward.5} parent=0 // loop_exit
    _

// kernel: d4_forward.6
$region0: #{d4_forward.6}
  #allocation0 [shape = 'u32[]', space=smem, size = 0x4, offset = 0x4, fixed_abs, tag = 'smem constant byte address 0x4 - core index']
  #allocation1 [shape = 'u32[144,128]{1,0:T(1,128)}', space=vmem, size = 0x12000, scoped, tag = 'internal scratch']
  %s0 = inlined_call_operand.vmem [shape: bf16[2,4,328,48], index: 0, kind: input, shape index: {}]
  %s1 = inlined_call_operand.vmem [shape: bf16[9,48,128], index: 1, kind: input, shape index: {}]
  %s2 = inlined_call_operand.vmem [shape: f32[1,128], index: 2, kind: input, shape index: {}]
  %s3 = inlined_call_operand.vmem [shape: bf16[2,4,72,128], index: 3, kind: output, shape index: {}]
  %s4 = sld [smem:[#allocation0]]
  $region45: #{d4_forward.6} parent=0
    _
  %s6 = ssub.s32 1, %s4
  %s7 = scalar_select 0, %s6, %s4
  loop: start=0, step=1, limit=4
  $region2: #{d4_forward.6} parent=0 // loop_pre_header
    _
  $region3: #{d4_forward.6} parent=0 // loop_header
    %s9 = sphi 0, %s13
    %p10 = scmp.ge.s32.totalorder %s9, 4
    %s16 = sphi 0, %s28
    %s17 = sphi 0, %s24
    %s18 = sphi 0, %s16
    %s19 = sphi 0, %s17
    %s20 = sphi 0, %s18
    %s21 = sphi 0, %s19
    %s33 = sphi 0, %s35
    %s36 = sphi 0, %s33
    %s37 = sphi 0, %s36
    %s53 = sphi 0, %s37
    %s57 = sphi 0, %s57
    %s59 = sphi 0, %s57
    %s60 = sphi 0, %s59
    %s74 = sphi 0, %s60
    %s78 = sphi 0, %s78
    %s80 = sphi 0, %s78
    %s81 = sphi 0, %s80
    %s95 = sphi 0, %s81
    %s103 = sphi 0, %s105
    %s106 = sphi 0, %s103
    %s107 = sphi 0, %s106
    %s123 = sphi 0, %s107
  $region4: #{d4_forward.6} parent=0 // loop_header_branch
    %12 = sbr.rel (%p10) target = $region8
  $region5: #{d4_forward.6} parent=0 // loop_body
    %s14 = ssub.s32 %s9, 1
    %s15 = ssub.s32 %s9, 2
    %s22 = sadd.s32 1, %s17
    %p23 = scmp.ge.s32.totalorder %s22, 1
    %s24 = scalar_select %p23, 0, %s22
    %s25 = sadd.s32 1, %s16
    %s26 = scalar_select %p23, %s25, %s16
    %p27 = scmp.ge.s32.totalorder %s26, 2
    %s28 = scalar_select %p27, 0, %s26
    %s29 = ssub.s32 %s16, %s28
    %s30 = ssub.s32 %s17, %s24
    %s31 = sor.u32 %s29, %s30
    %p32 = scmp.eq.s32.totalorder %s31, 0
    %s34 = sadd.s32 %s33, 1
    %s35 = scalar_select %p32, %s33, %s34
    %p38 = pneg %p32
    %p39 = scmp.eq.s32.totalorder %s9, 1
    %p40 = por %p38, %p39
    %p41 = scmp.ne.s32.totalorder %s33, %s36
    %p42 = scmp.eq.s32.totalorder %s9, 0
    %p43 = por %p41, %p42
    %p44 = scmp.ne.s32.totalorder %s33, %s36
    %p45 = scmp.eq.s32.totalorder %s14, 1
    %p46 = por %p44, %p45
    %p47 = scmp.ne.s32.totalorder %s36, %s37
    %p48 = scmp.eq.s32.totalorder %s14, 0
    %p49 = por %p47, %p48
    %p50 = scmp.ne.s32.totalorder %s36, %s37
    %p51 = scmp.eq.s32.totalorder %s15, 1
    %p52 = por %p50, %p51
    %p54 = scmp.ne.s32.totalorder %s37, %s53
    %p55 = scmp.eq.s32.totalorder %s15, 0
    %p56 = por %p54, %p55
    %s58 = sadd.s32 %s57, 1
    %p61 = scmp.eq.s32.totalorder %s9, 1
    %p62 = scmp.ne.s32.totalorder %s57, %s59
    %p63 = scmp.eq.s32.totalorder %s9, 0
    %p64 = por %p62, %p63
    %p65 = scmp.ne.s32.totalorder %s57, %s59
    %p66 = scmp.eq.s32.totalorder %s14, 1
    %p67 = por %p65, %p66
    %p68 = scmp.ne.s32.totalorder %s59, %s60
    %p69 = scmp.eq.s32.totalorder %s14, 0
    %p70 = por %p68, %p69
    %p71 = scmp.ne.s32.totalorder %s59, %s60
    %p72 = scmp.eq.s32.totalorder %s15, 1
    %p73 = por %p71, %p72
    %p75 = scmp.ne.s32.totalorder %s60, %s74
    %p76 = scmp.eq.s32.totalorder %s15, 0
    %p77 = por %p75, %p76
    %s79 = sadd.s32 %s78, 1
    %p82 = scmp.eq.s32.totalorder %s9, 1
    %p83 = scmp.ne.s32.totalorder %s78, %s80
    %p84 = scmp.eq.s32.totalorder %s9, 0
    %p85 = por %p83, %p84
    %p86 = scmp.ne.s32.totalorder %s78, %s80
    %p87 = scmp.eq.s32.totalorder %s14, 1
    %p88 = por %p86, %p87
    %p89 = scmp.ne.s32.totalorder %s80, %s81
    %p90 = scmp.eq.s32.totalorder %s14, 0
    %p91 = por %p89, %p90
    %p92 = scmp.ne.s32.totalorder %s80, %s81
    %p93 = scmp.eq.s32.totalorder %s15, 1
    %p94 = por %p92, %p93
    %p96 = scmp.ne.s32.totalorder %s81, %s95
    %p97 = scmp.eq.s32.totalorder %s15, 0
    %p98 = por %p96, %p97
    %s99 = ssub.s32 %s16, %s28
    %s100 = ssub.s32 %s17, %s24
    %s101 = sor.u32 %s99, %s100
    %p102 = scmp.eq.s32.totalorder %s101, 0
    %s104 = sadd.s32 %s103, 1
    %s105 = scalar_select %p102, %s103, %s104
    %p108 = pneg %p102
    %p109 = scmp.eq.s32.totalorder %s9, 1
    %p110 = por %p108, %p109
    %p111 = scmp.ne.s32.totalorder %s103, %s106
    %p112 = scmp.eq.s32.totalorder %s9, 0
    %p113 = por %p111, %p112
    %p114 = scmp.ne.s32.totalorder %s103, %s106
    %p115 = scmp.eq.s32.totalorder %s14, 1
    %p116 = por %p114, %p115
    %p117 = scmp.ne.s32.totalorder %s106, %s107
    %p118 = scmp.eq.s32.totalorder %s14, 0
    %p119 = por %p117, %p118
    %p120 = scmp.ne.s32.totalorder %s106, %s107
    %p121 = scmp.eq.s32.totalorder %s15, 1
    %p122 = por %p120, %p121
    %p124 = scmp.ne.s32.totalorder %s107, %s123
    %p125 = scmp.eq.s32.totalorder %s15, 0
    %p126 = por %p124, %p125
    %p127 = scmp.le.s32.totalorder 1, %s9
    %p128 = scmp.lt.s32.totalorder %s9, 3
    %p129 = pnand %p127, %p128
    %p130 = pneg %p129
    // Predicated region
    $region9: #{d4_forward.6} parent=5 // pred_check
      _
    $region10: #{d4_forward.6} parent=5 // pred_check_branch
      %132 = sbr.rel (%p129) target = $region12
    $region11: #{d4_forward.6} parent=5 // pred_region
      %s133 = ssub.s32 %s9, 1
      // Predicated region
      $region13: #{d4_forward.6} parent=11 // pred_check
        %p134 = pneg %p70
      $region14: #{d4_forward.6} parent=11 // pred_check_branch
        %136 = sbr.rel (%p134) target = $region16
      $region15: #{d4_forward.6} parent=11 // pred_region
        _
      $region16: #{d4_forward.6} parent=11 // pred_fallthru
        _
      // Predicated region
      $region17: #{d4_forward.6} parent=11 // pred_check
        %p137 = pneg %p91
      $region18: #{d4_forward.6} parent=11 // pred_check_branch
        %139 = sbr.rel (%p137) target = $region20
      $region19: #{d4_forward.6} parent=11 // pred_region
        _
      $region20: #{d4_forward.6} parent=11 // pred_fallthru
        _
    $region12: #{d4_forward.6} parent=5 // pred_fallthru
      _
    %p140 = scmp.lt.s32.totalorder %s9, 2
    // Predicated region
    $region21: #{d4_forward.6} parent=5 // pred_check
      %p141 = pneg %p140
    $region22: #{d4_forward.6} parent=5 // pred_check_branch
      %143 = sbr.rel (%p141) target = $region24
    $region23: #{d4_forward.6} parent=5 // pred_region
      // Predicated region
      $region25: #{d4_forward.6} parent=23 // pred_check
        %p144 = pneg %p43
      $region26: #{d4_forward.6} parent=23 // pred_check_branch
        %146 = sbr.rel (%p144) target = $region28
      $region27: #{d4_forward.6} parent=23 // pred_region
        %s147 = smul.u32 4, %s17
        %p148 = scmp.lt.s32.totalorder %s16, 1
        %s149 = scalar_select %p148, %s16, 1
        %p150 = scmp.lt.s32.totalorder %s147, 3
        %s151 = scalar_select %p150, %s147, 3
        %s152 = smul.addr %s151, 41
        %s153 = smul.addr %s149, 164
        %s154 = sadd.s32 %s152, %s153
        %s155 = smul.addr %s154, 4
        %s156 = scalar_lea.vmem %s0, %s155
        %s157 = smul.u32 4, %s17
      $region28: #{d4_forward.6} parent=23 // pred_fallthru
        _
    $region24: #{d4_forward.6} parent=5 // pred_fallthru
      _
    %p158 = scmp.le.s32.totalorder 1, %s9
    %p159 = scmp.lt.s32.totalorder %s9, 3
    %p160 = pnand %p158, %p159
    %p161 = pneg %p160
    // Predicated region
    $region29: #{d4_forward.6} parent=5 // pred_check
      _
    $region30: #{d4_forward.6} parent=5 // pred_check_branch
      %163 = sbr.rel (%p160) target = $region32
    $region31: #{d4_forward.6} parent=5 // pred_region
      %s164 = ssub.s32 %s9, 1
      %s165 = smul.u32 4, %s19
      %p166 = scmp.lt.s32.totalorder %s18, 1
      %s167 = scalar_select %p166, %s18, 1
      %p168 = scmp.lt.s32.totalorder %s165, 3
      %s169 = scalar_select %p168, %s165, 3
      %s170 = smul.addr %s169, 41
      %s171 = smul.addr %s167, 164
      %s172 = sadd.s32 %s170, %s171
      %s173 = smul.addr %s172, 4
      %s174 = scalar_lea.vmem %s0, %s173
      %p175 = pneg %p49
      %p176 = pneg %p46
      %p177 = pneg %p70
      %p178 = pneg %p67
      %p179 = pneg %p91
      %p180 = pneg %p88
      %p181 = pneg %p119
      %p182 = pneg %p116
      %s183 = smul.u32 4, %s19
      %p184 = scmp.lt.s32.totalorder %s18, 1
      %s185 = scalar_select %p184, %s18, 1
      %p186 = scmp.lt.s32.totalorder %s183, 3
      %s187 = scalar_select %p186, %s183, 3
      %s188 = smul.addr %s187, 9
      %s189 = smul.addr %s185, 36
      %s190 = sadd.s32 %s188, %s189
      %s191 = smul.addr %s190, 4
      %s192 = scalar_lea.vmem %s3, %s191
      %s193 = smul.u32 4, %s19
      %p194 = scmp.lt.s32.totalorder %s18, 1
      %s195 = scalar_select %p194, %s18, 1
      %p196 = scmp.lt.s32.totalorder %s193, 3
      %s197 = scalar_select %p196, %s193, 3
      %s198 = smul.addr %s197, 41
      %s199 = smul.addr %s195, 164
      %s200 = sadd.s32 %s198, %s199
      %s201 = smul.addr %s200, 4
      %s202 = scalar_lea.vmem %s0, %s201
      %s203 = smul.u32 4, %s19
      %s204 = smul.u32 4, %s19
      %p205 = scmp.lt.s32.totalorder %s18, 1
      %s206 = scalar_select %p205, %s18, 1
      %p207 = scmp.lt.s32.totalorder %s204, 3
      %s208 = scalar_select %p207, %s204, 3
      %s209 = smul.addr %s208, 9
      %s210 = smul.addr %s206, 36
      %s211 = sadd.s32 %s209, %s210
      %s212 = smul.addr %s211, 4
      %s213 = scalar_lea.vmem %s3, %s212
      %s214 = smul.u32 4, %s19
      %v216 = vld [vmem:[%s202] sm:$0xf]
      %v217 = vld [vmem:[%s202 + $0x4] sm:$0xf]
      %v218 = vld [vmem:[%s202 + $0x8] sm:$0xf]
      %v219 = vld [vmem:[%s202 + $0xc] sm:$0xf]
      %v220 = vld [vmem:[%s202 + $0x10] sm:$0xf]
      %v221 = vld [vmem:[%s202 + $0x14] sm:$0xf]
      %v222 = vld [vmem:[%s202 + $0x18] sm:$0xf]
      %v223 = vld [vmem:[%s202 + $0x1c] sm:$0xf]
      %v224 = vld [vmem:[%s202 + $0x20] sm:$0xf]
      %v225 = vld [vmem:[%s1] sm:$0xf]
      %v226 = vld [vmem:[%s1 + $0x4] sm:$0xf]
      %v227 = vld [vmem:[%s1 + $0x8] sm:$0xf]
      %v228 = vld [vmem:[%s1 + $0xc] sm:$0xf]
      %v229 = vld [vmem:[%s1 + $0x10] sm:$0xf]
      %v230 = vld [vmem:[%s1 + $0x14] sm:$0xf]
      %v231 = vld [vmem:[%s202 + $0x28] sm:$0xf]
      %v232 = vld [vmem:[%s202 + $0x2c] sm:$0xf]
      %v233 = vld [vmem:[%s202 + $0x30] sm:$0xf]
      %v234 = vld [vmem:[%s202 + $0x34] sm:$0xf]
      %v235 = vld [vmem:[%s202 + $0x38] sm:$0xf]
      %v236 = vld [vmem:[%s202 + $0x3c] sm:$0xf]
      %v237 = vld [vmem:[%s202 + $0x40] sm:$0xf]
      %v238 = vld [vmem:[%s202 + $0x44] sm:$0xf]
      %v239 = vld [vmem:[%s202 + $0x48] sm:$0xf]
      %v240 = vld [vmem:[%s202 + $0x4c] sm:$0x1]
      %s241 = scalar_lea.vmem %s1, 24
      %v242 = vld [vmem:[%s241] sm:$0xf]
      %v243 = vld [vmem:[%s241 + $0x4] sm:$0xf]
      %v244 = vld [vmem:[%s241 + $0x8] sm:$0xf]
      %v245 = vld [vmem:[%s241 + $0xc] sm:$0xf]
      %v246 = vld [vmem:[%s241 + $0x10] sm:$0xf]
      %v247 = vld [vmem:[%s241 + $0x14] sm:$0xf]
      %v258 = vunpack.c.l.b16 %v231
      %v259 = vunpack.c.l.b16 %v232
      %v260 = vunpack.c.l.b16 %v233
      %v261 = vunpack.c.l.b16 %v234
      %v262 = vunpack.c.l.b16 %v235
      %v263 = vunpack.c.l.b16 %v236
      %v264 = vunpack.c.l.b16 %v237
      %v265 = vunpack.c.l.b16 %v238
      %v266 = vunpack.c.l.b16 %v239
      %v267 = vunpack.c.l.b16 %v240
      %v268 = vpack.c.b16 %v259, %v258
      %v269 = vpack.c.b16 %v261, %v260
      %v270 = vpack.c.b16 %v263, %v262
      %v271 = vpack.c.b16 %v265, %v264
      %v272 = vpack.c.b16 %v267, %v266
      %vm273 = vsmask.f32 7424
      %v275 = vshrl.u32 %v268, 16
      %v277 = vshll.u32 %v268, 16
      %v279 = vrot.slane %v277, 1
      %v280 = vor.u32 %v275, %v279
      %v282 = vshll.u32 %v269, 16
      %v284 = vrot.slane %v282, 1
      %v285 = vsel %vm273, %v280, %v284
      %v286 = vshrl.u32 %v269, 16
      %v288 = vor.u32 %v286, %v284
      %v290 = vshll.u32 %v270, 16
      %v292 = vrot.slane %v290, 1
      %v293 = vsel %vm273, %v288, %v292
      %v294 = vshrl.u32 %v270, 16
      %v296 = vor.u32 %v294, %v292
      %v298 = vshll.u32 %v271, 16
      %v300 = vrot.slane %v298, 1
      %v301 = vsel %vm273, %v296, %v300
      %v302 = vshrl.u32 %v271, 16
      %v304 = vor.u32 %v302, %v300
      %v306 = vshll.u32 %v272, 16
      %v308 = vrot.slane %v306, 1
      %v309 = vsel %vm273, %v304, %v308
      %v310 = vshrl.u32 %v272, 16
      %v312 = vor.u32 %v310, %v308
      %v319 = vunpack.c.l.b16 %v242
      %v320 = vunpack.c.l.b16 %v243
      %v321 = vunpack.c.l.b16 %v244
      %v322 = vunpack.c.l.b16 %v245
      %v323 = vunpack.c.l.b16 %v246
      %v324 = vunpack.c.l.b16 %v247
      %v325 = vpack.c.b16 %v320, %v319
      %v326 = vpack.c.b16 %v322, %v321
      %v327 = vpack.c.b16 %v324, %v323
      %vm331 = vcmask 392192
      %v333 = vsel %vm331, %v285, 0
      %v336 = vsel %vm331, %v293, 0
      %v339 = vsel %vm331, %v301, 0
      %v342 = vsel %vm331, %v309, 0
      %v345 = vsel %vm331, %v312, 0
      %347 = vmatprep.subr.bf16.mxu0 0
      %348 = vmatpush1.bf16.msra.mxu0 0
      %349 = vmatprep.subr.bf16.mxu0 0
      %350 = vmatpush1.bf16.msra.mxu0 0
      %351 = vmatprep.subr.bf16.mxu0 0
      %352 = vmatpush1.bf16.msra.mxu0 0
      %353 = vmatprep.subr.bf16.mxu0 0
      %354 = vmatpush1.bf16.msra.mxu0 0
      %355 = vmatprep.subr.bf16.mxu0 0
      %356 = vmatpush1.bf16.msra.mxu0 0
      %357 = vmatprep.subr.bf16.mxu0 0
      %358 = vmatpush1.bf16.msra.mxu0 %v327
      %359 = vmatprep.subr.bf16.mxu0 0
      %360 = vmatpush1.bf16.msra.mxu0 %v326
      %361 = vmatprep.subr.bf16.mxu0 0
      %362 = vmatpush1.bf16.msra.mxu0 %v325
      %363 = vmatprep.subr.bf16.mxu0 0
      %364 = vmatpush2.bf16.msra.mxu0 0
      %365 = vmatprep.subr.bf16.mxu0 0
      %366 = vmatpush2.bf16.msra.mxu0 0
      %367 = vmatprep.subr.bf16.mxu0 0
      %368 = vmatpush2.bf16.msra.mxu0 0
      %369 = vmatprep.subr.bf16.mxu0 0
      %370 = vmatpush2.bf16.msra.mxu0 0
      %371 = vmatprep.subr.bf16.mxu0 0
      %372 = vmatpush2.bf16.msra.mxu0 0
      %373 = vmatprep.subr.bf16.mxu0 0
      %374 = vmatpush2.bf16.msra.mxu0 0
      %375 = vmatprep.subr.bf16.mxu0 0
      %376 = vmatpush2.bf16.msra.mxu0 0
      %377 = vmatprep.subr.bf16.mxu0 0
      %378 = vmatpush2.bf16.msra.mxu0 0
      %379 = vmatprep.mubr.bf16.mxu0 0
      %380 = vmatmul.mubr.bf16.gmra.mxu0 %v333
      %v381 = vpop.f32.mrf.mxu0
      %v382 = vadd.f32 0.0, %v381
      %v383 = vpop.f32.mrf.mxu0
      %v384 = vpop.f32.mrf.mxu0
      %v385 = vadd.f32 0.0, %v384
      %v386 = vpop.f32.mrf.mxu0
      %387 = vmatprep.mubr.bf16.mxu0 0
      %388 = vmatmul.mubr.bf16.gmra.mxu0 %v336
      %v389 = vpop.f32.mrf.mxu0
      %v390 = vadd.f32 0.0, %v389
      %v391 = vpop.f32.mrf.mxu0
      %v392 = vpop.f32.mrf.mxu0
      %v393 = vadd.f32 0.0, %v392
      %v394 = vpop.f32.mrf.mxu0
      %395 = vmatprep.mubr.bf16.mxu0 0
      %396 = vmatmul.mubr.bf16.gmra.mxu0 %v339
      %v397 = vpop.f32.mrf.mxu0
      %v398 = vadd.f32 0.0, %v397
      %v399 = vpop.f32.mrf.mxu0
      %v400 = vpop.f32.mrf.mxu0
      %v401 = vadd.f32 0.0, %v400
      %v402 = vpop.f32.mrf.mxu0
      %403 = vmatprep.mubr.bf16.mxu0 0
      %404 = vmatmul.mubr.bf16.gmra.mxu0 %v342
      %v405 = vpop.f32.mrf.mxu0
      %v406 = vadd.f32 0.0, %v405
      %v407 = vpop.f32.mrf.mxu0
      %v408 = vpop.f32.mrf.mxu0
      %v409 = vadd.f32 0.0, %v408
      %v410 = vpop.f32.mrf.mxu0
      %411 = vmatprep.mubr.bf16.mxu0 0
      %412 = vmatmul.mubr.bf16.gmra.mxu0 %v345
      %v413 = vpop.f32.mrf.mxu0
      %v414 = vadd.f32 0.0, %v413
      %v415 = vpop.f32.mrf.mxu0
      %v416 = vpop.f32.mrf.mxu0
      %v417 = vpop.f32.mrf.mxu0
      %418 = vdwg.mxu0
      %v428 = vunpack.c.l.b16 %v216
      %v429 = vunpack.c.l.b16 %v217
      %v430 = vunpack.c.l.b16 %v218
      %v431 = vunpack.c.l.b16 %v219
      %v432 = vunpack.c.l.b16 %v220
      %v433 = vunpack.c.l.b16 %v221
      %v434 = vunpack.c.l.b16 %v222
      %v435 = vunpack.c.l.b16 %v223
      %v436 = vunpack.c.l.b16 %v224
      %v437 = vpack.c.b16 %v429, %v428
      %v438 = vpack.c.b16 %v431, %v430
      %v439 = vpack.c.b16 %v433, %v432
      %v440 = vpack.c.b16 %v435, %v434
      %v441 = vpack.c.b16 %v436, %v436
      %v448 = vunpack.c.l.b16 %v225
      %v449 = vunpack.c.l.b16 %v226
      %v450 = vunpack.c.l.b16 %v227
      %v451 = vunpack.c.l.b16 %v228
      %v452 = vunpack.c.l.b16 %v229
      %v453 = vunpack.c.l.b16 %v230
      %v454 = vpack.c.b16 %v449, %v448
      %v455 = vpack.c.b16 %v451, %v450
      %v456 = vpack.c.b16 %v453, %v452
      %v461 = vsel %vm331, %v437, 0
      %v464 = vsel %vm331, %v438, 0
      %v467 = vsel %vm331, %v439, 0
      %v470 = vsel %vm331, %v440, 0
      %v473 = vsel %vm331, %v441, 0
      %475 = vmatprep.subr.bf16.mxu0 0
      %476 = vmatpush1.bf16.msra.mxu0 0
      %477 = vmatprep.subr.bf16.mxu0 0
      %478 = vmatpush1.bf16.msra.mxu0 0
      %479 = vmatprep.subr.bf16.mxu0 0
      %480 = vmatpush1.bf16.msra.mxu0 0
      %481 = vmatprep.subr.bf16.mxu0 0
      %482 = vmatpush1.bf16.msra.mxu0 0
      %483 = vmatprep.subr.bf16.mxu0 0
      %484 = vmatpush1.bf16.msra.mxu0 0
      %485 = vmatprep.subr.bf16.mxu0 0
      %486 = vmatpush1.bf16.msra.mxu0 %v456
      %487 = vmatprep.subr.bf16.mxu0 0
      %488 = vmatpush1.bf16.msra.mxu0 %v455
      %489 = vmatprep.subr.bf16.mxu0 0
      %490 = vmatpush1.bf16.msra.mxu0 %v454
      %491 = vmatprep.subr.bf16.mxu0 0
      %492 = vmatpush2.bf16.msra.mxu0 0
      %493 = vmatprep.subr.bf16.mxu0 0
      %494 = vmatpush2.bf16.msra.mxu0 0
      %495 = vmatprep.subr.bf16.mxu0 0
      %496 = vmatpush2.bf16.msra.mxu0 0
      %497 = vmatprep.subr.bf16.mxu0 0
      %498 = vmatpush2.bf16.msra.mxu0 0
      %499 = vmatprep.subr.bf16.mxu0 0
      %500 = vmatpush2.bf16.msra.mxu0 0
      %501 = vmatprep.subr.bf16.mxu0 0
      %502 = vmatpush2.bf16.msra.mxu0 0
      %503 = vmatprep.subr.bf16.mxu0 0
      %504 = vmatpush2.bf16.msra.mxu0 0
      %505 = vmatprep.subr.bf16.mxu0 0
      %506 = vmatpush2.bf16.msra.mxu0 0
      %507 = vmatprep.mubr.bf16.mxu0 0
      %508 = vmatmul.mubr.bf16.gmra.mxu0 %v461
      %v509 = vpop.f32.mrf.mxu0
      %v510 = vadd.f32 %v382, %v509
      %v511 = vpop.f32.mrf.mxu0
      %v512 = vpop.f32.mrf.mxu0
      %v513 = vadd.f32 %v385, %v512
      %v514 = vpop.f32.mrf.mxu0
      %515 = vmatprep.mubr.bf16.mxu0 0
      %516 = vmatmul.mubr.bf16.gmra.mxu0 %v464
      %v517 = vpop.f32.mrf.mxu0
      %v518 = vadd.f32 %v390, %v517
      %v519 = vpop.f32.mrf.mxu0
      %v520 = vpop.f32.mrf.mxu0
      %v521 = vadd.f32 %v393, %v520
      %v522 = vpop.f32.mrf.mxu0
      %523 = vmatprep.mubr.bf16.mxu0 0
      %524 = vmatmul.mubr.bf16.gmra.mxu0 %v467
      %v525 = vpop.f32.mrf.mxu0
      %v526 = vadd.f32 %v398, %v525
      %v527 = vpop.f32.mrf.mxu0
      %v528 = vpop.f32.mrf.mxu0
      %v529 = vadd.f32 %v401, %v528
      %v530 = vpop.f32.mrf.mxu0
      %531 = vmatprep.mubr.bf16.mxu0 0
      %532 = vmatmul.mubr.bf16.gmra.mxu0 %v470
      %v533 = vpop.f32.mrf.mxu0
      %v534 = vadd.f32 %v406, %v533
      %v535 = vpop.f32.mrf.mxu0
      %v536 = vpop.f32.mrf.mxu0
      %v537 = vadd.f32 %v409, %v536
      %v538 = vpop.f32.mrf.mxu0
      %539 = vmatprep.mubr.bf16.mxu0 0
      %540 = vmatmul.mubr.bf16.gmra.mxu0 %v473
      %v541 = vpop.f32.mrf.mxu0
      %v542 = vadd.f32 %v414, %v541
      %v543 = vpop.f32.mrf.mxu0
      %v544 = vpop.f32.mrf.mxu0
      %v545 = vpop.f32.mrf.mxu0
      %546 = vdwg.mxu0
      %v547 = vld [vmem:[%s202] sm:$0xf]
      %v548 = vld [vmem:[%s202 + $0x4] sm:$0xf]
      %v549 = vld [vmem:[%s202 + $0x8] sm:$0xf]
      %v550 = vld [vmem:[%s202 + $0xc] sm:$0xf]
      %v551 = vld [vmem:[%s202 + $0x10] sm:$0xf]
      %v552 = vld [vmem:[%s202 + $0x14] sm:$0xf]
      %v553 = vld [vmem:[%s202 + $0x18] sm:$0xf]
      %v554 = vld [vmem:[%s202 + $0x1c] sm:$0xf]
      %v555 = vld [vmem:[%s202 + $0x20] sm:$0xf]
      %v556 = vld [vmem:[%s202 + $0x24] sm:$0x1]
      %s557 = scalar_lea.vmem %s1, 48
      %v558 = vld [vmem:[%s557] sm:$0xf]
      %v559 = vld [vmem:[%s557 + $0x4] sm:$0xf]
      %v560 = vld [vmem:[%s557 + $0x8] sm:$0xf]
      %v561 = vld [vmem:[%s557 + $0xc] sm:$0xf]
      %v562 = vld [vmem:[%s557 + $0x10] sm:$0xf]
      %v563 = vld [vmem:[%s557 + $0x14] sm:$0xf]
      %v574 = vunpack.c.l.b16 %v547
      %v575 = vunpack.c.l.b16 %v548
      %v576 = vunpack.c.l.b16 %v549
      %v577 = vunpack.c.l.b16 %v550
      %v578 = vunpack.c.l.b16 %v551
      %v579 = vunpack.c.l.b16 %v552
      %v580 = vunpack.c.l.b16 %v553
      %v581 = vunpack.c.l.b16 %v554
      %v582 = vunpack.c.l.b16 %v555
      %v583 = vunpack.c.l.b16 %v556
      %v584 = vpack.c.b16 %v575, %v574
      %v585 = vpack.c.b16 %v577, %v576
      %v586 = vpack.c.b16 %v579, %v578
      %v587 = vpack.c.b16 %v581, %v580
      %v588 = vpack.c.b16 %v583, %v582
      %v590 = vshrl.u32 %v584, 16
      %v592 = vshll.u32 %v584, 16
      %v594 = vrot.slane %v592, 1
      %v595 = vor.u32 %v590, %v594
      %v597 = vshll.u32 %v585, 16
      %v599 = vrot.slane %v597, 1
      %v600 = vsel %vm273, %v595, %v599
      %v601 = vshrl.u32 %v585, 16
      %v603 = vor.u32 %v601, %v599
      %v605 = vshll.u32 %v586, 16
      %v607 = vrot.slane %v605, 1
      %v608 = vsel %vm273, %v603, %v607
      %v609 = vshrl.u32 %v586, 16
      %v611 = vor.u32 %v609, %v607
      %v613 = vshll.u32 %v587, 16
      %v615 = vrot.slane %v613, 1
      %v616 = vsel %vm273, %v611, %v615
      %v617 = vshrl.u32 %v587, 16
      %v619 = vor.u32 %v617, %v615
      %v621 = vshll.u32 %v588, 16
      %v623 = vrot.slane %v621, 1
      %v624 = vsel %vm273, %v619, %v623
      %v625 = vshrl.u32 %v588, 16
      %v627 = vor.u32 %v625, %v623
      %v634 = vunpack.c.l.b16 %v558
      %v635 = vunpack.c.l.b16 %v559
      %v636 = vunpack.c.l.b16 %v560
      %v637 = vunpack.c.l.b16 %v561
      %v638 = vunpack.c.l.b16 %v562
      %v639 = vunpack.c.l.b16 %v563
      %v640 = vpack.c.b16 %v635, %v634
      %v641 = vpack.c.b16 %v637, %v636
      %v642 = vpack.c.b16 %v639, %v638
      %v647 = vsel %vm331, %v600, 0
      %v650 = vsel %vm331, %v608, 0
      %v653 = vsel %vm331, %v616, 0
      %v656 = vsel %vm331, %v624, 0
      %v659 = vsel %vm331, %v627, 0
      %661 = vmatprep.subr.bf16.mxu0 0
      %662 = vmatpush1.bf16.msra.mxu0 0
      %663 = vmatprep.subr.bf16.mxu0 0
      %664 = vmatpush1.bf16.msra.mxu0 0
      %665 = vmatprep.subr.bf16.mxu0 0
      %666 = vmatpush1.bf16.msra.mxu0 0
      %667 = vmatprep.subr.bf16.mxu0 0
      %668 = vmatpush1.bf16.msra.mxu0 0
      %669 = vmatprep.subr.bf16.mxu0 0
      %670 = vmatpush1.bf16.msra.mxu0 0
      %671 = vmatprep.subr.bf16.mxu0 0
      %672 = vmatpush1.bf16.msra.mxu0 %v642
      %673 = vmatprep.subr.bf16.mxu0 0
      %674 = vmatpush1.bf16.msra.mxu0 %v641
      %675 = vmatprep.subr.bf16.mxu0 0
      %676 = vmatpush1.bf16.msra.mxu0 %v640
      %677 = vmatprep.subr.bf16.mxu0 0
      %678 = vmatpush2.bf16.msra.mxu0 0
      %679 = vmatprep.subr.bf16.mxu0 0
      %680 = vmatpush2.bf16.msra.mxu0 0
      %681 = vmatprep.subr.bf16.mxu0 0
      %682 = vmatpush2.bf16.msra.mxu0 0
      %683 = vmatprep.subr.bf16.mxu0 0
      %684 = vmatpush2.bf16.msra.mxu0 0
      %685 = vmatprep.subr.bf16.mxu0 0
      %686 = vmatpush2.bf16.msra.mxu0 0
      %687 = vmatprep.subr.bf16.mxu0 0
      %688 = vmatpush2.bf16.msra.mxu0 0
      %689 = vmatprep.subr.bf16.mxu0 0
      %690 = vmatpush2.bf16.msra.mxu0 0
      %691 = vmatprep.subr.bf16.mxu0 0
      %692 = vmatpush2.bf16.msra.mxu0 0
      %693 = vmatprep.mubr.bf16.mxu0 0
      %694 = vmatmul.mubr.bf16.gmra.mxu0 %v647
      %v695 = vpop.f32.mrf.mxu0
      %v696 = vadd.f32 0.0, %v695
      %v697 = vpop.f32.mrf.mxu0
      %v698 = vpop.f32.mrf.mxu0
      %v699 = vadd.f32 0.0, %v698
      %v700 = vpop.f32.mrf.mxu0
      %701 = vmatprep.mubr.bf16.mxu0 0
      %702 = vmatmul.mubr.bf16.gmra.mxu0 %v650
      %v703 = vpop.f32.mrf.mxu0
      %v704 = vadd.f32 0.0, %v703
      %v705 = vpop.f32.mrf.mxu0
      %v706 = vpop.f32.mrf.mxu0
      %v707 = vadd.f32 0.0, %v706
      %v708 = vpop.f32.mrf.mxu0
      %709 = vmatprep.mubr.bf16.mxu0 0
      %710 = vmatmul.mubr.bf16.gmra.mxu0 %v653
      %v711 = vpop.f32.mrf.mxu0
      %v712 = vadd.f32 0.0, %v711
      %v713 = vpop.f32.mrf.mxu0
      %v714 = vpop.f32.mrf.mxu0
      %v715 = vadd.f32 0.0, %v714
      %v716 = vpop.f32.mrf.mxu0
      %717 = vmatprep.mubr.bf16.mxu0 0
      %718 = vmatmul.mubr.bf16.gmra.mxu0 %v656
      %v719 = vpop.f32.mrf.mxu0
      %v720 = vadd.f32 0.0, %v719
      %v721 = vpop.f32.mrf.mxu0
      %v722 = vpop.f32.mrf.mxu0
      %v723 = vadd.f32 0.0, %v722
      %v724 = vpop.f32.mrf.mxu0
      %725 = vmatprep.mubr.bf16.mxu0 0
      %726 = vmatmul.mubr.bf16.gmra.mxu0 %v659
      %v727 = vpop.f32.mrf.mxu0
      %v728 = vadd.f32 0.0, %v727
      %v729 = vpop.f32.mrf.mxu0
      %v730 = vpop.f32.mrf.mxu0
      %v731 = vpop.f32.mrf.mxu0
      %732 = vdwg.mxu0
      %v733 = vadd.f32 %v510, %v696
      %v734 = vadd.f32 %v513, %v699
      %v735 = vadd.f32 %v518, %v704
      %v736 = vadd.f32 %v521, %v707
      %v737 = vadd.f32 %v526, %v712
      %v738 = vadd.f32 %v529, %v715
      %v739 = vadd.f32 %v534, %v720
      %v740 = vadd.f32 %v537, %v723
      %v741 = vadd.f32 %v542, %v728
      %v742 = vld [vmem:[%s202 + $0x50] sm:$0xe]
      %v743 = vld [vmem:[%s202 + $0x54] sm:$0xf]
      %v744 = vld [vmem:[%s202 + $0x58] sm:$0xf]
      %v745 = vld [vmem:[%s202 + $0x5c] sm:$0xf]
      %v746 = vld [vmem:[%s202 + $0x60] sm:$0xf]
      %v747 = vld [vmem:[%s202 + $0x64] sm:$0xf]
      %v748 = vld [vmem:[%s202 + $0x68] sm:$0xf]
      %v749 = vld [vmem:[%s202 + $0x6c] sm:$0xf]
      %v750 = vld [vmem:[%s202 + $0x70] sm:$0xf]
      %v751 = vld [vmem:[%s202 + $0x74] sm:$0x1]
      %s752 = scalar_lea.vmem %s1, 72
      %v753 = vld [vmem:[%s752] sm:$0xf]
      %v754 = vld [vmem:[%s752 + $0x4] sm:$0xf]
      %v755 = vld [vmem:[%s752 + $0x8] sm:$0xf]
      %v756 = vld [vmem:[%s752 + $0xc] sm:$0xf]
      %v757 = vld [vmem:[%s752 + $0x10] sm:$0xf]
      %v758 = vld [vmem:[%s752 + $0x14] sm:$0xf]
      %v769 = vunpack.c.l.b16 %v742
      %v770 = vunpack.c.l.b16 %v743
      %v771 = vunpack.c.l.b16 %v744
      %v772 = vunpack.c.l.b16 %v745
      %v773 = vunpack.c.l.b16 %v746
      %v774 = vunpack.c.l.b16 %v747
      %v775 = vunpack.c.l.b16 %v748
      %v776 = vunpack.c.l.b16 %v749
      %v777 = vunpack.c.l.b16 %v750
      %v778 = vunpack.c.l.b16 %v751
      %v779 = vpack.c.b16 %v770, %v769
      %v780 = vpack.c.b16 %v772, %v771
      %v781 = vpack.c.b16 %v774, %v773
      %v782 = vpack.c.b16 %v776, %v775
      %v783 = vpack.c.b16 %v778, %v777
      %vm784 = vcmask 1046528
      %v785 = vrot.slane %v779, 1
      %v786 = vrot.slane %v780, 1
      %v787 = vsel %vm784, %v785, %v786
      %v788 = vrot.slane %v781, 1
      %v789 = vsel %vm784, %v786, %v788
      %v790 = vrot.slane %v782, 1
      %v791 = vsel %vm784, %v788, %v790
      %v792 = vrot.slane %v783, 1
      %v793 = vsel %vm784, %v790, %v792
      %v800 = vunpack.c.l.b16 %v753
      %v801 = vunpack.c.l.b16 %v754
      %v802 = vunpack.c.l.b16 %v755
      %v803 = vunpack.c.l.b16 %v756
      %v804 = vunpack.c.l.b16 %v757
      %v805 = vunpack.c.l.b16 %v758
      %v806 = vpack.c.b16 %v801, %v800
      %v807 = vpack.c.b16 %v803, %v802
      %v808 = vpack.c.b16 %v805, %v804
      %v813 = vsel %vm331, %v787, 0
      %v816 = vsel %vm331, %v789, 0
      %v819 = vsel %vm331, %v791, 0
      %v822 = vsel %vm331, %v793, 0
      %v825 = vsel %vm331, %v792, 0
      %827 = vmatprep.subr.bf16.mxu0 0
      %828 = vmatpush1.bf16.msra.mxu0 0
      %829 = vmatprep.subr.bf16.mxu0 0
      %830 = vmatpush1.bf16.msra.mxu0 0
      %831 = vmatprep.subr.bf16.mxu0 0
      %832 = vmatpush1.bf16.msra.mxu0 0
      %833 = vmatprep.subr.bf16.mxu0 0
      %834 = vmatpush1.bf16.msra.mxu0 0
      %835 = vmatprep.subr.bf16.mxu0 0
      %836 = vmatpush1.bf16.msra.mxu0 0
      %837 = vmatprep.subr.bf16.mxu0 0
      %838 = vmatpush1.bf16.msra.mxu0 %v808
      %839 = vmatprep.subr.bf16.mxu0 0
      %840 = vmatpush1.bf16.msra.mxu0 %v807
      %841 = vmatprep.subr.bf16.mxu0 0
      %842 = vmatpush1.bf16.msra.mxu0 %v806
      %843 = vmatprep.subr.bf16.mxu0 0
      %844 = vmatpush2.bf16.msra.mxu0 0
      %845 = vmatprep.subr.bf16.mxu0 0
      %846 = vmatpush2.bf16.msra.mxu0 0
      %847 = vmatprep.subr.bf16.mxu0 0
      %848 = vmatpush2.bf16.msra.mxu0 0
      %849 = vmatprep.subr.bf16.mxu0 0
      %850 = vmatpush2.bf16.msra.mxu0 0
      %851 = vmatprep.subr.bf16.mxu0 0
      %852 = vmatpush2.bf16.msra.mxu0 0
      %853 = vmatprep.subr.bf16.mxu0 0
      %854 = vmatpush2.bf16.msra.mxu0 0
      %855 = vmatprep.subr.bf16.mxu0 0
      %856 = vmatpush2.bf16.msra.mxu0 0
      %857 = vmatprep.subr.bf16.mxu0 0
      %858 = vmatpush2.bf16.msra.mxu0 0
      %859 = vmatprep.mubr.bf16.mxu0 0
      %860 = vmatmul.mubr.bf16.gmra.mxu0 %v813
      %v861 = vpop.f32.mrf.mxu0
      %v862 = vadd.f32 0.0, %v861
      %v863 = vpop.f32.mrf.mxu0
      %v864 = vpop.f32.mrf.mxu0
      %v865 = vadd.f32 0.0, %v864
      %v866 = vpop.f32.mrf.mxu0
      %867 = vmatprep.mubr.bf16.mxu0 0
      %868 = vmatmul.mubr.bf16.gmra.mxu0 %v816
      %v869 = vpop.f32.mrf.mxu0
      %v870 = vadd.f32 0.0, %v869
      %v871 = vpop.f32.mrf.mxu0
      %v872 = vpop.f32.mrf.mxu0
      %v873 = vadd.f32 0.0, %v872
      %v874 = vpop.f32.mrf.mxu0
      %875 = vmatprep.mubr.bf16.mxu0 0
      %876 = vmatmul.mubr.bf16.gmra.mxu0 %v819
      %v877 = vpop.f32.mrf.mxu0
      %v878 = vadd.f32 0.0, %v877
      %v879 = vpop.f32.mrf.mxu0
      %v880 = vpop.f32.mrf.mxu0
      %v881 = vadd.f32 0.0, %v880
      %v882 = vpop.f32.mrf.mxu0
      %883 = vmatprep.mubr.bf16.mxu0 0
      %884 = vmatmul.mubr.bf16.gmra.mxu0 %v822
      %v885 = vpop.f32.mrf.mxu0
      %v886 = vadd.f32 0.0, %v885
      %v887 = vpop.f32.mrf.mxu0
      %v888 = vpop.f32.mrf.mxu0
      %v889 = vadd.f32 0.0, %v888
      %v890 = vpop.f32.mrf.mxu0
      %891 = vmatprep.mubr.bf16.mxu0 0
      %892 = vmatmul.mubr.bf16.gmra.mxu0 %v825
      %v893 = vpop.f32.mrf.mxu0
      %v894 = vadd.f32 0.0, %v893
      %v895 = vpop.f32.mrf.mxu0
      %v896 = vpop.f32.mrf.mxu0
      %v897 = vpop.f32.mrf.mxu0
      %898 = vdwg.mxu0
      %v899 = vadd.f32 %v733, %v862
      %v900 = vadd.f32 %v734, %v865
      %v901 = vadd.f32 %v735, %v870
      %v902 = vadd.f32 %v736, %v873
      %v903 = vadd.f32 %v737, %v878
      %v904 = vadd.f32 %v738, %v881
      %v905 = vadd.f32 %v739, %v886
      %v906 = vadd.f32 %v740, %v889
      %v907 = vadd.f32 %v741, %v894
      %v908 = vld [vmem:[%s202 + $0x78] sm:$0xe]
      %v909 = vld [vmem:[%s202 + $0x7c] sm:$0xf]
      %v910 = vld [vmem:[%s202 + $0x80] sm:$0xf]
      %v911 = vld [vmem:[%s202 + $0x84] sm:$0xf]
      %v912 = vld [vmem:[%s202 + $0x88] sm:$0xf]
      %v913 = vld [vmem:[%s202 + $0x8c] sm:$0xf]
      %v914 = vld [vmem:[%s202 + $0x90] sm:$0xf]
      %v915 = vld [vmem:[%s202 + $0x94] sm:$0xf]
      %v916 = vld [vmem:[%s202 + $0x98] sm:$0xf]
      %v917 = vld [vmem:[%s202 + $0x9c] sm:$0x3]
      %s918 = scalar_lea.vmem %s1, 96
      %v919 = vld [vmem:[%s918] sm:$0xf]
      %v920 = vld [vmem:[%s918 + $0x4] sm:$0xf]
      %v921 = vld [vmem:[%s918 + $0x8] sm:$0xf]
      %v922 = vld [vmem:[%s918 + $0xc] sm:$0xf]
      %v923 = vld [vmem:[%s918 + $0x10] sm:$0xf]
      %v924 = vld [vmem:[%s918 + $0x14] sm:$0xf]
      %v935 = vunpack.c.l.b16 %v908
      %v936 = vunpack.c.l.b16 %v909
      %v937 = vunpack.c.l.b16 %v910
      %v938 = vunpack.c.l.b16 %v911
      %v939 = vunpack.c.l.b16 %v912
      %v940 = vunpack.c.l.b16 %v913
      %v941 = vunpack.c.l.b16 %v914
      %v942 = vunpack.c.l.b16 %v915
      %v943 = vunpack.c.l.b16 %v916
      %v944 = vunpack.c.l.b16 %v917
      %v945 = vpack.c.b16 %v936, %v935
      %v946 = vpack.c.b16 %v938, %v937
      %v947 = vpack.c.b16 %v940, %v939
      %v948 = vpack.c.b16 %v942, %v941
      %v949 = vpack.c.b16 %v944, %v943
      %vm950 = vsmask.f32 6400
      %v952 = vshrl.u32 %v945, 16
      %v954 = vrot.slane %v952, 1
      %v955 = vshll.u32 %v945, 16
      %v957 = vrot.slane %v955, 2
      %v958 = vor.u32 %v954, %v957
      %v960 = vshrl.u32 %v946, 16
      %v962 = vrot.slane %v960, 1
      %v963 = vshll.u32 %v946, 16
      %v965 = vrot.slane %v963, 2
      %v966 = vor.u32 %v962, %v965
      %v967 = vsel %vm950, %v958, %v966
      %v969 = vshrl.u32 %v947, 16
      %v971 = vrot.slane %v969, 1
      %v972 = vshll.u32 %v947, 16
      %v974 = vrot.slane %v972, 2
      %v975 = vor.u32 %v971, %v974
      %v976 = vsel %vm950, %v966, %v975
      %v978 = vshrl.u32 %v948, 16
      %v980 = vrot.slane %v978, 1
      %v981 = vshll.u32 %v948, 16
      %v983 = vrot.slane %v981, 2
      %v984 = vor.u32 %v980, %v983
      %v985 = vsel %vm950, %v975, %v984
      %v987 = vshrl.u32 %v949, 16
      %v989 = vrot.slane %v987, 1
      %v990 = vshll.u32 %v949, 16
      %v992 = vrot.slane %v990, 2
      %v993 = vor.u32 %v989, %v992
      %v994 = vsel %vm950, %v984, %v993
      %v1001 = vunpack.c.l.b16 %v919
      %v1002 = vunpack.c.l.b16 %v920
      %v1003 = vunpack.c.l.b16 %v921
      %v1004 = vunpack.c.l.b16 %v922
      %v1005 = vunpack.c.l.b16 %v923
      %v1006 = vunpack.c.l.b16 %v924
      %v1007 = vpack.c.b16 %v1002, %v1001
      %v1008 = vpack.c.b16 %v1004, %v1003
      %v1009 = vpack.c.b16 %v1006, %v1005
      %v1014 = vsel %vm331, %v967, 0
      %v1017 = vsel %vm331, %v976, 0
      %v1020 = vsel %vm331, %v985, 0
      %v1023 = vsel %vm331, %v994, 0
      %v1026 = vsel %vm331, %v993, 0
      %1028 = vmatprep.subr.bf16.mxu0 0
      %1029 = vmatpush1.bf16.msra.mxu0 0
      %1030 = vmatprep.subr.bf16.mxu0 0
      %1031 = vmatpush1.bf16.msra.mxu0 0
      %1032 = vmatprep.subr.bf16.mxu0 0
      %1033 = vmatpush1.bf16.msra.mxu0 0
      %1034 = vmatprep.subr.bf16.mxu0 0
      %1035 = vmatpush1.bf16.msra.mxu0 0
      %1036 = vmatprep.subr.bf16.mxu0 0
      %1037 = vmatpush1.bf16.msra.mxu0 0
      %1038 = vmatprep.subr.bf16.mxu0 0
      %1039 = vmatpush1.bf16.msra.mxu0 %v1009
      %1040 = vmatprep.subr.bf16.mxu0 0
      %1041 = vmatpush1.bf16.msra.mxu0 %v1008
      %1042 = vmatprep.subr.bf16.mxu0 0
      %1043 = vmatpush1.bf16.msra.mxu0 %v1007
      %1044 = vmatprep.subr.bf16.mxu0 0
      %1045 = vmatpush2.bf16.msra.mxu0 0
      %1046 = vmatprep.subr.bf16.mxu0 0
      %1047 = vmatpush2.bf16.msra.mxu0 0
      %1048 = vmatprep.subr.bf16.mxu0 0
      %1049 = vmatpush2.bf16.msra.mxu0 0
      %1050 = vmatprep.subr.bf16.mxu0 0
      %1051 = vmatpush2.bf16.msra.mxu0 0
      %1052 = vmatprep.subr.bf16.mxu0 0
      %1053 = vmatpush2.bf16.msra.mxu0 0
      %1054 = vmatprep.subr.bf16.mxu0 0
      %1055 = vmatpush2.bf16.msra.mxu0 0
      %1056 = vmatprep.subr.bf16.mxu0 0
      %1057 = vmatpush2.bf16.msra.mxu0 0
      %1058 = vmatprep.subr.bf16.mxu0 0
      %1059 = vmatpush2.bf16.msra.mxu0 0
      %1060 = vmatprep.mubr.bf16.mxu0 0
      %1061 = vmatmul.mubr.bf16.gmra.mxu0 %v1014
      %v1062 = vpop.f32.mrf.mxu0
      %v1063 = vadd.f32 0.0, %v1062
      %v1064 = vpop.f32.mrf.mxu0
      %v1065 = vpop.f32.mrf.mxu0
      %v1066 = vadd.f32 0.0, %v1065
      %v1067 = vpop.f32.mrf.mxu0
      %1068 = vmatprep.mubr.bf16.mxu0 0
      %1069 = vmatmul.mubr.bf16.gmra.mxu0 %v1017
      %v1070 = vpop.f32.mrf.mxu0
      %v1071 = vadd.f32 0.0, %v1070
      %v1072 = vpop.f32.mrf.mxu0
      %v1073 = vpop.f32.mrf.mxu0
      %v1074 = vadd.f32 0.0, %v1073
      %v1075 = vpop.f32.mrf.mxu0
      %1076 = vmatprep.mubr.bf16.mxu0 0
      %1077 = vmatmul.mubr.bf16.gmra.mxu0 %v1020
      %v1078 = vpop.f32.mrf.mxu0
      %v1079 = vadd.f32 0.0, %v1078
      %v1080 = vpop.f32.mrf.mxu0
      %v1081 = vpop.f32.mrf.mxu0
      %v1082 = vadd.f32 0.0, %v1081
      %v1083 = vpop.f32.mrf.mxu0
      %1084 = vmatprep.mubr.bf16.mxu0 0
      %1085 = vmatmul.mubr.bf16.gmra.mxu0 %v1023
      %v1086 = vpop.f32.mrf.mxu0
      %v1087 = vadd.f32 0.0, %v1086
      %v1088 = vpop.f32.mrf.mxu0
      %v1089 = vpop.f32.mrf.mxu0
      %v1090 = vadd.f32 0.0, %v1089
      %v1091 = vpop.f32.mrf.mxu0
      %1092 = vmatprep.mubr.bf16.mxu0 0
      %1093 = vmatmul.mubr.bf16.gmra.mxu0 %v1026
      %v1094 = vpop.f32.mrf.mxu0
      %v1095 = vadd.f32 0.0, %v1094
      %v1096 = vpop.f32.mrf.mxu0
      %v1097 = vpop.f32.mrf.mxu0
      %v1098 = vpop.f32.mrf.mxu0
      %1099 = vdwg.mxu0
      %v1100 = vadd.f32 %v899, %v1063
      %v1101 = vadd.f32 %v900, %v1066
      %v1102 = vadd.f32 %v901, %v1071
      %v1103 = vadd.f32 %v902, %v1074
      %v1104 = vadd.f32 %v903, %v1079
      %v1105 = vadd.f32 %v904, %v1082
      %v1106 = vadd.f32 %v905, %v1087
      %v1107 = vadd.f32 %v906, %v1090
      %v1108 = vadd.f32 %v907, %v1095
      %v1109 = vld [vmem:[%s202 + $0x74] sm:$0x3]
      %s1110 = scalar_lea.vmem %s1, 120
      %v1111 = vld [vmem:[%s1110] sm:$0xf]
      %v1112 = vld [vmem:[%s1110 + $0x4] sm:$0xf]
      %v1113 = vld [vmem:[%s1110 + $0x8] sm:$0xf]
      %v1114 = vld [vmem:[%s1110 + $0xc] sm:$0xf]
      %v1115 = vld [vmem:[%s1110 + $0x10] sm:$0xf]
      %v1116 = vld [vmem:[%s1110 + $0x14] sm:$0xf]
      %v1118 = vunpack.c.l.b16 %v1109
      %v1119 = vpack.c.b16 %v1118, %v777
      %v1121 = vshrl.u32 %v779, 16
      %v1123 = vrot.slane %v1121, 1
      %v1124 = vshll.u32 %v779, 16
      %v1126 = vrot.slane %v1124, 2
      %v1127 = vor.u32 %v1123, %v1126
      %v1129 = vshrl.u32 %v780, 16
      %v1131 = vrot.slane %v1129, 1
      %v1132 = vshll.u32 %v780, 16
      %v1134 = vrot.slane %v1132, 2
      %v1135 = vor.u32 %v1131, %v1134
      %v1136 = vsel %vm950, %v1127, %v1135
      %v1138 = vshrl.u32 %v781, 16
      %v1140 = vrot.slane %v1138, 1
      %v1141 = vshll.u32 %v781, 16
      %v1143 = vrot.slane %v1141, 2
      %v1144 = vor.u32 %v1140, %v1143
      %v1145 = vsel %vm950, %v1135, %v1144
      %v1147 = vshrl.u32 %v782, 16
      %v1149 = vrot.slane %v1147, 1
      %v1150 = vshll.u32 %v782, 16
      %v1152 = vrot.slane %v1150, 2
      %v1153 = vor.u32 %v1149, %v1152
      %v1154 = vsel %vm950, %v1144, %v1153
      %v1156 = vshrl.u32 %v1119, 16
      %v1158 = vrot.slane %v1156, 1
      %v1159 = vshll.u32 %v1119, 16
      %v1161 = vrot.slane %v1159, 2
      %v1162 = vor.u32 %v1158, %v1161
      %v1163 = vsel %vm950, %v1153, %v1162
      %v1170 = vunpack.c.l.b16 %v1111
      %v1171 = vunpack.c.l.b16 %v1112
      %v1172 = vunpack.c.l.b16 %v1113
      %v1173 = vunpack.c.l.b16 %v1114
      %v1174 = vunpack.c.l.b16 %v1115
      %v1175 = vunpack.c.l.b16 %v1116
      %v1176 = vpack.c.b16 %v1171, %v1170
      %v1177 = vpack.c.b16 %v1173, %v1172
      %v1178 = vpack.c.b16 %v1175, %v1174
      %v1183 = vsel %vm331, %v1136, 0
      %v1186 = vsel %vm331, %v1145, 0
      %v1189 = vsel %vm331, %v1154, 0
      %v1192 = vsel %vm331, %v1163, 0
      %v1195 = vsel %vm331, %v1162, 0
      %1197 = vmatprep.subr.bf16.mxu0 0
      %1198 = vmatpush1.bf16.msra.mxu0 0
      %1199 = vmatprep.subr.bf16.mxu0 0
      %1200 = vmatpush1.bf16.msra.mxu0 0
      %1201 = vmatprep.subr.bf16.mxu0 0
      %1202 = vmatpush1.bf16.msra.mxu0 0
      %1203 = vmatprep.subr.bf16.mxu0 0
      %1204 = vmatpush1.bf16.msra.mxu0 0
      %1205 = vmatprep.subr.bf16.mxu0 0
      %1206 = vmatpush1.bf16.msra.mxu0 0
      %1207 = vmatprep.subr.bf16.mxu0 0
      %1208 = vmatpush1.bf16.msra.mxu0 %v1178
      %1209 = vmatprep.subr.bf16.mxu0 0
      %1210 = vmatpush1.bf16.msra.mxu0 %v1177
      %1211 = vmatprep.subr.bf16.mxu0 0
      %1212 = vmatpush1.bf16.msra.mxu0 %v1176
      %1213 = vmatprep.subr.bf16.mxu0 0
      %1214 = vmatpush2.bf16.msra.mxu0 0
      %1215 = vmatprep.subr.bf16.mxu0 0
      %1216 = vmatpush2.bf16.msra.mxu0 0
      %1217 = vmatprep.subr.bf16.mxu0 0
      %1218 = vmatpush2.bf16.msra.mxu0 0
      %1219 = vmatprep.subr.bf16.mxu0 0
      %1220 = vmatpush2.bf16.msra.mxu0 0
      %1221 = vmatprep.subr.bf16.mxu0 0
      %1222 = vmatpush2.bf16.msra.mxu0 0
      %1223 = vmatprep.subr.bf16.mxu0 0
      %1224 = vmatpush2.bf16.msra.mxu0 0
      %1225 = vmatprep.subr.bf16.mxu0 0
      %1226 = vmatpush2.bf16.msra.mxu0 0
      %1227 = vmatprep.subr.bf16.mxu0 0
      %1228 = vmatpush2.bf16.msra.mxu0 0
      %1229 = vmatprep.mubr.bf16.mxu0 0
      %1230 = vmatmul.mubr.bf16.gmra.mxu0 %v1183
      %v1231 = vpop.f32.mrf.mxu0
      %v1232 = vadd.f32 0.0, %v1231
      %v1233 = vpop.f32.mrf.mxu0
      %v1234 = vpop.f32.mrf.mxu0
      %v1235 = vadd.f32 0.0, %v1234
      %v1236 = vpop.f32.mrf.mxu0
      %1237 = vmatprep.mubr.bf16.mxu0 0
      %1238 = vmatmul.mubr.bf16.gmra.mxu0 %v1186
      %v1239 = vpop.f32.mrf.mxu0
      %v1240 = vadd.f32 0.0, %v1239
      %v1241 = vpop.f32.mrf.mxu0
      %v1242 = vpop.f32.mrf.mxu0
      %v1243 = vadd.f32 0.0, %v1242
      %v1244 = vpop.f32.mrf.mxu0
      %1245 = vmatprep.mubr.bf16.mxu0 0
      %1246 = vmatmul.mubr.bf16.gmra.mxu0 %v1189
      %v1247 = vpop.f32.mrf.mxu0
      %v1248 = vadd.f32 0.0, %v1247
      %v1249 = vpop.f32.mrf.mxu0
      %v1250 = vpop.f32.mrf.mxu0
      %v1251 = vadd.f32 0.0, %v1250
      %v1252 = vpop.f32.mrf.mxu0
      %1253 = vmatprep.mubr.bf16.mxu0 0
      %1254 = vmatmul.mubr.bf16.gmra.mxu0 %v1192
      %v1255 = vpop.f32.mrf.mxu0
      %v1256 = vadd.f32 0.0, %v1255
      %v1257 = vpop.f32.mrf.mxu0
      %v1258 = vpop.f32.mrf.mxu0
      %v1259 = vadd.f32 0.0, %v1258
      %v1260 = vpop.f32.mrf.mxu0
      %1261 = vmatprep.mubr.bf16.mxu0 0
      %1262 = vmatmul.mubr.bf16.gmra.mxu0 %v1195
      %v1263 = vpop.f32.mrf.mxu0
      %v1264 = vadd.f32 0.0, %v1263
      %v1265 = vpop.f32.mrf.mxu0
      %v1266 = vpop.f32.mrf.mxu0
      %v1267 = vpop.f32.mrf.mxu0
      %1268 = vdwg.mxu0
      %v1269 = vadd.f32 %v1100, %v1232
      %v1270 = vadd.f32 %v1101, %v1235
      %v1271 = vadd.f32 %v1102, %v1240
      %v1272 = vadd.f32 %v1103, %v1243
      %v1273 = vadd.f32 %v1104, %v1248
      %v1274 = vadd.f32 %v1105, %v1251
      %v1275 = vadd.f32 %v1106, %v1256
      %v1276 = vadd.f32 %v1107, %v1259
      %v1277 = vadd.f32 %v1108, %v1264
      %v1278 = vld [vmem:[%s202 + $0x4] sm:$0xf]
      %v1279 = vld [vmem:[%s202 + $0x8] sm:$0xf]
      %v1280 = vld [vmem:[%s202 + $0xc] sm:$0xf]
      %v1281 = vld [vmem:[%s202 + $0x10] sm:$0xf]
      %v1282 = vld [vmem:[%s202 + $0x14] sm:$0xf]
      %v1283 = vld [vmem:[%s202 + $0x18] sm:$0xf]
      %v1284 = vld [vmem:[%s202 + $0x1c] sm:$0xf]
      %v1285 = vld [vmem:[%s202 + $0x20] sm:$0xf]
      %v1286 = vld [vmem:[%s202 + $0x24] sm:$0xf]
      %v1287 = vld [vmem:[%s202 + $0x28] sm:$0x1]
      %s1288 = scalar_lea.vmem %s1, 144
      %v1289 = vld [vmem:[%s1288] sm:$0xf]
      %v1290 = vld [vmem:[%s1288 + $0x4] sm:$0xf]
      %v1291 = vld [vmem:[%s1288 + $0x8] sm:$0xf]
      %v1292 = vld [vmem:[%s1288 + $0xc] sm:$0xf]
      %v1293 = vld [vmem:[%s1288 + $0x10] sm:$0xf]
      %v1294 = vld [vmem:[%s1288 + $0x14] sm:$0xf]
      %v1305 = vunpack.c.l.b16 %v1278
      %v1306 = vunpack.c.l.b16 %v1279
      %v1307 = vunpack.c.l.b16 %v1280
      %v1308 = vunpack.c.l.b16 %v1281
      %v1309 = vunpack.c.l.b16 %v1282
      %v1310 = vunpack.c.l.b16 %v1283
      %v1311 = vunpack.c.l.b16 %v1284
      %v1312 = vunpack.c.l.b16 %v1285
      %v1313 = vunpack.c.l.b16 %v1286
      %v1314 = vunpack.c.l.b16 %v1287
      %v1315 = vpack.c.b16 %v1306, %v1305
      %v1316 = vpack.c.b16 %v1308, %v1307
      %v1317 = vpack.c.b16 %v1310, %v1309
      %v1318 = vpack.c.b16 %v1312, %v1311
      %v1319 = vpack.c.b16 %v1314, %v1313
      %v1321 = vshrl.u32 %v1315, 16
      %v1323 = vshll.u32 %v1315, 16
      %v1325 = vrot.slane %v1323, 1
      %v1326 = vor.u32 %v1321, %v1325
      %v1328 = vshll.u32 %v1316, 16
      %v1330 = vrot.slane %v1328, 1
      %v1331 = vsel %vm273, %v1326, %v1330
      %v1332 = vshrl.u32 %v1316, 16
      %v1334 = vor.u32 %v1332, %v1330
      %v1336 = vshll.u32 %v1317, 16
      %v1338 = vrot.slane %v1336, 1
      %v1339 = vsel %vm273, %v1334, %v1338
      %v1340 = vshrl.u32 %v1317, 16
      %v1342 = vor.u32 %v1340, %v1338
      %v1344 = vshll.u32 %v1318, 16
      %v1346 = vrot.slane %v1344, 1
      %v1347 = vsel %vm273, %v1342, %v1346
      %v1348 = vshrl.u32 %v1318, 16
      %v1350 = vor.u32 %v1348, %v1346
      %v1352 = vshll.u32 %v1319, 16
      %v1354 = vrot.slane %v1352, 1
      %v1355 = vsel %vm273, %v1350, %v1354
      %v1356 = vshrl.u32 %v1319, 16
      %v1358 = vor.u32 %v1356, %v1354
      %v1365 = vunpack.c.l.b16 %v1289
      %v1366 = vunpack.c.l.b16 %v1290
      %v1367 = vunpack.c.l.b16 %v1291
      %v1368 = vunpack.c.l.b16 %v1292
      %v1369 = vunpack.c.l.b16 %v1293
      %v1370 = vunpack.c.l.b16 %v1294
      %v1371 = vpack.c.b16 %v1366, %v1365
      %v1372 = vpack.c.b16 %v1368, %v1367
      %v1373 = vpack.c.b16 %v1370, %v1369
      %v1378 = vsel %vm331, %v1331, 0
      %v1381 = vsel %vm331, %v1339, 0
      %v1384 = vsel %vm331, %v1347, 0
      %v1387 = vsel %vm331, %v1355, 0
      %v1390 = vsel %vm331, %v1358, 0
      %1392 = vmatprep.subr.bf16.mxu0 0
      %1393 = vmatpush1.bf16.msra.mxu0 0
      %1394 = vmatprep.subr.bf16.mxu0 0
      %1395 = vmatpush1.bf16.msra.mxu0 0
      %1396 = vmatprep.subr.bf16.mxu0 0
      %1397 = vmatpush1.bf16.msra.mxu0 0
      %1398 = vmatprep.subr.bf16.mxu0 0
      %1399 = vmatpush1.bf16.msra.mxu0 0
      %1400 = vmatprep.subr.bf16.mxu0 0
      %1401 = vmatpush1.bf16.msra.mxu0 0
      %1402 = vmatprep.subr.bf16.mxu0 0
      %1403 = vmatpush1.bf16.msra.mxu0 %v1373
      %1404 = vmatprep.subr.bf16.mxu0 0
      %1405 = vmatpush1.bf16.msra.mxu0 %v1372
      %1406 = vmatprep.subr.bf16.mxu0 0
      %1407 = vmatpush1.bf16.msra.mxu0 %v1371
      %1408 = vmatprep.subr.bf16.mxu0 0
      %1409 = vmatpush2.bf16.msra.mxu0 0
      %1410 = vmatprep.subr.bf16.mxu0 0
      %1411 = vmatpush2.bf16.msra.mxu0 0
      %1412 = vmatprep.subr.bf16.mxu0 0
      %1413 = vmatpush2.bf16.msra.mxu0 0
      %1414 = vmatprep.subr.bf16.mxu0 0
      %1415 = vmatpush2.bf16.msra.mxu0 0
      %1416 = vmatprep.subr.bf16.mxu0 0
      %1417 = vmatpush2.bf16.msra.mxu0 0
      %1418 = vmatprep.subr.bf16.mxu0 0
      %1419 = vmatpush2.bf16.msra.mxu0 0
      %1420 = vmatprep.subr.bf16.mxu0 0
      %1421 = vmatpush2.bf16.msra.mxu0 0
      %1422 = vmatprep.subr.bf16.mxu0 0
      %1423 = vmatpush2.bf16.msra.mxu0 0
      %1424 = vmatprep.mubr.bf16.mxu0 0
      %1425 = vmatmul.mubr.bf16.gmra.mxu0 %v1378
      %v1426 = vpop.f32.mrf.mxu0
      %v1427 = vadd.f32 0.0, %v1426
      %v1428 = vpop.f32.mrf.mxu0
      %v1429 = vpop.f32.mrf.mxu0
      %v1430 = vadd.f32 0.0, %v1429
      %v1431 = vpop.f32.mrf.mxu0
      %1432 = vmatprep.mubr.bf16.mxu0 0
      %1433 = vmatmul.mubr.bf16.gmra.mxu0 %v1381
      %v1434 = vpop.f32.mrf.mxu0
      %v1435 = vadd.f32 0.0, %v1434
      %v1436 = vpop.f32.mrf.mxu0
      %v1437 = vpop.f32.mrf.mxu0
      %v1438 = vadd.f32 0.0, %v1437
      %v1439 = vpop.f32.mrf.mxu0
      %1440 = vmatprep.mubr.bf16.mxu0 0
      %1441 = vmatmul.mubr.bf16.gmra.mxu0 %v1384
      %v1442 = vpop.f32.mrf.mxu0
      %v1443 = vadd.f32 0.0, %v1442
      %v1444 = vpop.f32.mrf.mxu0
      %v1445 = vpop.f32.mrf.mxu0
      %v1446 = vadd.f32 0.0, %v1445
      %v1447 = vpop.f32.mrf.mxu0
      %1448 = vmatprep.mubr.bf16.mxu0 0
      %1449 = vmatmul.mubr.bf16.gmra.mxu0 %v1387
      %v1450 = vpop.f32.mrf.mxu0
      %v1451 = vadd.f32 0.0, %v1450
      %v1452 = vpop.f32.mrf.mxu0
      %v1453 = vpop.f32.mrf.mxu0
      %v1454 = vadd.f32 0.0, %v1453
      %v1455 = vpop.f32.mrf.mxu0
      %1456 = vmatprep.mubr.bf16.mxu0 0
      %1457 = vmatmul.mubr.bf16.gmra.mxu0 %v1390
      %v1458 = vpop.f32.mrf.mxu0
      %v1459 = vadd.f32 0.0, %v1458
      %v1460 = vpop.f32.mrf.mxu0
      %v1461 = vpop.f32.mrf.mxu0
      %v1462 = vpop.f32.mrf.mxu0
      %1463 = vdwg.mxu0
      %v1464 = vadd.f32 %v1269, %v1427
      %v1465 = vadd.f32 %v1270, %v1430
      %v1466 = vadd.f32 %v1271, %v1435
      %v1467 = vadd.f32 %v1272, %v1438
      %v1468 = vadd.f32 %v1273, %v1443
      %v1469 = vadd.f32 %v1274, %v1446
      %v1470 = vadd.f32 %v1275, %v1451
      %v1471 = vadd.f32 %v1276, %v1454
      %v1472 = vadd.f32 %v1277, %v1459
      %v1473 = vld [vmem:[%s202 + $0x2c] sm:$0xe]
      %v1474 = vld [vmem:[%s202 + $0x30] sm:$0xf]
      %v1475 = vld [vmem:[%s202 + $0x34] sm:$0xf]
      %v1476 = vld [vmem:[%s202 + $0x38] sm:$0xf]
      %v1477 = vld [vmem:[%s202 + $0x3c] sm:$0xf]
      %v1478 = vld [vmem:[%s202 + $0x40] sm:$0xf]
      %v1479 = vld [vmem:[%s202 + $0x44] sm:$0xf]
      %v1480 = vld [vmem:[%s202 + $0x48] sm:$0xf]
      %v1481 = vld [vmem:[%s202 + $0x4c] sm:$0xf]
      %v1482 = vld [vmem:[%s202 + $0x50] sm:$0x1]
      %s1483 = scalar_lea.vmem %s1, 168
      %v1484 = vld [vmem:[%s1483] sm:$0xf]
      %v1485 = vld [vmem:[%s1483 + $0x4] sm:$0xf]
      %v1486 = vld [vmem:[%s1483 + $0x8] sm:$0xf]
      %v1487 = vld [vmem:[%s1483 + $0xc] sm:$0xf]
      %v1488 = vld [vmem:[%s1483 + $0x10] sm:$0xf]
      %v1489 = vld [vmem:[%s1483 + $0x14] sm:$0xf]
      %v1500 = vunpack.c.l.b16 %v1473
      %v1501 = vunpack.c.l.b16 %v1474
      %v1502 = vunpack.c.l.b16 %v1475
      %v1503 = vunpack.c.l.b16 %v1476
      %v1504 = vunpack.c.l.b16 %v1477
      %v1505 = vunpack.c.l.b16 %v1478
      %v1506 = vunpack.c.l.b16 %v1479
      %v1507 = vunpack.c.l.b16 %v1480
      %v1508 = vunpack.c.l.b16 %v1481
      %v1509 = vunpack.c.l.b16 %v1482
      %v1510 = vpack.c.b16 %v1501, %v1500
      %v1511 = vpack.c.b16 %v1503, %v1502
      %v1512 = vpack.c.b16 %v1505, %v1504
      %v1513 = vpack.c.b16 %v1507, %v1506
      %v1514 = vpack.c.b16 %v1509, %v1508
      %v1515 = vrot.slane %v1510, 1
      %v1516 = vrot.slane %v1511, 1
      %v1517 = vsel %vm784, %v1515, %v1516
      %v1518 = vrot.slane %v1512, 1
      %v1519 = vsel %vm784, %v1516, %v1518
      %v1520 = vrot.slane %v1513, 1
      %v1521 = vsel %vm784, %v1518, %v1520
      %v1522 = vrot.slane %v1514, 1
      %v1523 = vsel %vm784, %v1520, %v1522
      %v1530 = vunpack.c.l.b16 %v1484
      %v1531 = vunpack.c.l.b16 %v1485
      %v1532 = vunpack.c.l.b16 %v1486
      %v1533 = vunpack.c.l.b16 %v1487
      %v1534 = vunpack.c.l.b16 %v1488
      %v1535 = vunpack.c.l.b16 %v1489
      %v1536 = vpack.c.b16 %v1531, %v1530
      %v1537 = vpack.c.b16 %v1533, %v1532
      %v1538 = vpack.c.b16 %v1535, %v1534
      %v1543 = vsel %vm331, %v1517, 0
      %v1546 = vsel %vm331, %v1519, 0
      %v1549 = vsel %vm331, %v1521, 0
      %v1552 = vsel %vm331, %v1523, 0
      %v1555 = vsel %vm331, %v1522, 0
      %1557 = vmatprep.subr.bf16.mxu0 0
      %1558 = vmatpush1.bf16.msra.mxu0 0
      %1559 = vmatprep.subr.bf16.mxu0 0
      %1560 = vmatpush1.bf16.msra.mxu0 0
      %1561 = vmatprep.subr.bf16.mxu0 0
      %1562 = vmatpush1.bf16.msra.mxu0 0
      %1563 = vmatprep.subr.bf16.mxu0 0
      %1564 = vmatpush1.bf16.msra.mxu0 0
      %1565 = vmatprep.subr.bf16.mxu0 0
      %1566 = vmatpush1.bf16.msra.mxu0 0
      %1567 = vmatprep.subr.bf16.mxu0 0
      %1568 = vmatpush1.bf16.msra.mxu0 %v1538
      %1569 = vmatprep.subr.bf16.mxu0 0
      %1570 = vmatpush1.bf16.msra.mxu0 %v1537
      %1571 = vmatprep.subr.bf16.mxu0 0
      %1572 = vmatpush1.bf16.msra.mxu0 %v1536
      %1573 = vmatprep.subr.bf16.mxu0 0
      %1574 = vmatpush2.bf16.msra.mxu0 0
      %1575 = vmatprep.subr.bf16.mxu0 0
      %1576 = vmatpush2.bf16.msra.mxu0 0
      %1577 = vmatprep.subr.bf16.mxu0 0
      %1578 = vmatpush2.bf16.msra.mxu0 0
      %1579 = vmatprep.subr.bf16.mxu0 0
      %1580 = vmatpush2.bf16.msra.mxu0 0
      %1581 = vmatprep.subr.bf16.mxu0 0
      %1582 = vmatpush2.bf16.msra.mxu0 0
      %1583 = vmatprep.subr.bf16.mxu0 0
      %1584 = vmatpush2.bf16.msra.mxu0 0
      %1585 = vmatprep.subr.bf16.mxu0 0
      %1586 = vmatpush2.bf16.msra.mxu0 0
      %1587 = vmatprep.subr.bf16.mxu0 0
      %1588 = vmatpush2.bf16.msra.mxu0 0
      %1589 = vmatprep.mubr.bf16.mxu0 0
      %1590 = vmatmul.mubr.bf16.gmra.mxu0 %v1543
      %v1591 = vpop.f32.mrf.mxu0
      %v1592 = vadd.f32 0.0, %v1591
      %v1593 = vpop.f32.mrf.mxu0
      %v1594 = vpop.f32.mrf.mxu0
      %v1595 = vadd.f32 0.0, %v1594
      %v1596 = vpop.f32.mrf.mxu0
      %1597 = vmatprep.mubr.bf16.mxu0 0
      %1598 = vmatmul.mubr.bf16.gmra.mxu0 %v1546
      %v1599 = vpop.f32.mrf.mxu0
      %v1600 = vadd.f32 0.0, %v1599
      %v1601 = vpop.f32.mrf.mxu0
      %v1602 = vpop.f32.mrf.mxu0
      %v1603 = vadd.f32 0.0, %v1602
      %v1604 = vpop.f32.mrf.mxu0
      %1605 = vmatprep.mubr.bf16.mxu0 0
      %1606 = vmatmul.mubr.bf16.gmra.mxu0 %v1549
      %v1607 = vpop.f32.mrf.mxu0
      %v1608 = vadd.f32 0.0, %v1607
      %v1609 = vpop.f32.mrf.mxu0
      %v1610 = vpop.f32.mrf.mxu0
      %v1611 = vadd.f32 0.0, %v1610
      %v1612 = vpop.f32.mrf.mxu0
      %1613 = vmatprep.mubr.bf16.mxu0 0
      %1614 = vmatmul.mubr.bf16.gmra.mxu0 %v1552
      %v1615 = vpop.f32.mrf.mxu0
      %v1616 = vadd.f32 0.0, %v1615
      %v1617 = vpop.f32.mrf.mxu0
      %v1618 = vpop.f32.mrf.mxu0
      %v1619 = vadd.f32 0.0, %v1618
      %v1620 = vpop.f32.mrf.mxu0
      %1621 = vmatprep.mubr.bf16.mxu0 0
      %1622 = vmatmul.mubr.bf16.gmra.mxu0 %v1555
      %v1623 = vpop.f32.mrf.mxu0
      %v1624 = vadd.f32 0.0, %v1623
      %v1625 = vpop.f32.mrf.mxu0
      %v1626 = vpop.f32.mrf.mxu0
      %v1627 = vpop.f32.mrf.mxu0
      %1628 = vdwg.mxu0
      %v1629 = vadd.f32 %v1464, %v1592
      %v1630 = vadd.f32 %v1465, %v1595
      %v1631 = vadd.f32 %v1466, %v1600
      %v1632 = vadd.f32 %v1467, %v1603
      %v1633 = vadd.f32 %v1468, %v1608
      %v1634 = vadd.f32 %v1469, %v1611
      %v1635 = vadd.f32 %v1470, %v1616
      %v1636 = vadd.f32 %v1471, %v1619
      %v1637 = vadd.f32 %v1472, %v1624
      %v1638 = vld [vmem:[%s202 + $0x4] sm:$0xe]
      %s1639 = scalar_lea.vmem %s1, 192
      %v1640 = vld [vmem:[%s1639] sm:$0xf]
      %v1641 = vld [vmem:[%s1639 + $0x4] sm:$0xf]
      %v1642 = vld [vmem:[%s1639 + $0x8] sm:$0xf]
      %v1643 = vld [vmem:[%s1639 + $0xc] sm:$0xf]
      %v1644 = vld [vmem:[%s1639 + $0x10] sm:$0xf]
      %v1645 = vld [vmem:[%s1639 + $0x14] sm:$0xf]
      %v1647 = vunpack.c.l.b16 %v1638
      %v1648 = vpack.c.b16 %v1306, %v1647
      %v1649 = vrot.slane %v1648, 1
      %v1650 = vrot.slane %v1316, 1
      %v1651 = vsel %vm784, %v1649, %v1650
      %v1652 = vrot.slane %v1317, 1
      %v1653 = vsel %vm784, %v1650, %v1652
      %v1654 = vrot.slane %v1318, 1
      %v1655 = vsel %vm784, %v1652, %v1654
      %v1656 = vrot.slane %v1319, 1
      %v1657 = vsel %vm784, %v1654, %v1656
      %v1664 = vunpack.c.l.b16 %v1640
      %v1665 = vunpack.c.l.b16 %v1641
      %v1666 = vunpack.c.l.b16 %v1642
      %v1667 = vunpack.c.l.b16 %v1643
      %v1668 = vunpack.c.l.b16 %v1644
      %v1669 = vunpack.c.l.b16 %v1645
      %v1670 = vpack.c.b16 %v1665, %v1664
      %v1671 = vpack.c.b16 %v1667, %v1666
      %v1672 = vpack.c.b16 %v1669, %v1668
      %v1677 = vsel %vm331, %v1651, 0
      %v1680 = vsel %vm331, %v1653, 0
      %v1683 = vsel %vm331, %v1655, 0
      %v1686 = vsel %vm331, %v1657, 0
      %v1689 = vsel %vm331, %v1656, 0
      %1691 = vmatprep.subr.bf16.mxu0 0
      %1692 = vmatpush1.bf16.msra.mxu0 0
      %1693 = vmatprep.subr.bf16.mxu0 0
      %1694 = vmatpush1.bf16.msra.mxu0 0
      %1695 = vmatprep.subr.bf16.mxu0 0
      %1696 = vmatpush1.bf16.msra.mxu0 0
      %1697 = vmatprep.subr.bf16.mxu0 0
      %1698 = vmatpush1.bf16.msra.mxu0 0
      %1699 = vmatprep.subr.bf16.mxu0 0
      %1700 = vmatpush1.bf16.msra.mxu0 0
      %1701 = vmatprep.subr.bf16.mxu0 0
      %1702 = vmatpush1.bf16.msra.mxu0 %v1672
      %1703 = vmatprep.subr.bf16.mxu0 0
      %1704 = vmatpush1.bf16.msra.mxu0 %v1671
      %1705 = vmatprep.subr.bf16.mxu0 0
      %1706 = vmatpush1.bf16.msra.mxu0 %v1670
      %1707 = vmatprep.subr.bf16.mxu0 0
      %1708 = vmatpush2.bf16.msra.mxu0 0
      %1709 = vmatprep.subr.bf16.mxu0 0
      %1710 = vmatpush2.bf16.msra.mxu0 0
      %1711 = vmatprep.subr.bf16.mxu0 0
      %1712 = vmatpush2.bf16.msra.mxu0 0
      %1713 = vmatprep.subr.bf16.mxu0 0
      %1714 = vmatpush2.bf16.msra.mxu0 0
      %1715 = vmatprep.subr.bf16.mxu0 0
      %1716 = vmatpush2.bf16.msra.mxu0 0
      %1717 = vmatprep.subr.bf16.mxu0 0
      %1718 = vmatpush2.bf16.msra.mxu0 0
      %1719 = vmatprep.subr.bf16.mxu0 0
      %1720 = vmatpush2.bf16.msra.mxu0 0
      %1721 = vmatprep.subr.bf16.mxu0 0
      %1722 = vmatpush2.bf16.msra.mxu0 0
      %1723 = vmatprep.mubr.bf16.mxu0 0
      %1724 = vmatmul.mubr.bf16.gmra.mxu0 %v1677
      %v1725 = vpop.f32.mrf.mxu0
      %v1726 = vadd.f32 0.0, %v1725
      %v1727 = vpop.f32.mrf.mxu0
      %v1728 = vpop.f32.mrf.mxu0
      %v1729 = vadd.f32 0.0, %v1728
      %v1730 = vpop.f32.mrf.mxu0
      %1731 = vmatprep.mubr.bf16.mxu0 0
      %1732 = vmatmul.mubr.bf16.gmra.mxu0 %v1680
      %v1733 = vpop.f32.mrf.mxu0
      %v1734 = vadd.f32 0.0, %v1733
      %v1735 = vpop.f32.mrf.mxu0
      %v1736 = vpop.f32.mrf.mxu0
      %v1737 = vadd.f32 0.0, %v1736
      %v1738 = vpop.f32.mrf.mxu0
      %1739 = vmatprep.mubr.bf16.mxu0 0
      %1740 = vmatmul.mubr.bf16.gmra.mxu0 %v1683
      %v1741 = vpop.f32.mrf.mxu0
      %v1742 = vadd.f32 0.0, %v1741
      %v1743 = vpop.f32.mrf.mxu0
      %v1744 = vpop.f32.mrf.mxu0
      %v1745 = vadd.f32 0.0, %v1744
      %v1746 = vpop.f32.mrf.mxu0
      %1747 = vmatprep.mubr.bf16.mxu0 0
      %1748 = vmatmul.mubr.bf16.gmra.mxu0 %v1686
      %v1749 = vpop.f32.mrf.mxu0
      %v1750 = vadd.f32 0.0, %v1749
      %v1751 = vpop.f32.mrf.mxu0
      %v1752 = vpop.f32.mrf.mxu0
      %v1753 = vadd.f32 0.0, %v1752
      %v1754 = vpop.f32.mrf.mxu0
      %1755 = vmatprep.mubr.bf16.mxu0 0
      %1756 = vmatmul.mubr.bf16.gmra.mxu0 %v1689
      %v1757 = vpop.f32.mrf.mxu0
      %v1758 = vadd.f32 0.0, %v1757
      %v1759 = vpop.f32.mrf.mxu0
      %v1760 = vpop.f32.mrf.mxu0
      %v1761 = vpop.f32.mrf.mxu0
      %1762 = vdwg.mxu0
      %v1763 = vadd.f32 %v1629, %v1726
      %v1764 = vadd.f32 %v1630, %v1729
      %v1765 = vadd.f32 %v1631, %v1734
      %v1766 = vadd.f32 %v1632, %v1737
      %v1767 = vadd.f32 %v1633, %v1742
      %v1768 = vadd.f32 %v1634, %v1745
      %v1769 = vadd.f32 %v1635, %v1750
      %v1770 = vadd.f32 %v1636, %v1753
      %v1771 = vadd.f32 %v1637, %v1758
      %v1772 = vld [vmem:[%s2] sm:$0x1]
      %v1774 = vlaneseq
      %v1775 = vshrl.u32 %v1774, 7
      %v1776 = vsub.s32 0, %v1775
      %v1777 = vrot.slane %v1772, %v1776
      %v1779 = vadd.f32 %v1763, %v1777
      %v1780 = vadd.f32 %v1764, %v1777
      %v1781 = vadd.f32 %v1765, %v1777
      %v1782 = vadd.f32 %v1766, %v1777
      %v1783 = vadd.f32 %v1767, %v1777
      %v1784 = vadd.f32 %v1768, %v1777
      %v1785 = vadd.f32 %v1769, %v1777
      %v1786 = vadd.f32 %v1770, %v1777
      %v1787 = vadd.f32 %v1771, %v1777
      %vm1788 = vcmp.ge.f32.partialorder %v1779, 0.0
      %vm1789 = vcmp.ge.f32.partialorder %v1780, 0.0
      %vm1790 = vcmp.ge.f32.partialorder %v1781, 0.0
      %vm1791 = vcmp.ge.f32.partialorder %v1782, 0.0
      %vm1792 = vcmp.ge.f32.partialorder %v1783, 0.0
      %vm1793 = vcmp.ge.f32.partialorder %v1784, 0.0
      %vm1794 = vcmp.ge.f32.partialorder %v1785, 0.0
      %vm1795 = vcmp.ge.f32.partialorder %v1786, 0.0
      %vm1796 = vcmp.ge.f32.partialorder %v1787, 0.0
      %v1797 = vmul.f32 %v1779, 0.2
      %v1798 = vmul.f32 %v1780, 0.2
      %v1799 = vmul.f32 %v1781, 0.2
      %v1800 = vmul.f32 %v1782, 0.2
      %v1801 = vmul.f32 %v1783, 0.2
      %v1802 = vmul.f32 %v1784, 0.2
      %v1803 = vmul.f32 %v1785, 0.2
      %v1804 = vmul.f32 %v1786, 0.2
      %v1805 = vmul.f32 %v1787, 0.2
      %v1806 = vsel %vm1788, %v1779, %v1797
      %v1807 = vsel %vm1789, %v1780, %v1798
      %v1808 = vsel %vm1790, %v1781, %v1799
      %v1809 = vsel %vm1791, %v1782, %v1800
      %v1810 = vsel %vm1792, %v1783, %v1801
      %v1811 = vsel %vm1793, %v1784, %v1802
      %v1812 = vsel %vm1794, %v1785, %v1803
      %v1813 = vsel %vm1795, %v1786, %v1804
      %v1814 = vsel %vm1796, %v1787, %v1805
      %v1815 = vpack.c.bf16 %v1807, %v1806
      %v1816 = vpack.c.bf16 %v1809, %v1808
      %v1817 = vpack.c.bf16 %v1811, %v1810
      %v1818 = vpack.c.bf16 %v1813, %v1812
      %v1819 = vpack.c.bf16 %v1814, %v1814
      %v1825 = vunpack.c.l.b16 %v1815
      %v1826 = vunpack.c.h.b16 %v1815
      %v1827 = vunpack.c.l.b16 %v1816
      %v1828 = vunpack.c.h.b16 %v1816
      %v1829 = vunpack.c.l.b16 %v1817
      %v1830 = vunpack.c.h.b16 %v1817
      %v1831 = vunpack.c.l.b16 %v1818
      %v1832 = vunpack.c.h.b16 %v1818
      %v1833 = vunpack.c.l.b16 %v1819
      %v1834 = vpack.c.b16 %v1825, %v1825
      %v1835 = vpack.c.b16 %v1826, %v1826
      %v1836 = vpack.c.b16 %v1827, %v1827
      %v1837 = vpack.c.b16 %v1828, %v1828
      %v1838 = vpack.c.b16 %v1829, %v1829
      %v1839 = vpack.c.b16 %v1830, %v1830
      %v1840 = vpack.c.b16 %v1831, %v1831
      %v1841 = vpack.c.b16 %v1832, %v1832
      %v1842 = vpack.c.b16 %v1833, %v1833
      %1852 = vst [vmem:[%s213] sm:$0xf] %v1834
      %1853 = vst [vmem:[%s213 + $0x4] sm:$0xf] %v1835
      %1854 = vst [vmem:[%s213 + $0x8] sm:$0xf] %v1836
      %1855 = vst [vmem:[%s213 + $0xc] sm:$0xf] %v1837
      %1856 = vst [vmem:[%s213 + $0x10] sm:$0xf] %v1838
      %1857 = vst [vmem:[%s213 + $0x14] sm:$0xf] %v1839
      %1858 = vst [vmem:[%s213 + $0x18] sm:$0xf] %v1840
      %1859 = vst [vmem:[%s213 + $0x1c] sm:$0xf] %v1841
      %1860 = vst [vmem:[%s213 + $0x20] sm:$0xf] %v1842
      %s1861 = scalar_lea.vmem %s202, 164
      %v1862 = vld [vmem:[%s1861] sm:$0xf]
      %v1863 = vld [vmem:[%s1861 + $0x4] sm:$0xf]
      %v1864 = vld [vmem:[%s1861 + $0x8] sm:$0xf]
      %v1865 = vld [vmem:[%s1861 + $0xc] sm:$0xf]
      %v1866 = vld [vmem:[%s1861 + $0x10] sm:$0xf]
      %v1867 = vld [vmem:[%s1861 + $0x14] sm:$0xf]
      %v1868 = vld [vmem:[%s1861 + $0x18] sm:$0xf]
      %v1869 = vld [vmem:[%s1861 + $0x1c] sm:$0xf]
      %v1870 = vld [vmem:[%s1861 + $0x20] sm:$0xf]
      %v1871 = vld [vmem:[%s1] sm:$0xf]
      %v1872 = vld [vmem:[%s1 + $0x4] sm:$0xf]
      %v1873 = vld [vmem:[%s1 + $0x8] sm:$0xf]
      %v1874 = vld [vmem:[%s1 + $0xc] sm:$0xf]
      %v1875 = vld [vmem:[%s1 + $0x10] sm:$0xf]
      %v1876 = vld [vmem:[%s1 + $0x14] sm:$0xf]
      %v1877 = vld [vmem:[%s1861 + $0x28] sm:$0xf]
      %v1878 = vld [vmem:[%s1861 + $0x2c] sm:$0xf]
      %v1879 = vld [vmem:[%s1861 + $0x30] sm:$0xf]
      %v1880 = vld [vmem:[%s1861 + $0x34] sm:$0xf]
      %v1881 = vld [vmem:[%s1861 + $0x38] sm:$0xf]
      %v1882 = vld [vmem:[%s1861 + $0x3c] sm:$0xf]
      %v1883 = vld [vmem:[%s1861 + $0x40] sm:$0xf]
      %v1884 = vld [vmem:[%s1861 + $0x44] sm:$0xf]
      %v1885 = vld [vmem:[%s1861 + $0x48] sm:$0xf]
      %v1886 = vld [vmem:[%s1861 + $0x4c] sm:$0x1]
      %v1887 = vld [vmem:[%s241] sm:$0xf]
      %v1888 = vld [vmem:[%s241 + $0x4] sm:$0xf]
      %v1889 = vld [vmem:[%s241 + $0x8] sm:$0xf]
      %v1890 = vld [vmem:[%s241 + $0xc] sm:$0xf]
      %v1891 = vld [vmem:[%s241 + $0x10] sm:$0xf]
      %v1892 = vld [vmem:[%s241 + $0x14] sm:$0xf]
      %v1903 = vunpack.c.l.b16 %v1877
      %v1904 = vunpack.c.l.b16 %v1878
      %v1905 = vunpack.c.l.b16 %v1879
      %v1906 = vunpack.c.l.b16 %v1880
      %v1907 = vunpack.c.l.b16 %v1881
      %v1908 = vunpack.c.l.b16 %v1882
      %v1909 = vunpack.c.l.b16 %v1883
      %v1910 = vunpack.c.l.b16 %v1884
      %v1911 = vunpack.c.l.b16 %v1885
      %v1912 = vunpack.c.l.b16 %v1886
      %v1913 = vpack.c.b16 %v1904, %v1903
      %v1914 = vpack.c.b16 %v1906, %v1905
      %v1915 = vpack.c.b16 %v1908, %v1907
      %v1916 = vpack.c.b16 %v1910, %v1909
      %v1917 = vpack.c.b16 %v1912, %v1911
      %v1919 = vshrl.u32 %v1913, 16
      %v1921 = vshll.u32 %v1913, 16
      %v1923 = vrot.slane %v1921, 1
      %v1924 = vor.u32 %v1919, %v1923
      %v1926 = vshll.u32 %v1914, 16
      %v1928 = vrot.slane %v1926, 1
      %v1929 = vsel %vm273, %v1924, %v1928
      %v1930 = vshrl.u32 %v1914, 16
      %v1932 = vor.u32 %v1930, %v1928
      %v1934 = vshll.u32 %v1915, 16
      %v1936 = vrot.slane %v1934, 1
      %v1937 = vsel %vm273, %v1932, %v1936
      %v1938 = vshrl.u32 %v1915, 16
      %v1940 = vor.u32 %v1938, %v1936
      %v1942 = vshll.u32 %v1916, 16
      %v1944 = vrot.slane %v1942, 1
      %v1945 = vsel %vm273, %v1940, %v1944
      %v1946 = vshrl.u32 %v1916, 16
      %v1948 = vor.u32 %v1946, %v1944
      %v1950 = vshll.u32 %v1917, 16
      %v1952 = vrot.slane %v1950, 1
      %v1953 = vsel %vm273, %v1948, %v1952
      %v1954 = vshrl.u32 %v1917, 16
      %v1956 = vor.u32 %v1954, %v1952
      %v1963 = vunpack.c.l.b16 %v1887
      %v1964 = vunpack.c.l.b16 %v1888
      %v1965 = vunpack.c.l.b16 %v1889
      %v1966 = vunpack.c.l.b16 %v1890
      %v1967 = vunpack.c.l.b16 %v1891
      %v1968 = vunpack.c.l.b16 %v1892
      %v1969 = vpack.c.b16 %v1964, %v1963
      %v1970 = vpack.c.b16 %v1966, %v1965
      %v1971 = vpack.c.b16 %v1968, %v1967
      %v1976 = vsel %vm331, %v1929, 0
      %v1979 = vsel %vm331, %v1937, 0
      %v1982 = vsel %vm331, %v1945, 0
      %v1985 = vsel %vm331, %v1953, 0
      %v1988 = vsel %vm331, %v1956, 0
      %1990 = vmatprep.subr.bf16.mxu0 0
      %1991 = vmatpush1.bf16.msra.mxu0 0
      %1992 = vmatprep.subr.bf16.mxu0 0
      %1993 = vmatpush1.bf16.msra.mxu0 0
      %1994 = vmatprep.subr.bf16.mxu0 0
      %1995 = vmatpush1.bf16.msra.mxu0 0
      %1996 = vmatprep.subr.bf16.mxu0 0
      %1997 = vmatpush1.bf16.msra.mxu0 0
      %1998 = vmatprep.subr.bf16.mxu0 0
      %1999 = vmatpush1.bf16.msra.mxu0 0
      %2000 = vmatprep.subr.bf16.mxu0 0
      %2001 = vmatpush1.bf16.msra.mxu0 %v1971
      %2002 = vmatprep.subr.bf16.mxu0 0
      %2003 = vmatpush1.bf16.msra.mxu0 %v1970
      %2004 = vmatprep.subr.bf16.mxu0 0
      %2005 = vmatpush1.bf16.msra.mxu0 %v1969
      %2006 = vmatprep.subr.bf16.mxu0 0
      %2007 = vmatpush2.bf16.msra.mxu0 0
      %2008 = vmatprep.subr.bf16.mxu0 0
      %2009 = vmatpush2.bf16.msra.mxu0 0
      %2010 = vmatprep.subr.bf16.mxu0 0
      %2011 = vmatpush2.bf16.msra.mxu0 0
      %2012 = vmatprep.subr.bf16.mxu0 0
      %2013 = vmatpush2.bf16.msra.mxu0 0
      %2014 = vmatprep.subr.bf16.mxu0 0
      %2015 = vmatpush2.bf16.msra.mxu0 0
      %2016 = vmatprep.subr.bf16.mxu0 0
      %2017 = vmatpush2.bf16.msra.mxu0 0
      %2018 = vmatprep.subr.bf16.mxu0 0
      %2019 = vmatpush2.bf16.msra.mxu0 0
      %2020 = vmatprep.subr.bf16.mxu0 0
      %2021 = vmatpush2.bf16.msra.mxu0 0
      %2022 = vmatprep.mubr.bf16.mxu0 0
      %2023 = vmatmul.mubr.bf16.gmra.mxu0 %v1976
      %v2024 = vpop.f32.mrf.mxu0
      %v2025 = vadd.f32 0.0, %v2024
      %v2026 = vpop.f32.mrf.mxu0
      %v2027 = vpop.f32.mrf.mxu0
      %v2028 = vadd.f32 0.0, %v2027
      %v2029 = vpop.f32.mrf.mxu0
      %2030 = vmatprep.mubr.bf16.mxu0 0
      %2031 = vmatmul.mubr.bf16.gmra.mxu0 %v1979
      %v2032 = vpop.f32.mrf.mxu0
      %v2033 = vadd.f32 0.0, %v2032
      %v2034 = vpop.f32.mrf.mxu0
      %v2035 = vpop.f32.mrf.mxu0
      %v2036 = vadd.f32 0.0, %v2035
      %v2037 = vpop.f32.mrf.mxu0
      %2038 = vmatprep.mubr.bf16.mxu0 0
      %2039 = vmatmul.mubr.bf16.gmra.mxu0 %v1982
      %v2040 = vpop.f32.mrf.mxu0
      %v2041 = vadd.f32 0.0, %v2040
      %v2042 = vpop.f32.mrf.mxu0
      %v2043 = vpop.f32.mrf.mxu0
      %v2044 = vadd.f32 0.0, %v2043
      %v2045 = vpop.f32.mrf.mxu0
      %2046 = vmatprep.mubr.bf16.mxu0 0
      %2047 = vmatmul.mubr.bf16.gmra.mxu0 %v1985
      %v2048 = vpop.f32.mrf.mxu0
      %v2049 = vadd.f32 0.0, %v2048
      %v2050 = vpop.f32.mrf.mxu0
      %v2051 = vpop.f32.mrf.mxu0
      %v2052 = vadd.f32 0.0, %v2051
      %v2053 = vpop.f32.mrf.mxu0
      %2054 = vmatprep.mubr.bf16.mxu0 0
      %2055 = vmatmul.mubr.bf16.gmra.mxu0 %v1988
      %v2056 = vpop.f32.mrf.mxu0
      %v2057 = vadd.f32 0.0, %v2056
      %v2058 = vpop.f32.mrf.mxu0
      %v2059 = vpop.f32.mrf.mxu0
      %v2060 = vpop.f32.mrf.mxu0
      %2061 = vdwg.mxu0
      %v2071 = vunpack.c.l.b16 %v1862
      %v2072 = vunpack.c.l.b16 %v1863
      %v2073 = vunpack.c.l.b16 %v1864
      %v2074 = vunpack.c.l.b16 %v1865
      %v2075 = vunpack.c.l.b16 %v1866
      %v2076 = vunpack.c.l.b16 %v1867
      %v2077 = vunpack.c.l.b16 %v1868
      %v2078 = vunpack.c.l.b16 %v1869
      %v2079 = vunpack.c.l.b16 %v1870
      %v2080 = vpack.c.b16 %v2072, %v2071
      %v2081 = vpack.c.b16 %v2074, %v2073
      %v2082 = vpack.c.b16 %v2076, %v2075
      %v2083 = vpack.c.b16 %v2078, %v2077
      %v2084 = vpack.c.b16 %v2079, %v2079
      %v2091 = vunpack.c.l.b16 %v1871
      %v2092 = vunpack.c.l.b16 %v1872
      %v2093 = vunpack.c.l.b16 %v1873
      %v2094 = vunpack.c.l.b16 %v1874
      %v2095 = vunpack.c.l.b16 %v1875
      %v2096 = vunpack.c.l.b16 %v1876
      %v2097 = vpack.c.b16 %v2092, %v2091
      %v2098 = vpack.c.b16 %v2094, %v2093
      %v2099 = vpack.c.b16 %v2096, %v2095
      %v2104 = vsel %vm331, %v2080, 0
      %v2107 = vsel %vm331, %v2081, 0
      %v2110 = vsel %vm331, %v2082, 0
      %v2113 = vsel %vm331, %v2083, 0
      %v2116 = vsel %vm331, %v2084, 0
      %2118 = vmatprep.subr.bf16.mxu0 0
      %2119 = vmatpush1.bf16.msra.mxu0 0
      %2120 = vmatprep.subr.bf16.mxu0 0
      %2121 = vmatpush1.bf16.msra.mxu0 0
      %2122 = vmatprep.subr.bf16.mxu0 0
      %2123 = vmatpush1.bf16.msra.mxu0 0
      %2124 = vmatprep.subr.bf16.mxu0 0
      %2125 = vmatpush1.bf16.msra.mxu0 0
      %2126 = vmatprep.subr.bf16.mxu0 0
      %2127 = vmatpush1.bf16.msra.mxu0 0
      %2128 = vmatprep.subr.bf16.mxu0 0
      %2129 = vmatpush1.bf16.msra.mxu0 %v2099
      %2130 = vmatprep.subr.bf16.mxu0 0
      %2131 = vmatpush1.bf16.msra.mxu0 %v2098
      %2132 = vmatprep.subr.bf16.mxu0 0
      %2133 = vmatpush1.bf16.msra.mxu0 %v2097
      %2134 = vmatprep.subr.bf16.mxu0 0
      %2135 = vmatpush2.bf16.msra.mxu0 0
      %2136 = vmatprep.subr.bf16.mxu0 0
      %2137 = vmatpush2.bf16.msra.mxu0 0
      %2138 = vmatprep.subr.bf16.mxu0 0
      %2139 = vmatpush2.bf16.msra.mxu0 0
      %2140 = vmatprep.subr.bf16.mxu0 0
      %2141 = vmatpush2.bf16.msra.mxu0 0
      %2142 = vmatprep.subr.bf16.mxu0 0
      %2143 = vmatpush2.bf16.msra.mxu0 0
      %2144 = vmatprep.subr.bf16.mxu0 0
      %2145 = vmatpush2.bf16.msra.mxu0 0
      %2146 = vmatprep.subr.bf16.mxu0 0
      %2147 = vmatpush2.bf16.msra.mxu0 0
      %2148 = vmatprep.subr.bf16.mxu0 0
      %2149 = vmatpush2.bf16.msra.mxu0 0
      %2150 = vmatprep.mubr.bf16.mxu0 0
      %2151 = vmatmul.mubr.bf16.gmra.mxu0 %v2104
      %v2152 = vpop.f32.mrf.mxu0
      %v2153 = vadd.f32 %v2025, %v2152
      %v2154 = vpop.f32.mrf.mxu0
      %v2155 = vpop.f32.mrf.mxu0
      %v2156 = vadd.f32 %v2028, %v2155
      %v2157 = vpop.f32.mrf.mxu0
      %2158 = vmatprep.mubr.bf16.mxu0 0
      %2159 = vmatmul.mubr.bf16.gmra.mxu0 %v2107
      %v2160 = vpop.f32.mrf.mxu0
      %v2161 = vadd.f32 %v2033, %v2160
      %v2162 = vpop.f32.mrf.mxu0
      %v2163 = vpop.f32.mrf.mxu0
      %v2164 = vadd.f32 %v2036, %v2163
      %v2165 = vpop.f32.mrf.mxu0
      %2166 = vmatprep.mubr.bf16.mxu0 0
      %2167 = vmatmul.mubr.bf16.gmra.mxu0 %v2110
      %v2168 = vpop.f32.mrf.mxu0
      %v2169 = vadd.f32 %v2041, %v2168
      %v2170 = vpop.f32.mrf.mxu0
      %v2171 = vpop.f32.mrf.mxu0
      %v2172 = vadd.f32 %v2044, %v2171
      %v2173 = vpop.f32.mrf.mxu0
      %2174 = vmatprep.mubr.bf16.mxu0 0
      %2175 = vmatmul.mubr.bf16.gmra.mxu0 %v2113
      %v2176 = vpop.f32.mrf.mxu0
      %v2177 = vadd.f32 %v2049, %v2176
      %v2178 = vpop.f32.mrf.mxu0
      %v2179 = vpop.f32.mrf.mxu0
      %v2180 = vadd.f32 %v2052, %v2179
      %v2181 = vpop.f32.mrf.mxu0
      %2182 = vmatprep.mubr.bf16.mxu0 0
      %2183 = vmatmul.mubr.bf16.gmra.mxu0 %v2116
      %v2184 = vpop.f32.mrf.mxu0
      %v2185 = vadd.f32 %v2057, %v2184
      %v2186 = vpop.f32.mrf.mxu0
      %v2187 = vpop.f32.mrf.mxu0
      %v2188 = vpop.f32.mrf.mxu0
      %2189 = vdwg.mxu0
      %v2190 = vld [vmem:[%s1861] sm:$0xf]
      %v2191 = vld [vmem:[%s1861 + $0x4] sm:$0xf]
      %v2192 = vld [vmem:[%s1861 + $0x8] sm:$0xf]
      %v2193 = vld [vmem:[%s1861 + $0xc] sm:$0xf]
      %v2194 = vld [vmem:[%s1861 + $0x10] sm:$0xf]
      %v2195 = vld [vmem:[%s1861 + $0x14] sm:$0xf]
      %v2196 = vld [vmem:[%s1861 + $0x18] sm:$0xf]
      %v2197 = vld [vmem:[%s1861 + $0x1c] sm:$0xf]
      %v2198 = vld [vmem:[%s1861 + $0x20] sm:$0xf]
      %v2199 = vld [vmem:[%s1861 + $0x24] sm:$0x1]
      %v2200 = vld [vmem:[%s557] sm:$0xf]
      %v2201 = vld [vmem:[%s557 + $0x4] sm:$0xf]
      %v2202 = vld [vmem:[%s557 + $0x8] sm:$0xf]
      %v2203 = vld [vmem:[%s557 + $0xc] sm:$0xf]
      %v2204 = vld [vmem:[%s557 + $0x10] sm:$0xf]
      %v2205 = vld [vmem:[%s557 + $0x14] sm:$0xf]
      %v2216 = vunpack.c.l.b16 %v2190
      %v2217 = vunpack.c.l.b16 %v2191
      %v2218 = vunpack.c.l.b16 %v2192
      %v2219 = vunpack.c.l.b16 %v2193
      %v2220 = vunpack.c.l.b16 %v2194
      %v2221 = vunpack.c.l.b16 %v2195
      %v2222 = vunpack.c.l.b16 %v2196
      %v2223 = vunpack.c.l.b16 %v2197
      %v2224 = vunpack.c.l.b16 %v2198
      %v2225 = vunpack.c.l.b16 %v2199
      %v2226 = vpack.c.b16 %v2217, %v2216
      %v2227 = vpack.c.b16 %v2219, %v2218
      %v2228 = vpack.c.b16 %v2221, %v2220
      %v2229 = vpack.c.b16 %v2223, %v2222
      %v2230 = vpack.c.b16 %v2225, %v2224
      %v2232 = vshrl.u32 %v2226, 16
      %v2234 = vshll.u32 %v2226, 16
      %v2236 = vrot.slane %v2234, 1
      %v2237 = vor.u32 %v2232, %v2236
      %v2239 = vshll.u32 %v2227, 16
      %v2241 = vrot.slane %v2239, 1
      %v2242 = vsel %vm273, %v2237, %v2241
      %v2243 = vshrl.u32 %v2227, 16
      %v2245 = vor.u32 %v2243, %v2241
      %v2247 = vshll.u32 %v2228, 16
      %v2249 = vrot.slane %v2247, 1
      %v2250 = vsel %vm273, %v2245, %v2249
      %v2251 = vshrl.u32 %v2228, 16
      %v2253 = vor.u32 %v2251, %v2249
      %v2255 = vshll.u32 %v2229, 16
      %v2257 = vrot.slane %v2255, 1
      %v2258 = vsel %vm273, %v2253, %v2257
      %v2259 = vshrl.u32 %v2229, 16
      %v2261 = vor.u32 %v2259, %v2257
      %v2263 = vshll.u32 %v2230, 16
      %v2265 = vrot.slane %v2263, 1
      %v2266 = vsel %vm273, %v2261, %v2265
      %v2267 = vshrl.u32 %v2230, 16
      %v2269 = vor.u32 %v2267, %v2265
      %v2276 = vunpack.c.l.b16 %v2200
      %v2277 = vunpack.c.l.b16 %v2201
      %v2278 = vunpack.c.l.b16 %v2202
      %v2279 = vunpack.c.l.b16 %v2203
      %v2280 = vunpack.c.l.b16 %v2204
      %v2281 = vunpack.c.l.b16 %v2205
      %v2282 = vpack.c.b16 %v2277, %v2276
      %v2283 = vpack.c.b16 %v2279, %v2278
      %v2284 = vpack.c.b16 %v2281, %v2280
      %v2289 = vsel %vm331, %v2242, 0
      %v2292 = vsel %vm331, %v2250, 0
      %v2295 = vsel %vm331, %v2258, 0
      %v2298 = vsel %vm331, %v2266, 0
      %v2301 = vsel %vm331, %v2269, 0
      %2303 = vmatprep.subr.bf16.mxu0 0
      %2304 = vmatpush1.bf16.msra.mxu0 0
      %2305 = vmatprep.subr.bf16.mxu0 0
      %2306 = vmatpush1.bf16.msra.mxu0 0
      %2307 = vmatprep.subr.bf16.mxu0 0
      %2308 = vmatpush1.bf16.msra.mxu0 0
      %2309 = vmatprep.subr.bf16.mxu0 0
      %2310 = vmatpush1.bf16.msra.mxu0 0
      %2311 = vmatprep.subr.bf16.mxu0 0
      %2312 = vmatpush1.bf16.msra.mxu0 0
      %2313 = vmatprep.subr.bf16.mxu0 0
      %2314 = vmatpush1.bf16.msra.mxu0 %v2284
      %2315 = vmatprep.subr.bf16.mxu0 0
      %2316 = vmatpush1.bf16.msra.mxu0 %v2283
      %2317 = vmatprep.subr.bf16.mxu0 0
      %2318 = vmatpush1.bf16.msra.mxu0 %v2282
      %2319 = vmatprep.subr.bf16.mxu0 0
      %2320 = vmatpush2.bf16.msra.mxu0 0
      %2321 = vmatprep.subr.bf16.mxu0 0
      %2322 = vmatpush2.bf16.msra.mxu0 0
      %2323 = vmatprep.subr.bf16.mxu0 0
      %2324 = vmatpush2.bf16.msra.mxu0 0
      %2325 = vmatprep.subr.bf16.mxu0 0
      %2326 = vmatpush2.bf16.msra.mxu0 0
      %2327 = vmatprep.subr.bf16.mxu0 0
      %2328 = vmatpush2.bf16.msra.mxu0 0
      %2329 = vmatprep.subr.bf16.mxu0 0
      %2330 = vmatpush2.bf16.msra.mxu0 0
      %2331 = vmatprep.subr.bf16.mxu0 0
      %2332 = vmatpush2.bf16.msra.mxu0 0
      %2333 = vmatprep.subr.bf16.mxu0 0
      %2334 = vmatpush2.bf16.msra.mxu0 0
      %2335 = vmatprep.mubr.bf16.mxu0 0
      %2336 = vmatmul.mubr.bf16.gmra.mxu0 %v2289
      %v2337 = vpop.f32.mrf.mxu0
      %v2338 = vadd.f32 0.0, %v2337
      %v2339 = vpop.f32.mrf.mxu0
      %v2340 = vpop.f32.mrf.mxu0
      %v2341 = vadd.f32 0.0, %v2340
      %v2342 = vpop.f32.mrf.mxu0
      %2343 = vmatprep.mubr.bf16.mxu0 0
      %2344 = vmatmul.mubr.bf16.gmra.mxu0 %v2292
      %v2345 = vpop.f32.mrf.mxu0
      %v2346 = vadd.f32 0.0, %v2345
      %v2347 = vpop.f32.mrf.mxu0
      %v2348 = vpop.f32.mrf.mxu0
      %v2349 = vadd.f32 0.0, %v2348
      %v2350 = vpop.f32.mrf.mxu0
      %2351 = vmatprep.mubr.bf16.mxu0 0
      %2352 = vmatmul.mubr.bf16.gmra.mxu0 %v2295
      %v2353 = vpop.f32.mrf.mxu0
      %v2354 = vadd.f32 0.0, %v2353
      %v2355 = vpop.f32.mrf.mxu0
      %v2356 = vpop.f32.mrf.mxu0
      %v2357 = vadd.f32 0.0, %v2356
      %v2358 = vpop.f32.mrf.mxu0
      %2359 = vmatprep.mubr.bf16.mxu0 0
      %2360 = vmatmul.mubr.bf16.gmra.mxu0 %v2298
      %v2361 = vpop.f32.mrf.mxu0
      %v2362 = vadd.f32 0.0, %v2361
      %v2363 = vpop.f32.mrf.mxu0
      %v2364 = vpop.f32.mrf.mxu0
      %v2365 = vadd.f32 0.0, %v2364
      %v2366 = vpop.f32.mrf.mxu0
      %2367 = vmatprep.mubr.bf16.mxu0 0
      %2368 = vmatmul.mubr.bf16.gmra.mxu0 %v2301
      %v2369 = vpop.f32.mrf.mxu0
      %v2370 = vadd.f32 0.0, %v2369
      %v2371 = vpop.f32.mrf.mxu0
      %v2372 = vpop.f32.mrf.mxu0
      %v2373 = vpop.f32.mrf.mxu0
      %2374 = vdwg.mxu0
      %v2375 = vadd.f32 %v2153, %v2338
      %v2376 = vadd.f32 %v2156, %v2341
      %v2377 = vadd.f32 %v2161, %v2346
      %v2378 = vadd.f32 %v2164, %v2349
      %v2379 = vadd.f32 %v2169, %v2354
      %v2380 = vadd.f32 %v2172, %v2357
      %v2381 = vadd.f32 %v2177, %v2362
      %v2382 = vadd.f32 %v2180, %v2365
      %v2383 = vadd.f32 %v2185, %v2370
      %v2384 = vld [vmem:[%s1861 + $0x50] sm:$0xe]
      %v2385 = vld [vmem:[%s1861 + $0x54] sm:$0xf]
      %v2386 = vld [vmem:[%s1861 + $0x58] sm:$0xf]
      %v2387 = vld [vmem:[%s1861 + $0x5c] sm:$0xf]
      %v2388 = vld [vmem:[%s1861 + $0x60] sm:$0xf]
      %v2389 = vld [vmem:[%s1861 + $0x64] sm:$0xf]
      %v2390 = vld [vmem:[%s1861 + $0x68] sm:$0xf]
      %v2391 = vld [vmem:[%s1861 + $0x6c] sm:$0xf]
      %v2392 = vld [vmem:[%s1861 + $0x70] sm:$0xf]
      %v2393 = vld [vmem:[%s1861 + $0x74] sm:$0x1]
      %v2394 = vld [vmem:[%s752] sm:$0xf]
      %v2395 = vld [vmem:[%s752 + $0x4] sm:$0xf]
      %v2396 = vld [vmem:[%s752 + $0x8] sm:$0xf]
      %v2397 = vld [vmem:[%s752 + $0xc] sm:$0xf]
      %v2398 = vld [vmem:[%s752 + $0x10] sm:$0xf]
      %v2399 = vld [vmem:[%s752 + $0x14] sm:$0xf]
      %v2410 = vunpack.c.l.b16 %v2384
      %v2411 = vunpack.c.l.b16 %v2385
      %v2412 = vunpack.c.l.b16 %v2386
      %v2413 = vunpack.c.l.b16 %v2387
      %v2414 = vunpack.c.l.b16 %v2388
      %v2415 = vunpack.c.l.b16 %v2389
      %v2416 = vunpack.c.l.b16 %v2390
      %v2417 = vunpack.c.l.b16 %v2391
      %v2418 = vunpack.c.l.b16 %v2392
      %v2419 = vunpack.c.l.b16 %v2393
      %v2420 = vpack.c.b16 %v2411, %v2410
      %v2421 = vpack.c.b16 %v2413, %v2412
      %v2422 = vpack.c.b16 %v2415, %v2414
      %v2423 = vpack.c.b16 %v2417, %v2416
      %v2424 = vpack.c.b16 %v2419, %v2418
      %v2425 = vrot.slane %v2420, 1
      %v2426 = vrot.slane %v2421, 1
      %v2427 = vsel %vm784, %v2425, %v2426
      %v2428 = vrot.slane %v2422, 1
      %v2429 = vsel %vm784, %v2426, %v2428
      %v2430 = vrot.slane %v2423, 1
      %v2431 = vsel %vm784, %v2428, %v2430
      %v2432 = vrot.slane %v2424, 1
      %v2433 = vsel %vm784, %v2430, %v2432
      %v2440 = vunpack.c.l.b16 %v2394
      %v2441 = vunpack.c.l.b16 %v2395
      %v2442 = vunpack.c.l.b16 %v2396
      %v2443 = vunpack.c.l.b16 %v2397
      %v2444 = vunpack.c.l.b16 %v2398
      %v2445 = vunpack.c.l.b16 %v2399
      %v2446 = vpack.c.b16 %v2441, %v2440
      %v2447 = vpack.c.b16 %v2443, %v2442
      %v2448 = vpack.c.b16 %v2445, %v2444
      %v2453 = vsel %vm331, %v2427, 0
      %v2456 = vsel %vm331, %v2429, 0
      %v2459 = vsel %vm331, %v2431, 0
      %v2462 = vsel %vm331, %v2433, 0
      %v2465 = vsel %vm331, %v2432, 0
      %2467 = vmatprep.subr.bf16.mxu0 0
      %2468 = vmatpush1.bf16.msra.mxu0 0
      %2469 = vmatprep.subr.bf16.mxu0 0
      %2470 = vmatpush1.bf16.msra.mxu0 0
      %2471 = vmatprep.subr.bf16.mxu0 0
      %2472 = vmatpush1.bf16.msra.mxu0 0
      %2473 = vmatprep.subr.bf16.mxu0 0
      %2474 = vmatpush1.bf16.msra.mxu0 0
      %2475 = vmatprep.subr.bf16.mxu0 0
      %2476 = vmatpush1.bf16.msra.mxu0 0
      %2477 = vmatprep.subr.bf16.mxu0 0
      %2478 = vmatpush1.bf16.msra.mxu0 %v2448
      %2479 = vmatprep.subr.bf16.mxu0 0
      %2480 = vmatpush1.bf16.msra.mxu0 %v2447
      %2481 = vmatprep.subr.bf16.mxu0 0
      %2482 = vmatpush1.bf16.msra.mxu0 %v2446
      %2483 = vmatprep.subr.bf16.mxu0 0
      %2484 = vmatpush2.bf16.msra.mxu0 0
      %2485 = vmatprep.subr.bf16.mxu0 0
      %2486 = vmatpush2.bf16.msra.mxu0 0
      %2487 = vmatprep.subr.bf16.mxu0 0
      %2488 = vmatpush2.bf16.msra.mxu0 0
      %2489 = vmatprep.subr.bf16.mxu0 0
      %2490 = vmatpush2.bf16.msra.mxu0 0
      %2491 = vmatprep.subr.bf16.mxu0 0
      %2492 = vmatpush2.bf16.msra.mxu0 0
      %2493 = vmatprep.subr.bf16.mxu0 0
      %2494 = vmatpush2.bf16.msra.mxu0 0
      %2495 = vmatprep.subr.bf16.mxu0 0
      %2496 = vmatpush2.bf16.msra.mxu0 0
      %2497 = vmatprep.subr.bf16.mxu0 0
      %2498 = vmatpush2.bf16.msra.mxu0 0
      %2499 = vmatprep.mubr.bf16.mxu0 0
      %2500 = vmatmul.mubr.bf16.gmra.mxu0 %v2453
      %v2501 = vpop.f32.mrf.mxu0
      %v2502 = vadd.f32 0.0, %v2501
      %v2503 = vpop.f32.mrf.mxu0
      %v2504 = vpop.f32.mrf.mxu0
      %v2505 = vadd.f32 0.0, %v2504
      %v2506 = vpop.f32.mrf.mxu0
      %2507 = vmatprep.mubr.bf16.mxu0 0
      %2508 = vmatmul.mubr.bf16.gmra.mxu0 %v2456
      %v2509 = vpop.f32.mrf.mxu0
      %v2510 = vadd.f32 0.0, %v2509
      %v2511 = vpop.f32.mrf.mxu0
      %v2512 = vpop.f32.mrf.mxu0
      %v2513 = vadd.f32 0.0, %v2512
      %v2514 = vpop.f32.mrf.mxu0
      %2515 = vmatprep.mubr.bf16.mxu0 0
      %2516 = vmatmul.mubr.bf16.gmra.mxu0 %v2459
      %v2517 = vpop.f32.mrf.mxu0
      %v2518 = vadd.f32 0.0, %v2517
      %v2519 = vpop.f32.mrf.mxu0
      %v2520 = vpop.f32.mrf.mxu0
      %v2521 = vadd.f32 0.0, %v2520
      %v2522 = vpop.f32.mrf.mxu0
      %2523 = vmatprep.mubr.bf16.mxu0 0
      %2524 = vmatmul.mubr.bf16.gmra.mxu0 %v2462
      %v2525 = vpop.f32.mrf.mxu0
      %v2526 = vadd.f32 0.0, %v2525
      %v2527 = vpop.f32.mrf.mxu0
      %v2528 = vpop.f32.mrf.mxu0
      %v2529 = vadd.f32 0.0, %v2528
      %v2530 = vpop.f32.mrf.mxu0
      %2531 = vmatprep.mubr.bf16.mxu0 0
      %2532 = vmatmul.mubr.bf16.gmra.mxu0 %v2465
      %v2533 = vpop.f32.mrf.mxu0
      %v2534 = vadd.f32 0.0, %v2533
      %v2535 = vpop.f32.mrf.mxu0
      %v2536 = vpop.f32.mrf.mxu0
      %v2537 = vpop.f32.mrf.mxu0
      %2538 = vdwg.mxu0
      %v2539 = vadd.f32 %v2375, %v2502
      %v2540 = vadd.f32 %v2376, %v2505
      %v2541 = vadd.f32 %v2377, %v2510
      %v2542 = vadd.f32 %v2378, %v2513
      %v2543 = vadd.f32 %v2379, %v2518
      %v2544 = vadd.f32 %v2380, %v2521
      %v2545 = vadd.f32 %v2381, %v2526
      %v2546 = vadd.f32 %v2382, %v2529
      %v2547 = vadd.f32 %v2383, %v2534
      %v2548 = vld [vmem:[%s1861 + $0x78] sm:$0xe]
      %v2549 = vld [vmem:[%s1861 + $0x7c] sm:$0xf]
      %v2550 = vld [vmem:[%s1861 + $0x80] sm:$0xf]
      %v2551 = vld [vmem:[%s1861 + $0x84] sm:$0xf]
      %v2552 = vld [vmem:[%s1861 + $0x88] sm:$0xf]
      %v2553 = vld [vmem:[%s1861 + $0x8c] sm:$0xf]
      %v2554 = vld [vmem:[%s1861 + $0x90] sm:$0xf]
      %v2555 = vld [vmem:[%s1861 + $0x94] sm:$0xf]
      %v2556 = vld [vmem:[%s1861 + $0x98] sm:$0xf]
      %v2557 = vld [vmem:[%s1861 + $0x9c] sm:$0x3]
      %v2558 = vld [vmem:[%s918] sm:$0xf]
      %v2559 = vld [vmem:[%s918 + $0x4] sm:$0xf]
      %v2560 = vld [vmem:[%s918 + $0x8] sm:$0xf]
      %v2561 = vld [vmem:[%s918 + $0xc] sm:$0xf]
      %v2562 = vld [vmem:[%s918 + $0x10] sm:$0xf]
      %v2563 = vld [vmem:[%s918 + $0x14] sm:$0xf]
      %v2574 = vunpack.c.l.b16 %v2548
      %v2575 = vunpack.c.l.b16 %v2549
      %v2576 = vunpack.c.l.b16 %v2550
      %v2577 = vunpack.c.l.b16 %v2551
      %v2578 = vunpack.c.l.b16 %v2552
      %v2579 = vunpack.c.l.b16 %v2553
      %v2580 = vunpack.c.l.b16 %v2554
      %v2581 = vunpack.c.l.b16 %v2555
      %v2582 = vunpack.c.l.b16 %v2556
      %v2583 = vunpack.c.l.b16 %v2557
      %v2584 = vpack.c.b16 %v2575, %v2574
      %v2585 = vpack.c.b16 %v2577, %v2576
      %v2586 = vpack.c.b16 %v2579, %v2578
      %v2587 = vpack.c.b16 %v2581, %v2580
      %v2588 = vpack.c.b16 %v2583, %v2582
      %v2590 = vshrl.u32 %v2584, 16
      %v2592 = vrot.slane %v2590, 1
      %v2593 = vshll.u32 %v2584, 16
      %v2595 = vrot.slane %v2593, 2
      %v2596 = vor.u32 %v2592, %v2595
      %v2598 = vshrl.u32 %v2585, 16
      %v2600 = vrot.slane %v2598, 1
      %v2601 = vshll.u32 %v2585, 16
      %v2603 = vrot.slane %v2601, 2
      %v2604 = vor.u32 %v2600, %v2603
      %v2605 = vsel %vm950, %v2596, %v2604
      %v2607 = vshrl.u32 %v2586, 16
      %v2609 = vrot.slane %v2607, 1
      %v2610 = vshll.u32 %v2586, 16
      %v2612 = vrot.slane %v2610, 2
      %v2613 = vor.u32 %v2609, %v2612
      %v2614 = vsel %vm950, %v2604, %v2613
      %v2616 = vshrl.u32 %v2587, 16
      %v2618 = vrot.slane %v2616, 1
      %v2619 = vshll.u32 %v2587, 16
      %v2621 = vrot.slane %v2619, 2
      %v2622 = vor.u32 %v2618, %v2621
      %v2623 = vsel %vm950, %v2613, %v2622
      %v2625 = vshrl.u32 %v2588, 16
      %v2627 = vrot.slane %v2625, 1
      %v2628 = vshll.u32 %v2588, 16
      %v2630 = vrot.slane %v2628, 2
      %v2631 = vor.u32 %v2627, %v2630
      %v2632 = vsel %vm950, %v2622, %v2631
      %v2639 = vunpack.c.l.b16 %v2558
      %v2640 = vunpack.c.l.b16 %v2559
      %v2641 = vunpack.c.l.b16 %v2560
      %v2642 = vunpack.c.l.b16 %v2561
      %v2643 = vunpack.c.l.b16 %v2562
      %v2644 = vunpack.c.l.b16 %v2563
      %v2645 = vpack.c.b16 %v2640, %v2639
      %v2646 = vpack.c.b16 %v2642, %v2641
      %v2647 = vpack.c.b16 %v2644, %v2643
      %v2652 = vsel %vm331, %v2605, 0
      %v2655 = vsel %vm331, %v2614, 0
      %v2658 = vsel %vm331, %v2623, 0
      %v2661 = vsel %vm331, %v2632, 0
      %v2664 = vsel %vm331, %v2631, 0
      %2666 = vmatprep.subr.bf16.mxu0 0
      %2667 = vmatpush1.bf16.msra.mxu0 0
      %2668 = vmatprep.subr.bf16.mxu0 0
      %2669 = vmatpush1.bf16.msra.mxu0 0
      %2670 = vmatprep.subr.bf16.mxu0 0
      %2671 = vmatpush1.bf16.msra.mxu0 0
      %2672 = vmatprep.subr.bf16.mxu0 0
      %2673 = vmatpush1.bf16.msra.mxu0 0
      %2674 = vmatprep.subr.bf16.mxu0 0
      %2675 = vmatpush1.bf16.msra.mxu0 0
      %2676 = vmatprep.subr.bf16.mxu0 0
      %2677 = vmatpush1.bf16.msra.mxu0 %v2647
      %2678 = vmatprep.subr.bf16.mxu0 0
      %2679 = vmatpush1.bf16.msra.mxu0 %v2646
      %2680 = vmatprep.subr.bf16.mxu0 0
      %2681 = vmatpush1.bf16.msra.mxu0 %v2645
      %2682 = vmatprep.subr.bf16.mxu0 0
      %2683 = vmatpush2.bf16.msra.mxu0 0
      %2684 = vmatprep.subr.bf16.mxu0 0
      %2685 = vmatpush2.bf16.msra.mxu0 0
      %2686 = vmatprep.subr.bf16.mxu0 0
      %2687 = vmatpush2.bf16.msra.mxu0 0
      %2688 = vmatprep.subr.bf16.mxu0 0
      %2689 = vmatpush2.bf16.msra.mxu0 0
      %2690 = vmatprep.subr.bf16.mxu0 0
      %2691 = vmatpush2.bf16.msra.mxu0 0
      %2692 = vmatprep.subr.bf16.mxu0 0
      %2693 = vmatpush2.bf16.msra.mxu0 0
      %2694 = vmatprep.subr.bf16.mxu0 0
      %2695 = vmatpush2.bf16.msra.mxu0 0
      %2696 = vmatprep.subr.bf16.mxu0 0
      %2697 = vmatpush2.bf16.msra.mxu0 0
      %2698 = vmatprep.mubr.bf16.mxu0 0
      %2699 = vmatmul.mubr.bf16.gmra.mxu0 %v2652
      %v2700 = vpop.f32.mrf.mxu0
      %v2701 = vadd.f32 0.0, %v2700
      %v2702 = vpop.f32.mrf.mxu0
      %v2703 = vpop.f32.mrf.mxu0
      %v2704 = vadd.f32 0.0, %v2703
      %v2705 = vpop.f32.mrf.mxu0
      %2706 = vmatprep.mubr.bf16.mxu0 0
      %2707 = vmatmul.mubr.bf16.gmra.mxu0 %v2655
      %v2708 = vpop.f32.mrf.mxu0
      %v2709 = vadd.f32 0.0, %v2708
      %v2710 = vpop.f32.mrf.mxu0
      %v2711 = vpop.f32.mrf.mxu0
      %v2712 = vadd.f32 0.0, %v2711
      %v2713 = vpop.f32.mrf.mxu0
      %2714 = vmatprep.mubr.bf16.mxu0 0
      %2715 = vmatmul.mubr.bf16.gmra.mxu0 %v2658
      %v2716 = vpop.f32.mrf.mxu0
      %v2717 = vadd.f32 0.0, %v2716
      %v2718 = vpop.f32.mrf.mxu0
      %v2719 = vpop.f32.mrf.mxu0
      %v2720 = vadd.f32 0.0, %v2719
      %v2721 = vpop.f32.mrf.mxu0
      %2722 = vmatprep.mubr.bf16.mxu0 0
      %2723 = vmatmul.mubr.bf16.gmra.mxu0 %v2661
      %v2724 = vpop.f32.mrf.mxu0
      %v2725 = vadd.f32 0.0, %v2724
      %v2726 = vpop.f32.mrf.mxu0
      %v2727 = vpop.f32.mrf.mxu0
      %v2728 = vadd.f32 0.0, %v2727
      %v2729 = vpop.f32.mrf.mxu0
      %2730 = vmatprep.mubr.bf16.mxu0 0
      %2731 = vmatmul.mubr.bf16.gmra.mxu0 %v2664
      %v2732 = vpop.f32.mrf.mxu0
      %v2733 = vadd.f32 0.0, %v2732
      %v2734 = vpop.f32.mrf.mxu0
      %v2735 = vpop.f32.mrf.mxu0
      %v2736 = vpop.f32.mrf.mxu0
      %2737 = vdwg.mxu0
      %v2738 = vadd.f32 %v2539, %v2701
      %v2739 = vadd.f32 %v2540, %v2704
      %v2740 = vadd.f32 %v2541, %v2709
      %v2741 = vadd.f32 %v2542, %v2712
      %v2742 = vadd.f32 %v2543, %v2717
      %v2743 = vadd.f32 %v2544, %v2720
      %v2744 = vadd.f32 %v2545, %v2725
      %v2745 = vadd.f32 %v2546, %v2728
      %v2746 = vadd.f32 %v2547, %v2733
      %v2747 = vld [vmem:[%s1861 + $0x74] sm:$0x3]
      %v2748 = vld [vmem:[%s1110] sm:$0xf]
      %v2749 = vld [vmem:[%s1110 + $0x4] sm:$0xf]
      %v2750 = vld [vmem:[%s1110 + $0x8] sm:$0xf]
      %v2751 = vld [vmem:[%s1110 + $0xc] sm:$0xf]
      %v2752 = vld [vmem:[%s1110 + $0x10] sm:$0xf]
      %v2753 = vld [vmem:[%s1110 + $0x14] sm:$0xf]
      %v2755 = vunpack.c.l.b16 %v2747
      %v2756 = vpack.c.b16 %v2755, %v2418
      %v2758 = vshrl.u32 %v2420, 16
      %v2760 = vrot.slane %v2758, 1
      %v2761 = vshll.u32 %v2420, 16
      %v2763 = vrot.slane %v2761, 2
      %v2764 = vor.u32 %v2760, %v2763
      %v2766 = vshrl.u32 %v2421, 16
      %v2768 = vrot.slane %v2766, 1
      %v2769 = vshll.u32 %v2421, 16
      %v2771 = vrot.slane %v2769, 2
      %v2772 = vor.u32 %v2768, %v2771
      %v2773 = vsel %vm950, %v2764, %v2772
      %v2775 = vshrl.u32 %v2422, 16
      %v2777 = vrot.slane %v2775, 1
      %v2778 = vshll.u32 %v2422, 16
      %v2780 = vrot.slane %v2778, 2
      %v2781 = vor.u32 %v2777, %v2780
      %v2782 = vsel %vm950, %v2772, %v2781
      %v2784 = vshrl.u32 %v2423, 16
      %v2786 = vrot.slane %v2784, 1
      %v2787 = vshll.u32 %v2423, 16
      %v2789 = vrot.slane %v2787, 2
      %v2790 = vor.u32 %v2786, %v2789
      %v2791 = vsel %vm950, %v2781, %v2790
      %v2793 = vshrl.u32 %v2756, 16
      %v2795 = vrot.slane %v2793, 1
      %v2796 = vshll.u32 %v2756, 16
      %v2798 = vrot.slane %v2796, 2
      %v2799 = vor.u32 %v2795, %v2798
      %v2800 = vsel %vm950, %v2790, %v2799
      %v2807 = vunpack.c.l.b16 %v2748
      %v2808 = vunpack.c.l.b16 %v2749
      %v2809 = vunpack.c.l.b16 %v2750
      %v2810 = vunpack.c.l.b16 %v2751
      %v2811 = vunpack.c.l.b16 %v2752
      %v2812 = vunpack.c.l.b16 %v2753
      %v2813 = vpack.c.b16 %v2808, %v2807
      %v2814 = vpack.c.b16 %v2810, %v2809
      %v2815 = vpack.c.b16 %v2812, %v2811
      %v2820 = vsel %vm331, %v2773, 0
      %v2823 = vsel %vm331, %v2782, 0
      %v2826 = vsel %vm331, %v2791, 0
      %v2829 = vsel %vm331, %v2800, 0
      %v2832 = vsel %vm331, %v2799, 0
      %2834 = vmatprep.subr.bf16.mxu0 0
      %2835 = vmatpush1.bf16.msra.mxu0 0
      %2836 = vmatprep.subr.bf16.mxu0 0
      %2837 = vmatpush1.bf16.msra.mxu0 0
      %2838 = vmatprep.subr.bf16.mxu0 0
      %2839 = vmatpush1.bf16.msra.mxu0 0
      %2840 = vmatprep.subr.bf16.mxu0 0
      %2841 = vmatpush1.bf16.msra.mxu0 0
      %2842 = vmatprep.subr.bf16.mxu0 0
      %2843 = vmatpush1.bf16.msra.mxu0 0
      %2844 = vmatprep.subr.bf16.mxu0 0
      %2845 = vmatpush1.bf16.msra.mxu0 %v2815
      %2846 = vmatprep.subr.bf16.mxu0 0
      %2847 = vmatpush1.bf16.msra.mxu0 %v2814
      %2848 = vmatprep.subr.bf16.mxu0 0
      %2849 = vmatpush1.bf16.msra.mxu0 %v2813
      %2850 = vmatprep.subr.bf16.mxu0 0
      %2851 = vmatpush2.bf16.msra.mxu0 0
      %2852 = vmatprep.subr.bf16.mxu0 0
      %2853 = vmatpush2.bf16.msra.mxu0 0
      %2854 = vmatprep.subr.bf16.mxu0 0
      %2855 = vmatpush2.bf16.msra.mxu0 0
      %2856 = vmatprep.subr.bf16.mxu0 0
      %2857 = vmatpush2.bf16.msra.mxu0 0
      %2858 = vmatprep.subr.bf16.mxu0 0
      %2859 = vmatpush2.bf16.msra.mxu0 0
      %2860 = vmatprep.subr.bf16.mxu0 0
      %2861 = vmatpush2.bf16.msra.mxu0 0
      %2862 = vmatprep.subr.bf16.mxu0 0
      %2863 = vmatpush2.bf16.msra.mxu0 0
      %2864 = vmatprep.subr.bf16.mxu0 0
      %2865 = vmatpush2.bf16.msra.mxu0 0
      %2866 = vmatprep.mubr.bf16.mxu0 0
      %2867 = vmatmul.mubr.bf16.gmra.mxu0 %v2820
      %v2868 = vpop.f32.mrf.mxu0
      %v2869 = vadd.f32 0.0, %v2868
      %v2870 = vpop.f32.mrf.mxu0
      %v2871 = vpop.f32.mrf.mxu0
      %v2872 = vadd.f32 0.0, %v2871
      %v2873 = vpop.f32.mrf.mxu0
      %2874 = vmatprep.mubr.bf16.mxu0 0
      %2875 = vmatmul.mubr.bf16.gmra.mxu0 %v2823
      %v2876 = vpop.f32.mrf.mxu0
      %v2877 = vadd.f32 0.0, %v2876
      %v2878 = vpop.f32.mrf.mxu0
      %v2879 = vpop.f32.mrf.mxu0
      %v2880 = vadd.f32 0.0, %v2879
      %v2881 = vpop.f32.mrf.mxu0
      %2882 = vmatprep.mubr.bf16.mxu0 0
      %2883 = vmatmul.mubr.bf16.gmra.mxu0 %v2826
      %v2884 = vpop.f32.mrf.mxu0
      %v2885 = vadd.f32 0.0, %v2884
      %v2886 = vpop.f32.mrf.mxu0
      %v2887 = vpop.f32.mrf.mxu0
      %v2888 = vadd.f32 0.0, %v2887
      %v2889 = vpop.f32.mrf.mxu0
      %2890 = vmatprep.mubr.bf16.mxu0 0
      %2891 = vmatmul.mubr.bf16.gmra.mxu0 %v2829
      %v2892 = vpop.f32.mrf.mxu0
      %v2893 = vadd.f32 0.0, %v2892
      %v2894 = vpop.f32.mrf.mxu0
      %v2895 = vpop.f32.mrf.mxu0
      %v2896 = vadd.f32 0.0, %v2895
      %v2897 = vpop.f32.mrf.mxu0
      %2898 = vmatprep.mubr.bf16.mxu0 0
      %2899 = vmatmul.mubr.bf16.gmra.mxu0 %v2832
      %v2900 = vpop.f32.mrf.mxu0
      %v2901 = vadd.f32 0.0, %v2900
      %v2902 = vpop.f32.mrf.mxu0
      %v2903 = vpop.f32.mrf.mxu0
      %v2904 = vpop.f32.mrf.mxu0
      %2905 = vdwg.mxu0
      %v2906 = vadd.f32 %v2738, %v2869
      %v2907 = vadd.f32 %v2739, %v2872
      %v2908 = vadd.f32 %v2740, %v2877
      %v2909 = vadd.f32 %v2741, %v2880
      %v2910 = vadd.f32 %v2742, %v2885
      %v2911 = vadd.f32 %v2743, %v2888
      %v2912 = vadd.f32 %v2744, %v2893
      %v2913 = vadd.f32 %v2745, %v2896
      %v2914 = vadd.f32 %v2746, %v2901
      %v2915 = vld [vmem:[%s1861 + $0x4] sm:$0xf]
      %v2916 = vld [vmem:[%s1861 + $0x8] sm:$0xf]
      %v2917 = vld [vmem:[%s1861 + $0xc] sm:$0xf]
      %v2918 = vld [vmem:[%s1861 + $0x10] sm:$0xf]
      %v2919 = vld [vmem:[%s1861 + $0x14] sm:$0xf]
      %v2920 = vld [vmem:[%s1861 + $0x18] sm:$0xf]
      %v2921 = vld [vmem:[%s1861 + $0x1c] sm:$0xf]
      %v2922 = vld [vmem:[%s1861 + $0x20] sm:$0xf]
      %v2923 = vld [vmem:[%s1861 + $0x24] sm:$0xf]
      %v2924 = vld [vmem:[%s1861 + $0x28] sm:$0x1]
      %v2925 = vld [vmem:[%s1288] sm:$0xf]
      %v2926 = vld [vmem:[%s1288 + $0x4] sm:$0xf]
      %v2927 = vld [vmem:[%s1288 + $0x8] sm:$0xf]
      %v2928 = vld [vmem:[%s1288 + $0xc] sm:$0xf]
      %v2929 = vld [vmem:[%s1288 + $0x10] sm:$0xf]
      %v2930 = vld [vmem:[%s1288 + $0x14] sm:$0xf]
      %v2941 = vunpack.c.l.b16 %v2915
      %v2942 = vunpack.c.l.b16 %v2916
      %v2943 = vunpack.c.l.b16 %v2917
      %v2944 = vunpack.c.l.b16 %v2918
      %v2945 = vunpack.c.l.b16 %v2919
      %v2946 = vunpack.c.l.b16 %v2920
      %v2947 = vunpack.c.l.b16 %v2921
      %v2948 = vunpack.c.l.b16 %v2922
      %v2949 = vunpack.c.l.b16 %v2923
      %v2950 = vunpack.c.l.b16 %v2924
      %v2951 = vpack.c.b16 %v2942, %v2941
      %v2952 = vpack.c.b16 %v2944, %v2943
      %v2953 = vpack.c.b16 %v2946, %v2945
      %v2954 = vpack.c.b16 %v2948, %v2947
      %v2955 = vpack.c.b16 %v2950, %v2949
      %v2957 = vshrl.u32 %v2951, 16
      %v2959 = vshll.u32 %v2951, 16
      %v2961 = vrot.slane %v2959, 1
      %v2962 = vor.u32 %v2957, %v2961
      %v2964 = vshll.u32 %v2952, 16
      %v2966 = vrot.slane %v2964, 1
      %v2967 = vsel %vm273, %v2962, %v2966
      %v2968 = vshrl.u32 %v2952, 16
      %v2970 = vor.u32 %v2968, %v2966
      %v2972 = vshll.u32 %v2953, 16
      %v2974 = vrot.slane %v2972, 1
      %v2975 = vsel %vm273, %v2970, %v2974
      %v2976 = vshrl.u32 %v2953, 16
      %v2978 = vor.u32 %v2976, %v2974
      %v2980 = vshll.u32 %v2954, 16
      %v2982 = vrot.slane %v2980, 1
      %v2983 = vsel %vm273, %v2978, %v2982
      %v2984 = vshrl.u32 %v2954, 16
      %v2986 = vor.u32 %v2984, %v2982
      %v2988 = vshll.u32 %v2955, 16
      %v2990 = vrot.slane %v2988, 1
      %v2991 = vsel %vm273, %v2986, %v2990
      %v2992 = vshrl.u32 %v2955, 16
      %v2994 = vor.u32 %v2992, %v2990
      %v3001 = vunpack.c.l.b16 %v2925
      %v3002 = vunpack.c.l.b16 %v2926
      %v3003 = vunpack.c.l.b16 %v2927
      %v3004 = vunpack.c.l.b16 %v2928
      %v3005 = vunpack.c.l.b16 %v2929
      %v3006 = vunpack.c.l.b16 %v2930
      %v3007 = vpack.c.b16 %v3002, %v3001
      %v3008 = vpack.c.b16 %v3004, %v3003
      %v3009 = vpack.c.b16 %v3006, %v3005
      %v3014 = vsel %vm331, %v2967, 0
      %v3017 = vsel %vm331, %v2975, 0
      %v3020 = vsel %vm331, %v2983, 0
      %v3023 = vsel %vm331, %v2991, 0
      %v3026 = vsel %vm331, %v2994, 0
      %3028 = vmatprep.subr.bf16.mxu0 0
      %3029 = vmatpush1.bf16.msra.mxu0 0
      %3030 = vmatprep.subr.bf16.mxu0 0
      %3031 = vmatpush1.bf16.msra.mxu0 0
      %3032 = vmatprep.subr.bf16.mxu0 0
      %3033 = vmatpush1.bf16.msra.mxu0 0
      %3034 = vmatprep.subr.bf16.mxu0 0
      %3035 = vmatpush1.bf16.msra.mxu0 0
      %3036 = vmatprep.subr.bf16.mxu0 0
      %3037 = vmatpush1.bf16.msra.mxu0 0
      %3038 = vmatprep.subr.bf16.mxu0 0
      %3039 = vmatpush1.bf16.msra.mxu0 %v3009
      %3040 = vmatprep.subr.bf16.mxu0 0
      %3041 = vmatpush1.bf16.msra.mxu0 %v3008
      %3042 = vmatprep.subr.bf16.mxu0 0
      %3043 = vmatpush1.bf16.msra.mxu0 %v3007
      %3044 = vmatprep.subr.bf16.mxu0 0
      %3045 = vmatpush2.bf16.msra.mxu0 0
      %3046 = vmatprep.subr.bf16.mxu0 0
      %3047 = vmatpush2.bf16.msra.mxu0 0
      %3048 = vmatprep.subr.bf16.mxu0 0
      %3049 = vmatpush2.bf16.msra.mxu0 0
      %3050 = vmatprep.subr.bf16.mxu0 0
      %3051 = vmatpush2.bf16.msra.mxu0 0
      %3052 = vmatprep.subr.bf16.mxu0 0
      %3053 = vmatpush2.bf16.msra.mxu0 0
      %3054 = vmatprep.subr.bf16.mxu0 0
      %3055 = vmatpush2.bf16.msra.mxu0 0
      %3056 = vmatprep.subr.bf16.mxu0 0
      %3057 = vmatpush2.bf16.msra.mxu0 0
      %3058 = vmatprep.subr.bf16.mxu0 0
      %3059 = vmatpush2.bf16.msra.mxu0 0
      %3060 = vmatprep.mubr.bf16.mxu0 0
      %3061 = vmatmul.mubr.bf16.gmra.mxu0 %v3014
      %v3062 = vpop.f32.mrf.mxu0
      %v3063 = vadd.f32 0.0, %v3062
      %v3064 = vpop.f32.mrf.mxu0
      %v3065 = vpop.f32.mrf.mxu0
      %v3066 = vadd.f32 0.0, %v3065
      %v3067 = vpop.f32.mrf.mxu0
      %3068 = vmatprep.mubr.bf16.mxu0 0
      %3069 = vmatmul.mubr.bf16.gmra.mxu0 %v3017
      %v3070 = vpop.f32.mrf.mxu0
      %v3071 = vadd.f32 0.0, %v3070
      %v3072 = vpop.f32.mrf.mxu0
      %v3073 = vpop.f32.mrf.mxu0
      %v3074 = vadd.f32 0.0, %v3073
      %v3075 = vpop.f32.mrf.mxu0
      %3076 = vmatprep.mubr.bf16.mxu0 0
      %3077 = vmatmul.mubr.bf16.gmra.mxu0 %v3020
      %v3078 = vpop.f32.mrf.mxu0
      %v3079 = vadd.f32 0.0, %v3078
      %v3080 = vpop.f32.mrf.mxu0
      %v3081 = vpop.f32.mrf.mxu0
      %v3082 = vadd.f32 0.0, %v3081
      %v3083 = vpop.f32.mrf.mxu0
      %3084 = vmatprep.mubr.bf16.mxu0 0
      %3085 = vmatmul.mubr.bf16.gmra.mxu0 %v3023
      %v3086 = vpop.f32.mrf.mxu0
      %v3087 = vadd.f32 0.0, %v3086
      %v3088 = vpop.f32.mrf.mxu0
      %v3089 = vpop.f32.mrf.mxu0
      %v3090 = vadd.f32 0.0, %v3089
      %v3091 = vpop.f32.mrf.mxu0
      %3092 = vmatprep.mubr.bf16.mxu0 0
      %3093 = vmatmul.mubr.bf16.gmra.mxu0 %v3026
      %v3094 = vpop.f32.mrf.mxu0
      %v3095 = vadd.f32 0.0, %v3094
      %v3096 = vpop.f32.mrf.mxu0
      %v3097 = vpop.f32.mrf.mxu0
      %v3098 = vpop.f32.mrf.mxu0
      %3099 = vdwg.mxu0
      %v3100 = vadd.f32 %v2906, %v3063
      %v3101 = vadd.f32 %v2907, %v3066
      %v3102 = vadd.f32 %v2908, %v3071
      %v3103 = vadd.f32 %v2909, %v3074
      %v3104 = vadd.f32 %v2910, %v3079
      %v3105 = vadd.f32 %v2911, %v3082
      %v3106 = vadd.f32 %v2912, %v3087
      %v3107 = vadd.f32 %v2913, %v3090
      %v3108 = vadd.f32 %v2914, %v3095
      %v3109 = vld [vmem:[%s1861 + $0x2c] sm:$0xe]
      %v3110 = vld [vmem:[%s1861 + $0x30] sm:$0xf]
      %v3111 = vld [vmem:[%s1861 + $0x34] sm:$0xf]
      %v3112 = vld [vmem:[%s1861 + $0x38] sm:$0xf]
      %v3113 = vld [vmem:[%s1861 + $0x3c] sm:$0xf]
      %v3114 = vld [vmem:[%s1861 + $0x40] sm:$0xf]
      %v3115 = vld [vmem:[%s1861 + $0x44] sm:$0xf]
      %v3116 = vld [vmem:[%s1861 + $0x48] sm:$0xf]
      %v3117 = vld [vmem:[%s1861 + $0x4c] sm:$0xf]
      %v3118 = vld [vmem:[%s1861 + $0x50] sm:$0x1]
      %v3119 = vld [vmem:[%s1483] sm:$0xf]
      %v3120 = vld [vmem:[%s1483 + $0x4] sm:$0xf]
      %v3121 = vld [vmem:[%s1483 + $0x8] sm:$0xf]
      %v3122 = vld [vmem:[%s1483 + $0xc] sm:$0xf]
      %v3123 = vld [vmem:[%s1483 + $0x10] sm:$0xf]
      %v3124 = vld [vmem:[%s1483 + $0x14] sm:$0xf]
      %v3135 = vunpack.c.l.b16 %v3109
      %v3136 = vunpack.c.l.b16 %v3110
      %v3137 = vunpack.c.l.b16 %v3111
      %v3138 = vunpack.c.l.b16 %v3112
      %v3139 = vunpack.c.l.b16 %v3113
      %v3140 = vunpack.c.l.b16 %v3114
      %v3141 = vunpack.c.l.b16 %v3115
      %v3142 = vunpack.c.l.b16 %v3116
      %v3143 = vunpack.c.l.b16 %v3117
      %v3144 = vunpack.c.l.b16 %v3118
      %v3145 = vpack.c.b16 %v3136, %v3135
      %v3146 = vpack.c.b16 %v3138, %v3137
      %v3147 = vpack.c.b16 %v3140, %v3139
      %v3148 = vpack.c.b16 %v3142, %v3141
      %v3149 = vpack.c.b16 %v3144, %v3143
      %v3150 = vrot.slane %v3145, 1
      %v3151 = vrot.slane %v3146, 1
      %v3152 = vsel %vm784, %v3150, %v3151
      %v3153 = vrot.slane %v3147, 1
      %v3154 = vsel %vm784, %v3151, %v3153
      %v3155 = vrot.slane %v3148, 1
      %v3156 = vsel %vm784, %v3153, %v3155
      %v3157 = vrot.slane %v3149, 1
      %v3158 = vsel %vm784, %v3155, %v3157
      %v3165 = vunpack.c.l.b16 %v3119
      %v3166 = vunpack.c.l.b16 %v3120
      %v3167 = vunpack.c.l.b16 %v3121
      %v3168 = vunpack.c.l.b16 %v3122
      %v3169 = vunpack.c.l.b16 %v3123
      %v3170 = vunpack.c.l.b16 %v3124
      %v3171 = vpack.c.b16 %v3166, %v3165
      %v3172 = vpack.c.b16 %v3168, %v3167
      %v3173 = vpack.c.b16 %v3170, %v3169
      %v3178 = vsel %vm331, %v3152, 0
      %v3181 = vsel %vm331, %v3154, 0
      %v3184 = vsel %vm331, %v3156, 0
      %v3187 = vsel %vm331, %v3158, 0
      %v3190 = vsel %vm331, %v3157, 0
      %3192 = vmatprep.subr.bf16.mxu0 0
      %3193 = vmatpush1.bf16.msra.mxu0 0
      %3194 = vmatprep.subr.bf16.mxu0 0
      %3195 = vmatpush1.bf16.msra.mxu0 0
      %3196 = vmatprep.subr.bf16.mxu0 0
      %3197 = vmatpush1.bf16.msra.mxu0 0
      %3198 = vmatprep.subr.bf16.mxu0 0
      %3199 = vmatpush1.bf16.msra.mxu0 0
      %3200 = vmatprep.subr.bf16.mxu0 0
      %3201 = vmatpush1.bf16.msra.mxu0 0
      %3202 = vmatprep.subr.bf16.mxu0 0
      %3203 = vmatpush1.bf16.msra.mxu0 %v3173
      %3204 = vmatprep.subr.bf16.mxu0 0
      %3205 = vmatpush1.bf16.msra.mxu0 %v3172
      %3206 = vmatprep.subr.bf16.mxu0 0
      %3207 = vmatpush1.bf16.msra.mxu0 %v3171
      %3208 = vmatprep.subr.bf16.mxu0 0
      %3209 = vmatpush2.bf16.msra.mxu0 0
      %3210 = vmatprep.subr.bf16.mxu0 0
      %3211 = vmatpush2.bf16.msra.mxu0 0
      %3212 = vmatprep.subr.bf16.mxu0 0
      %3213 = vmatpush2.bf16.msra.mxu0 0
      %3214 = vmatprep.subr.bf16.mxu0 0
      %3215 = vmatpush2.bf16.msra.mxu0 0
      %3216 = vmatprep.subr.bf16.mxu0 0
      %3217 = vmatpush2.bf16.msra.mxu0 0
      %3218 = vmatprep.subr.bf16.mxu0 0
      %3219 = vmatpush2.bf16.msra.mxu0 0
      %3220 = vmatprep.subr.bf16.mxu0 0
      %3221 = vmatpush2.bf16.msra.mxu0 0
      %3222 = vmatprep.subr.bf16.mxu0 0
      %3223 = vmatpush2.bf16.msra.mxu0 0
      %3224 = vmatprep.mubr.bf16.mxu0 0
      %3225 = vmatmul.mubr.bf16.gmra.mxu0 %v3178
      %v3226 = vpop.f32.mrf.mxu0
      %v3227 = vadd.f32 0.0, %v3226
      %v3228 = vpop.f32.mrf.mxu0
      %v3229 = vpop.f32.mrf.mxu0
      %v3230 = vadd.f32 0.0, %v3229
      %v3231 = vpop.f32.mrf.mxu0
      %3232 = vmatprep.mubr.bf16.mxu0 0
      %3233 = vmatmul.mubr.bf16.gmra.mxu0 %v3181
      %v3234 = vpop.f32.mrf.mxu0
      %v3235 = vadd.f32 0.0, %v3234
      %v3236 = vpop.f32.mrf.mxu0
      %v3237 = vpop.f32.mrf.mxu0
      %v3238 = vadd.f32 0.0, %v3237
      %v3239 = vpop.f32.mrf.mxu0
      %3240 = vmatprep.mubr.bf16.mxu0 0
      %3241 = vmatmul.mubr.bf16.gmra.mxu0 %v3184
      %v3242 = vpop.f32.mrf.mxu0
      %v3243 = vadd.f32 0.0, %v3242
      %v3244 = vpop.f32.mrf.mxu0
      %v3245 = vpop.f32.mrf.mxu0
      %v3246 = vadd.f32 0.0, %v3245
      %v3247 = vpop.f32.mrf.mxu0
      %3248 = vmatprep.mubr.bf16.mxu0 0
      %3249 = vmatmul.mubr.bf16.gmra.mxu0 %v3187
      %v3250 = vpop.f32.mrf.mxu0
      %v3251 = vadd.f32 0.0, %v3250
      %v3252 = vpop.f32.mrf.mxu0
      %v3253 = vpop.f32.mrf.mxu0
      %v3254 = vadd.f32 0.0, %v3253
      %v3255 = vpop.f32.mrf.mxu0
      %3256 = vmatprep.mubr.bf16.mxu0 0
      %3257 = vmatmul.mubr.bf16.gmra.mxu0 %v3190
      %v3258 = vpop.f32.mrf.mxu0
      %v3259 = vadd.f32 0.0, %v3258
      %v3260 = vpop.f32.mrf.mxu0
      %v3261 = vpop.f32.mrf.mxu0
      %v3262 = vpop.f32.mrf.mxu0
      %3263 = vdwg.mxu0
      %v3264 = vadd.f32 %v3100, %v3227
      %v3265 = vadd.f32 %v3101, %v3230
      %v3266 = vadd.f32 %v3102, %v3235
      %v3267 = vadd.f32 %v3103, %v3238
      %v3268 = vadd.f32 %v3104, %v3243
      %v3269 = vadd.f32 %v3105, %v3246
      %v3270 = vadd.f32 %v3106, %v3251
      %v3271 = vadd.f32 %v3107, %v3254
      %v3272 = vadd.f32 %v3108, %v3259
      %v3273 = vld [vmem:[%s1861 + $0x4] sm:$0xe]
      %v3274 = vld [vmem:[%s1639] sm:$0xf]
      %v3275 = vld [vmem:[%s1639 + $0x4] sm:$0xf]
      %v3276 = vld [vmem:[%s1639 + $0x8] sm:$0xf]
      %v3277 = vld [vmem:[%s1639 + $0xc] sm:$0xf]
      %v3278 = vld [vmem:[%s1639 + $0x10] sm:$0xf]
      %v3279 = vld [vmem:[%s1639 + $0x14] sm:$0xf]
      %v3281 = vunpack.c.l.b16 %v3273
      %v3282 = vpack.c.b16 %v2942, %v3281
      %v3283 = vrot.slane %v3282, 1
      %v3284 = vrot.slane %v2952, 1
      %v3285 = vsel %vm784, %v3283, %v3284
      %v3286 = vrot.slane %v2953, 1
      %v3287 = vsel %vm784, %v3284, %v3286
      %v3288 = vrot.slane %v2954, 1
      %v3289 = vsel %vm784, %v3286, %v3288
      %v3290 = vrot.slane %v2955, 1
      %v3291 = vsel %vm784, %v3288, %v3290
      %v3298 = vunpack.c.l.b16 %v3274
      %v3299 = vunpack.c.l.b16 %v3275
      %v3300 = vunpack.c.l.b16 %v3276
      %v3301 = vunpack.c.l.b16 %v3277
      %v3302 = vunpack.c.l.b16 %v3278
      %v3303 = vunpack.c.l.b16 %v3279
      %v3304 = vpack.c.b16 %v3299, %v3298
      %v3305 = vpack.c.b16 %v3301, %v3300
      %v3306 = vpack.c.b16 %v3303, %v3302
      %v3311 = vsel %vm331, %v3285, 0
      %v3314 = vsel %vm331, %v3287, 0
      %v3317 = vsel %vm331, %v3289, 0
      %v3320 = vsel %vm331, %v3291, 0
      %v3323 = vsel %vm331, %v3290, 0
      %3325 = vmatprep.subr.bf16.mxu0 0
      %3326 = vmatpush1.bf16.msra.mxu0 0
      %3327 = vmatprep.subr.bf16.mxu0 0
      %3328 = vmatpush1.bf16.msra.mxu0 0
      %3329 = vmatprep.subr.bf16.mxu0 0
      %3330 = vmatpush1.bf16.msra.mxu0 0
      %3331 = vmatprep.subr.bf16.mxu0 0
      %3332 = vmatpush1.bf16.msra.mxu0 0
      %3333 = vmatprep.subr.bf16.mxu0 0
      %3334 = vmatpush1.bf16.msra.mxu0 0
      %3335 = vmatprep.subr.bf16.mxu0 0
      %3336 = vmatpush1.bf16.msra.mxu0 %v3306
      %3337 = vmatprep.subr.bf16.mxu0 0
      %3338 = vmatpush1.bf16.msra.mxu0 %v3305
      %3339 = vmatprep.subr.bf16.mxu0 0
      %3340 = vmatpush1.bf16.msra.mxu0 %v3304
      %3341 = vmatprep.subr.bf16.mxu0 0
      %3342 = vmatpush2.bf16.msra.mxu0 0
      %3343 = vmatprep.subr.bf16.mxu0 0
      %3344 = vmatpush2.bf16.msra.mxu0 0
      %3345 = vmatprep.subr.bf16.mxu0 0
      %3346 = vmatpush2.bf16.msra.mxu0 0
      %3347 = vmatprep.subr.bf16.mxu0 0
      %3348 = vmatpush2.bf16.msra.mxu0 0
      %3349 = vmatprep.subr.bf16.mxu0 0
      %3350 = vmatpush2.bf16.msra.mxu0 0
      %3351 = vmatprep.subr.bf16.mxu0 0
      %3352 = vmatpush2.bf16.msra.mxu0 0
      %3353 = vmatprep.subr.bf16.mxu0 0
      %3354 = vmatpush2.bf16.msra.mxu0 0
      %3355 = vmatprep.subr.bf16.mxu0 0
      %3356 = vmatpush2.bf16.msra.mxu0 0
      %3357 = vmatprep.mubr.bf16.mxu0 0
      %3358 = vmatmul.mubr.bf16.gmra.mxu0 %v3311
      %v3359 = vpop.f32.mrf.mxu0
      %v3360 = vadd.f32 0.0, %v3359
      %v3361 = vpop.f32.mrf.mxu0
      %v3362 = vpop.f32.mrf.mxu0
      %v3363 = vadd.f32 0.0, %v3362
      %v3364 = vpop.f32.mrf.mxu0
      %3365 = vmatprep.mubr.bf16.mxu0 0
      %3366 = vmatmul.mubr.bf16.gmra.mxu0 %v3314
      %v3367 = vpop.f32.mrf.mxu0
      %v3368 = vadd.f32 0.0, %v3367
      %v3369 = vpop.f32.mrf.mxu0
      %v3370 = vpop.f32.mrf.mxu0
      %v3371 = vadd.f32 0.0, %v3370
      %v3372 = vpop.f32.mrf.mxu0
      %3373 = vmatprep.mubr.bf16.mxu0 0
      %3374 = vmatmul.mubr.bf16.gmra.mxu0 %v3317
      %v3375 = vpop.f32.mrf.mxu0
      %v3376 = vadd.f32 0.0, %v3375
      %v3377 = vpop.f32.mrf.mxu0
      %v3378 = vpop.f32.mrf.mxu0
      %v3379 = vadd.f32 0.0, %v3378
      %v3380 = vpop.f32.mrf.mxu0
      %3381 = vmatprep.mubr.bf16.mxu0 0
      %3382 = vmatmul.mubr.bf16.gmra.mxu0 %v3320
      %v3383 = vpop.f32.mrf.mxu0
      %v3384 = vadd.f32 0.0, %v3383
      %v3385 = vpop.f32.mrf.mxu0
      %v3386 = vpop.f32.mrf.mxu0
      %v3387 = vadd.f32 0.0, %v3386
      %v3388 = vpop.f32.mrf.mxu0
      %3389 = vmatprep.mubr.bf16.mxu0 0
      %3390 = vmatmul.mubr.bf16.gmra.mxu0 %v3323
      %v3391 = vpop.f32.mrf.mxu0
      %v3392 = vadd.f32 0.0, %v3391
      %v3393 = vpop.f32.mrf.mxu0
      %v3394 = vpop.f32.mrf.mxu0
      %v3395 = vpop.f32.mrf.mxu0
      %3396 = vdwg.mxu0
      %v3397 = vadd.f32 %v3264, %v3360
      %v3398 = vadd.f32 %v3265, %v3363
      %v3399 = vadd.f32 %v3266, %v3368
      %v3400 = vadd.f32 %v3267, %v3371
      %v3401 = vadd.f32 %v3268, %v3376
      %v3402 = vadd.f32 %v3269, %v3379
      %v3403 = vadd.f32 %v3270, %v3384
      %v3404 = vadd.f32 %v3271, %v3387
      %v3405 = vadd.f32 %v3272, %v3392
      %v3406 = vld [vmem:[%s2] sm:$0x1]
      %v3408 = vlaneseq
      %v3409 = vshrl.u32 %v3408, 7
      %v3410 = vsub.s32 0, %v3409
      %v3411 = vrot.slane %v3406, %v3410
      %v3413 = vadd.f32 %v3397, %v3411
      %v3414 = vadd.f32 %v3398, %v3411
      %v3415 = vadd.f32 %v3399, %v3411
      %v3416 = vadd.f32 %v3400, %v3411
      %v3417 = vadd.f32 %v3401, %v3411
      %v3418 = vadd.f32 %v3402, %v3411
      %v3419 = vadd.f32 %v3403, %v3411
      %v3420 = vadd.f32 %v3404, %v3411
      %v3421 = vadd.f32 %v3405, %v3411
      %vm3422 = vcmp.ge.f32.partialorder %v3413, 0.0
      %vm3423 = vcmp.ge.f32.partialorder %v3414, 0.0
      %vm3424 = vcmp.ge.f32.partialorder %v3415, 0.0
      %vm3425 = vcmp.ge.f32.partialorder %v3416, 0.0
      %vm3426 = vcmp.ge.f32.partialorder %v3417, 0.0
      %vm3427 = vcmp.ge.f32.partialorder %v3418, 0.0
      %vm3428 = vcmp.ge.f32.partialorder %v3419, 0.0
      %vm3429 = vcmp.ge.f32.partialorder %v3420, 0.0
      %vm3430 = vcmp.ge.f32.partialorder %v3421, 0.0
      %v3431 = vmul.f32 %v3413, 0.2
      %v3432 = vmul.f32 %v3414, 0.2
      %v3433 = vmul.f32 %v3415, 0.2
      %v3434 = vmul.f32 %v3416, 0.2
      %v3435 = vmul.f32 %v3417, 0.2
      %v3436 = vmul.f32 %v3418, 0.2
      %v3437 = vmul.f32 %v3419, 0.2
      %v3438 = vmul.f32 %v3420, 0.2
      %v3439 = vmul.f32 %v3421, 0.2
      %v3440 = vsel %vm3422, %v3413, %v3431
      %v3441 = vsel %vm3423, %v3414, %v3432
      %v3442 = vsel %vm3424, %v3415, %v3433
      %v3443 = vsel %vm3425, %v3416, %v3434
      %v3444 = vsel %vm3426, %v3417, %v3435
      %v3445 = vsel %vm3427, %v3418, %v3436
      %v3446 = vsel %vm3428, %v3419, %v3437
      %v3447 = vsel %vm3429, %v3420, %v3438
      %v3448 = vsel %vm3430, %v3421, %v3439
      %v3449 = vpack.c.bf16 %v3441, %v3440
      %v3450 = vpack.c.bf16 %v3443, %v3442
      %v3451 = vpack.c.bf16 %v3445, %v3444
      %v3452 = vpack.c.bf16 %v3447, %v3446
      %v3453 = vpack.c.bf16 %v3448, %v3448
      %v3459 = vunpack.c.l.b16 %v3449
      %v3460 = vunpack.c.h.b16 %v3449
      %v3461 = vunpack.c.l.b16 %v3450
      %v3462 = vunpack.c.h.b16 %v3450
      %v3463 = vunpack.c.l.b16 %v3451
      %v3464 = vunpack.c.h.b16 %v3451
      %v3465 = vunpack.c.l.b16 %v3452
      %v3466 = vunpack.c.h.b16 %v3452
      %v3467 = vunpack.c.l.b16 %v3453
      %v3468 = vpack.c.b16 %v3459, %v3459
      %v3469 = vpack.c.b16 %v3460, %v3460
      %v3470 = vpack.c.b16 %v3461, %v3461
      %v3471 = vpack.c.b16 %v3462, %v3462
      %v3472 = vpack.c.b16 %v3463, %v3463
      %v3473 = vpack.c.b16 %v3464, %v3464
      %v3474 = vpack.c.b16 %v3465, %v3465
      %v3475 = vpack.c.b16 %v3466, %v3466
      %v3476 = vpack.c.b16 %v3467, %v3467
      %s3486 = scalar_lea.vmem %s213, 36
      %3487 = vst [vmem:[%s3486] sm:$0xf] %v3468
      %3488 = vst [vmem:[%s3486 + $0x4] sm:$0xf] %v3469
      %3489 = vst [vmem:[%s3486 + $0x8] sm:$0xf] %v3470
      %3490 = vst [vmem:[%s3486 + $0xc] sm:$0xf] %v3471
      %3491 = vst [vmem:[%s3486 + $0x10] sm:$0xf] %v3472
      %3492 = vst [vmem:[%s3486 + $0x14] sm:$0xf] %v3473
      %3493 = vst [vmem:[%s3486 + $0x18] sm:$0xf] %v3474
      %3494 = vst [vmem:[%s3486 + $0x1c] sm:$0xf] %v3475
      %3495 = vst [vmem:[%s3486 + $0x20] sm:$0xf] %v3476
      %s3496 = scalar_lea.vmem %s202, 328
      %v3497 = vld [vmem:[%s3496] sm:$0xf]
      %v3498 = vld [vmem:[%s3496 + $0x4] sm:$0xf]
      %v3499 = vld [vmem:[%s3496 + $0x8] sm:$0xf]
      %v3500 = vld [vmem:[%s3496 + $0xc] sm:$0xf]
      %v3501 = vld [vmem:[%s3496 + $0x10] sm:$0xf]
      %v3502 = vld [vmem:[%s3496 + $0x14] sm:$0xf]
      %v3503 = vld [vmem:[%s3496 + $0x18] sm:$0xf]
      %v3504 = vld [vmem:[%s3496 + $0x1c] sm:$0xf]
      %v3505 = vld [vmem:[%s3496 + $0x20] sm:$0xf]
      %v3506 = vld [vmem:[%s1] sm:$0xf]
      %v3507 = vld [vmem:[%s1 + $0x4] sm:$0xf]
      %v3508 = vld [vmem:[%s1 + $0x8] sm:$0xf]
      %v3509 = vld [vmem:[%s1 + $0xc] sm:$0xf]
      %v3510 = vld [vmem:[%s1 + $0x10] sm:$0xf]
      %v3511 = vld [vmem:[%s1 + $0x14] sm:$0xf]
      %v3512 = vld [vmem:[%s3496 + $0x28] sm:$0xf]
      %v3513 = vld [vmem:[%s3496 + $0x2c] sm:$0xf]
      %v3514 = vld [vmem:[%s3496 + $0x30] sm:$0xf]
      %v3515 = vld [vmem:[%s3496 + $0x34] sm:$0xf]
      %v3516 = vld [vmem:[%s3496 + $0x38] sm:$0xf]
      %v3517 = vld [vmem:[%s3496 + $0x3c] sm:$0xf]
      %v3518 = vld [vmem:[%s3496 + $0x40] sm:$0xf]
      %v3519 = vld [vmem:[%s3496 + $0x44] sm:$0xf]
      %v3520 = vld [vmem:[%s3496 + $0x48] sm:$0xf]
      %v3521 = vld [vmem:[%s3496 + $0x4c] sm:$0x1]
      %v3522 = vld [vmem:[%s241] sm:$0xf]
      %v3523 = vld [vmem:[%s241 + $0x4] sm:$0xf]
      %v3524 = vld [vmem:[%s241 + $0x8] sm:$0xf]
      %v3525 = vld [vmem:[%s241 + $0xc] sm:$0xf]
      %v3526 = vld [vmem:[%s241 + $0x10] sm:$0xf]
      %v3527 = vld [vmem:[%s241 + $0x14] sm:$0xf]
      %v3538 = vunpack.c.l.b16 %v3512
      %v3539 = vunpack.c.l.b16 %v3513
      %v3540 = vunpack.c.l.b16 %v3514
      %v3541 = vunpack.c.l.b16 %v3515
      %v3542 = vunpack.c.l.b16 %v3516
      %v3543 = vunpack.c.l.b16 %v3517
      %v3544 = vunpack.c.l.b16 %v3518
      %v3545 = vunpack.c.l.b16 %v3519
      %v3546 = vunpack.c.l.b16 %v3520
      %v3547 = vunpack.c.l.b16 %v3521
      %v3548 = vpack.c.b16 %v3539, %v3538
      %v3549 = vpack.c.b16 %v3541, %v3540
      %v3550 = vpack.c.b16 %v3543, %v3542
      %v3551 = vpack.c.b16 %v3545, %v3544
      %v3552 = vpack.c.b16 %v3547, %v3546
      %v3554 = vshrl.u32 %v3548, 16
      %v3556 = vshll.u32 %v3548, 16
      %v3558 = vrot.slane %v3556, 1
      %v3559 = vor.u32 %v3554, %v3558
      %v3561 = vshll.u32 %v3549, 16
      %v3563 = vrot.slane %v3561, 1
      %v3564 = vsel %vm273, %v3559, %v3563
      %v3565 = vshrl.u32 %v3549, 16
      %v3567 = vor.u32 %v3565, %v3563
      %v3569 = vshll.u32 %v3550, 16
      %v3571 = vrot.slane %v3569, 1
      %v3572 = vsel %vm273, %v3567, %v3571
      %v3573 = vshrl.u32 %v3550, 16
      %v3575 = vor.u32 %v3573, %v3571
      %v3577 = vshll.u32 %v3551, 16
      %v3579 = vrot.slane %v3577, 1
      %v3580 = vsel %vm273, %v3575, %v3579
      %v3581 = vshrl.u32 %v3551, 16
      %v3583 = vor.u32 %v3581, %v3579
      %v3585 = vshll.u32 %v3552, 16
      %v3587 = vrot.slane %v3585, 1
      %v3588 = vsel %vm273, %v3583, %v3587
      %v3589 = vshrl.u32 %v3552, 16
      %v3591 = vor.u32 %v3589, %v3587
      %v3598 = vunpack.c.l.b16 %v3522
      %v3599 = vunpack.c.l.b16 %v3523
      %v3600 = vunpack.c.l.b16 %v3524
      %v3601 = vunpack.c.l.b16 %v3525
      %v3602 = vunpack.c.l.b16 %v3526
      %v3603 = vunpack.c.l.b16 %v3527
      %v3604 = vpack.c.b16 %v3599, %v3598
      %v3605 = vpack.c.b16 %v3601, %v3600
      %v3606 = vpack.c.b16 %v3603, %v3602
      %v3611 = vsel %vm331, %v3564, 0
      %v3614 = vsel %vm331, %v3572, 0
      %v3617 = vsel %vm331, %v3580, 0
      %v3620 = vsel %vm331, %v3588, 0
      %v3623 = vsel %vm331, %v3591, 0
      %3625 = vmatprep.subr.bf16.mxu0 0
      %3626 = vmatpush1.bf16.msra.mxu0 0
      %3627 = vmatprep.subr.bf16.mxu0 0
      %3628 = vmatpush1.bf16.msra.mxu0 0
      %3629 = vmatprep.subr.bf16.mxu0 0
      %3630 = vmatpush1.bf16.msra.mxu0 0
      %3631 = vmatprep.subr.bf16.mxu0 0
      %3632 = vmatpush1.bf16.msra.mxu0 0
      %3633 = vmatprep.subr.bf16.mxu0 0
      %3634 = vmatpush1.bf16.msra.mxu0 0
      %3635 = vmatprep.subr.bf16.mxu0 0
      %3636 = vmatpush1.bf16.msra.mxu0 %v3606
      %3637 = vmatprep.subr.bf16.mxu0 0
      %3638 = vmatpush1.bf16.msra.mxu0 %v3605
      %3639 = vmatprep.subr.bf16.mxu0 0
      %3640 = vmatpush1.bf16.msra.mxu0 %v3604
      %3641 = vmatprep.subr.bf16.mxu0 0
      %3642 = vmatpush2.bf16.msra.mxu0 0
      %3643 = vmatprep.subr.bf16.mxu0 0
      %3644 = vmatpush2.bf16.msra.mxu0 0
      %3645 = vmatprep.subr.bf16.mxu0 0
      %3646 = vmatpush2.bf16.msra.mxu0 0
      %3647 = vmatprep.subr.bf16.mxu0 0
      %3648 = vmatpush2.bf16.msra.mxu0 0
      %3649 = vmatprep.subr.bf16.mxu0 0
      %3650 = vmatpush2.bf16.msra.mxu0 0
      %3651 = vmatprep.subr.bf16.mxu0 0
      %3652 = vmatpush2.bf16.msra.mxu0 0
      %3653 = vmatprep.subr.bf16.mxu0 0
      %3654 = vmatpush2.bf16.msra.mxu0 0
      %3655 = vmatprep.subr.bf16.mxu0 0
      %3656 = vmatpush2.bf16.msra.mxu0 0
      %3657 = vmatprep.mubr.bf16.mxu0 0
      %3658 = vmatmul.mubr.bf16.gmra.mxu0 %v3611
      %v3659 = vpop.f32.mrf.mxu0
      %v3660 = vadd.f32 0.0, %v3659
      %v3661 = vpop.f32.mrf.mxu0
      %v3662 = vpop.f32.mrf.mxu0
      %v3663 = vadd.f32 0.0, %v3662
      %v3664 = vpop.f32.mrf.mxu0
      %3665 = vmatprep.mubr.bf16.mxu0 0
      %3666 = vmatmul.mubr.bf16.gmra.mxu0 %v3614
      %v3667 = vpop.f32.mrf.mxu0
      %v3668 = vadd.f32 0.0, %v3667
      %v3669 = vpop.f32.mrf.mxu0
      %v3670 = vpop.f32.mrf.mxu0
      %v3671 = vadd.f32 0.0, %v3670
      %v3672 = vpop.f32.mrf.mxu0
      %3673 = vmatprep.mubr.bf16.mxu0 0
      %3674 = vmatmul.mubr.bf16.gmra.mxu0 %v3617
      %v3675 = vpop.f32.mrf.mxu0
      %v3676 = vadd.f32 0.0, %v3675
      %v3677 = vpop.f32.mrf.mxu0
      %v3678 = vpop.f32.mrf.mxu0
      %v3679 = vadd.f32 0.0, %v3678
      %v3680 = vpop.f32.mrf.mxu0
      %3681 = vmatprep.mubr.bf16.mxu0 0
      %3682 = vmatmul.mubr.bf16.gmra.mxu0 %v3620
      %v3683 = vpop.f32.mrf.mxu0
      %v3684 = vadd.f32 0.0, %v3683
      %v3685 = vpop.f32.mrf.mxu0
      %v3686 = vpop.f32.mrf.mxu0
      %v3687 = vadd.f32 0.0, %v3686
      %v3688 = vpop.f32.mrf.mxu0
      %3689 = vmatprep.mubr.bf16.mxu0 0
      %3690 = vmatmul.mubr.bf16.gmra.mxu0 %v3623
      %v3691 = vpop.f32.mrf.mxu0
      %v3692 = vadd.f32 0.0, %v3691
      %v3693 = vpop.f32.mrf.mxu0
      %v3694 = vpop.f32.mrf.mxu0
      %v3695 = vpop.f32.mrf.mxu0
      %3696 = vdwg.mxu0
      %v3706 = vunpack.c.l.b16 %v3497
      %v3707 = vunpack.c.l.b16 %v3498
      %v3708 = vunpack.c.l.b16 %v3499
      %v3709 = vunpack.c.l.b16 %v3500
      %v3710 = vunpack.c.l.b16 %v3501
      %v3711 = vunpack.c.l.b16 %v3502
      %v3712 = vunpack.c.l.b16 %v3503
      %v3713 = vunpack.c.l.b16 %v3504
      %v3714 = vunpack.c.l.b16 %v3505
      %v3715 = vpack.c.b16 %v3707, %v3706
      %v3716 = vpack.c.b16 %v3709, %v3708
      %v3717 = vpack.c.b16 %v3711, %v3710
      %v3718 = vpack.c.b16 %v3713, %v3712
      %v3719 = vpack.c.b16 %v3714, %v3714
      %v3726 = vunpack.c.l.b16 %v3506
      %v3727 = vunpack.c.l.b16 %v3507
      %v3728 = vunpack.c.l.b16 %v3508
      %v3729 = vunpack.c.l.b16 %v3509
      %v3730 = vunpack.c.l.b16 %v3510
      %v3731 = vunpack.c.l.b16 %v3511
      %v3732 = vpack.c.b16 %v3727, %v3726
      %v3733 = vpack.c.b16 %v3729, %v3728
      %v3734 = vpack.c.b16 %v3731, %v3730
      %v3739 = vsel %vm331, %v3715, 0
      %v3742 = vsel %vm331, %v3716, 0
      %v3745 = vsel %vm331, %v3717, 0
      %v3748 = vsel %vm331, %v3718, 0
      %v3751 = vsel %vm331, %v3719, 0
      %3753 = vmatprep.subr.bf16.mxu0 0
      %3754 = vmatpush1.bf16.msra.mxu0 0
      %3755 = vmatprep.subr.bf16.mxu0 0
      %3756 = vmatpush1.bf16.msra.mxu0 0
      %3757 = vmatprep.subr.bf16.mxu0 0
      %3758 = vmatpush1.bf16.msra.mxu0 0
      %3759 = vmatprep.subr.bf16.mxu0 0
      %3760 = vmatpush1.bf16.msra.mxu0 0
      %3761 = vmatprep.subr.bf16.mxu0 0
      %3762 = vmatpush1.bf16.msra.mxu0 0
      %3763 = vmatprep.subr.bf16.mxu0 0
      %3764 = vmatpush1.bf16.msra.mxu0 %v3734
      %3765 = vmatprep.subr.bf16.mxu0 0
      %3766 = vmatpush1.bf16.msra.mxu0 %v3733
      %3767 = vmatprep.subr.bf16.mxu0 0
      %3768 = vmatpush1.bf16.msra.mxu0 %v3732
      %3769 = vmatprep.subr.bf16.mxu0 0
      %3770 = vmatpush2.bf16.msra.mxu0 0
      %3771 = vmatprep.subr.bf16.mxu0 0
      %3772 = vmatpush2.bf16.msra.mxu0 0
      %3773 = vmatprep.subr.bf16.mxu0 0
      %3774 = vmatpush2.bf16.msra.mxu0 0
      %3775 = vmatprep.subr.bf16.mxu0 0
      %3776 = vmatpush2.bf16.msra.mxu0 0
      %3777 = vmatprep.subr.bf16.mxu0 0
      %3778 = vmatpush2.bf16.msra.mxu0 0
      %3779 = vmatprep.subr.bf16.mxu0 0
      %3780 = vmatpush2.bf16.msra.mxu0 0
      %3781 = vmatprep.subr.bf16.mxu0 0
      %3782 = vmatpush2.bf16.msra.mxu0 0
      %3783 = vmatprep.subr.bf16.mxu0 0
      %3784 = vmatpush2.bf16.msra.mxu0 0
      %3785 = vmatprep.mubr.bf16.mxu0 0
      %3786 = vmatmul.mubr.bf16.gmra.mxu0 %v3739
      %v3787 = vpop.f32.mrf.mxu0
      %v3788 = vadd.f32 %v3660, %v3787
      %v3789 = vpop.f32.mrf.mxu0
      %v3790 = vpop.f32.mrf.mxu0
      %v3791 = vadd.f32 %v3663, %v3790
      %v3792 = vpop.f32.mrf.mxu0
      %3793 = vmatprep.mubr.bf16.mxu0 0
      %3794 = vmatmul.mubr.bf16.gmra.mxu0 %v3742
      %v3795 = vpop.f32.mrf.mxu0
      %v3796 = vadd.f32 %v3668, %v3795
      %v3797 = vpop.f32.mrf.mxu0
      %v3798 = vpop.f32.mrf.mxu0
      %v3799 = vadd.f32 %v3671, %v3798
      %v3800 = vpop.f32.mrf.mxu0
      %3801 = vmatprep.mubr.bf16.mxu0 0
      %3802 = vmatmul.mubr.bf16.gmra.mxu0 %v3745
      %v3803 = vpop.f32.mrf.mxu0
      %v3804 = vadd.f32 %v3676, %v3803
      %v3805 = vpop.f32.mrf.mxu0
      %v3806 = vpop.f32.mrf.mxu0
      %v3807 = vadd.f32 %v3679, %v3806
      %v3808 = vpop.f32.mrf.mxu0
      %3809 = vmatprep.mubr.bf16.mxu0 0
      %3810 = vmatmul.mubr.bf16.gmra.mxu0 %v3748
      %v3811 = vpop.f32.mrf.mxu0
      %v3812 = vadd.f32 %v3684, %v3811
      %v3813 = vpop.f32.mrf.mxu0
      %v3814 = vpop.f32.mrf.mxu0
      %v3815 = vadd.f32 %v3687, %v3814
      %v3816 = vpop.f32.mrf.mxu0
      %3817 = vmatprep.mubr.bf16.mxu0 0
      %3818 = vmatmul.mubr.bf16.gmra.mxu0 %v3751
      %v3819 = vpop.f32.mrf.mxu0
      %v3820 = vadd.f32 %v3692, %v3819
      %v3821 = vpop.f32.mrf.mxu0
      %v3822 = vpop.f32.mrf.mxu0
      %v3823 = vpop.f32.mrf.mxu0
      %3824 = vdwg.mxu0
      %v3825 = vld [vmem:[%s3496] sm:$0xf]
      %v3826 = vld [vmem:[%s3496 + $0x4] sm:$0xf]
      %v3827 = vld [vmem:[%s3496 + $0x8] sm:$0xf]
      %v3828 = vld [vmem:[%s3496 + $0xc] sm:$0xf]
      %v3829 = vld [vmem:[%s3496 + $0x10] sm:$0xf]
      %v3830 = vld [vmem:[%s3496 + $0x14] sm:$0xf]
      %v3831 = vld [vmem:[%s3496 + $0x18] sm:$0xf]
      %v3832 = vld [vmem:[%s3496 + $0x1c] sm:$0xf]
      %v3833 = vld [vmem:[%s3496 + $0x20] sm:$0xf]
      %v3834 = vld [vmem:[%s3496 + $0x24] sm:$0x1]
      %v3835 = vld [vmem:[%s557] sm:$0xf]
      %v3836 = vld [vmem:[%s557 + $0x4] sm:$0xf]
      %v3837 = vld [vmem:[%s557 + $0x8] sm:$0xf]
      %v3838 = vld [vmem:[%s557 + $0xc] sm:$0xf]
      %v3839 = vld [vmem:[%s557 + $0x10] sm:$0xf]
      %v3840 = vld [vmem:[%s557 + $0x14] sm:$0xf]
      %v3851 = vunpack.c.l.b16 %v3825
      %v3852 = vunpack.c.l.b16 %v3826
      %v3853 = vunpack.c.l.b16 %v3827
      %v3854 = vunpack.c.l.b16 %v3828
      %v3855 = vunpack.c.l.b16 %v3829
      %v3856 = vunpack.c.l.b16 %v3830
      %v3857 = vunpack.c.l.b16 %v3831
      %v3858 = vunpack.c.l.b16 %v3832
      %v3859 = vunpack.c.l.b16 %v3833
      %v3860 = vunpack.c.l.b16 %v3834
      %v3861 = vpack.c.b16 %v3852, %v3851
      %v3862 = vpack.c.b16 %v3854, %v3853
      %v3863 = vpack.c.b16 %v3856, %v3855
      %v3864 = vpack.c.b16 %v3858, %v3857
      %v3865 = vpack.c.b16 %v3860, %v3859
      %v3867 = vshrl.u32 %v3861, 16
      %v3869 = vshll.u32 %v3861, 16
      %v3871 = vrot.slane %v3869, 1
      %v3872 = vor.u32 %v3867, %v3871
      %v3874 = vshll.u32 %v3862, 16
      %v3876 = vrot.slane %v3874, 1
      %v3877 = vsel %vm273, %v3872, %v3876
      %v3878 = vshrl.u32 %v3862, 16
      %v3880 = vor.u32 %v3878, %v3876
      %v3882 = vshll.u32 %v3863, 16
      %v3884 = vrot.slane %v3882, 1
      %v3885 = vsel %vm273, %v3880, %v3884
      %v3886 = vshrl.u32 %v3863, 16
      %v3888 = vor.u32 %v3886, %v3884
      %v3890 = vshll.u32 %v3864, 16
      %v3892 = vrot.slane %v3890, 1
      %v3893 = vsel %vm273, %v3888, %v3892
      %v3894 = vshrl.u32 %v3864, 16
      %v3896 = vor.u32 %v3894, %v3892
      %v3898 = vshll.u32 %v3865, 16
      %v3900 = vrot.slane %v3898, 1
      %v3901 = vsel %vm273, %v3896, %v3900
      %v3902 = vshrl.u32 %v3865, 16
      %v3904 = vor.u32 %v3902, %v3900
      %v3911 = vunpack.c.l.b16 %v3835
      %v3912 = vunpack.c.l.b16 %v3836
      %v3913 = vunpack.c.l.b16 %v3837
      %v3914 = vunpack.c.l.b16 %v3838
      %v3915 = vunpack.c.l.b16 %v3839
      %v3916 = vunpack.c.l.b16 %v3840
      %v3917 = vpack.c.b16 %v3912, %v3911
      %v3918 = vpack.c.b16 %v3914, %v3913
      %v3919 = vpack.c.b16 %v3916, %v3915
      %v3924 = vsel %vm331, %v3877, 0
      %v3927 = vsel %vm331, %v3885, 0
      %v3930 = vsel %vm331, %v3893, 0
      %v3933 = vsel %vm331, %v3901, 0
      %v3936 = vsel %vm331, %v3904, 0
      %3938 = vmatprep.subr.bf16.mxu0 0
      %3939 = vmatpush1.bf16.msra.mxu0 0
      %3940 = vmatprep.subr.bf16.mxu0 0
      %3941 = vmatpush1.bf16.msra.mxu0 0
      %3942 = vmatprep.subr.bf16.mxu0 0
      %3943 = vmatpush1.bf16.msra.mxu0 0
      %3944 = vmatprep.subr.bf16.mxu0 0
      %3945 = vmatpush1.bf16.msra.mxu0 0
      %3946 = vmatprep.subr.bf16.mxu0 0
      %3947 = vmatpush1.bf16.msra.mxu0 0
      %3948 = vmatprep.subr.bf16.mxu0 0
      %3949 = vmatpush1.bf16.msra.mxu0 %v3919
      %3950 = vmatprep.subr.bf16.mxu0 0
      %3951 = vmatpush1.bf16.msra.mxu0 %v3918
      %3952 = vmatprep.subr.bf16.mxu0 0
      %3953 = vmatpush1.bf16.msra.mxu0 %v3917
      %3954 = vmatprep.subr.bf16.mxu0 0
      %3955 = vmatpush2.bf16.msra.mxu0 0
      %3956 = vmatprep.subr.bf16.mxu0 0
      %3957 = vmatpush2.bf16.msra.mxu0 0
      %3958 = vmatprep.subr.bf16.mxu0 0
      %3959 = vmatpush2.bf16.msra.mxu0 0
      %3960 = vmatprep.subr.bf16.mxu0 0
      %3961 = vmatpush2.bf16.msra.mxu0 0
      %3962 = vmatprep.subr.bf16.mxu0 0
      %3963 = vmatpush2.bf16.msra.mxu0 0
      %3964 = vmatprep.subr.bf16.mxu0 0
      %3965 = vmatpush2.bf16.msra.mxu0 0
      %3966 = vmatprep.subr.bf16.mxu0 0
      %3967 = vmatpush2.bf16.msra.mxu0 0
      %3968 = vmatprep.subr.bf16.mxu0 0
      %3969 = vmatpush2.bf16.msra.mxu0 0
      %3970 = vmatprep.mubr.bf16.mxu0 0
      %3971 = vmatmul.mubr.bf16.gmra.mxu0 %v3924
      %v3972 = vpop.f32.mrf.mxu0
      %v3973 = vadd.f32 0.0, %v3972
      %v3974 = vpop.f32.mrf.mxu0
      %v3975 = vpop.f32.mrf.mxu0
      %v3976 = vadd.f32 0.0, %v3975
      %v3977 = vpop.f32.mrf.mxu0
      %3978 = vmatprep.mubr.bf16.mxu0 0
      %3979 = vmatmul.mubr.bf16.gmra.mxu0 %v3927
      %v3980 = vpop.f32.mrf.mxu0
      %v3981 = vadd.f32 0.0, %v3980
      %v3982 = vpop.f32.mrf.mxu0
      %v3983 = vpop.f32.mrf.mxu0
      %v3984 = vadd.f32 0.0, %v3983
      %v3985 = vpop.f32.mrf.mxu0
      %3986 = vmatprep.mubr.bf16.mxu0 0
      %3987 = vmatmul.mubr.bf16.gmra.mxu0 %v3930
      %v3988 = vpop.f32.mrf.mxu0
      %v3989 = vadd.f32 0.0, %v3988
      %v3990 = vpop.f32.mrf.mxu0
      %v3991 = vpop.f32.mrf.mxu0
      %v3992 = vadd.f32 0.0, %v3991
      %v3993 = vpop.f32.mrf.mxu0
      %3994 = vmatprep.mubr.bf16.mxu0 0
      %3995 = vmatmul.mubr.bf16.gmra.mxu0 %v3933
      %v3996 = vpop.f32.mrf.mxu0
      %v3997 = vadd.f32 0.0, %v3996
      %v3998 = vpop.f32.mrf.mxu0
      %v3999 = vpop.f32.mrf.mxu0
      %v4000 = vadd.f32 0.0, %v3999
      %v4001 = vpop.f32.mrf.mxu0
      %4002 = vmatprep.mubr.bf16.mxu0 0
      %4003 = vmatmul.mubr.bf16.gmra.mxu0 %v3936
      %v4004 = vpop.f32.mrf.mxu0
      %v4005 = vadd.f32 0.0, %v4004
      %v4006 = vpop.f32.mrf.mxu0
      %v4007 = vpop.f32.mrf.mxu0
      %v4008 = vpop.f32.mrf.mxu0
      %4009 = vdwg.mxu0
      %v4010 = vadd.f32 %v3788, %v3973
      %v4011 = vadd.f32 %v3791, %v3976
      %v4012 = vadd.f32 %v3796, %v3981
      %v4013 = vadd.f32 %v3799, %v3984
      %v4014 = vadd.f32 %v3804, %v3989
      %v4015 = vadd.f32 %v3807, %v3992
      %v4016 = vadd.f32 %v3812, %v3997
      %v4017 = vadd.f32 %v3815, %v4000
      %v4018 = vadd.f32 %v3820, %v4005
      %v4019 = vld [vmem:[%s3496 + $0x50] sm:$0xe]
      %v4020 = vld [vmem:[%s3496 + $0x54] sm:$0xf]
      %v4021 = vld [vmem:[%s3496 + $0x58] sm:$0xf]
      %v4022 = vld [vmem:[%s3496 + $0x5c] sm:$0xf]
      %v4023 = vld [vmem:[%s3496 + $0x60] sm:$0xf]
      %v4024 = vld [vmem:[%s3496 + $0x64] sm:$0xf]
      %v4025 = vld [vmem:[%s3496 + $0x68] sm:$0xf]
      %v4026 = vld [vmem:[%s3496 + $0x6c] sm:$0xf]
      %v4027 = vld [vmem:[%s3496 + $0x70] sm:$0xf]
      %v4028 = vld [vmem:[%s3496 + $0x74] sm:$0x1]
      %v4029 = vld [vmem:[%s752] sm:$0xf]
      %v4030 = vld [vmem:[%s752 + $0x4] sm:$0xf]
      %v4031 = vld [vmem:[%s752 + $0x8] sm:$0xf]
      %v4032 = vld [vmem:[%s752 + $0xc] sm:$0xf]
      %v4033 = vld [vmem:[%s752 + $0x10] sm:$0xf]
      %v4034 = vld [vmem:[%s752 + $0x14] sm:$0xf]
      %v4045 = vunpack.c.l.b16 %v4019
      %v4046 = vunpack.c.l.b16 %v4020
      %v4047 = vunpack.c.l.b16 %v4021
      %v4048 = vunpack.c.l.b16 %v4022
      %v4049 = vunpack.c.l.b16 %v4023
      %v4050 = vunpack.c.l.b16 %v4024
      %v4051 = vunpack.c.l.b16 %v4025
      %v4052 = vunpack.c.l.b16 %v4026
      %v4053 = vunpack.c.l.b16 %v4027
      %v4054 = vunpack.c.l.b16 %v4028
      %v4055 = vpack.c.b16 %v4046, %v4045
      %v4056 = vpack.c.b16 %v4048, %v4047
      %v4057 = vpack.c.b16 %v4050, %v4049
      %v4058 = vpack.c.b16 %v4052, %v4051
      %v4059 = vpack.c.b16 %v4054, %v4053
      %v4060 = vrot.slane %v4055, 1
      %v4061 = vrot.slane %v4056, 1
      %v4062 = vsel %vm784, %v4060, %v4061
      %v4063 = vrot.slane %v4057, 1
      %v4064 = vsel %vm784, %v4061, %v4063
      %v4065 = vrot.slane %v4058, 1
      %v4066 = vsel %vm784, %v4063, %v4065
      %v4067 = vrot.slane %v4059, 1
      %v4068 = vsel %vm784, %v4065, %v4067
      %v4075 = vunpack.c.l.b16 %v4029
      %v4076 = vunpack.c.l.b16 %v4030
      %v4077 = vunpack.c.l.b16 %v4031
      %v4078 = vunpack.c.l.b16 %v4032
      %v4079 = vunpack.c.l.b16 %v4033
      %v4080 = vunpack.c.l.b16 %v4034
      %v4081 = vpack.c.b16 %v4076, %v4075
      %v4082 = vpack.c.b16 %v4078, %v4077
      %v4083 = vpack.c.b16 %v4080, %v4079
      %v4088 = vsel %vm331, %v4062, 0
      %v4091 = vsel %vm331, %v4064, 0
      %v4094 = vsel %vm331, %v4066, 0
      %v4097 = vsel %vm331, %v4068, 0
      %v4100 = vsel %vm331, %v4067, 0
      %4102 = vmatprep.subr.bf16.mxu0 0
      %4103 = vmatpush1.bf16.msra.mxu0 0
      %4104 = vmatprep.subr.bf16.mxu0 0
      %4105 = vmatpush1.bf16.msra.mxu0 0
      %4106 = vmatprep.subr.bf16.mxu0 0
      %4107 = vmatpush1.bf16.msra.mxu0 0
      %4108 = vmatprep.subr.bf16.mxu0 0
      %4109 = vmatpush1.bf16.msra.mxu0 0
      %4110 = vmatprep.subr.bf16.mxu0 0
      %4111 = vmatpush1.bf16.msra.mxu0 0
      %4112 = vmatprep.subr.bf16.mxu0 0
      %4113 = vmatpush1.bf16.msra.mxu0 %v4083
      %4114 = vmatprep.subr.bf16.mxu0 0
      %4115 = vmatpush1.bf16.msra.mxu0 %v4082
      %4116 = vmatprep.subr.bf16.mxu0 0
      %4117 = vmatpush1.bf16.msra.mxu0 %v4081
      %4118 = vmatprep.subr.bf16.mxu0 0
      %4119 = vmatpush2.bf16.msra.mxu0 0
      %4120 = vmatprep.subr.bf16.mxu0 0
      %4121 = vmatpush2.bf16.msra.mxu0 0
      %4122 = vmatprep.subr.bf16.mxu0 0
      %4123 = vmatpush2.bf16.msra.mxu0 0
      %4124 = vmatprep.subr.bf16.mxu0 0
      %4125 = vmatpush2.bf16.msra.mxu0 0
      %4126 = vmatprep.subr.bf16.mxu0 0
      %4127 = vmatpush2.bf16.msra.mxu0 0
      %4128 = vmatprep.subr.bf16.mxu0 0
      %4129 = vmatpush2.bf16.msra.mxu0 0
      %4130 = vmatprep.subr.bf16.mxu0 0
      %4131 = vmatpush2.bf16.msra.mxu0 0
      %4132 = vmatprep.subr.bf16.mxu0 0
      %4133 = vmatpush2.bf16.msra.mxu0 0
      %4134 = vmatprep.mubr.bf16.mxu0 0
      %4135 = vmatmul.mubr.bf16.gmra.mxu0 %v4088
      %v4136 = vpop.f32.mrf.mxu0
      %v4137 = vadd.f32 0.0, %v4136
      %v4138 = vpop.f32.mrf.mxu0
      %v4139 = vpop.f32.mrf.mxu0
      %v4140 = vadd.f32 0.0, %v4139
      %v4141 = vpop.f32.mrf.mxu0
      %4142 = vmatprep.mubr.bf16.mxu0 0
      %4143 = vmatmul.mubr.bf16.gmra.mxu0 %v4091
      %v4144 = vpop.f32.mrf.mxu0
      %v4145 = vadd.f32 0.0, %v4144
      %v4146 = vpop.f32.mrf.mxu0
      %v4147 = vpop.f32.mrf.mxu0
      %v4148 = vadd.f32 0.0, %v4147
      %v4149 = vpop.f32.mrf.mxu0
      %4150 = vmatprep.mubr.bf16.mxu0 0
      %4151 = vmatmul.mubr.bf16.gmra.mxu0 %v4094
      %v4152 = vpop.f32.mrf.mxu0
      %v4153 = vadd.f32 0.0, %v4152
      %v4154 = vpop.f32.mrf.mxu0
      %v4155 = vpop.f32.mrf.mxu0
      %v4156 = vadd.f32 0.0, %v4155
      %v4157 = vpop.f32.mrf.mxu0
      %4158 = vmatprep.mubr.bf16.mxu0 0
      %4159 = vmatmul.mubr.bf16.gmra.mxu0 %v4097
      %v4160 = vpop.f32.mrf.mxu0
      %v4161 = vadd.f32 0.0, %v4160
      %v4162 = vpop.f32.mrf.mxu0
      %v4163 = vpop.f32.mrf.mxu0
      %v4164 = vadd.f32 0.0, %v4163
      %v4165 = vpop.f32.mrf.mxu0
      %4166 = vmatprep.mubr.bf16.mxu0 0
      %4167 = vmatmul.mubr.bf16.gmra.mxu0 %v4100
      %v4168 = vpop.f32.mrf.mxu0
      %v4169 = vadd.f32 0.0, %v4168
      %v4170 = vpop.f32.mrf.mxu0
      %v4171 = vpop.f32.mrf.mxu0
      %v4172 = vpop.f32.mrf.mxu0
      %4173 = vdwg.mxu0
      %v4174 = vadd.f32 %v4010, %v4137
      %v4175 = vadd.f32 %v4011, %v4140
      %v4176 = vadd.f32 %v4012, %v4145
      %v4177 = vadd.f32 %v4013, %v4148
      %v4178 = vadd.f32 %v4014, %v4153
      %v4179 = vadd.f32 %v4015, %v4156
      %v4180 = vadd.f32 %v4016, %v4161
      %v4181 = vadd.f32 %v4017, %v4164
      %v4182 = vadd.f32 %v4018, %v4169
      %v4183 = vld [vmem:[%s3496 + $0x78] sm:$0xe]
      %v4184 = vld [vmem:[%s3496 + $0x7c] sm:$0xf]
      %v4185 = vld [vmem:[%s3496 + $0x80] sm:$0xf]
      %v4186 = vld [vmem:[%s3496 + $0x84] sm:$0xf]
      %v4187 = vld [vmem:[%s3496 + $0x88] sm:$0xf]
      %v4188 = vld [vmem:[%s3496 + $0x8c] sm:$0xf]
      %v4189 = vld [vmem:[%s3496 + $0x90] sm:$0xf]
      %v4190 = vld [vmem:[%s3496 + $0x94] sm:$0xf]
      %v4191 = vld [vmem:[%s3496 + $0x98] sm:$0xf]
      %v4192 = vld [vmem:[%s3496 + $0x9c] sm:$0x3]
      %v4193 = vld [vmem:[%s918] sm:$0xf]
      %v4194 = vld [vmem:[%s918 + $0x4] sm:$0xf]
      %v4195 = vld [vmem:[%s918 + $0x8] sm:$0xf]
      %v4196 = vld [vmem:[%s918 + $0xc] sm:$0xf]
      %v4197 = vld [vmem:[%s918 + $0x10] sm:$0xf]
      %v4198 = vld [vmem:[%s918 + $0x14] sm:$0xf]
      %v4209 = vunpack.c.l.b16 %v4183
      %v4210 = vunpack.c.l.b16 %v4184
      %v4211 = vunpack.c.l.b16 %v4185
      %v4212 = vunpack.c.l.b16 %v4186
      %v4213 = vunpack.c.l.b16 %v4187
      %v4214 = vunpack.c.l.b16 %v4188
      %v4215 = vunpack.c.l.b16 %v4189
      %v4216 = vunpack.c.l.b16 %v4190
      %v4217 = vunpack.c.l.b16 %v4191
      %v4218 = vunpack.c.l.b16 %v4192
      %v4219 = vpack.c.b16 %v4210, %v4209
      %v4220 = vpack.c.b16 %v4212, %v4211
      %v4221 = vpack.c.b16 %v4214, %v4213
      %v4222 = vpack.c.b16 %v4216, %v4215
      %v4223 = vpack.c.b16 %v4218, %v4217
      %v4225 = vshrl.u32 %v4219, 16
      %v4227 = vrot.slane %v4225, 1
      %v4228 = vshll.u32 %v4219, 16
      %v4230 = vrot.slane %v4228, 2
      %v4231 = vor.u32 %v4227, %v4230
      %v4233 = vshrl.u32 %v4220, 16
      %v4235 = vrot.slane %v4233, 1
      %v4236 = vshll.u32 %v4220, 16
      %v4238 = vrot.slane %v4236, 2
      %v4239 = vor.u32 %v4235, %v4238
      %v4240 = vsel %vm950, %v4231, %v4239
      %v4242 = vshrl.u32 %v4221, 16
      %v4244 = vrot.slane %v4242, 1
      %v4245 = vshll.u32 %v4221, 16
      %v4247 = vrot.slane %v4245, 2
      %v4248 = vor.u32 %v4244, %v4247
      %v4249 = vsel %vm950, %v4239, %v4248
      %v4251 = vshrl.u32 %v4222, 16
      %v4253 = vrot.slane %v4251, 1
      %v4254 = vshll.u32 %v4222, 16
      %v4256 = vrot.slane %v4254, 2
      %v4257 = vor.u32 %v4253, %v4256
      %v4258 = vsel %vm950, %v4248, %v4257
      %v4260 = vshrl.u32 %v4223, 16
      %v4262 = vrot.slane %v4260, 1
      %v4263 = vshll.u32 %v4223, 16
      %v4265 = vrot.slane %v4263, 2
      %v4266 = vor.u32 %v4262, %v4265
      %v4267 = vsel %vm950, %v4257, %v4266
      %v4274 = vunpack.c.l.b16 %v4193
      %v4275 = vunpack.c.l.b16 %v4194
      %v4276 = vunpack.c.l.b16 %v4195
      %v4277 = vunpack.c.l.b16 %v4196
      %v4278 = vunpack.c.l.b16 %v4197
      %v4279 = vunpack.c.l.b16 %v4198
      %v4280 = vpack.c.b16 %v4275, %v4274
      %v4281 = vpack.c.b16 %v4277, %v4276
      %v4282 = vpack.c.b16 %v4279, %v4278
      %v4287 = vsel %vm331, %v4240, 0
      %v4290 = vsel %vm331, %v4249, 0
      %v4293 = vsel %vm331, %v4258, 0
      %v4296 = vsel %vm331, %v4267, 0
      %v4299 = vsel %vm331, %v4266, 0
      %4301 = vmatprep.subr.bf16.mxu0 0
      %4302 = vmatpush1.bf16.msra.mxu0 0
      %4303 = vmatprep.subr.bf16.mxu0 0
      %4304 = vmatpush1.bf16.msra.mxu0 0
      %4305 = vmatprep.subr.bf16.mxu0 0
      %4306 = vmatpush1.bf16.msra.mxu0 0
      %4307 = vmatprep.subr.bf16.mxu0 0
      %4308 = vmatpush1.bf16.msra.mxu0 0
      %4309 = vmatprep.subr.bf16.mxu0 0
      %4310 = vmatpush1.bf16.msra.mxu0 0
      %4311 = vmatprep.subr.bf16.mxu0 0
      %4312 = vmatpush1.bf16.msra.mxu0 %v4282
      %4313 = vmatprep.subr.bf16.mxu0 0
      %4314 = vmatpush1.bf16.msra.mxu0 %v4281
      %4315 = vmatprep.subr.bf16.mxu0 0
      %4316 = vmatpush1.bf16.msra.mxu0 %v4280
      %4317 = vmatprep.subr.bf16.mxu0 0
      %4318 = vmatpush2.bf16.msra.mxu0 0
      %4319 = vmatprep.subr.bf16.mxu0 0
      %4320 = vmatpush2.bf16.msra.mxu0 0
      %4321 = vmatprep.subr.bf16.mxu0 0
      %4322 = vmatpush2.bf16.msra.mxu0 0
      %4323 = vmatprep.subr.bf16.mxu0 0
      %4324 = vmatpush2.bf16.msra.mxu0 0
      %4325 = vmatprep.subr.bf16.mxu0 0
      %4326 = vmatpush2.bf16.msra.mxu0 0
      %4327 = vmatprep.subr.bf16.mxu0 0
      %4328 = vmatpush2.bf16.msra.mxu0 0
      %4329 = vmatprep.subr.bf16.mxu0 0
      %4330 = vmatpush2.bf16.msra.mxu0 0
      %4331 = vmatprep.subr.bf16.mxu0 0
      %4332 = vmatpush2.bf16.msra.mxu0 0
      %4333 = vmatprep.mubr.bf16.mxu0 0
      %4334 = vmatmul.mubr.bf16.gmra.mxu0 %v4287
      %v4335 = vpop.f32.mrf.mxu0
      %v4336 = vadd.f32 0.0, %v4335
      %v4337 = vpop.f32.mrf.mxu0
      %v4338 = vpop.f32.mrf.mxu0
      %v4339 = vadd.f32 0.0, %v4338
      %v4340 = vpop.f32.mrf.mxu0
      %4341 = vmatprep.mubr.bf16.mxu0 0
      %4342 = vmatmul.mubr.bf16.gmra.mxu0 %v4290
      %v4343 = vpop.f32.mrf.mxu0
      %v4344 = vadd.f32 0.0, %v4343
      %v4345 = vpop.f32.mrf.mxu0
      %v4346 = vpop.f32.mrf.mxu0
      %v4347 = vadd.f32 0.0, %v4346
      %v4348 = vpop.f32.mrf.mxu0
      %4349 = vmatprep.mubr.bf16.mxu0 0
      %4350 = vmatmul.mubr.bf16.gmra.mxu0 %v4293
      %v4351 = vpop.f32.mrf.mxu0
      %v4352 = vadd.f32 0.0, %v4351
      %v4353 = vpop.f32.mrf.mxu0
      %v4354 = vpop.f32.mrf.mxu0
      %v4355 = vadd.f32 0.0, %v4354
      %v4356 = vpop.f32.mrf.mxu0
      %4357 = vmatprep.mubr.bf16.mxu0 0
      %4358 = vmatmul.mubr.bf16.gmra.mxu0 %v4296
      %v4359 = vpop.f32.mrf.mxu0
      %v4360 = vadd.f32 0.0, %v4359
      %v4361 = vpop.f32.mrf.mxu0
      %v4362 = vpop.f32.mrf.mxu0
      %v4363 = vadd.f32 0.0, %v4362
      %v4364 = vpop.f32.mrf.mxu0
      %4365 = vmatprep.mubr.bf16.mxu0 0
      %4366 = vmatmul.mubr.bf16.gmra.mxu0 %v4299
      %v4367 = vpop.f32.mrf.mxu0
      %v4368 = vadd.f32 0.0, %v4367
      %v4369 = vpop.f32.mrf.mxu0
      %v4370 = vpop.f32.mrf.mxu0
      %v4371 = vpop.f32.mrf.mxu0
      %4372 = vdwg.mxu0
      %v4373 = vadd.f32 %v4174, %v4336
      %v4374 = vadd.f32 %v4175, %v4339
      %v4375 = vadd.f32 %v4176, %v4344
      %v4376 = vadd.f32 %v4177, %v4347
      %v4377 = vadd.f32 %v4178, %v4352
      %v4378 = vadd.f32 %v4179, %v4355
      %v4379 = vadd.f32 %v4180, %v4360
      %v4380 = vadd.f32 %v4181, %v4363
      %v4381 = vadd.f32 %v4182, %v4368
      %v4382 = vld [vmem:[%s3496 + $0x74] sm:$0x3]
      %v4383 = vld [vmem:[%s1110] sm:$0xf]
      %v4384 = vld [vmem:[%s1110 + $0x4] sm:$0xf]
      %v4385 = vld [vmem:[%s1110 + $0x8] sm:$0xf]
      %v4386 = vld [vmem:[%s1110 + $0xc] sm:$0xf]
      %v4387 = vld [vmem:[%s1110 + $0x10] sm:$0xf]
      %v4388 = vld [vmem:[%s1110 + $0x14] sm:$0xf]
      %v4390 = vunpack.c.l.b16 %v4382
      %v4391 = vpack.c.b16 %v4390, %v4053
      %v4393 = vshrl.u32 %v4055, 16
      %v4395 = vrot.slane %v4393, 1
      %v4396 = vshll.u32 %v4055, 16
      %v4398 = vrot.slane %v4396, 2
      %v4399 = vor.u32 %v4395, %v4398
      %v4401 = vshrl.u32 %v4056, 16
      %v4403 = vrot.slane %v4401, 1
      %v4404 = vshll.u32 %v4056, 16
      %v4406 = vrot.slane %v4404, 2
      %v4407 = vor.u32 %v4403, %v4406
      %v4408 = vsel %vm950, %v4399, %v4407
      %v4410 = vshrl.u32 %v4057, 16
      %v4412 = vrot.slane %v4410, 1
      %v4413 = vshll.u32 %v4057, 16
      %v4415 = vrot.slane %v4413, 2
      %v4416 = vor.u32 %v4412, %v4415
      %v4417 = vsel %vm950, %v4407, %v4416
      %v4419 = vshrl.u32 %v4058, 16
      %v4421 = vrot.slane %v4419, 1
      %v4422 = vshll.u32 %v4058, 16
      %v4424 = vrot.slane %v4422, 2
      %v4425 = vor.u32 %v4421, %v4424
      %v4426 = vsel %vm950, %v4416, %v4425
      %v4428 = vshrl.u32 %v4391, 16
      %v4430 = vrot.slane %v4428, 1
      %v4431 = vshll.u32 %v4391, 16
      %v4433 = vrot.slane %v4431, 2
      %v4434 = vor.u32 %v4430, %v4433
      %v4435 = vsel %vm950, %v4425, %v4434
      %v4442 = vunpack.c.l.b16 %v4383
      %v4443 = vunpack.c.l.b16 %v4384
      %v4444 = vunpack.c.l.b16 %v4385
      %v4445 = vunpack.c.l.b16 %v4386
      %v4446 = vunpack.c.l.b16 %v4387
      %v4447 = vunpack.c.l.b16 %v4388
      %v4448 = vpack.c.b16 %v4443, %v4442
      %v4449 = vpack.c.b16 %v4445, %v4444
      %v4450 = vpack.c.b16 %v4447, %v4446
      %v4455 = vsel %vm331, %v4408, 0
      %v4458 = vsel %vm331, %v4417, 0
      %v4461 = vsel %vm331, %v4426, 0
      %v4464 = vsel %vm331, %v4435, 0
      %v4467 = vsel %vm331, %v4434, 0
      %4469 = vmatprep.subr.bf16.mxu0 0
      %4470 = vmatpush1.bf16.msra.mxu0 0
      %4471 = vmatprep.subr.bf16.mxu0 0
      %4472 = vmatpush1.bf16.msra.mxu0 0
      %4473 = vmatprep.subr.bf16.mxu0 0
      %4474 = vmatpush1.bf16.msra.mxu0 0
      %4475 = vmatprep.subr.bf16.mxu0 0
      %4476 = vmatpush1.bf16.msra.mxu0 0
      %4477 = vmatprep.subr.bf16.mxu0 0
      %4478 = vmatpush1.bf16.msra.mxu0 0
      %4479 = vmatprep.subr.bf16.mxu0 0
      %4480 = vmatpush1.bf16.msra.mxu0 %v4450
      %4481 = vmatprep.subr.bf16.mxu0 0
      %4482 = vmatpush1.bf16.msra.mxu0 %v4449
      %4483 = vmatprep.subr.bf16.mxu0 0
      %4484 = vmatpush1.bf16.msra.mxu0 %v4448
      %4485 = vmatprep.subr.bf16.mxu0 0
      %4486 = vmatpush2.bf16.msra.mxu0 0
      %4487 = vmatprep.subr.bf16.mxu0 0
      %4488 = vmatpush2.bf16.msra.mxu0 0
      %4489 = vmatprep.subr.bf16.mxu0 0
      %4490 = vmatpush2.bf16.msra.mxu0 0
      %4491 = vmatprep.subr.bf16.mxu0 0
      %4492 = vmatpush2.bf16.msra.mxu0 0
      %4493 = vmatprep.subr.bf16.mxu0 0
      %4494 = vmatpush2.bf16.msra.mxu0 0
      %4495 = vmatprep.subr.bf16.mxu0 0
      %4496 = vmatpush2.bf16.msra.mxu0 0
      %4497 = vmatprep.subr.bf16.mxu0 0
      %4498 = vmatpush2.bf16.msra.mxu0 0
      %4499 = vmatprep.subr.bf16.mxu0 0
      %4500 = vmatpush2.bf16.msra.mxu0 0
      %4501 = vmatprep.mubr.bf16.mxu0 0
      %4502 = vmatmul.mubr.bf16.gmra.mxu0 %v4455
      %v4503 = vpop.f32.mrf.mxu0
      %v4504 = vadd.f32 0.0, %v4503
      %v4505 = vpop.f32.mrf.mxu0
      %v4506 = vpop.f32.mrf.mxu0
      %v4507 = vadd.f32 0.0, %v4506
      %v4508 = vpop.f32.mrf.mxu0
      %4509 = vmatprep.mubr.bf16.mxu0 0
      %4510 = vmatmul.mubr.bf16.gmra.mxu0 %v4458
      %v4511 = vpop.f32.mrf.mxu0
      %v4512 = vadd.f32 0.0, %v4511
      %v4513 = vpop.f32.mrf.mxu0
      %v4514 = vpop.f32.mrf.mxu0
      %v4515 = vadd.f32 0.0, %v4514
      %v4516 = vpop.f32.mrf.mxu0
      %4517 = vmatprep.mubr.bf16.mxu0 0
      %4518 = vmatmul.mubr.bf16.gmra.mxu0 %v4461
      %v4519 = vpop.f32.mrf.mxu0
      %v4520 = vadd.f32 0.0, %v4519
      %v4521 = vpop.f32.mrf.mxu0
      %v4522 = vpop.f32.mrf.mxu0
      %v4523 = vadd.f32 0.0, %v4522
      %v4524 = vpop.f32.mrf.mxu0
      %4525 = vmatprep.mubr.bf16.mxu0 0
      %4526 = vmatmul.mubr.bf16.gmra.mxu0 %v4464
      %v4527 = vpop.f32.mrf.mxu0
      %v4528 = vadd.f32 0.0, %v4527
      %v4529 = vpop.f32.mrf.mxu0
      %v4530 = vpop.f32.mrf.mxu0
      %v4531 = vadd.f32 0.0, %v4530
      %v4532 = vpop.f32.mrf.mxu0
      %4533 = vmatprep.mubr.bf16.mxu0 0
      %4534 = vmatmul.mubr.bf16.gmra.mxu0 %v4467
      %v4535 = vpop.f32.mrf.mxu0
      %v4536 = vadd.f32 0.0, %v4535
      %v4537 = vpop.f32.mrf.mxu0
      %v4538 = vpop.f32.mrf.mxu0
      %v4539 = vpop.f32.mrf.mxu0
      %4540 = vdwg.mxu0
      %v4541 = vadd.f32 %v4373, %v4504
      %v4542 = vadd.f32 %v4374, %v4507
      %v4543 = vadd.f32 %v4375, %v4512
      %v4544 = vadd.f32 %v4376, %v4515
      %v4545 = vadd.f32 %v4377, %v4520
      %v4546 = vadd.f32 %v4378, %v4523
      %v4547 = vadd.f32 %v4379, %v4528
      %v4548 = vadd.f32 %v4380, %v4531
      %v4549 = vadd.f32 %v4381, %v4536
      %v4550 = vld [vmem:[%s3496 + $0x4] sm:$0xf]
      %v4551 = vld [vmem:[%s3496 + $0x8] sm:$0xf]
      %v4552 = vld [vmem:[%s3496 + $0xc] sm:$0xf]
      %v4553 = vld [vmem:[%s3496 + $0x10] sm:$0xf]
      %v4554 = vld [vmem:[%s3496 + $0x14] sm:$0xf]
      %v4555 = vld [vmem:[%s3496 + $0x18] sm:$0xf]
      %v4556 = vld [vmem:[%s3496 + $0x1c] sm:$0xf]
      %v4557 = vld [vmem:[%s3496 + $0x20] sm:$0xf]
      %v4558 = vld [vmem:[%s3496 + $0x24] sm:$0xf]
      %v4559 = vld [vmem:[%s3496 + $0x28] sm:$0x1]
      %v4560 = vld [vmem:[%s1288] sm:$0xf]
      %v4561 = vld [vmem:[%s1288 + $0x4] sm:$0xf]
      %v4562 = vld [vmem:[%s1288 + $0x8] sm:$0xf]
      %v4563 = vld [vmem:[%s1288 + $0xc] sm:$0xf]
      %v4564 = vld [vmem:[%s1288 + $0x10] sm:$0xf]
      %v4565 = vld [vmem:[%s1288 + $0x14] sm:$0xf]
      %v4576 = vunpack.c.l.b16 %v4550
      %v4577 = vunpack.c.l.b16 %v4551
      %v4578 = vunpack.c.l.b16 %v4552
      %v4579 = vunpack.c.l.b16 %v4553
      %v4580 = vunpack.c.l.b16 %v4554
      %v4581 = vunpack.c.l.b16 %v4555
      %v4582 = vunpack.c.l.b16 %v4556
      %v4583 = vunpack.c.l.b16 %v4557
      %v4584 = vunpack.c.l.b16 %v4558
      %v4585 = vunpack.c.l.b16 %v4559
      %v4586 = vpack.c.b16 %v4577, %v4576
      %v4587 = vpack.c.b16 %v4579, %v4578
      %v4588 = vpack.c.b16 %v4581, %v4580
      %v4589 = vpack.c.b16 %v4583, %v4582
      %v4590 = vpack.c.b16 %v4585, %v4584
      %v4592 = vshrl.u32 %v4586, 16
      %v4594 = vshll.u32 %v4586, 16
      %v4596 = vrot.slane %v4594, 1
      %v4597 = vor.u32 %v4592, %v4596
      %v4599 = vshll.u32 %v4587, 16
      %v4601 = vrot.slane %v4599, 1
      %v4602 = vsel %vm273, %v4597, %v4601
      %v4603 = vshrl.u32 %v4587, 16
      %v4605 = vor.u32 %v4603, %v4601
      %v4607 = vshll.u32 %v4588, 16
      %v4609 = vrot.slane %v4607, 1
      %v4610 = vsel %vm273, %v4605, %v4609
      %v4611 = vshrl.u32 %v4588, 16
      %v4613 = vor.u32 %v4611, %v4609
      %v4615 = vshll.u32 %v4589, 16
      %v4617 = vrot.slane %v4615, 1
      %v4618 = vsel %vm273, %v4613, %v4617
      %v4619 = vshrl.u32 %v4589, 16
      %v4621 = vor.u32 %v4619, %v4617
      %v4623 = vshll.u32 %v4590, 16
      %v4625 = vrot.slane %v4623, 1
      %v4626 = vsel %vm273, %v4621, %v4625
      %v4627 = vshrl.u32 %v4590, 16
      %v4629 = vor.u32 %v4627, %v4625
      %v4636 = vunpack.c.l.b16 %v4560
      %v4637 = vunpack.c.l.b16 %v4561
      %v4638 = vunpack.c.l.b16 %v4562
      %v4639 = vunpack.c.l.b16 %v4563
      %v4640 = vunpack.c.l.b16 %v4564
      %v4641 = vunpack.c.l.b16 %v4565
      %v4642 = vpack.c.b16 %v4637, %v4636
      %v4643 = vpack.c.b16 %v4639, %v4638
      %v4644 = vpack.c.b16 %v4641, %v4640
      %v4649 = vsel %vm331, %v4602, 0
      %v4652 = vsel %vm331, %v4610, 0
      %v4655 = vsel %vm331, %v4618, 0
      %v4658 = vsel %vm331, %v4626, 0
      %v4661 = vsel %vm331, %v4629, 0
      %4663 = vmatprep.subr.bf16.mxu0 0
      %4664 = vmatpush1.bf16.msra.mxu0 0
      %4665 = vmatprep.subr.bf16.mxu0 0
      %4666 = vmatpush1.bf16.msra.mxu0 0
      %4667 = vmatprep.subr.bf16.mxu0 0
      %4668 = vmatpush1.bf16.msra.mxu0 0
      %4669 = vmatprep.subr.bf16.mxu0 0
      %4670 = vmatpush1.bf16.msra.mxu0 0
      %4671 = vmatprep.subr.bf16.mxu0 0
      %4672 = vmatpush1.bf16.msra.mxu0 0
      %4673 = vmatprep.subr.bf16.mxu0 0
      %4674 = vmatpush1.bf16.msra.mxu0 %v4644
      %4675 = vmatprep.subr.bf16.mxu0 0
      %4676 = vmatpush1.bf16.msra.mxu0 %v4643
      %4677 = vmatprep.subr.bf16.mxu0 0
      %4678 = vmatpush1.bf16.msra.mxu0 %v4642
      %4679 = vmatprep.subr.bf16.mxu0 0
      %4680 = vmatpush2.bf16.msra.mxu0 0
      %4681 = vmatprep.subr.bf16.mxu0 0
      %4682 = vmatpush2.bf16.msra.mxu0 0
      %4683 = vmatprep.subr.bf16.mxu0 0
      %4684 = vmatpush2.bf16.msra.mxu0 0
      %4685 = vmatprep.subr.bf16.mxu0 0
      %4686 = vmatpush2.bf16.msra.mxu0 0
      %4687 = vmatprep.subr.bf16.mxu0 0
      %4688 = vmatpush2.bf16.msra.mxu0 0
      %4689 = vmatprep.subr.bf16.mxu0 0
      %4690 = vmatpush2.bf16.msra.mxu0 0
      %4691 = vmatprep.subr.bf16.mxu0 0
      %4692 = vmatpush2.bf16.msra.mxu0 0
      %4693 = vmatprep.subr.bf16.mxu0 0
      %4694 = vmatpush2.bf16.msra.mxu0 0
      %4695 = vmatprep.mubr.bf16.mxu0 0
      %4696 = vmatmul.mubr.bf16.gmra.mxu0 %v4649
      %v4697 = vpop.f32.mrf.mxu0
      %v4698 = vadd.f32 0.0, %v4697
      %v4699 = vpop.f32.mrf.mxu0
      %v4700 = vpop.f32.mrf.mxu0
      %v4701 = vadd.f32 0.0, %v4700
      %v4702 = vpop.f32.mrf.mxu0
      %4703 = vmatprep.mubr.bf16.mxu0 0
      %4704 = vmatmul.mubr.bf16.gmra.mxu0 %v4652
      %v4705 = vpop.f32.mrf.mxu0
      %v4706 = vadd.f32 0.0, %v4705
      %v4707 = vpop.f32.mrf.mxu0
      %v4708 = vpop.f32.mrf.mxu0
      %v4709 = vadd.f32 0.0, %v4708
      %v4710 = vpop.f32.mrf.mxu0
      %4711 = vmatprep.mubr.bf16.mxu0 0
      %4712 = vmatmul.mubr.bf16.gmra.mxu0 %v4655
      %v4713 = vpop.f32.mrf.mxu0
      %v4714 = vadd.f32 0.0, %v4713
      %v4715 = vpop.f32.mrf.mxu0
      %v4716 = vpop.f32.mrf.mxu0
      %v4717 = vadd.f32 0.0, %v4716
      %v4718 = vpop.f32.mrf.mxu0
      %4719 = vmatprep.mubr.bf16.mxu0 0
      %4720 = vmatmul.mubr.bf16.gmra.mxu0 %v4658
      %v4721 = vpop.f32.mrf.mxu0
      %v4722 = vadd.f32 0.0, %v4721
      %v4723 = vpop.f32.mrf.mxu0
      %v4724 = vpop.f32.mrf.mxu0
      %v4725 = vadd.f32 0.0, %v4724
      %v4726 = vpop.f32.mrf.mxu0
      %4727 = vmatprep.mubr.bf16.mxu0 0
      %4728 = vmatmul.mubr.bf16.gmra.mxu0 %v4661
      %v4729 = vpop.f32.mrf.mxu0
      %v4730 = vadd.f32 0.0, %v4729
      %v4731 = vpop.f32.mrf.mxu0
      %v4732 = vpop.f32.mrf.mxu0
      %v4733 = vpop.f32.mrf.mxu0
      %4734 = vdwg.mxu0
      %v4735 = vadd.f32 %v4541, %v4698
      %v4736 = vadd.f32 %v4542, %v4701
      %v4737 = vadd.f32 %v4543, %v4706
      %v4738 = vadd.f32 %v4544, %v4709
      %v4739 = vadd.f32 %v4545, %v4714
      %v4740 = vadd.f32 %v4546, %v4717
      %v4741 = vadd.f32 %v4547, %v4722
      %v4742 = vadd.f32 %v4548, %v4725
      %v4743 = vadd.f32 %v4549, %v4730
      %v4744 = vld [vmem:[%s3496 + $0x2c] sm:$0xe]
      %v4745 = vld [vmem:[%s3496 + $0x30] sm:$0xf]
      %v4746 = vld [vmem:[%s3496 + $0x34] sm:$0xf]
      %v4747 = vld [vmem:[%s3496 + $0x38] sm:$0xf]
      %v4748 = vld [vmem:[%s3496 + $0x3c] sm:$0xf]
      %v4749 = vld [vmem:[%s3496 + $0x40] sm:$0xf]
      %v4750 = vld [vmem:[%s3496 + $0x44] sm:$0xf]
      %v4751 = vld [vmem:[%s3496 + $0x48] sm:$0xf]
      %v4752 = vld [vmem:[%s3496 + $0x4c] sm:$0xf]
      %v4753 = vld [vmem:[%s3496 + $0x50] sm:$0x1]
      %v4754 = vld [vmem:[%s1483] sm:$0xf]
      %v4755 = vld [vmem:[%s1483 + $0x4] sm:$0xf]
      %v4756 = vld [vmem:[%s1483 + $0x8] sm:$0xf]
      %v4757 = vld [vmem:[%s1483 + $0xc] sm:$0xf]
      %v4758 = vld [vmem:[%s1483 + $0x10] sm:$0xf]
      %v4759 = vld [vmem:[%s1483 + $0x14] sm:$0xf]
      %v4770 = vunpack.c.l.b16 %v4744
      %v4771 = vunpack.c.l.b16 %v4745
      %v4772 = vunpack.c.l.b16 %v4746
      %v4773 = vunpack.c.l.b16 %v4747
      %v4774 = vunpack.c.l.b16 %v4748
      %v4775 = vunpack.c.l.b16 %v4749
      %v4776 = vunpack.c.l.b16 %v4750
      %v4777 = vunpack.c.l.b16 %v4751
      %v4778 = vunpack.c.l.b16 %v4752
      %v4779 = vunpack.c.l.b16 %v4753
      %v4780 = vpack.c.b16 %v4771, %v4770
      %v4781 = vpack.c.b16 %v4773, %v4772
      %v4782 = vpack.c.b16 %v4775, %v4774
      %v4783 = vpack.c.b16 %v4777, %v4776
      %v4784 = vpack.c.b16 %v4779, %v4778
      %v4785 = vrot.slane %v4780, 1
      %v4786 = vrot.slane %v4781, 1
      %v4787 = vsel %vm784, %v4785, %v4786
      %v4788 = vrot.slane %v4782, 1
      %v4789 = vsel %vm784, %v4786, %v4788
      %v4790 = vrot.slane %v4783, 1
      %v4791 = vsel %vm784, %v4788, %v4790
      %v4792 = vrot.slane %v4784, 1
      %v4793 = vsel %vm784, %v4790, %v4792
      %v4800 = vunpack.c.l.b16 %v4754
      %v4801 = vunpack.c.l.b16 %v4755
      %v4802 = vunpack.c.l.b16 %v4756
      %v4803 = vunpack.c.l.b16 %v4757
      %v4804 = vunpack.c.l.b16 %v4758
      %v4805 = vunpack.c.l.b16 %v4759
      %v4806 = vpack.c.b16 %v4801, %v4800
      %v4807 = vpack.c.b16 %v4803, %v4802
      %v4808 = vpack.c.b16 %v4805, %v4804
      %v4813 = vsel %vm331, %v4787, 0
      %v4816 = vsel %vm331, %v4789, 0
      %v4819 = vsel %vm331, %v4791, 0
      %v4822 = vsel %vm331, %v4793, 0
      %v4825 = vsel %vm331, %v4792, 0
      %4827 = vmatprep.subr.bf16.mxu0 0
      %4828 = vmatpush1.bf16.msra.mxu0 0
      %4829 = vmatprep.subr.bf16.mxu0 0
      %4830 = vmatpush1.bf16.msra.mxu0 0
      %4831 = vmatprep.subr.bf16.mxu0 0
      %4832 = vmatpush1.bf16.msra.mxu0 0
      %4833 = vmatprep.subr.bf16.mxu0 0
      %4834 = vmatpush1.bf16.msra.mxu0 0
      %4835 = vmatprep.subr.bf16.mxu0 0
      %4836 = vmatpush1.bf16.msra.mxu0 0
      %4837 = vmatprep.subr.bf16.mxu0 0
      %4838 = vmatpush1.bf16.msra.mxu0 %v4808
      %4839 = vmatprep.subr.bf16.mxu0 0
      %4840 = vmatpush1.bf16.msra.mxu0 %v4807
      %4841 = vmatprep.subr.bf16.mxu0 0
      %4842 = vmatpush1.bf16.msra.mxu0 %v4806
      %4843 = vmatprep.subr.bf16.mxu0 0
      %4844 = vmatpush2.bf16.msra.mxu0 0
      %4845 = vmatprep.subr.bf16.mxu0 0
      %4846 = vmatpush2.bf16.msra.mxu0 0
      %4847 = vmatprep.subr.bf16.mxu0 0
      %4848 = vmatpush2.bf16.msra.mxu0 0
      %4849 = vmatprep.subr.bf16.mxu0 0
      %4850 = vmatpush2.bf16.msra.mxu0 0
      %4851 = vmatprep.subr.bf16.mxu0 0
      %4852 = vmatpush2.bf16.msra.mxu0 0
      %4853 = vmatprep.subr.bf16.mxu0 0
      %4854 = vmatpush2.bf16.msra.mxu0 0
      %4855 = vmatprep.subr.bf16.mxu0 0
      %4856 = vmatpush2.bf16.msra.mxu0 0
      %4857 = vmatprep.subr.bf16.mxu0 0
      %4858 = vmatpush2.bf16.msra.mxu0 0
      %4859 = vmatprep.mubr.bf16.mxu0 0
      %4860 = vmatmul.mubr.bf16.gmra.mxu0 %v4813
      %v4861 = vpop.f32.mrf.mxu0
      %v4862 = vadd.f32 0.0, %v4861
      %v4863 = vpop.f32.mrf.mxu0
      %v4864 = vpop.f32.mrf.mxu0
      %v4865 = vadd.f32 0.0, %v4864
      %v4866 = vpop.f32.mrf.mxu0
      %4867 = vmatprep.mubr.bf16.mxu0 0
      %4868 = vmatmul.mubr.bf16.gmra.mxu0 %v4816
      %v4869 = vpop.f32.mrf.mxu0
      %v4870 = vadd.f32 0.0, %v4869
      %v4871 = vpop.f32.mrf.mxu0
      %v4872 = vpop.f32.mrf.mxu0
      %v4873 = vadd.f32 0.0, %v4872
      %v4874 = vpop.f32.mrf.mxu0
      %4875 = vmatprep.mubr.bf16.mxu0 0
      %4876 = vmatmul.mubr.bf16.gmra.mxu0 %v4819
      %v4877 = vpop.f32.mrf.mxu0
      %v4878 = vadd.f32 0.0, %v4877
      %v4879 = vpop.f32.mrf.mxu0
      %v4880 = vpop.f32.mrf.mxu0
      %v4881 = vadd.f32 0.0, %v4880
      %v4882 = vpop.f32.mrf.mxu0
      %4883 = vmatprep.mubr.bf16.mxu0 0
      %4884 = vmatmul.mubr.bf16.gmra.mxu0 %v4822
      %v4885 = vpop.f32.mrf.mxu0
      %v4886 = vadd.f32 0.0, %v4885
      %v4887 = vpop.f32.mrf.mxu0
      %v4888 = vpop.f32.mrf.mxu0
      %v4889 = vadd.f32 0.0, %v4888
      %v4890 = vpop.f32.mrf.mxu0
      %4891 = vmatprep.mubr.bf16.mxu0 0
      %4892 = vmatmul.mubr.bf16.gmra.mxu0 %v4825
      %v4893 = vpop.f32.mrf.mxu0
      %v4894 = vadd.f32 0.0, %v4893
      %v4895 = vpop.f32.mrf.mxu0
      %v4896 = vpop.f32.mrf.mxu0
      %v4897 = vpop.f32.mrf.mxu0
      %4898 = vdwg.mxu0
      %v4899 = vadd.f32 %v4735, %v4862
      %v4900 = vadd.f32 %v4736, %v4865
      %v4901 = vadd.f32 %v4737, %v4870
      %v4902 = vadd.f32 %v4738, %v4873
      %v4903 = vadd.f32 %v4739, %v4878
      %v4904 = vadd.f32 %v4740, %v4881
      %v4905 = vadd.f32 %v4741, %v4886
      %v4906 = vadd.f32 %v4742, %v4889
      %v4907 = vadd.f32 %v4743, %v4894
      %v4908 = vld [vmem:[%s3496 + $0x4] sm:$0xe]
      %v4909 = vld [vmem:[%s1639] sm:$0xf]
      %v4910 = vld [vmem:[%s1639 + $0x4] sm:$0xf]
      %v4911 = vld [vmem:[%s1639 + $0x8] sm:$0xf]
      %v4912 = vld [vmem:[%s1639 + $0xc] sm:$0xf]
      %v4913 = vld [vmem:[%s1639 + $0x10] sm:$0xf]
      %v4914 = vld [vmem:[%s1639 + $0x14] sm:$0xf]
      %v4916 = vunpack.c.l.b16 %v4908
      %v4917 = vpack.c.b16 %v4577, %v4916
      %v4918 = vrot.slane %v4917, 1
      %v4919 = vrot.slane %v4587, 1
      %v4920 = vsel %vm784, %v4918, %v4919
      %v4921 = vrot.slane %v4588, 1
      %v4922 = vsel %vm784, %v4919, %v4921
      %v4923 = vrot.slane %v4589, 1
      %v4924 = vsel %vm784, %v4921, %v4923
      %v4925 = vrot.slane %v4590, 1
      %v4926 = vsel %vm784, %v4923, %v4925
      %v4933 = vunpack.c.l.b16 %v4909
      %v4934 = vunpack.c.l.b16 %v4910
      %v4935 = vunpack.c.l.b16 %v4911
      %v4936 = vunpack.c.l.b16 %v4912
      %v4937 = vunpack.c.l.b16 %v4913
      %v4938 = vunpack.c.l.b16 %v4914
      %v4939 = vpack.c.b16 %v4934, %v4933
      %v4940 = vpack.c.b16 %v4936, %v4935
      %v4941 = vpack.c.b16 %v4938, %v4937
      %v4946 = vsel %vm331, %v4920, 0
      %v4949 = vsel %vm331, %v4922, 0
      %v4952 = vsel %vm331, %v4924, 0
      %v4955 = vsel %vm331, %v4926, 0
      %v4958 = vsel %vm331, %v4925, 0
      %4960 = vmatprep.subr.bf16.mxu0 0
      %4961 = vmatpush1.bf16.msra.mxu0 0
      %4962 = vmatprep.subr.bf16.mxu0 0
      %4963 = vmatpush1.bf16.msra.mxu0 0
      %4964 = vmatprep.subr.bf16.mxu0 0
      %4965 = vmatpush1.bf16.msra.mxu0 0
      %4966 = vmatprep.subr.bf16.mxu0 0
      %4967 = vmatpush1.bf16.msra.mxu0 0
      %4968 = vmatprep.subr.bf16.mxu0 0
      %4969 = vmatpush1.bf16.msra.mxu0 0
      %4970 = vmatprep.subr.bf16.mxu0 0
      %4971 = vmatpush1.bf16.msra.mxu0 %v4941
      %4972 = vmatprep.subr.bf16.mxu0 0
      %4973 = vmatpush1.bf16.msra.mxu0 %v4940
      %4974 = vmatprep.subr.bf16.mxu0 0
      %4975 = vmatpush1.bf16.msra.mxu0 %v4939
      %4976 = vmatprep.subr.bf16.mxu0 0
      %4977 = vmatpush2.bf16.msra.mxu0 0
      %4978 = vmatprep.subr.bf16.mxu0 0
      %4979 = vmatpush2.bf16.msra.mxu0 0
      %4980 = vmatprep.subr.bf16.mxu0 0
      %4981 = vmatpush2.bf16.msra.mxu0 0
      %4982 = vmatprep.subr.bf16.mxu0 0
      %4983 = vmatpush2.bf16.msra.mxu0 0
      %4984 = vmatprep.subr.bf16.mxu0 0
      %4985 = vmatpush2.bf16.msra.mxu0 0
      %4986 = vmatprep.subr.bf16.mxu0 0
      %4987 = vmatpush2.bf16.msra.mxu0 0
      %4988 = vmatprep.subr.bf16.mxu0 0
      %4989 = vmatpush2.bf16.msra.mxu0 0
      %4990 = vmatprep.subr.bf16.mxu0 0
      %4991 = vmatpush2.bf16.msra.mxu0 0
      %4992 = vmatprep.mubr.bf16.mxu0 0
      %4993 = vmatmul.mubr.bf16.gmra.mxu0 %v4946
      %v4994 = vpop.f32.mrf.mxu0
      %v4995 = vadd.f32 0.0, %v4994
      %v4996 = vpop.f32.mrf.mxu0
      %v4997 = vpop.f32.mrf.mxu0
      %v4998 = vadd.f32 0.0, %v4997
      %v4999 = vpop.f32.mrf.mxu0
      %5000 = vmatprep.mubr.bf16.mxu0 0
      %5001 = vmatmul.mubr.bf16.gmra.mxu0 %v4949
      %v5002 = vpop.f32.mrf.mxu0
      %v5003 = vadd.f32 0.0, %v5002
      %v5004 = vpop.f32.mrf.mxu0
      %v5005 = vpop.f32.mrf.mxu0
      %v5006 = vadd.f32 0.0, %v5005
      %v5007 = vpop.f32.mrf.mxu0
      %5008 = vmatprep.mubr.bf16.mxu0 0
      %5009 = vmatmul.mubr.bf16.gmra.mxu0 %v4952
      %v5010 = vpop.f32.mrf.mxu0
      %v5011 = vadd.f32 0.0, %v5010
      %v5012 = vpop.f32.mrf.mxu0
      %v5013 = vpop.f32.mrf.mxu0
      %v5014 = vadd.f32 0.0, %v5013
      %v5015 = vpop.f32.mrf.mxu0
      %5016 = vmatprep.mubr.bf16.mxu0 0
      %5017 = vmatmul.mubr.bf16.gmra.mxu0 %v4955
      %v5018 = vpop.f32.mrf.mxu0
      %v5019 = vadd.f32 0.0, %v5018
      %v5020 = vpop.f32.mrf.mxu0
      %v5021 = vpop.f32.mrf.mxu0
      %v5022 = vadd.f32 0.0, %v5021
      %v5023 = vpop.f32.mrf.mxu0
      %5024 = vmatprep.mubr.bf16.mxu0 0
      %5025 = vmatmul.mubr.bf16.gmra.mxu0 %v4958
      %v5026 = vpop.f32.mrf.mxu0
      %v5027 = vadd.f32 0.0, %v5026
      %v5028 = vpop.f32.mrf.mxu0
      %v5029 = vpop.f32.mrf.mxu0
      %v5030 = vpop.f32.mrf.mxu0
      %5031 = vdwg.mxu0
      %v5032 = vadd.f32 %v4899, %v4995
      %v5033 = vadd.f32 %v4900, %v4998
      %v5034 = vadd.f32 %v4901, %v5003
      %v5035 = vadd.f32 %v4902, %v5006
      %v5036 = vadd.f32 %v4903, %v5011
      %v5037 = vadd.f32 %v4904, %v5014
      %v5038 = vadd.f32 %v4905, %v5019
      %v5039 = vadd.f32 %v4906, %v5022
      %v5040 = vadd.f32 %v4907, %v5027
      %v5041 = vld [vmem:[%s2] sm:$0x1]
      %v5043 = vlaneseq
      %v5044 = vshrl.u32 %v5043, 7
      %v5045 = vsub.s32 0, %v5044
      %v5046 = vrot.slane %v5041, %v5045
      %v5048 = vadd.f32 %v5032, %v5046
      %v5049 = vadd.f32 %v5033, %v5046
      %v5050 = vadd.f32 %v5034, %v5046
      %v5051 = vadd.f32 %v5035, %v5046
      %v5052 = vadd.f32 %v5036, %v5046
      %v5053 = vadd.f32 %v5037, %v5046
      %v5054 = vadd.f32 %v5038, %v5046
      %v5055 = vadd.f32 %v5039, %v5046
      %v5056 = vadd.f32 %v5040, %v5046
      %vm5057 = vcmp.ge.f32.partialorder %v5048, 0.0
      %vm5058 = vcmp.ge.f32.partialorder %v5049, 0.0
      %vm5059 = vcmp.ge.f32.partialorder %v5050, 0.0
      %vm5060 = vcmp.ge.f32.partialorder %v5051, 0.0
      %vm5061 = vcmp.ge.f32.partialorder %v5052, 0.0
      %vm5062 = vcmp.ge.f32.partialorder %v5053, 0.0
      %vm5063 = vcmp.ge.f32.partialorder %v5054, 0.0
      %vm5064 = vcmp.ge.f32.partialorder %v5055, 0.0
      %vm5065 = vcmp.ge.f32.partialorder %v5056, 0.0
      %v5066 = vmul.f32 %v5048, 0.2
      %v5067 = vmul.f32 %v5049, 0.2
      %v5068 = vmul.f32 %v5050, 0.2
      %v5069 = vmul.f32 %v5051, 0.2
      %v5070 = vmul.f32 %v5052, 0.2
      %v5071 = vmul.f32 %v5053, 0.2
      %v5072 = vmul.f32 %v5054, 0.2
      %v5073 = vmul.f32 %v5055, 0.2
      %v5074 = vmul.f32 %v5056, 0.2
      %v5075 = vsel %vm5057, %v5048, %v5066
      %v5076 = vsel %vm5058, %v5049, %v5067
      %v5077 = vsel %vm5059, %v5050, %v5068
      %v5078 = vsel %vm5060, %v5051, %v5069
      %v5079 = vsel %vm5061, %v5052, %v5070
      %v5080 = vsel %vm5062, %v5053, %v5071
      %v5081 = vsel %vm5063, %v5054, %v5072
      %v5082 = vsel %vm5064, %v5055, %v5073
      %v5083 = vsel %vm5065, %v5056, %v5074
      %v5084 = vpack.c.bf16 %v5076, %v5075
      %v5085 = vpack.c.bf16 %v5078, %v5077
      %v5086 = vpack.c.bf16 %v5080, %v5079
      %v5087 = vpack.c.bf16 %v5082, %v5081
      %v5088 = vpack.c.bf16 %v5083, %v5083
      %v5094 = vunpack.c.l.b16 %v5084
      %v5095 = vunpack.c.h.b16 %v5084
      %v5096 = vunpack.c.l.b16 %v5085
      %v5097 = vunpack.c.h.b16 %v5085
      %v5098 = vunpack.c.l.b16 %v5086
      %v5099 = vunpack.c.h.b16 %v5086
      %v5100 = vunpack.c.l.b16 %v5087
      %v5101 = vunpack.c.h.b16 %v5087
      %v5102 = vunpack.c.l.b16 %v5088
      %v5103 = vpack.c.b16 %v5094, %v5094
      %v5104 = vpack.c.b16 %v5095, %v5095
      %v5105 = vpack.c.b16 %v5096, %v5096
      %v5106 = vpack.c.b16 %v5097, %v5097
      %v5107 = vpack.c.b16 %v5098, %v5098
      %v5108 = vpack.c.b16 %v5099, %v5099
      %v5109 = vpack.c.b16 %v5100, %v5100
      %v5110 = vpack.c.b16 %v5101, %v5101
      %v5111 = vpack.c.b16 %v5102, %v5102
      %s5121 = scalar_lea.vmem %s213, 72
      %5122 = vst [vmem:[%s5121] sm:$0xf] %v5103
      %5123 = vst [vmem:[%s5121 + $0x4] sm:$0xf] %v5104
      %5124 = vst [vmem:[%s5121 + $0x8] sm:$0xf] %v5105
      %5125 = vst [vmem:[%s5121 + $0xc] sm:$0xf] %v5106
      %5126 = vst [vmem:[%s5121 + $0x10] sm:$0xf] %v5107
      %5127 = vst [vmem:[%s5121 + $0x14] sm:$0xf] %v5108
      %5128 = vst [vmem:[%s5121 + $0x18] sm:$0xf] %v5109
      %5129 = vst [vmem:[%s5121 + $0x1c] sm:$0xf] %v5110
      %5130 = vst [vmem:[%s5121 + $0x20] sm:$0xf] %v5111
      %s5131 = scalar_lea.vmem %s202, 492
      %v5132 = vld [vmem:[%s5131] sm:$0xf]
      %v5133 = vld [vmem:[%s5131 + $0x4] sm:$0xf]
      %v5134 = vld [vmem:[%s5131 + $0x8] sm:$0xf]
      %v5135 = vld [vmem:[%s5131 + $0xc] sm:$0xf]
      %v5136 = vld [vmem:[%s5131 + $0x10] sm:$0xf]
      %v5137 = vld [vmem:[%s5131 + $0x14] sm:$0xf]
      %v5138 = vld [vmem:[%s5131 + $0x18] sm:$0xf]
      %v5139 = vld [vmem:[%s5131 + $0x1c] sm:$0xf]
      %v5140 = vld [vmem:[%s5131 + $0x20] sm:$0xf]
      %v5141 = vld [vmem:[%s1] sm:$0xf]
      %v5142 = vld [vmem:[%s1 + $0x4] sm:$0xf]
      %v5143 = vld [vmem:[%s1 + $0x8] sm:$0xf]
      %v5144 = vld [vmem:[%s1 + $0xc] sm:$0xf]
      %v5145 = vld [vmem:[%s1 + $0x10] sm:$0xf]
      %v5146 = vld [vmem:[%s1 + $0x14] sm:$0xf]
      %v5147 = vld [vmem:[%s5131 + $0x28] sm:$0xf]
      %v5148 = vld [vmem:[%s5131 + $0x2c] sm:$0xf]
      %v5149 = vld [vmem:[%s5131 + $0x30] sm:$0xf]
      %v5150 = vld [vmem:[%s5131 + $0x34] sm:$0xf]
      %v5151 = vld [vmem:[%s5131 + $0x38] sm:$0xf]
      %v5152 = vld [vmem:[%s5131 + $0x3c] sm:$0xf]
      %v5153 = vld [vmem:[%s5131 + $0x40] sm:$0xf]
      %v5154 = vld [vmem:[%s5131 + $0x44] sm:$0xf]
      %v5155 = vld [vmem:[%s5131 + $0x48] sm:$0xf]
      %v5156 = vld [vmem:[%s5131 + $0x4c] sm:$0x1]
      %v5157 = vld [vmem:[%s241] sm:$0xf]
      %v5158 = vld [vmem:[%s241 + $0x4] sm:$0xf]
      %v5159 = vld [vmem:[%s241 + $0x8] sm:$0xf]
      %v5160 = vld [vmem:[%s241 + $0xc] sm:$0xf]
      %v5161 = vld [vmem:[%s241 + $0x10] sm:$0xf]
      %v5162 = vld [vmem:[%s241 + $0x14] sm:$0xf]
      %v5173 = vunpack.c.l.b16 %v5147
      %v5174 = vunpack.c.l.b16 %v5148
      %v5175 = vunpack.c.l.b16 %v5149
      %v5176 = vunpack.c.l.b16 %v5150
      %v5177 = vunpack.c.l.b16 %v5151
      %v5178 = vunpack.c.l.b16 %v5152
      %v5179 = vunpack.c.l.b16 %v5153
      %v5180 = vunpack.c.l.b16 %v5154
      %v5181 = vunpack.c.l.b16 %v5155
      %v5182 = vunpack.c.l.b16 %v5156
      %v5183 = vpack.c.b16 %v5174, %v5173
      %v5184 = vpack.c.b16 %v5176, %v5175
      %v5185 = vpack.c.b16 %v5178, %v5177
      %v5186 = vpack.c.b16 %v5180, %v5179
      %v5187 = vpack.c.b16 %v5182, %v5181
      %v5189 = vshrl.u32 %v5183, 16
      %v5191 = vshll.u32 %v5183, 16
      %v5193 = vrot.slane %v5191, 1
      %v5194 = vor.u32 %v5189, %v5193
      %v5196 = vshll.u32 %v5184, 16
      %v5198 = vrot.slane %v5196, 1
      %v5199 = vsel %vm273, %v5194, %v5198
      %v5200 = vshrl.u32 %v5184, 16
      %v5202 = vor.u32 %v5200, %v5198
      %v5204 = vshll.u32 %v5185, 16
      %v5206 = vrot.slane %v5204, 1
      %v5207 = vsel %vm273, %v5202, %v5206
      %v5208 = vshrl.u32 %v5185, 16
      %v5210 = vor.u32 %v5208, %v5206
      %v5212 = vshll.u32 %v5186, 16
      %v5214 = vrot.slane %v5212, 1
      %v5215 = vsel %vm273, %v5210, %v5214
      %v5216 = vshrl.u32 %v5186, 16
      %v5218 = vor.u32 %v5216, %v5214
      %v5220 = vshll.u32 %v5187, 16
      %v5222 = vrot.slane %v5220, 1
      %v5223 = vsel %vm273, %v5218, %v5222
      %v5224 = vshrl.u32 %v5187, 16
      %v5226 = vor.u32 %v5224, %v5222
      %v5233 = vunpack.c.l.b16 %v5157
      %v5234 = vunpack.c.l.b16 %v5158
      %v5235 = vunpack.c.l.b16 %v5159
      %v5236 = vunpack.c.l.b16 %v5160
      %v5237 = vunpack.c.l.b16 %v5161
      %v5238 = vunpack.c.l.b16 %v5162
      %v5239 = vpack.c.b16 %v5234, %v5233
      %v5240 = vpack.c.b16 %v5236, %v5235
      %v5241 = vpack.c.b16 %v5238, %v5237
      %v5246 = vsel %vm331, %v5199, 0
      %v5249 = vsel %vm331, %v5207, 0
      %v5252 = vsel %vm331, %v5215, 0
      %v5255 = vsel %vm331, %v5223, 0
      %v5258 = vsel %vm331, %v5226, 0
      %5260 = vmatprep.subr.bf16.mxu0 0
      %5261 = vmatpush1.bf16.msra.mxu0 0
      %5262 = vmatprep.subr.bf16.mxu0 0
      %5263 = vmatpush1.bf16.msra.mxu0 0
      %5264 = vmatprep.subr.bf16.mxu0 0
      %5265 = vmatpush1.bf16.msra.mxu0 0
      %5266 = vmatprep.subr.bf16.mxu0 0
      %5267 = vmatpush1.bf16.msra.mxu0 0
      %5268 = vmatprep.subr.bf16.mxu0 0
      %5269 = vmatpush1.bf16.msra.mxu0 0
      %5270 = vmatprep.subr.bf16.mxu0 0
      %5271 = vmatpush1.bf16.msra.mxu0 %v5241
      %5272 = vmatprep.subr.bf16.mxu0 0
      %5273 = vmatpush1.bf16.msra.mxu0 %v5240
      %5274 = vmatprep.subr.bf16.mxu0 0
      %5275 = vmatpush1.bf16.msra.mxu0 %v5239
      %5276 = vmatprep.subr.bf16.mxu0 0
      %5277 = vmatpush2.bf16.msra.mxu0 0
      %5278 = vmatprep.subr.bf16.mxu0 0
      %5279 = vmatpush2.bf16.msra.mxu0 0
      %5280 = vmatprep.subr.bf16.mxu0 0
      %5281 = vmatpush2.bf16.msra.mxu0 0
      %5282 = vmatprep.subr.bf16.mxu0 0
      %5283 = vmatpush2.bf16.msra.mxu0 0
      %5284 = vmatprep.subr.bf16.mxu0 0
      %5285 = vmatpush2.bf16.msra.mxu0 0
      %5286 = vmatprep.subr.bf16.mxu0 0
      %5287 = vmatpush2.bf16.msra.mxu0 0
      %5288 = vmatprep.subr.bf16.mxu0 0
      %5289 = vmatpush2.bf16.msra.mxu0 0
      %5290 = vmatprep.subr.bf16.mxu0 0
      %5291 = vmatpush2.bf16.msra.mxu0 0
      %5292 = vmatprep.mubr.bf16.mxu0 0
      %5293 = vmatmul.mubr.bf16.gmra.mxu0 %v5246
      %v5294 = vpop.f32.mrf.mxu0
      %v5295 = vadd.f32 0.0, %v5294
      %v5296 = vpop.f32.mrf.mxu0
      %v5297 = vpop.f32.mrf.mxu0
      %v5298 = vadd.f32 0.0, %v5297
      %v5299 = vpop.f32.mrf.mxu0
      %5300 = vmatprep.mubr.bf16.mxu0 0
      %5301 = vmatmul.mubr.bf16.gmra.mxu0 %v5249
      %v5302 = vpop.f32.mrf.mxu0
      %v5303 = vadd.f32 0.0, %v5302
      %v5304 = vpop.f32.mrf.mxu0
      %v5305 = vpop.f32.mrf.mxu0
      %v5306 = vadd.f32 0.0, %v5305
      %v5307 = vpop.f32.mrf.mxu0
      %5308 = vmatprep.mubr.bf16.mxu0 0
      %5309 = vmatmul.mubr.bf16.gmra.mxu0 %v5252
      %v5310 = vpop.f32.mrf.mxu0
      %v5311 = vadd.f32 0.0, %v5310
      %v5312 = vpop.f32.mrf.mxu0
      %v5313 = vpop.f32.mrf.mxu0
      %v5314 = vadd.f32 0.0, %v5313
      %v5315 = vpop.f32.mrf.mxu0
      %5316 = vmatprep.mubr.bf16.mxu0 0
      %5317 = vmatmul.mubr.bf16.gmra.mxu0 %v5255
      %v5318 = vpop.f32.mrf.mxu0
      %v5319 = vadd.f32 0.0, %v5318
      %v5320 = vpop.f32.mrf.mxu0
      %v5321 = vpop.f32.mrf.mxu0
      %v5322 = vadd.f32 0.0, %v5321
      %v5323 = vpop.f32.mrf.mxu0
      %5324 = vmatprep.mubr.bf16.mxu0 0
      %5325 = vmatmul.mubr.bf16.gmra.mxu0 %v5258
      %v5326 = vpop.f32.mrf.mxu0
      %v5327 = vadd.f32 0.0, %v5326
      %v5328 = vpop.f32.mrf.mxu0
      %v5329 = vpop.f32.mrf.mxu0
      %v5330 = vpop.f32.mrf.mxu0
      %5331 = vdwg.mxu0
      %v5341 = vunpack.c.l.b16 %v5132
      %v5342 = vunpack.c.l.b16 %v5133
      %v5343 = vunpack.c.l.b16 %v5134
      %v5344 = vunpack.c.l.b16 %v5135
      %v5345 = vunpack.c.l.b16 %v5136
      %v5346 = vunpack.c.l.b16 %v5137
      %v5347 = vunpack.c.l.b16 %v5138
      %v5348 = vunpack.c.l.b16 %v5139
      %v5349 = vunpack.c.l.b16 %v5140
      %v5350 = vpack.c.b16 %v5342, %v5341
      %v5351 = vpack.c.b16 %v5344, %v5343
      %v5352 = vpack.c.b16 %v5346, %v5345
      %v5353 = vpack.c.b16 %v5348, %v5347
      %v5354 = vpack.c.b16 %v5349, %v5349
      %v5361 = vunpack.c.l.b16 %v5141
      %v5362 = vunpack.c.l.b16 %v5142
      %v5363 = vunpack.c.l.b16 %v5143
      %v5364 = vunpack.c.l.b16 %v5144
      %v5365 = vunpack.c.l.b16 %v5145
      %v5366 = vunpack.c.l.b16 %v5146
      %v5367 = vpack.c.b16 %v5362, %v5361
      %v5368 = vpack.c.b16 %v5364, %v5363
      %v5369 = vpack.c.b16 %v5366, %v5365
      %v5374 = vsel %vm331, %v5350, 0
      %v5377 = vsel %vm331, %v5351, 0
      %v5380 = vsel %vm331, %v5352, 0
      %v5383 = vsel %vm331, %v5353, 0
      %v5386 = vsel %vm331, %v5354, 0
      %5388 = vmatprep.subr.bf16.mxu0 0
      %5389 = vmatpush1.bf16.msra.mxu0 0
      %5390 = vmatprep.subr.bf16.mxu0 0
      %5391 = vmatpush1.bf16.msra.mxu0 0
      %5392 = vmatprep.subr.bf16.mxu0 0
      %5393 = vmatpush1.bf16.msra.mxu0 0
      %5394 = vmatprep.subr.bf16.mxu0 0
      %5395 = vmatpush1.bf16.msra.mxu0 0
      %5396 = vmatprep.subr.bf16.mxu0 0
      %5397 = vmatpush1.bf16.msra.mxu0 0
      %5398 = vmatprep.subr.bf16.mxu0 0
      %5399 = vmatpush1.bf16.msra.mxu0 %v5369
      %5400 = vmatprep.subr.bf16.mxu0 0
      %5401 = vmatpush1.bf16.msra.mxu0 %v5368
      %5402 = vmatprep.subr.bf16.mxu0 0
      %5403 = vmatpush1.bf16.msra.mxu0 %v5367
      %5404 = vmatprep.subr.bf16.mxu0 0
      %5405 = vmatpush2.bf16.msra.mxu0 0
      %5406 = vmatprep.subr.bf16.mxu0 0
      %5407 = vmatpush2.bf16.msra.mxu0 0
      %5408 = vmatprep.subr.bf16.mxu0 0
      %5409 = vmatpush2.bf16.msra.mxu0 0
      %5410 = vmatprep.subr.bf16.mxu0 0
      %5411 = vmatpush2.bf16.msra.mxu0 0
      %5412 = vmatprep.subr.bf16.mxu0 0
      %5413 = vmatpush2.bf16.msra.mxu0 0
      %5414 = vmatprep.subr.bf16.mxu0 0
      %5415 = vmatpush2.bf16.msra.mxu0 0
      %5416 = vmatprep.subr.bf16.mxu0 0
      %5417 = vmatpush2.bf16.msra.mxu0 0
      %5418 = vmatprep.subr.bf16.mxu0 0
      %5419 = vmatpush2.bf16.msra.mxu0 0
      %5420 = vmatprep.mubr.bf16.mxu0 0
      %5421 = vmatmul.mubr.bf16.gmra.mxu0 %v5374
      %v5422 = vpop.f32.mrf.mxu0
      %v5423 = vadd.f32 %v5295, %v5422
      %v5424 = vpop.f32.mrf.mxu0
      %v5425 = vpop.f32.mrf.mxu0
      %v5426 = vadd.f32 %v5298, %v5425
      %v5427 = vpop.f32.mrf.mxu0
      %5428 = vmatprep.mubr.bf16.mxu0 0
      %5429 = vmatmul.mubr.bf16.gmra.mxu0 %v5377
      %v5430 = vpop.f32.mrf.mxu0
      %v5431 = vadd.f32 %v5303, %v5430
      %v5432 = vpop.f32.mrf.mxu0
      %v5433 = vpop.f32.mrf.mxu0
      %v5434 = vadd.f32 %v5306, %v5433
      %v5435 = vpop.f32.mrf.mxu0
      %5436 = vmatprep.mubr.bf16.mxu0 0
      %5437 = vmatmul.mubr.bf16.gmra.mxu0 %v5380
      %v5438 = vpop.f32.mrf.mxu0
      %v5439 = vadd.f32 %v5311, %v5438
      %v5440 = vpop.f32.mrf.mxu0
      %v5441 = vpop.f32.mrf.mxu0
      %v5442 = vadd.f32 %v5314, %v5441
      %v5443 = vpop.f32.mrf.mxu0
      %5444 = vmatprep.mubr.bf16.mxu0 0
      %5445 = vmatmul.mubr.bf16.gmra.mxu0 %v5383
      %v5446 = vpop.f32.mrf.mxu0
      %v5447 = vadd.f32 %v5319, %v5446
      %v5448 = vpop.f32.mrf.mxu0
      %v5449 = vpop.f32.mrf.mxu0
      %v5450 = vadd.f32 %v5322, %v5449
      %v5451 = vpop.f32.mrf.mxu0
      %5452 = vmatprep.mubr.bf16.mxu0 0
      %5453 = vmatmul.mubr.bf16.gmra.mxu0 %v5386
      %v5454 = vpop.f32.mrf.mxu0
      %v5455 = vadd.f32 %v5327, %v5454
      %v5456 = vpop.f32.mrf.mxu0
      %v5457 = vpop.f32.mrf.mxu0
      %v5458 = vpop.f32.mrf.mxu0
      %5459 = vdwg.mxu0
      %v5460 = vld [vmem:[%s5131] sm:$0xf]
      %v5461 = vld [vmem:[%s5131 + $0x4] sm:$0xf]
      %v5462 = vld [vmem:[%s5131 + $0x8] sm:$0xf]
      %v5463 = vld [vmem:[%s5131 + $0xc] sm:$0xf]
      %v5464 = vld [vmem:[%s5131 + $0x10] sm:$0xf]
      %v5465 = vld [vmem:[%s5131 + $0x14] sm:$0xf]
      %v5466 = vld [vmem:[%s5131 + $0x18] sm:$0xf]
      %v5467 = vld [vmem:[%s5131 + $0x1c] sm:$0xf]
      %v5468 = vld [vmem:[%s5131 + $0x20] sm:$0xf]
      %v5469 = vld [vmem:[%s5131 + $0x24] sm:$0x1]
      %v5470 = vld [vmem:[%s557] sm:$0xf]
      %v5471 = vld [vmem:[%s557 + $0x4] sm:$0xf]
      %v5472 = vld [vmem:[%s557 + $0x8] sm:$0xf]
      %v5473 = vld [vmem:[%s557 + $0xc] sm:$0xf]
      %v5474 = vld [vmem:[%s557 + $0x10] sm:$0xf]
      %v5475 = vld [vmem:[%s557 + $0x14] sm:$0xf]
      %v5486 = vunpack.c.l.b16 %v5460
      %v5487 = vunpack.c.l.b16 %v5461
      %v5488 = vunpack.c.l.b16 %v5462
      %v5489 = vunpack.c.l.b16 %v5463
      %v5490 = vunpack.c.l.b16 %v5464
      %v5491 = vunpack.c.l.b16 %v5465
      %v5492 = vunpack.c.l.b16 %v5466
      %v5493 = vunpack.c.l.b16 %v5467
      %v5494 = vunpack.c.l.b16 %v5468
      %v5495 = vunpack.c.l.b16 %v5469
      %v5496 = vpack.c.b16 %v5487, %v5486
      %v5497 = vpack.c.b16 %v5489, %v5488
      %v5498 = vpack.c.b16 %v5491, %v5490
      %v5499 = vpack.c.b16 %v5493, %v5492
      %v5500 = vpack.c.b16 %v5495, %v5494
      %v5502 = vshrl.u32 %v5496, 16
      %v5504 = vshll.u32 %v5496, 16
      %v5506 = vrot.slane %v5504, 1
      %v5507 = vor.u32 %v5502, %v5506
      %v5509 = vshll.u32 %v5497, 16
      %v5511 = vrot.slane %v5509, 1
      %v5512 = vsel %vm273, %v5507, %v5511
      %v5513 = vshrl.u32 %v5497, 16
      %v5515 = vor.u32 %v5513, %v5511
      %v5517 = vshll.u32 %v5498, 16
      %v5519 = vrot.slane %v5517, 1
      %v5520 = vsel %vm273, %v5515, %v5519
      %v5521 = vshrl.u32 %v5498, 16
      %v5523 = vor.u32 %v5521, %v5519
      %v5525 = vshll.u32 %v5499, 16
      %v5527 = vrot.slane %v5525, 1
      %v5528 = vsel %vm273, %v5523, %v5527
      %v5529 = vshrl.u32 %v5499, 16
      %v5531 = vor.u32 %v5529, %v5527
      %v5533 = vshll.u32 %v5500, 16
      %v5535 = vrot.slane %v5533, 1
      %v5536 = vsel %vm273, %v5531, %v5535
      %v5537 = vshrl.u32 %v5500, 16
      %v5539 = vor.u32 %v5537, %v5535
      %v5546 = vunpack.c.l.b16 %v5470
      %v5547 = vunpack.c.l.b16 %v5471
      %v5548 = vunpack.c.l.b16 %v5472
      %v5549 = vunpack.c.l.b16 %v5473
      %v5550 = vunpack.c.l.b16 %v5474
      %v5551 = vunpack.c.l.b16 %v5475
      %v5552 = vpack.c.b16 %v5547, %v5546
      %v5553 = vpack.c.b16 %v5549, %v5548
      %v5554 = vpack.c.b16 %v5551, %v5550
      %v5559 = vsel %vm331, %v5512, 0
      %v5562 = vsel %vm331, %v5520, 0
      %v5565 = vsel %vm331, %v5528, 0
      %v5568 = vsel %vm331, %v5536, 0
      %v5571 = vsel %vm331, %v5539, 0
      %5573 = vmatprep.subr.bf16.mxu0 0
      %5574 = vmatpush1.bf16.msra.mxu0 0
      %5575 = vmatprep.subr.bf16.mxu0 0
      %5576 = vmatpush1.bf16.msra.mxu0 0
      %5577 = vmatprep.subr.bf16.mxu0 0
      %5578 = vmatpush1.bf16.msra.mxu0 0
      %5579 = vmatprep.subr.bf16.mxu0 0
      %5580 = vmatpush1.bf16.msra.mxu0 0
      %5581 = vmatprep.subr.bf16.mxu0 0
      %5582 = vmatpush1.bf16.msra.mxu0 0
      %5583 = vmatprep.subr.bf16.mxu0 0
      %5584 = vmatpush1.bf16.msra.mxu0 %v5554
      %5585 = vmatprep.subr.bf16.mxu0 0
      %5586 = vmatpush1.bf16.msra.mxu0 %v5553
      %5587 = vmatprep.subr.bf16.mxu0 0
      %5588 = vmatpush1.bf16.msra.mxu0 %v5552
      %5589 = vmatprep.subr.bf16.mxu0 0
      %5590 = vmatpush2.bf16.msra.mxu0 0
      %5591 = vmatprep.subr.bf16.mxu0 0
      %5592 = vmatpush2.bf16.msra.mxu0 0
      %5593 = vmatprep.subr.bf16.mxu0 0
      %5594 = vmatpush2.bf16.msra.mxu0 0
      %5595 = vmatprep.subr.bf16.mxu0 0
      %5596 = vmatpush2.bf16.msra.mxu0 0
      %5597 = vmatprep.subr.bf16.mxu0 0
      %5598 = vmatpush2.bf16.msra.mxu0 0
      %5599 = vmatprep.subr.bf16.mxu0 0
      %5600 = vmatpush2.bf16.msra.mxu0 0
      %5601 = vmatprep.subr.bf16.mxu0 0
      %5602 = vmatpush2.bf16.msra.mxu0 0
      %5603 = vmatprep.subr.bf16.mxu0 0
      %5604 = vmatpush2.bf16.msra.mxu0 0
      %5605 = vmatprep.mubr.bf16.mxu0 0
      %5606 = vmatmul.mubr.bf16.gmra.mxu0 %v5559
      %v5607 = vpop.f32.mrf.mxu0
      %v5608 = vadd.f32 0.0, %v5607
      %v5609 = vpop.f32.mrf.mxu0
      %v5610 = vpop.f32.mrf.mxu0
      %v5611 = vadd.f32 0.0, %v5610
      %v5612 = vpop.f32.mrf.mxu0
      %5613 = vmatprep.mubr.bf16.mxu0 0
      %5614 = vmatmul.mubr.bf16.gmra.mxu0 %v5562
      %v5615 = vpop.f32.mrf.mxu0
      %v5616 = vadd.f32 0.0, %v5615
      %v5617 = vpop.f32.mrf.mxu0
      %v5618 = vpop.f32.mrf.mxu0
      %v5619 = vadd.f32 0.0, %v5618
      %v5620 = vpop.f32.mrf.mxu0
      %5621 = vmatprep.mubr.bf16.mxu0 0
      %5622 = vmatmul.mubr.bf16.gmra.mxu0 %v5565
      %v5623 = vpop.f32.mrf.mxu0
      %v5624 = vadd.f32 0.0, %v5623
      %v5625 = vpop.f32.mrf.mxu0
      %v5626 = vpop.f32.mrf.mxu0
      %v5627 = vadd.f32 0.0, %v5626
      %v5628 = vpop.f32.mrf.mxu0
      %5629 = vmatprep.mubr.bf16.mxu0 0
      %5630 = vmatmul.mubr.bf16.gmra.mxu0 %v5568
      %v5631 = vpop.f32.mrf.mxu0
      %v5632 = vadd.f32 0.0, %v5631
      %v5633 = vpop.f32.mrf.mxu0
      %v5634 = vpop.f32.mrf.mxu0
      %v5635 = vadd.f32 0.0, %v5634
      %v5636 = vpop.f32.mrf.mxu0
      %5637 = vmatprep.mubr.bf16.mxu0 0
      %5638 = vmatmul.mubr.bf16.gmra.mxu0 %v5571
      %v5639 = vpop.f32.mrf.mxu0
      %v5640 = vadd.f32 0.0, %v5639
      %v5641 = vpop.f32.mrf.mxu0
      %v5642 = vpop.f32.mrf.mxu0
      %v5643 = vpop.f32.mrf.mxu0
      %5644 = vdwg.mxu0
      %v5645 = vadd.f32 %v5423, %v5608
      %v5646 = vadd.f32 %v5426, %v5611
      %v5647 = vadd.f32 %v5431, %v5616
      %v5648 = vadd.f32 %v5434, %v5619
      %v5649 = vadd.f32 %v5439, %v5624
      %v5650 = vadd.f32 %v5442, %v5627
      %v5651 = vadd.f32 %v5447, %v5632
      %v5652 = vadd.f32 %v5450, %v5635
      %v5653 = vadd.f32 %v5455, %v5640
      %v5654 = vld [vmem:[%s5131 + $0x50] sm:$0xe]
      %v5655 = vld [vmem:[%s5131 + $0x54] sm:$0xf]
      %v5656 = vld [vmem:[%s5131 + $0x58] sm:$0xf]
      %v5657 = vld [vmem:[%s5131 + $0x5c] sm:$0xf]
      %v5658 = vld [vmem:[%s5131 + $0x60] sm:$0xf]
      %v5659 = vld [vmem:[%s5131 + $0x64] sm:$0xf]
      %v5660 = vld [vmem:[%s5131 + $0x68] sm:$0xf]
      %v5661 = vld [vmem:[%s5131 + $0x6c] sm:$0xf]
      %v5662 = vld [vmem:[%s5131 + $0x70] sm:$0xf]
      %v5663 = vld [vmem:[%s5131 + $0x74] sm:$0x1]
      %v5664 = vld [vmem:[%s752] sm:$0xf]
      %v5665 = vld [vmem:[%s752 + $0x4] sm:$0xf]
      %v5666 = vld [vmem:[%s752 + $0x8] sm:$0xf]
      %v5667 = vld [vmem:[%s752 + $0xc] sm:$0xf]
      %v5668 = vld [vmem:[%s752 + $0x10] sm:$0xf]
      %v5669 = vld [vmem:[%s752 + $0x14] sm:$0xf]
      %v5680 = vunpack.c.l.b16 %v5654
      %v5681 = vunpack.c.l.b16 %v5655
      %v5682 = vunpack.c.l.b16 %v5656
      %v5683 = vunpack.c.l.b16 %v5657
      %v5684 = vunpack.c.l.b16 %v5658
      %v5685 = vunpack.c.l.b16 %v5659
      %v5686 = vunpack.c.l.b16 %v5660
      %v5687 = vunpack.c.l.b16 %v5661
      %v5688 = vunpack.c.l.b16 %v5662
      %v5689 = vunpack.c.l.b16 %v5663
      %v5690 = vpack.c.b16 %v5681, %v5680
      %v5691 = vpack.c.b16 %v5683, %v5682
      %v5692 = vpack.c.b16 %v5685, %v5684
      %v5693 = vpack.c.b16 %v5687, %v5686
      %v5694 = vpack.c.b16 %v5689, %v5688
      %v5695 = vrot.slane %v5690, 1
      %v5696 = vrot.slane %v5691, 1
      %v5697 = vsel %vm784, %v5695, %v5696
      %v5698 = vrot.slane %v5692, 1
      %v5699 = vsel %vm784, %v5696, %v5698
      %v5700 = vrot.slane %v5693, 1
      %v5701 = vsel %vm784, %v5698, %v5700
      %v5702 = vrot.slane %v5694, 1
      %v5703 = vsel %vm784, %v5700, %v5702
      %v5710 = vunpack.c.l.b16 %v5664
      %v5711 = vunpack.c.l.b16 %v5665
      %v5712 = vunpack.c.l.b16 %v5666
      %v5713 = vunpack.c.l.b16 %v5667
      %v5714 = vunpack.c.l.b16 %v5668
      %v5715 = vunpack.c.l.b16 %v5669
      %v5716 = vpack.c.b16 %v5711, %v5710
      %v5717 = vpack.c.b16 %v5713, %v5712
      %v5718 = vpack.c.b16 %v5715, %v5714
      %v5723 = vsel %vm331, %v5697, 0
      %v5726 = vsel %vm331, %v5699, 0
      %v5729 = vsel %vm331, %v5701, 0
      %v5732 = vsel %vm331, %v5703, 0
      %v5735 = vsel %vm331, %v5702, 0
      %5737 = vmatprep.subr.bf16.mxu0 0
      %5738 = vmatpush1.bf16.msra.mxu0 0
      %5739 = vmatprep.subr.bf16.mxu0 0
      %5740 = vmatpush1.bf16.msra.mxu0 0
      %5741 = vmatprep.subr.bf16.mxu0 0
      %5742 = vmatpush1.bf16.msra.mxu0 0
      %5743 = vmatprep.subr.bf16.mxu0 0
      %5744 = vmatpush1.bf16.msra.mxu0 0
      %5745 = vmatprep.subr.bf16.mxu0 0
      %5746 = vmatpush1.bf16.msra.mxu0 0
      %5747 = vmatprep.subr.bf16.mxu0 0
      %5748 = vmatpush1.bf16.msra.mxu0 %v5718
      %5749 = vmatprep.subr.bf16.mxu0 0
      %5750 = vmatpush1.bf16.msra.mxu0 %v5717
      %5751 = vmatprep.subr.bf16.mxu0 0
      %5752 = vmatpush1.bf16.msra.mxu0 %v5716
      %5753 = vmatprep.subr.bf16.mxu0 0
      %5754 = vmatpush2.bf16.msra.mxu0 0
      %5755 = vmatprep.subr.bf16.mxu0 0
      %5756 = vmatpush2.bf16.msra.mxu0 0
      %5757 = vmatprep.subr.bf16.mxu0 0
      %5758 = vmatpush2.bf16.msra.mxu0 0
      %5759 = vmatprep.subr.bf16.mxu0 0
      %5760 = vmatpush2.bf16.msra.mxu0 0
      %5761 = vmatprep.subr.bf16.mxu0 0
      %5762 = vmatpush2.bf16.msra.mxu0 0
      %5763 = vmatprep.subr.bf16.mxu0 0
      %5764 = vmatpush2.bf16.msra.mxu0 0
      %5765 = vmatprep.subr.bf16.mxu0 0
      %5766 = vmatpush2.bf16.msra.mxu0 0
      %5767 = vmatprep.subr.bf16.mxu0 0
      %5768 = vmatpush2.bf16.msra.mxu0 0
      %5769 = vmatprep.mubr.bf16.mxu0 0
      %5770 = vmatmul.mubr.bf16.gmra.mxu0 %v5723
      %v5771 = vpop.f32.mrf.mxu0
      %v5772 = vadd.f32 0.0, %v5771
      %v5773 = vpop.f32.mrf.mxu0
      %v5774 = vpop.f32.mrf.mxu0
      %v5775 = vadd.f32 0.0, %v5774
      %v5776 = vpop.f32.mrf.mxu0
      %5777 = vmatprep.mubr.bf16.mxu0 0
      %5778 = vmatmul.mubr.bf16.gmra.mxu0 %v5726
      %v5779 = vpop.f32.mrf.mxu0
      %v5780 = vadd.f32 0.0, %v5779
      %v5781 = vpop.f32.mrf.mxu0
      %v5782 = vpop.f32.mrf.mxu0
      %v5783 = vadd.f32 0.0, %v5782
      %v5784 = vpop.f32.mrf.mxu0
      %5785 = vmatprep.mubr.bf16.mxu0 0
      %5786 = vmatmul.mubr.bf16.gmra.mxu0 %v5729
      %v5787 = vpop.f32.mrf.mxu0
      %v5788 = vadd.f32 0.0, %v5787
      %v5789 = vpop.f32.mrf.mxu0
      %v5790 = vpop.f32.mrf.mxu0
      %v5791 = vadd.f32 0.0, %v5790
      %v5792 = vpop.f32.mrf.mxu0
      %5793 = vmatprep.mubr.bf16.mxu0 0
      %5794 = vmatmul.mubr.bf16.gmra.mxu0 %v5732
      %v5795 = vpop.f32.mrf.mxu0
      %v5796 = vadd.f32 0.0, %v5795
      %v5797 = vpop.f32.mrf.mxu0
      %v5798 = vpop.f32.mrf.mxu0
      %v5799 = vadd.f32 0.0, %v5798
      %v5800 = vpop.f32.mrf.mxu0
      %5801 = vmatprep.mubr.bf16.mxu0 0
      %5802 = vmatmul.mubr.bf16.gmra.mxu0 %v5735
      %v5803 = vpop.f32.mrf.mxu0
      %v5804 = vadd.f32 0.0, %v5803
      %v5805 = vpop.f32.mrf.mxu0
      %v5806 = vpop.f32.mrf.mxu0
      %v5807 = vpop.f32.mrf.mxu0
      %5808 = vdwg.mxu0
      %v5809 = vadd.f32 %v5645, %v5772
      %v5810 = vadd.f32 %v5646, %v5775
      %v5811 = vadd.f32 %v5647, %v5780
      %v5812 = vadd.f32 %v5648, %v5783
      %v5813 = vadd.f32 %v5649, %v5788
      %v5814 = vadd.f32 %v5650, %v5791
      %v5815 = vadd.f32 %v5651, %v5796
      %v5816 = vadd.f32 %v5652, %v5799
      %v5817 = vadd.f32 %v5653, %v5804
      %v5818 = vld [vmem:[%s5131 + $0x78] sm:$0xe]
      %v5819 = vld [vmem:[%s5131 + $0x7c] sm:$0xf]
      %v5820 = vld [vmem:[%s5131 + $0x80] sm:$0xf]
      %v5821 = vld [vmem:[%s5131 + $0x84] sm:$0xf]
      %v5822 = vld [vmem:[%s5131 + $0x88] sm:$0xf]
      %v5823 = vld [vmem:[%s5131 + $0x8c] sm:$0xf]
      %v5824 = vld [vmem:[%s5131 + $0x90] sm:$0xf]
      %v5825 = vld [vmem:[%s5131 + $0x94] sm:$0xf]
      %v5826 = vld [vmem:[%s5131 + $0x98] sm:$0xf]
      %v5827 = vld [vmem:[%s5131 + $0x9c] sm:$0x3]
      %v5828 = vld [vmem:[%s918] sm:$0xf]
      %v5829 = vld [vmem:[%s918 + $0x4] sm:$0xf]
      %v5830 = vld [vmem:[%s918 + $0x8] sm:$0xf]
      %v5831 = vld [vmem:[%s918 + $0xc] sm:$0xf]
      %v5832 = vld [vmem:[%s918 + $0x10] sm:$0xf]
      %v5833 = vld [vmem:[%s918 + $0x14] sm:$0xf]
      %v5844 = vunpack.c.l.b16 %v5818
      %v5845 = vunpack.c.l.b16 %v5819
      %v5846 = vunpack.c.l.b16 %v5820
      %v5847 = vunpack.c.l.b16 %v5821
      %v5848 = vunpack.c.l.b16 %v5822
      %v5849 = vunpack.c.l.b16 %v5823
      %v5850 = vunpack.c.l.b16 %v5824
      %v5851 = vunpack.c.l.b16 %v5825
      %v5852 = vunpack.c.l.b16 %v5826
      %v5853 = vunpack.c.l.b16 %v5827
      %v5854 = vpack.c.b16 %v5845, %v5844
      %v5855 = vpack.c.b16 %v5847, %v5846
      %v5856 = vpack.c.b16 %v5849, %v5848
      %v5857 = vpack.c.b16 %v5851, %v5850
      %v5858 = vpack.c.b16 %v5853, %v5852
      %v5860 = vshrl.u32 %v5854, 16
      %v5862 = vrot.slane %v5860, 1
      %v5863 = vshll.u32 %v5854, 16
      %v5865 = vrot.slane %v5863, 2
      %v5866 = vor.u32 %v5862, %v5865
      %v5868 = vshrl.u32 %v5855, 16
      %v5870 = vrot.slane %v5868, 1
      %v5871 = vshll.u32 %v5855, 16
      %v5873 = vrot.slane %v5871, 2
      %v5874 = vor.u32 %v5870, %v5873
      %v5875 = vsel %vm950, %v5866, %v5874
      %v5877 = vshrl.u32 %v5856, 16
      %v5879 = vrot.slane %v5877, 1
      %v5880 = vshll.u32 %v5856, 16
      %v5882 = vrot.slane %v5880, 2
      %v5883 = vor.u32 %v5879, %v5882
      %v5884 = vsel %vm950, %v5874, %v5883
      %v5886 = vshrl.u32 %v5857, 16
      %v5888 = vrot.slane %v5886, 1
      %v5889 = vshll.u32 %v5857, 16
      %v5891 = vrot.slane %v5889, 2
      %v5892 = vor.u32 %v5888, %v5891
      %v5893 = vsel %vm950, %v5883, %v5892
      %v5895 = vshrl.u32 %v5858, 16
      %v5897 = vrot.slane %v5895, 1
      %v5898 = vshll.u32 %v5858, 16
      %v5900 = vrot.slane %v5898, 2
      %v5901 = vor.u32 %v5897, %v5900
      %v5902 = vsel %vm950, %v5892, %v5901
      %v5909 = vunpack.c.l.b16 %v5828
      %v5910 = vunpack.c.l.b16 %v5829
      %v5911 = vunpack.c.l.b16 %v5830
      %v5912 = vunpack.c.l.b16 %v5831
      %v5913 = vunpack.c.l.b16 %v5832
      %v5914 = vunpack.c.l.b16 %v5833
      %v5915 = vpack.c.b16 %v5910, %v5909
      %v5916 = vpack.c.b16 %v5912, %v5911
      %v5917 = vpack.c.b16 %v5914, %v5913
      %v5922 = vsel %vm331, %v5875, 0
      %v5925 = vsel %vm331, %v5884, 0
      %v5928 = vsel %vm331, %v5893, 0
      %v5931 = vsel %vm331, %v5902, 0
      %v5934 = vsel %vm331, %v5901, 0
      %5936 = vmatprep.subr.bf16.mxu0 0
      %5937 = vmatpush1.bf16.msra.mxu0 0
      %5938 = vmatprep.subr.bf16.mxu0 0
      %5939 = vmatpush1.bf16.msra.mxu0 0
      %5940 = vmatprep.subr.bf16.mxu0 0
      %5941 = vmatpush1.bf16.msra.mxu0 0
      %5942 = vmatprep.subr.bf16.mxu0 0
      %5943 = vmatpush1.bf16.msra.mxu0 0
      %5944 = vmatprep.subr.bf16.mxu0 0
      %5945 = vmatpush1.bf16.msra.mxu0 0
      %5946 = vmatprep.subr.bf16.mxu0 0
      %5947 = vmatpush1.bf16.msra.mxu0 %v5917
      %5948 = vmatprep.subr.bf16.mxu0 0
      %5949 = vmatpush1.bf16.msra.mxu0 %v5916
      %5950 = vmatprep.subr.bf16.mxu0 0
      %5951 = vmatpush1.bf16.msra.mxu0 %v5915
      %5952 = vmatprep.subr.bf16.mxu0 0
      %5953 = vmatpush2.bf16.msra.mxu0 0
      %5954 = vmatprep.subr.bf16.mxu0 0
      %5955 = vmatpush2.bf16.msra.mxu0 0
      %5956 = vmatprep.subr.bf16.mxu0 0
      %5957 = vmatpush2.bf16.msra.mxu0 0
      %5958 = vmatprep.subr.bf16.mxu0 0
      %5959 = vmatpush2.bf16.msra.mxu0 0
      %5960 = vmatprep.subr.bf16.mxu0 0
      %5961 = vmatpush2.bf16.msra.mxu0 0
      %5962 = vmatprep.subr.bf16.mxu0 0
      %5963 = vmatpush2.bf16.msra.mxu0 0
      %5964 = vmatprep.subr.bf16.mxu0 0
      %5965 = vmatpush2.bf16.msra.mxu0 0
      %5966 = vmatprep.subr.bf16.mxu0 0
      %5967 = vmatpush2.bf16.msra.mxu0 0
      %5968 = vmatprep.mubr.bf16.mxu0 0
      %5969 = vmatmul.mubr.bf16.gmra.mxu0 %v5922
      %v5970 = vpop.f32.mrf.mxu0
      %v5971 = vadd.f32 0.0, %v5970
      %v5972 = vpop.f32.mrf.mxu0
      %v5973 = vpop.f32.mrf.mxu0
      %v5974 = vadd.f32 0.0, %v5973
      %v5975 = vpop.f32.mrf.mxu0
      %5976 = vmatprep.mubr.bf16.mxu0 0
      %5977 = vmatmul.mubr.bf16.gmra.mxu0 %v5925
      %v5978 = vpop.f32.mrf.mxu0
      %v5979 = vadd.f32 0.0, %v5978
      %v5980 = vpop.f32.mrf.mxu0
      %v5981 = vpop.f32.mrf.mxu0
      %v5982 = vadd.f32 0.0, %v5981
      %v5983 = vpop.f32.mrf.mxu0
      %5984 = vmatprep.mubr.bf16.mxu0 0
      %5985 = vmatmul.mubr.bf16.gmra.mxu0 %v5928
      %v5986 = vpop.f32.mrf.mxu0
      %v5987 = vadd.f32 0.0, %v5986
      %v5988 = vpop.f32.mrf.mxu0
      %v5989 = vpop.f32.mrf.mxu0
      %v5990 = vadd.f32 0.0, %v5989
      %v5991 = vpop.f32.mrf.mxu0
      %5992 = vmatprep.mubr.bf16.mxu0 0
      %5993 = vmatmul.mubr.bf16.gmra.mxu0 %v5931
      %v5994 = vpop.f32.mrf.mxu0
      %v5995 = vadd.f32 0.0, %v5994
      %v5996 = vpop.f32.mrf.mxu0
      %v5997 = vpop.f32.mrf.mxu0
      %v5998 = vadd.f32 0.0, %v5997
      %v5999 = vpop.f32.mrf.mxu0
      %6000 = vmatprep.mubr.bf16.mxu0 0
      %6001 = vmatmul.mubr.bf16.gmra.mxu0 %v5934
      %v6002 = vpop.f32.mrf.mxu0
      %v6003 = vadd.f32 0.0, %v6002
      %v6004 = vpop.f32.mrf.mxu0
      %v6005 = vpop.f32.mrf.mxu0
      %v6006 = vpop.f32.mrf.mxu0
      %6007 = vdwg.mxu0
      %v6008 = vadd.f32 %v5809, %v5971
      %v6009 = vadd.f32 %v5810, %v5974
      %v6010 = vadd.f32 %v5811, %v5979
      %v6011 = vadd.f32 %v5812, %v5982
      %v6012 = vadd.f32 %v5813, %v5987
      %v6013 = vadd.f32 %v5814, %v5990
      %v6014 = vadd.f32 %v5815, %v5995
      %v6015 = vadd.f32 %v5816, %v5998
      %v6016 = vadd.f32 %v5817, %v6003
      %v6017 = vld [vmem:[%s5131 + $0x74] sm:$0x3]
      %v6018 = vld [vmem:[%s1110] sm:$0xf]
      %v6019 = vld [vmem:[%s1110 + $0x4] sm:$0xf]
      %v6020 = vld [vmem:[%s1110 + $0x8] sm:$0xf]
      %v6021 = vld [vmem:[%s1110 + $0xc] sm:$0xf]
      %v6022 = vld [vmem:[%s1110 + $0x10] sm:$0xf]
      %v6023 = vld [vmem:[%s1110 + $0x14] sm:$0xf]
      %v6025 = vunpack.c.l.b16 %v6017
      %v6026 = vpack.c.b16 %v6025, %v5688
      %v6028 = vshrl.u32 %v5690, 16
      %v6030 = vrot.slane %v6028, 1
      %v6031 = vshll.u32 %v5690, 16
      %v6033 = vrot.slane %v6031, 2
      %v6034 = vor.u32 %v6030, %v6033
      %v6036 = vshrl.u32 %v5691, 16
      %v6038 = vrot.slane %v6036, 1
      %v6039 = vshll.u32 %v5691, 16
      %v6041 = vrot.slane %v6039, 2
      %v6042 = vor.u32 %v6038, %v6041
      %v6043 = vsel %vm950, %v6034, %v6042
      %v6045 = vshrl.u32 %v5692, 16
      %v6047 = vrot.slane %v6045, 1
      %v6048 = vshll.u32 %v5692, 16
      %v6050 = vrot.slane %v6048, 2
      %v6051 = vor.u32 %v6047, %v6050
      %v6052 = vsel %vm950, %v6042, %v6051
      %v6054 = vshrl.u32 %v5693, 16
      %v6056 = vrot.slane %v6054, 1
      %v6057 = vshll.u32 %v5693, 16
      %v6059 = vrot.slane %v6057, 2
      %v6060 = vor.u32 %v6056, %v6059
      %v6061 = vsel %vm950, %v6051, %v6060
      %v6063 = vshrl.u32 %v6026, 16
      %v6065 = vrot.slane %v6063, 1
      %v6066 = vshll.u32 %v6026, 16
      %v6068 = vrot.slane %v6066, 2
      %v6069 = vor.u32 %v6065, %v6068
      %v6070 = vsel %vm950, %v6060, %v6069
      %v6077 = vunpack.c.l.b16 %v6018
      %v6078 = vunpack.c.l.b16 %v6019
      %v6079 = vunpack.c.l.b16 %v6020
      %v6080 = vunpack.c.l.b16 %v6021
      %v6081 = vunpack.c.l.b16 %v6022
      %v6082 = vunpack.c.l.b16 %v6023
      %v6083 = vpack.c.b16 %v6078, %v6077
      %v6084 = vpack.c.b16 %v6080, %v6079
      %v6085 = vpack.c.b16 %v6082, %v6081
      %v6090 = vsel %vm331, %v6043, 0
      %v6093 = vsel %vm331, %v6052, 0
      %v6096 = vsel %vm331, %v6061, 0
      %v6099 = vsel %vm331, %v6070, 0
      %v6102 = vsel %vm331, %v6069, 0
      %6104 = vmatprep.subr.bf16.mxu0 0
      %6105 = vmatpush1.bf16.msra.mxu0 0
      %6106 = vmatprep.subr.bf16.mxu0 0
      %6107 = vmatpush1.bf16.msra.mxu0 0
      %6108 = vmatprep.subr.bf16.mxu0 0
      %6109 = vmatpush1.bf16.msra.mxu0 0
      %6110 = vmatprep.subr.bf16.mxu0 0
      %6111 = vmatpush1.bf16.msra.mxu0 0
      %6112 = vmatprep.subr.bf16.mxu0 0
      %6113 = vmatpush1.bf16.msra.mxu0 0
      %6114 = vmatprep.subr.bf16.mxu0 0
      %6115 = vmatpush1.bf16.msra.mxu0 %v6085
      %6116 = vmatprep.subr.bf16.mxu0 0
      %6117 = vmatpush1.bf16.msra.mxu0 %v6084
      %6118 = vmatprep.subr.bf16.mxu0 0
      %6119 = vmatpush1.bf16.msra.mxu0 %v6083
      %6120 = vmatprep.subr.bf16.mxu0 0
      %6121 = vmatpush2.bf16.msra.mxu0 0
      %6122 = vmatprep.subr.bf16.mxu0 0
      %6123 = vmatpush2.bf16.msra.mxu0 0
      %6124 = vmatprep.subr.bf16.mxu0 0
      %6125 = vmatpush2.bf16.msra.mxu0 0
      %6126 = vmatprep.subr.bf16.mxu0 0
      %6127 = vmatpush2.bf16.msra.mxu0 0
      %6128 = vmatprep.subr.bf16.mxu0 0
      %6129 = vmatpush2.bf16.msra.mxu0 0
      %6130 = vmatprep.subr.bf16.mxu0 0
      %6131 = vmatpush2.bf16.msra.mxu0 0
      %6132 = vmatprep.subr.bf16.mxu0 0
      %6133 = vmatpush2.bf16.msra.mxu0 0
      %6134 = vmatprep.subr.bf16.mxu0 0
      %6135 = vmatpush2.bf16.msra.mxu0 0
      %6136 = vmatprep.mubr.bf16.mxu0 0
      %6137 = vmatmul.mubr.bf16.gmra.mxu0 %v6090
      %v6138 = vpop.f32.mrf.mxu0
      %v6139 = vadd.f32 0.0, %v6138
      %v6140 = vpop.f32.mrf.mxu0
      %v6141 = vpop.f32.mrf.mxu0
      %v6142 = vadd.f32 0.0, %v6141
      %v6143 = vpop.f32.mrf.mxu0
      %6144 = vmatprep.mubr.bf16.mxu0 0
      %6145 = vmatmul.mubr.bf16.gmra.mxu0 %v6093
      %v6146 = vpop.f32.mrf.mxu0
      %v6147 = vadd.f32 0.0, %v6146
      %v6148 = vpop.f32.mrf.mxu0
      %v6149 = vpop.f32.mrf.mxu0
      %v6150 = vadd.f32 0.0, %v6149
      %v6151 = vpop.f32.mrf.mxu0
      %6152 = vmatprep.mubr.bf16.mxu0 0
      %6153 = vmatmul.mubr.bf16.gmra.mxu0 %v6096
      %v6154 = vpop.f32.mrf.mxu0
      %v6155 = vadd.f32 0.0, %v6154
      %v6156 = vpop.f32.mrf.mxu0
      %v6157 = vpop.f32.mrf.mxu0
      %v6158 = vadd.f32 0.0, %v6157
      %v6159 = vpop.f32.mrf.mxu0
      %6160 = vmatprep.mubr.bf16.mxu0 0
      %6161 = vmatmul.mubr.bf16.gmra.mxu0 %v6099
      %v6162 = vpop.f32.mrf.mxu0
      %v6163 = vadd.f32 0.0, %v6162
      %v6164 = vpop.f32.mrf.mxu0
      %v6165 = vpop.f32.mrf.mxu0
      %v6166 = vadd.f32 0.0, %v6165
      %v6167 = vpop.f32.mrf.mxu0
      %6168 = vmatprep.mubr.bf16.mxu0 0
      %6169 = vmatmul.mubr.bf16.gmra.mxu0 %v6102
      %v6170 = vpop.f32.mrf.mxu0
      %v6171 = vadd.f32 0.0, %v6170
      %v6172 = vpop.f32.mrf.mxu0
      %v6173 = vpop.f32.mrf.mxu0
      %v6174 = vpop.f32.mrf.mxu0
      %6175 = vdwg.mxu0
      %v6176 = vadd.f32 %v6008, %v6139
      %v6177 = vadd.f32 %v6009, %v6142
      %v6178 = vadd.f32 %v6010, %v6147
      %v6179 = vadd.f32 %v6011, %v6150
      %v6180 = vadd.f32 %v6012, %v6155
      %v6181 = vadd.f32 %v6013, %v6158
      %v6182 = vadd.f32 %v6014, %v6163
      %v6183 = vadd.f32 %v6015, %v6166
      %v6184 = vadd.f32 %v6016, %v6171
      %v6185 = vld [vmem:[%s5131 + $0x4] sm:$0xf]
      %v6186 = vld [vmem:[%s5131 + $0x8] sm:$0xf]
      %v6187 = vld [vmem:[%s5131 + $0xc] sm:$0xf]
      %v6188 = vld [vmem:[%s5131 + $0x10] sm:$0xf]
      %v6189 = vld [vmem:[%s5131 + $0x14] sm:$0xf]
      %v6190 = vld [vmem:[%s5131 + $0x18] sm:$0xf]
      %v6191 = vld [vmem:[%s5131 + $0x1c] sm:$0xf]
      %v6192 = vld [vmem:[%s5131 + $0x20] sm:$0xf]
      %v6193 = vld [vmem:[%s5131 + $0x24] sm:$0xf]
      %v6194 = vld [vmem:[%s5131 + $0x28] sm:$0x1]
      %v6195 = vld [vmem:[%s1288] sm:$0xf]
      %v6196 = vld [vmem:[%s1288 + $0x4] sm:$0xf]
      %v6197 = vld [vmem:[%s1288 + $0x8] sm:$0xf]
      %v6198 = vld [vmem:[%s1288 + $0xc] sm:$0xf]
      %v6199 = vld [vmem:[%s1288 + $0x10] sm:$0xf]
      %v6200 = vld [vmem:[%s1288 + $0x14] sm:$0xf]
      %v6211 = vunpack.c.l.b16 %v6185
      %v6212 = vunpack.c.l.b16 %v6186
      %v6213 = vunpack.c.l.b16 %v6187
      %v6214 = vunpack.c.l.b16 %v6188
      %v6215 = vunpack.c.l.b16 %v6189
      %v6216 = vunpack.c.l.b16 %v6190
      %v6217 = vunpack.c.l.b16 %v6191
      %v6218 = vunpack.c.l.b16 %v6192
      %v6219 = vunpack.c.l.b16 %v6193
      %v6220 = vunpack.c.l.b16 %v6194
      %v6221 = vpack.c.b16 %v6212, %v6211
      %v6222 = vpack.c.b16 %v6214, %v6213
      %v6223 = vpack.c.b16 %v6216, %v6215
      %v6224 = vpack.c.b16 %v6218, %v6217
      %v6225 = vpack.c.b16 %v6220, %v6219
      %v6227 = vshrl.u32 %v6221, 16
      %v6229 = vshll.u32 %v6221, 16
      %v6231 = vrot.slane %v6229, 1
      %v6232 = vor.u32 %v6227, %v6231
      %v6234 = vshll.u32 %v6222, 16
      %v6236 = vrot.slane %v6234, 1
      %v6237 = vsel %vm273, %v6232, %v6236
      %v6238 = vshrl.u32 %v6222, 16
      %v6240 = vor.u32 %v6238, %v6236
      %v6242 = vshll.u32 %v6223, 16
      %v6244 = vrot.slane %v6242, 1
      %v6245 = vsel %vm273, %v6240, %v6244
      %v6246 = vshrl.u32 %v6223, 16
      %v6248 = vor.u32 %v6246, %v6244
      %v6250 = vshll.u32 %v6224, 16
      %v6252 = vrot.slane %v6250, 1
      %v6253 = vsel %vm273, %v6248, %v6252
      %v6254 = vshrl.u32 %v6224, 16
      %v6256 = vor.u32 %v6254, %v6252
      %v6258 = vshll.u32 %v6225, 16
      %v6260 = vrot.slane %v6258, 1
      %v6261 = vsel %vm273, %v6256, %v6260
      %v6262 = vshrl.u32 %v6225, 16
      %v6264 = vor.u32 %v6262, %v6260
      %v6271 = vunpack.c.l.b16 %v6195
      %v6272 = vunpack.c.l.b16 %v6196
      %v6273 = vunpack.c.l.b16 %v6197
      %v6274 = vunpack.c.l.b16 %v6198
      %v6275 = vunpack.c.l.b16 %v6199
      %v6276 = vunpack.c.l.b16 %v6200
      %v6277 = vpack.c.b16 %v6272, %v6271
      %v6278 = vpack.c.b16 %v6274, %v6273
      %v6279 = vpack.c.b16 %v6276, %v6275
      %v6284 = vsel %vm331, %v6237, 0
      %v6287 = vsel %vm331, %v6245, 0
      %v6290 = vsel %vm331, %v6253, 0
      %v6293 = vsel %vm331, %v6261, 0
      %v6296 = vsel %vm331, %v6264, 0
      %6298 = vmatprep.subr.bf16.mxu0 0
      %6299 = vmatpush1.bf16.msra.mxu0 0
      %6300 = vmatprep.subr.bf16.mxu0 0
      %6301 = vmatpush1.bf16.msra.mxu0 0
      %6302 = vmatprep.subr.bf16.mxu0 0
      %6303 = vmatpush1.bf16.msra.mxu0 0
      %6304 = vmatprep.subr.bf16.mxu0 0
      %6305 = vmatpush1.bf16.msra.mxu0 0
      %6306 = vmatprep.subr.bf16.mxu0 0
      %6307 = vmatpush1.bf16.msra.mxu0 0
      %6308 = vmatprep.subr.bf16.mxu0 0
      %6309 = vmatpush1.bf16.msra.mxu0 %v6279
      %6310 = vmatprep.subr.bf16.mxu0 0
      %6311 = vmatpush1.bf16.msra.mxu0 %v6278
      %6312 = vmatprep.subr.bf16.mxu0 0
      %6313 = vmatpush1.bf16.msra.mxu0 %v6277
      %6314 = vmatprep.subr.bf16.mxu0 0
      %6315 = vmatpush2.bf16.msra.mxu0 0
      %6316 = vmatprep.subr.bf16.mxu0 0
      %6317 = vmatpush2.bf16.msra.mxu0 0
      %6318 = vmatprep.subr.bf16.mxu0 0
      %6319 = vmatpush2.bf16.msra.mxu0 0
      %6320 = vmatprep.subr.bf16.mxu0 0
      %6321 = vmatpush2.bf16.msra.mxu0 0
      %6322 = vmatprep.subr.bf16.mxu0 0
      %6323 = vmatpush2.bf16.msra.mxu0 0
      %6324 = vmatprep.subr.bf16.mxu0 0
      %6325 = vmatpush2.bf16.msra.mxu0 0
      %6326 = vmatprep.subr.bf16.mxu0 0
      %6327 = vmatpush2.bf16.msra.mxu0 0
      %6328 = vmatprep.subr.bf16.mxu0 0
      %6329 = vmatpush2.bf16.msra.mxu0 0
      %6330 = vmatprep.mubr.bf16.mxu0 0
      %6331 = vmatmul.mubr.bf16.gmra.mxu0 %v6284
      %v6332 = vpop.f32.mrf.mxu0
      %v6333 = vadd.f32 0.0, %v6332
      %v6334 = vpop.f32.mrf.mxu0
      %v6335 = vpop.f32.mrf.mxu0
      %v6336 = vadd.f32 0.0, %v6335
      %v6337 = vpop.f32.mrf.mxu0
      %6338 = vmatprep.mubr.bf16.mxu0 0
      %6339 = vmatmul.mubr.bf16.gmra.mxu0 %v6287
      %v6340 = vpop.f32.mrf.mxu0
      %v6341 = vadd.f32 0.0, %v6340
      %v6342 = vpop.f32.mrf.mxu0
      %v6343 = vpop.f32.mrf.mxu0
      %v6344 = vadd.f32 0.0, %v6343
      %v6345 = vpop.f32.mrf.mxu0
      %6346 = vmatprep.mubr.bf16.mxu0 0
      %6347 = vmatmul.mubr.bf16.gmra.mxu0 %v6290
      %v6348 = vpop.f32.mrf.mxu0
      %v6349 = vadd.f32 0.0, %v6348
      %v6350 = vpop.f32.mrf.mxu0
      %v6351 = vpop.f32.mrf.mxu0
      %v6352 = vadd.f32 0.0, %v6351
      %v6353 = vpop.f32.mrf.mxu0
      %6354 = vmatprep.mubr.bf16.mxu0 0
      %6355 = vmatmul.mubr.bf16.gmra.mxu0 %v6293
      %v6356 = vpop.f32.mrf.mxu0
      %v6357 = vadd.f32 0.0, %v6356
      %v6358 = vpop.f32.mrf.mxu0
      %v6359 = vpop.f32.mrf.mxu0
      %v6360 = vadd.f32 0.0, %v6359
      %v6361 = vpop.f32.mrf.mxu0
      %6362 = vmatprep.mubr.bf16.mxu0 0
      %6363 = vmatmul.mubr.bf16.gmra.mxu0 %v6296
      %v6364 = vpop.f32.mrf.mxu0
      %v6365 = vadd.f32 0.0, %v6364
      %v6366 = vpop.f32.mrf.mxu0
      %v6367 = vpop.f32.mrf.mxu0
      %v6368 = vpop.f32.mrf.mxu0
      %6369 = vdwg.mxu0
      %v6370 = vadd.f32 %v6176, %v6333
      %v6371 = vadd.f32 %v6177, %v6336
      %v6372 = vadd.f32 %v6178, %v6341
      %v6373 = vadd.f32 %v6179, %v6344
      %v6374 = vadd.f32 %v6180, %v6349
      %v6375 = vadd.f32 %v6181, %v6352
      %v6376 = vadd.f32 %v6182, %v6357
      %v6377 = vadd.f32 %v6183, %v6360
      %v6378 = vadd.f32 %v6184, %v6365
      %v6379 = vld [vmem:[%s5131 + $0x2c] sm:$0xe]
      %v6380 = vld [vmem:[%s5131 + $0x30] sm:$0xf]
      %v6381 = vld [vmem:[%s5131 + $0x34] sm:$0xf]
      %v6382 = vld [vmem:[%s5131 + $0x38] sm:$0xf]
      %v6383 = vld [vmem:[%s5131 + $0x3c] sm:$0xf]
      %v6384 = vld [vmem:[%s5131 + $0x40] sm:$0xf]
      %v6385 = vld [vmem:[%s5131 + $0x44] sm:$0xf]
      %v6386 = vld [vmem:[%s5131 + $0x48] sm:$0xf]
      %v6387 = vld [vmem:[%s5131 + $0x4c] sm:$0xf]
      %v6388 = vld [vmem:[%s5131 + $0x50] sm:$0x1]
      %v6389 = vld [vmem:[%s1483] sm:$0xf]
      %v6390 = vld [vmem:[%s1483 + $0x4] sm:$0xf]
      %v6391 = vld [vmem:[%s1483 + $0x8] sm:$0xf]
      %v6392 = vld [vmem:[%s1483 + $0xc] sm:$0xf]
      %v6393 = vld [vmem:[%s1483 + $0x10] sm:$0xf]
      %v6394 = vld [vmem:[%s1483 + $0x14] sm:$0xf]
      %v6405 = vunpack.c.l.b16 %v6379
      %v6406 = vunpack.c.l.b16 %v6380
      %v6407 = vunpack.c.l.b16 %v6381
      %v6408 = vunpack.c.l.b16 %v6382
      %v6409 = vunpack.c.l.b16 %v6383
      %v6410 = vunpack.c.l.b16 %v6384
      %v6411 = vunpack.c.l.b16 %v6385
      %v6412 = vunpack.c.l.b16 %v6386
      %v6413 = vunpack.c.l.b16 %v6387
      %v6414 = vunpack.c.l.b16 %v6388
      %v6415 = vpack.c.b16 %v6406, %v6405
      %v6416 = vpack.c.b16 %v6408, %v6407
      %v6417 = vpack.c.b16 %v6410, %v6409
      %v6418 = vpack.c.b16 %v6412, %v6411
      %v6419 = vpack.c.b16 %v6414, %v6413
      %v6420 = vrot.slane %v6415, 1
      %v6421 = vrot.slane %v6416, 1
      %v6422 = vsel %vm784, %v6420, %v6421
      %v6423 = vrot.slane %v6417, 1
      %v6424 = vsel %vm784, %v6421, %v6423
      %v6425 = vrot.slane %v6418, 1
      %v6426 = vsel %vm784, %v6423, %v6425
      %v6427 = vrot.slane %v6419, 1
      %v6428 = vsel %vm784, %v6425, %v6427
      %v6435 = vunpack.c.l.b16 %v6389
      %v6436 = vunpack.c.l.b16 %v6390
      %v6437 = vunpack.c.l.b16 %v6391
      %v6438 = vunpack.c.l.b16 %v6392
      %v6439 = vunpack.c.l.b16 %v6393
      %v6440 = vunpack.c.l.b16 %v6394
      %v6441 = vpack.c.b16 %v6436, %v6435
      %v6442 = vpack.c.b16 %v6438, %v6437
      %v6443 = vpack.c.b16 %v6440, %v6439
      %v6448 = vsel %vm331, %v6422, 0
      %v6451 = vsel %vm331, %v6424, 0
      %v6454 = vsel %vm331, %v6426, 0
      %v6457 = vsel %vm331, %v6428, 0
      %v6460 = vsel %vm331, %v6427, 0
      %6462 = vmatprep.subr.bf16.mxu0 0
      %6463 = vmatpush1.bf16.msra.mxu0 0
      %6464 = vmatprep.subr.bf16.mxu0 0
      %6465 = vmatpush1.bf16.msra.mxu0 0
      %6466 = vmatprep.subr.bf16.mxu0 0
      %6467 = vmatpush1.bf16.msra.mxu0 0
      %6468 = vmatprep.subr.bf16.mxu0 0
      %6469 = vmatpush1.bf16.msra.mxu0 0
      %6470 = vmatprep.subr.bf16.mxu0 0
      %6471 = vmatpush1.bf16.msra.mxu0 0
      %6472 = vmatprep.subr.bf16.mxu0 0
      %6473 = vmatpush1.bf16.msra.mxu0 %v6443
      %6474 = vmatprep.subr.bf16.mxu0 0
      %6475 = vmatpush1.bf16.msra.mxu0 %v6442
      %6476 = vmatprep.subr.bf16.mxu0 0
      %6477 = vmatpush1.bf16.msra.mxu0 %v6441
      %6478 = vmatprep.subr.bf16.mxu0 0
      %6479 = vmatpush2.bf16.msra.mxu0 0
      %6480 = vmatprep.subr.bf16.mxu0 0
      %6481 = vmatpush2.bf16.msra.mxu0 0
      %6482 = vmatprep.subr.bf16.mxu0 0
      %6483 = vmatpush2.bf16.msra.mxu0 0
      %6484 = vmatprep.subr.bf16.mxu0 0
      %6485 = vmatpush2.bf16.msra.mxu0 0
      %6486 = vmatprep.subr.bf16.mxu0 0
      %6487 = vmatpush2.bf16.msra.mxu0 0
      %6488 = vmatprep.subr.bf16.mxu0 0
      %6489 = vmatpush2.bf16.msra.mxu0 0
      %6490 = vmatprep.subr.bf16.mxu0 0
      %6491 = vmatpush2.bf16.msra.mxu0 0
      %6492 = vmatprep.subr.bf16.mxu0 0
      %6493 = vmatpush2.bf16.msra.mxu0 0
      %6494 = vmatprep.mubr.bf16.mxu0 0
      %6495 = vmatmul.mubr.bf16.gmra.mxu0 %v6448
      %v6496 = vpop.f32.mrf.mxu0
      %v6497 = vadd.f32 0.0, %v6496
      %v6498 = vpop.f32.mrf.mxu0
      %v6499 = vpop.f32.mrf.mxu0
      %v6500 = vadd.f32 0.0, %v6499
      %v6501 = vpop.f32.mrf.mxu0
      %6502 = vmatprep.mubr.bf16.mxu0 0
      %6503 = vmatmul.mubr.bf16.gmra.mxu0 %v6451
      %v6504 = vpop.f32.mrf.mxu0
      %v6505 = vadd.f32 0.0, %v6504
      %v6506 = vpop.f32.mrf.mxu0
      %v6507 = vpop.f32.mrf.mxu0
      %v6508 = vadd.f32 0.0, %v6507
      %v6509 = vpop.f32.mrf.mxu0
      %6510 = vmatprep.mubr.bf16.mxu0 0
      %6511 = vmatmul.mubr.bf16.gmra.mxu0 %v6454
      %v6512 = vpop.f32.mrf.mxu0
      %v6513 = vadd.f32 0.0, %v6512
      %v6514 = vpop.f32.mrf.mxu0
      %v6515 = vpop.f32.mrf.mxu0
      %v6516 = vadd.f32 0.0, %v6515
      %v6517 = vpop.f32.mrf.mxu0
      %6518 = vmatprep.mubr.bf16.mxu0 0
      %6519 = vmatmul.mubr.bf16.gmra.mxu0 %v6457
      %v6520 = vpop.f32.mrf.mxu0
      %v6521 = vadd.f32 0.0, %v6520
      %v6522 = vpop.f32.mrf.mxu0
      %v6523 = vpop.f32.mrf.mxu0
      %v6524 = vadd.f32 0.0, %v6523
      %v6525 = vpop.f32.mrf.mxu0
      %6526 = vmatprep.mubr.bf16.mxu0 0
      %6527 = vmatmul.mubr.bf16.gmra.mxu0 %v6460
      %v6528 = vpop.f32.mrf.mxu0
      %v6529 = vadd.f32 0.0, %v6528
      %v6530 = vpop.f32.mrf.mxu0
      %v6531 = vpop.f32.mrf.mxu0
      %v6532 = vpop.f32.mrf.mxu0
      %6533 = vdwg.mxu0
      %v6534 = vadd.f32 %v6370, %v6497
      %v6535 = vadd.f32 %v6371, %v6500
      %v6536 = vadd.f32 %v6372, %v6505
      %v6537 = vadd.f32 %v6373, %v6508
      %v6538 = vadd.f32 %v6374, %v6513
      %v6539 = vadd.f32 %v6375, %v6516
      %v6540 = vadd.f32 %v6376, %v6521
      %v6541 = vadd.f32 %v6377, %v6524
      %v6542 = vadd.f32 %v6378, %v6529
      %v6543 = vld [vmem:[%s5131 + $0x4] sm:$0xe]
      %v6544 = vld [vmem:[%s1639] sm:$0xf]
      %v6545 = vld [vmem:[%s1639 + $0x4] sm:$0xf]
      %v6546 = vld [vmem:[%s1639 + $0x8] sm:$0xf]
      %v6547 = vld [vmem:[%s1639 + $0xc] sm:$0xf]
      %v6548 = vld [vmem:[%s1639 + $0x10] sm:$0xf]
      %v6549 = vld [vmem:[%s1639 + $0x14] sm:$0xf]
      %v6551 = vunpack.c.l.b16 %v6543
      %v6552 = vpack.c.b16 %v6212, %v6551
      %v6553 = vrot.slane %v6552, 1
      %v6554 = vrot.slane %v6222, 1
      %v6555 = vsel %vm784, %v6553, %v6554
      %v6556 = vrot.slane %v6223, 1
      %v6557 = vsel %vm784, %v6554, %v6556
      %v6558 = vrot.slane %v6224, 1
      %v6559 = vsel %vm784, %v6556, %v6558
      %v6560 = vrot.slane %v6225, 1
      %v6561 = vsel %vm784, %v6558, %v6560
      %v6568 = vunpack.c.l.b16 %v6544
      %v6569 = vunpack.c.l.b16 %v6545
      %v6570 = vunpack.c.l.b16 %v6546
      %v6571 = vunpack.c.l.b16 %v6547
      %v6572 = vunpack.c.l.b16 %v6548
      %v6573 = vunpack.c.l.b16 %v6549
      %v6574 = vpack.c.b16 %v6569, %v6568
      %v6575 = vpack.c.b16 %v6571, %v6570
      %v6576 = vpack.c.b16 %v6573, %v6572
      %v6581 = vsel %vm331, %v6555, 0
      %v6584 = vsel %vm331, %v6557, 0
      %v6587 = vsel %vm331, %v6559, 0
      %v6590 = vsel %vm331, %v6561, 0
      %v6593 = vsel %vm331, %v6560, 0
      %6595 = vmatprep.subr.bf16.mxu0 0
      %6596 = vmatpush1.bf16.msra.mxu0 0
      %6597 = vmatprep.subr.bf16.mxu0 0
      %6598 = vmatpush1.bf16.msra.mxu0 0
      %6599 = vmatprep.subr.bf16.mxu0 0
      %6600 = vmatpush1.bf16.msra.mxu0 0
      %6601 = vmatprep.subr.bf16.mxu0 0
      %6602 = vmatpush1.bf16.msra.mxu0 0
      %6603 = vmatprep.subr.bf16.mxu0 0
      %6604 = vmatpush1.bf16.msra.mxu0 0
      %6605 = vmatprep.subr.bf16.mxu0 0
      %6606 = vmatpush1.bf16.msra.mxu0 %v6576
      %6607 = vmatprep.subr.bf16.mxu0 0
      %6608 = vmatpush1.bf16.msra.mxu0 %v6575
      %6609 = vmatprep.subr.bf16.mxu0 0
      %6610 = vmatpush1.bf16.msra.mxu0 %v6574
      %6611 = vmatprep.subr.bf16.mxu0 0
      %6612 = vmatpush2.bf16.msra.mxu0 0
      %6613 = vmatprep.subr.bf16.mxu0 0
      %6614 = vmatpush2.bf16.msra.mxu0 0
      %6615 = vmatprep.subr.bf16.mxu0 0
      %6616 = vmatpush2.bf16.msra.mxu0 0
      %6617 = vmatprep.subr.bf16.mxu0 0
      %6618 = vmatpush2.bf16.msra.mxu0 0
      %6619 = vmatprep.subr.bf16.mxu0 0
      %6620 = vmatpush2.bf16.msra.mxu0 0
      %6621 = vmatprep.subr.bf16.mxu0 0
      %6622 = vmatpush2.bf16.msra.mxu0 0
      %6623 = vmatprep.subr.bf16.mxu0 0
      %6624 = vmatpush2.bf16.msra.mxu0 0
      %6625 = vmatprep.subr.bf16.mxu0 0
      %6626 = vmatpush2.bf16.msra.mxu0 0
      %6627 = vmatprep.mubr.bf16.mxu0 0
      %6628 = vmatmul.mubr.bf16.gmra.mxu0 %v6581
      %v6629 = vpop.f32.mrf.mxu0
      %v6630 = vadd.f32 0.0, %v6629
      %v6631 = vpop.f32.mrf.mxu0
      %v6632 = vpop.f32.mrf.mxu0
      %v6633 = vadd.f32 0.0, %v6632
      %v6634 = vpop.f32.mrf.mxu0
      %6635 = vmatprep.mubr.bf16.mxu0 0
      %6636 = vmatmul.mubr.bf16.gmra.mxu0 %v6584
      %v6637 = vpop.f32.mrf.mxu0
      %v6638 = vadd.f32 0.0, %v6637
      %v6639 = vpop.f32.mrf.mxu0
      %v6640 = vpop.f32.mrf.mxu0
      %v6641 = vadd.f32 0.0, %v6640
      %v6642 = vpop.f32.mrf.mxu0
      %6643 = vmatprep.mubr.bf16.mxu0 0
      %6644 = vmatmul.mubr.bf16.gmra.mxu0 %v6587
      %v6645 = vpop.f32.mrf.mxu0
      %v6646 = vadd.f32 0.0, %v6645
      %v6647 = vpop.f32.mrf.mxu0
      %v6648 = vpop.f32.mrf.mxu0
      %v6649 = vadd.f32 0.0, %v6648
      %v6650 = vpop.f32.mrf.mxu0
      %6651 = vmatprep.mubr.bf16.mxu0 0
      %6652 = vmatmul.mubr.bf16.gmra.mxu0 %v6590
      %v6653 = vpop.f32.mrf.mxu0
      %v6654 = vadd.f32 0.0, %v6653
      %v6655 = vpop.f32.mrf.mxu0
      %v6656 = vpop.f32.mrf.mxu0
      %v6657 = vadd.f32 0.0, %v6656
      %v6658 = vpop.f32.mrf.mxu0
      %6659 = vmatprep.mubr.bf16.mxu0 0
      %6660 = vmatmul.mubr.bf16.gmra.mxu0 %v6593
      %v6661 = vpop.f32.mrf.mxu0
      %v6662 = vadd.f32 0.0, %v6661
      %v6663 = vpop.f32.mrf.mxu0
      %v6664 = vpop.f32.mrf.mxu0
      %v6665 = vpop.f32.mrf.mxu0
      %6666 = vdwg.mxu0
      %v6667 = vadd.f32 %v6534, %v6630
      %v6668 = vadd.f32 %v6535, %v6633
      %v6669 = vadd.f32 %v6536, %v6638
      %v6670 = vadd.f32 %v6537, %v6641
      %v6671 = vadd.f32 %v6538, %v6646
      %v6672 = vadd.f32 %v6539, %v6649
      %v6673 = vadd.f32 %v6540, %v6654
      %v6674 = vadd.f32 %v6541, %v6657
      %v6675 = vadd.f32 %v6542, %v6662
      %v6676 = vld [vmem:[%s2] sm:$0x1]
      %v6678 = vlaneseq
      %v6679 = vshrl.u32 %v6678, 7
      %v6680 = vsub.s32 0, %v6679
      %v6681 = vrot.slane %v6676, %v6680
      %v6683 = vadd.f32 %v6667, %v6681
      %v6684 = vadd.f32 %v6668, %v6681
      %v6685 = vadd.f32 %v6669, %v6681
      %v6686 = vadd.f32 %v6670, %v6681
      %v6687 = vadd.f32 %v6671, %v6681
      %v6688 = vadd.f32 %v6672, %v6681
      %v6689 = vadd.f32 %v6673, %v6681
      %v6690 = vadd.f32 %v6674, %v6681
      %v6691 = vadd.f32 %v6675, %v6681
      %vm6692 = vcmp.ge.f32.partialorder %v6683, 0.0
      %vm6693 = vcmp.ge.f32.partialorder %v6684, 0.0
      %vm6694 = vcmp.ge.f32.partialorder %v6685, 0.0
      %vm6695 = vcmp.ge.f32.partialorder %v6686, 0.0
      %vm6696 = vcmp.ge.f32.partialorder %v6687, 0.0
      %vm6697 = vcmp.ge.f32.partialorder %v6688, 0.0
      %vm6698 = vcmp.ge.f32.partialorder %v6689, 0.0
      %vm6699 = vcmp.ge.f32.partialorder %v6690, 0.0
      %vm6700 = vcmp.ge.f32.partialorder %v6691, 0.0
      %v6701 = vmul.f32 %v6683, 0.2
      %v6702 = vmul.f32 %v6684, 0.2
      %v6703 = vmul.f32 %v6685, 0.2
      %v6704 = vmul.f32 %v6686, 0.2
      %v6705 = vmul.f32 %v6687, 0.2
      %v6706 = vmul.f32 %v6688, 0.2
      %v6707 = vmul.f32 %v6689, 0.2
      %v6708 = vmul.f32 %v6690, 0.2
      %v6709 = vmul.f32 %v6691, 0.2
      %v6710 = vsel %vm6692, %v6683, %v6701
      %v6711 = vsel %vm6693, %v6684, %v6702
      %v6712 = vsel %vm6694, %v6685, %v6703
      %v6713 = vsel %vm6695, %v6686, %v6704
      %v6714 = vsel %vm6696, %v6687, %v6705
      %v6715 = vsel %vm6697, %v6688, %v6706
      %v6716 = vsel %vm6698, %v6689, %v6707
      %v6717 = vsel %vm6699, %v6690, %v6708
      %v6718 = vsel %vm6700, %v6691, %v6709
      %v6719 = vpack.c.bf16 %v6711, %v6710
      %v6720 = vpack.c.bf16 %v6713, %v6712
      %v6721 = vpack.c.bf16 %v6715, %v6714
      %v6722 = vpack.c.bf16 %v6717, %v6716
      %v6723 = vpack.c.bf16 %v6718, %v6718
      %v6729 = vunpack.c.l.b16 %v6719
      %v6730 = vunpack.c.h.b16 %v6719
      %v6731 = vunpack.c.l.b16 %v6720
      %v6732 = vunpack.c.h.b16 %v6720
      %v6733 = vunpack.c.l.b16 %v6721
      %v6734 = vunpack.c.h.b16 %v6721
      %v6735 = vunpack.c.l.b16 %v6722
      %v6736 = vunpack.c.h.b16 %v6722
      %v6737 = vunpack.c.l.b16 %v6723
      %v6738 = vpack.c.b16 %v6729, %v6729
      %v6739 = vpack.c.b16 %v6730, %v6730
      %v6740 = vpack.c.b16 %v6731, %v6731
      %v6741 = vpack.c.b16 %v6732, %v6732
      %v6742 = vpack.c.b16 %v6733, %v6733
      %v6743 = vpack.c.b16 %v6734, %v6734
      %v6744 = vpack.c.b16 %v6735, %v6735
      %v6745 = vpack.c.b16 %v6736, %v6736
      %v6746 = vpack.c.b16 %v6737, %v6737
      %s6756 = scalar_lea.vmem %s213, 108
      %6757 = vst [vmem:[%s6756] sm:$0xf] %v6738
      %6758 = vst [vmem:[%s6756 + $0x4] sm:$0xf] %v6739
      %6759 = vst [vmem:[%s6756 + $0x8] sm:$0xf] %v6740
      %6760 = vst [vmem:[%s6756 + $0xc] sm:$0xf] %v6741
      %6761 = vst [vmem:[%s6756 + $0x10] sm:$0xf] %v6742
      %6762 = vst [vmem:[%s6756 + $0x14] sm:$0xf] %v6743
      %6763 = vst [vmem:[%s6756 + $0x18] sm:$0xf] %v6744
      %6764 = vst [vmem:[%s6756 + $0x1c] sm:$0xf] %v6745
      %6765 = vst [vmem:[%s6756 + $0x20] sm:$0xf] %v6746
      %s6766 = smul.u32 4, %s19
      %p6767 = scmp.lt.s32.totalorder %s18, 1
      %s6768 = scalar_select %p6767, %s18, 1
      %p6769 = scmp.lt.s32.totalorder %s6766, 3
      %s6770 = scalar_select %p6769, %s6766, 3
      %s6771 = smul.addr %s6770, 9
      %s6772 = smul.addr %s6768, 36
      %s6773 = sadd.s32 %s6771, %s6772
      %s6774 = smul.addr %s6773, 4
      %s6775 = scalar_lea.vmem %s3, %s6774
      // Predicated region
      $region33: #{d4_forward.6} parent=31 // pred_check
        %p6776 = pneg %p116
      $region34: #{d4_forward.6} parent=31 // pred_check_branch
        %6778 = sbr.rel (%p6776) target = $region36
      $region35: #{d4_forward.6} parent=31 // pred_region
        %s6779 = smul.u32 4, %s19
      $region36: #{d4_forward.6} parent=31 // pred_fallthru
        _
    $region32: #{d4_forward.6} parent=5 // pred_fallthru
      _
    %p6780 = scmp.le.s32.totalorder 2, %s9
    // Predicated region
    $region37: #{d4_forward.6} parent=5 // pred_check
      %p6781 = pneg %p6780
    $region38: #{d4_forward.6} parent=5 // pred_check_branch
      %6783 = sbr.rel (%p6781) target = $region40
    $region39: #{d4_forward.6} parent=5 // pred_region
      %s6784 = ssub.s32 %s9, 2
      // Predicated region
      $region41: #{d4_forward.6} parent=39 // pred_check
        %p6785 = pneg %p122
      $region42: #{d4_forward.6} parent=39 // pred_check_branch
        %6787 = sbr.rel (%p6785) target = $region44
      $region43: #{d4_forward.6} parent=39 // pred_region
        %s6788 = smul.u32 4, %s21
        %p6789 = scmp.lt.s32.totalorder %s20, 1
        %s6790 = scalar_select %p6789, %s20, 1
        %p6791 = scmp.lt.s32.totalorder %s6788, 3
        %s6792 = scalar_select %p6791, %s6788, 3
        %s6793 = smul.addr %s6792, 9
        %s6794 = smul.addr %s6790, 36
        %s6795 = sadd.s32 %s6793, %s6794
        %s6796 = smul.addr %s6795, 4
        %s6797 = scalar_lea.vmem %s3, %s6796
      $region44: #{d4_forward.6} parent=39 // pred_fallthru
        _
    $region40: #{d4_forward.6} parent=5 // pred_fallthru
      _
  $region6: #{d4_forward.6} parent=0 // loop_footer
    %s13 = sadd.s32 1, %s9
  $region7: #{d4_forward.6} parent=0 // loop_footer_branch
    %8 = sbr.rel target = $region3
  $region8: #{d4_forward.6} parent=0 // loop_exit
    _

// kernel: d4_forward.7
$region0: #{d4_forward.7}
  #allocation0 [shape = 'u32[]', space=smem, size = 0x4, offset = 0x4, fixed_abs, tag = 'smem constant byte address 0x4 - core index']
  #allocation1 [shape = 'u32[144,128]{1,0:T(1,128)}', space=vmem, size = 0x12000, scoped, tag = 'internal scratch']
  %s0 = inlined_call_operand.vmem [shape: bf16[1,1,128,432], index: 0, kind: input, shape index: {}]
  %s1 = inlined_call_operand.vmem [shape: bf16[1,432,128], index: 1, kind: input, shape index: {}]
  %s2 = inlined_call_operand.vmem [shape: f32[1,128], index: 2, kind: input, shape index: {}]
  %s3 = inlined_call_operand.vmem [shape: bf16[1,1,128,128], index: 3, kind: output, shape index: {}]
  %s4 = sld [smem:[#allocation0]]
  $region22: #{d4_forward.7} parent=0
    _
  %s6 = ssub.s32 1, %s4
  %s7 = scalar_select 0, %s6, %s4
  // Predicated region
  $region2: #{d4_forward.7} parent=0 // pred_check
    _
  $region3: #{d4_forward.7} parent=0 // pred_check_branch
    %9 = sbr.rel (0) target = $region5
  $region4: #{d4_forward.7} parent=0 // pred_region
    _
  $region5: #{d4_forward.7} parent=0 // pred_fallthru
    _
  // Predicated region
  $region6: #{d4_forward.7} parent=0 // pred_check
    _
  $region7: #{d4_forward.7} parent=0 // pred_check_branch
    %11 = sbr.rel (0) target = $region9
  $region8: #{d4_forward.7} parent=0 // pred_region
    _
  $region9: #{d4_forward.7} parent=0 // pred_fallthru
    _
  // Predicated region
  $region10: #{d4_forward.7} parent=0 // pred_check
    _
  $region11: #{d4_forward.7} parent=0 // pred_check_branch
    %13 = sbr.rel (0) target = $region13
  $region12: #{d4_forward.7} parent=0 // pred_region
    _
  $region13: #{d4_forward.7} parent=0 // pred_fallthru
    _
  %v15 = vld [vmem:[%s0] sm:$0xff]
  %v16 = vld [vmem:[%s0 + $0x8] sm:$0xff]
  %v17 = vld [vmem:[%s0 + $0x10] sm:$0xff]
  %v18 = vld [vmem:[%s0 + $0x18] sm:$0xff]
  %v19 = vld [vmem:[%s0 + $0x20] sm:$0xff]
  %v20 = vld [vmem:[%s0 + $0x28] sm:$0xff]
  %v21 = vld [vmem:[%s0 + $0x30] sm:$0xff]
  %v22 = vld [vmem:[%s0 + $0x38] sm:$0xff]
  %v23 = vld [vmem:[%s0 + $0x40] sm:$0xff]
  %v24 = vld [vmem:[%s0 + $0x48] sm:$0xff]
  %v25 = vld [vmem:[%s0 + $0x50] sm:$0xff]
  %v26 = vld [vmem:[%s0 + $0x58] sm:$0xff]
  %v27 = vld [vmem:[%s0 + $0x60] sm:$0xff]
  %v28 = vld [vmem:[%s0 + $0x68] sm:$0xff]
  %v29 = vld [vmem:[%s0 + $0x70] sm:$0xff]
  %v30 = vld [vmem:[%s0 + $0x78] sm:$0xff]
  %v31 = vld [vmem:[%s0 + $0x80] sm:$0xff]
  %v32 = vld [vmem:[%s0 + $0x88] sm:$0xff]
  %v33 = vld [vmem:[%s0 + $0x90] sm:$0xff]
  %v34 = vld [vmem:[%s0 + $0x98] sm:$0xff]
  %v35 = vld [vmem:[%s0 + $0xa0] sm:$0xff]
  %v36 = vld [vmem:[%s0 + $0xa8] sm:$0xff]
  %v37 = vld [vmem:[%s0 + $0xb0] sm:$0xff]
  %v38 = vld [vmem:[%s0 + $0xb8] sm:$0xff]
  %v39 = vld [vmem:[%s0 + $0xc0] sm:$0xff]
  %v40 = vld [vmem:[%s0 + $0xc8] sm:$0xff]
  %v41 = vld [vmem:[%s0 + $0xd0] sm:$0xff]
  %v42 = vld [vmem:[%s0 + $0xd8] sm:$0xff]
  %v43 = vld [vmem:[%s0 + $0xe0] sm:$0xff]
  %v44 = vld [vmem:[%s0 + $0xe8] sm:$0xff]
  %v45 = vld [vmem:[%s0 + $0xf0] sm:$0xff]
  %v46 = vld [vmem:[%s0 + $0xf8] sm:$0xff]
  %v47 = vld [vmem:[%s1] sm:$0xf]
  %v48 = vld [vmem:[%s1 + $0x4] sm:$0xf]
  %v49 = vld [vmem:[%s1 + $0x8] sm:$0xf]
  %v50 = vld [vmem:[%s1 + $0xc] sm:$0xf]
  %v51 = vld [vmem:[%s1 + $0x10] sm:$0xf]
  %v52 = vld [vmem:[%s1 + $0x14] sm:$0xf]
  %v53 = vld [vmem:[%s1 + $0x18] sm:$0xf]
  %v54 = vld [vmem:[%s1 + $0x1c] sm:$0xf]
  %v55 = vld [vmem:[%s1 + $0x20] sm:$0xf]
  %v56 = vld [vmem:[%s1 + $0x24] sm:$0xf]
  %v57 = vld [vmem:[%s1 + $0x28] sm:$0xf]
  %v58 = vld [vmem:[%s1 + $0x2c] sm:$0xf]
  %v59 = vld [vmem:[%s1 + $0x30] sm:$0xf]
  %v60 = vld [vmem:[%s1 + $0x34] sm:$0xf]
  %v61 = vld [vmem:[%s1 + $0x38] sm:$0xf]
  %v62 = vld [vmem:[%s1 + $0x3c] sm:$0xf]
  %v63 = vld [vmem:[%s1 + $0x40] sm:$0xf]
  %v64 = vld [vmem:[%s1 + $0x44] sm:$0xf]
  %v65 = vld [vmem:[%s1 + $0x48] sm:$0xf]
  %v66 = vld [vmem:[%s1 + $0x4c] sm:$0xf]
  %v67 = vld [vmem:[%s1 + $0x50] sm:$0xf]
  %v68 = vld [vmem:[%s1 + $0x54] sm:$0xf]
  %v69 = vld [vmem:[%s1 + $0x58] sm:$0xf]
  %v70 = vld [vmem:[%s1 + $0x5c] sm:$0xf]
  %v71 = vld [vmem:[%s1 + $0x60] sm:$0xf]
  %v72 = vld [vmem:[%s1 + $0x64] sm:$0xf]
  %v73 = vld [vmem:[%s1 + $0x68] sm:$0xf]
  %v74 = vld [vmem:[%s1 + $0x6c] sm:$0xf]
  %v75 = vld [vmem:[%s1 + $0x70] sm:$0xf]
  %v76 = vld [vmem:[%s1 + $0x74] sm:$0xf]
  %v77 = vld [vmem:[%s1 + $0x78] sm:$0xf]
  %v78 = vld [vmem:[%s1 + $0x7c] sm:$0xf]
  %v79 = vld [vmem:[%s1 + $0x80] sm:$0xf]
  %v80 = vld [vmem:[%s1 + $0x84] sm:$0xf]
  %v81 = vld [vmem:[%s1 + $0x88] sm:$0xf]
  %v82 = vld [vmem:[%s1 + $0x8c] sm:$0xf]
  %v83 = vld [vmem:[%s1 + $0x90] sm:$0xf]
  %v84 = vld [vmem:[%s1 + $0x94] sm:$0xf]
  %v85 = vld [vmem:[%s1 + $0x98] sm:$0xf]
  %v86 = vld [vmem:[%s1 + $0x9c] sm:$0xf]
  %v87 = vld [vmem:[%s1 + $0xa0] sm:$0xf]
  %v88 = vld [vmem:[%s1 + $0xa4] sm:$0xf]
  %v89 = vld [vmem:[%s1 + $0xa8] sm:$0xf]
  %v90 = vld [vmem:[%s1 + $0xac] sm:$0xf]
  %v91 = vld [vmem:[%s1 + $0xb0] sm:$0xf]
  %v92 = vld [vmem:[%s1 + $0xb4] sm:$0xf]
  %v93 = vld [vmem:[%s1 + $0xb8] sm:$0xf]
  %v94 = vld [vmem:[%s1 + $0xbc] sm:$0xf]
  %v95 = vld [vmem:[%s1 + $0xc0] sm:$0xf]
  %v96 = vld [vmem:[%s1 + $0xc4] sm:$0xf]
  %v97 = vld [vmem:[%s1 + $0xc8] sm:$0xf]
  %v98 = vld [vmem:[%s1 + $0xcc] sm:$0xf]
  %v99 = vld [vmem:[%s1 + $0xd0] sm:$0xf]
  %v100 = vld [vmem:[%s1 + $0xd4] sm:$0xf]
  %v101 = vld [vmem:[%s2] sm:$0x1]
  %v103 = vlaneseq
  %v104 = vshrl.u32 %v103, 7
  %v105 = vsub.s32 0, %v104
  %v106 = vrot.slane %v101, %v105
  %v140 = vunpack.c.l.b16 %v15
  %v141 = vunpack.c.h.b16 %v15
  %v142 = vunpack.c.l.b16 %v16
  %v143 = vunpack.c.h.b16 %v16
  %v144 = vunpack.c.l.b16 %v17
  %v145 = vunpack.c.h.b16 %v17
  %v146 = vunpack.c.l.b16 %v18
  %v147 = vunpack.c.h.b16 %v18
  %v148 = vunpack.c.l.b16 %v19
  %v149 = vunpack.c.h.b16 %v19
  %v150 = vunpack.c.l.b16 %v20
  %v151 = vunpack.c.h.b16 %v20
  %v152 = vunpack.c.l.b16 %v21
  %v153 = vunpack.c.h.b16 %v21
  %v154 = vunpack.c.l.b16 %v22
  %v155 = vunpack.c.h.b16 %v22
  %v156 = vunpack.c.l.b16 %v23
  %v157 = vunpack.c.h.b16 %v23
  %v158 = vunpack.c.l.b16 %v24
  %v159 = vunpack.c.h.b16 %v24
  %v160 = vunpack.c.l.b16 %v25
  %v161 = vunpack.c.h.b16 %v25
  %v162 = vunpack.c.l.b16 %v26
  %v163 = vunpack.c.h.b16 %v26
  %v164 = vunpack.c.l.b16 %v27
  %v165 = vunpack.c.h.b16 %v27
  %v166 = vunpack.c.l.b16 %v28
  %v167 = vunpack.c.h.b16 %v28
  %v168 = vunpack.c.l.b16 %v29
  %v169 = vunpack.c.h.b16 %v29
  %v170 = vunpack.c.l.b16 %v30
  %v171 = vunpack.c.h.b16 %v30
  %v172 = vunpack.c.l.b16 %v31
  %v173 = vunpack.c.h.b16 %v31
  %v174 = vunpack.c.l.b16 %v32
  %v175 = vunpack.c.h.b16 %v32
  %v176 = vunpack.c.l.b16 %v33
  %v177 = vunpack.c.h.b16 %v33
  %v178 = vunpack.c.l.b16 %v34
  %v179 = vunpack.c.h.b16 %v34
  %v180 = vunpack.c.l.b16 %v35
  %v181 = vunpack.c.h.b16 %v35
  %v182 = vunpack.c.l.b16 %v36
  %v183 = vunpack.c.h.b16 %v36
  %v184 = vunpack.c.l.b16 %v37
  %v185 = vunpack.c.h.b16 %v37
  %v186 = vunpack.c.l.b16 %v38
  %v187 = vunpack.c.h.b16 %v38
  %v188 = vunpack.c.l.b16 %v39
  %v189 = vunpack.c.h.b16 %v39
  %v190 = vunpack.c.l.b16 %v40
  %v191 = vunpack.c.h.b16 %v40
  %v192 = vunpack.c.l.b16 %v41
  %v193 = vunpack.c.h.b16 %v41
  %v194 = vunpack.c.l.b16 %v42
  %v195 = vunpack.c.h.b16 %v42
  %v196 = vunpack.c.l.b16 %v43
  %v197 = vunpack.c.h.b16 %v43
  %v198 = vunpack.c.l.b16 %v44
  %v199 = vunpack.c.h.b16 %v44
  %v200 = vunpack.c.l.b16 %v45
  %v201 = vunpack.c.h.b16 %v45
  %v202 = vunpack.c.l.b16 %v46
  %v203 = vunpack.c.h.b16 %v46
  %v204 = vpack.c.b16 %v144, %v140
  %v205 = vpack.c.b16 %v145, %v141
  %v206 = vpack.c.b16 %v146, %v142
  %v207 = vpack.c.b16 %v147, %v143
  %v208 = vpack.c.b16 %v152, %v148
  %v209 = vpack.c.b16 %v153, %v149
  %v210 = vpack.c.b16 %v154, %v150
  %v211 = vpack.c.b16 %v155, %v151
  %v212 = vpack.c.b16 %v160, %v156
  %v213 = vpack.c.b16 %v161, %v157
  %v214 = vpack.c.b16 %v162, %v158
  %v215 = vpack.c.b16 %v163, %v159
  %v216 = vpack.c.b16 %v168, %v164
  %v217 = vpack.c.b16 %v169, %v165
  %v218 = vpack.c.b16 %v170, %v166
  %v219 = vpack.c.b16 %v171, %v167
  %v220 = vpack.c.b16 %v176, %v172
  %v221 = vpack.c.b16 %v177, %v173
  %v222 = vpack.c.b16 %v178, %v174
  %v223 = vpack.c.b16 %v179, %v175
  %v224 = vpack.c.b16 %v184, %v180
  %v225 = vpack.c.b16 %v185, %v181
  %v226 = vpack.c.b16 %v186, %v182
  %v227 = vpack.c.b16 %v187, %v183
  %v228 = vpack.c.b16 %v192, %v188
  %v229 = vpack.c.b16 %v193, %v189
  %v230 = vpack.c.b16 %v194, %v190
  %v231 = vpack.c.b16 %v195, %v191
  %v232 = vpack.c.b16 %v200, %v196
  %v233 = vpack.c.b16 %v201, %v197
  %v234 = vpack.c.b16 %v202, %v198
  %v235 = vpack.c.b16 %v203, %v199
  %v314 = vunpack.c.l.b16 %v47
  %v315 = vunpack.c.l.b16 %v48
  %v316 = vunpack.c.l.b16 %v49
  %v317 = vunpack.c.l.b16 %v50
  %v318 = vunpack.c.l.b16 %v51
  %v319 = vunpack.c.l.b16 %v52
  %v320 = vunpack.c.l.b16 %v53
  %v321 = vunpack.c.l.b16 %v54
  %v322 = vunpack.c.l.b16 %v55
  %v323 = vunpack.c.l.b16 %v56
  %v324 = vunpack.c.l.b16 %v57
  %v325 = vunpack.c.l.b16 %v58
  %v326 = vunpack.c.l.b16 %v59
  %v327 = vunpack.c.l.b16 %v60
  %v328 = vunpack.c.l.b16 %v61
  %v329 = vunpack.c.l.b16 %v62
  %v330 = vunpack.c.l.b16 %v63
  %v331 = vunpack.c.l.b16 %v64
  %v332 = vunpack.c.l.b16 %v65
  %v333 = vunpack.c.l.b16 %v66
  %v334 = vunpack.c.l.b16 %v67
  %v335 = vunpack.c.l.b16 %v68
  %v336 = vunpack.c.l.b16 %v69
  %v337 = vunpack.c.l.b16 %v70
  %v338 = vunpack.c.l.b16 %v71
  %v339 = vunpack.c.l.b16 %v72
  %v340 = vunpack.c.l.b16 %v73
  %v341 = vunpack.c.l.b16 %v74
  %v342 = vunpack.c.l.b16 %v75
  %v343 = vunpack.c.l.b16 %v76
  %v344 = vunpack.c.l.b16 %v77
  %v345 = vunpack.c.l.b16 %v78
  %v346 = vunpack.c.l.b16 %v79
  %v347 = vunpack.c.l.b16 %v80
  %v348 = vunpack.c.l.b16 %v81
  %v349 = vunpack.c.l.b16 %v82
  %v350 = vunpack.c.l.b16 %v83
  %v351 = vunpack.c.l.b16 %v84
  %v352 = vunpack.c.l.b16 %v85
  %v353 = vunpack.c.l.b16 %v86
  %v354 = vunpack.c.l.b16 %v87
  %v355 = vunpack.c.l.b16 %v88
  %v356 = vunpack.c.l.b16 %v89
  %v357 = vunpack.c.l.b16 %v90
  %v358 = vunpack.c.l.b16 %v91
  %v359 = vunpack.c.l.b16 %v92
  %v360 = vunpack.c.l.b16 %v93
  %v361 = vunpack.c.l.b16 %v94
  %v362 = vunpack.c.l.b16 %v95
  %v363 = vunpack.c.l.b16 %v96
  %v364 = vunpack.c.l.b16 %v97
  %v365 = vunpack.c.l.b16 %v98
  %v366 = vunpack.c.l.b16 %v99
  %v367 = vunpack.c.l.b16 %v100
  %v368 = vpack.c.b16 %v315, %v314
  %v369 = vpack.c.b16 %v317, %v316
  %v370 = vpack.c.b16 %v319, %v318
  %v371 = vpack.c.b16 %v321, %v320
  %v372 = vpack.c.b16 %v323, %v322
  %v373 = vpack.c.b16 %v325, %v324
  %v374 = vpack.c.b16 %v327, %v326
  %v375 = vpack.c.b16 %v329, %v328
  %v376 = vpack.c.b16 %v331, %v330
  %v377 = vpack.c.b16 %v333, %v332
  %v378 = vpack.c.b16 %v335, %v334
  %v379 = vpack.c.b16 %v337, %v336
  %v380 = vpack.c.b16 %v339, %v338
  %v381 = vpack.c.b16 %v341, %v340
  %v382 = vpack.c.b16 %v343, %v342
  %v383 = vpack.c.b16 %v345, %v344
  %v384 = vpack.c.b16 %v347, %v346
  %v385 = vpack.c.b16 %v349, %v348
  %v386 = vpack.c.b16 %v351, %v350
  %v387 = vpack.c.b16 %v353, %v352
  %v388 = vpack.c.b16 %v355, %v354
  %v389 = vpack.c.b16 %v357, %v356
  %v390 = vpack.c.b16 %v359, %v358
  %v391 = vpack.c.b16 %v361, %v360
  %v392 = vpack.c.b16 %v363, %v362
  %v393 = vpack.c.b16 %v365, %v364
  %v394 = vpack.c.b16 %v367, %v366
  %vm422 = vcmask 392192
  %v424 = vsel %vm422, %v207, 0
  %v427 = vsel %vm422, %v211, 0
  %v430 = vsel %vm422, %v215, 0
  %v433 = vsel %vm422, %v219, 0
  %v436 = vsel %vm422, %v223, 0
  %v439 = vsel %vm422, %v227, 0
  %v442 = vsel %vm422, %v231, 0
  %v445 = vsel %vm422, %v235, 0
  %447 = vmatprep.subr.bf16.mxu0 0
  %448 = vmatpush1.bf16.msra.mxu0 %v375
  %449 = vmatprep.subr.bf16.mxu0 0
  %450 = vmatpush1.bf16.msra.mxu0 %v374
  %451 = vmatprep.subr.bf16.mxu0 0
  %452 = vmatpush1.bf16.msra.mxu0 %v373
  %453 = vmatprep.subr.bf16.mxu0 0
  %454 = vmatpush1.bf16.msra.mxu0 %v372
  %455 = vmatprep.subr.bf16.mxu0 0
  %456 = vmatpush1.bf16.msra.mxu0 %v371
  %457 = vmatprep.subr.bf16.mxu0 0
  %458 = vmatpush1.bf16.msra.mxu0 %v370
  %459 = vmatprep.subr.bf16.mxu0 0
  %460 = vmatpush1.bf16.msra.mxu0 %v369
  %461 = vmatprep.subr.bf16.mxu0 0
  %462 = vmatpush1.bf16.msra.mxu0 %v368
  %463 = vmatprep.subr.bf16.mxu0 0
  %464 = vmatpush2.bf16.msra.mxu0 %v383
  %465 = vmatprep.subr.bf16.mxu0 0
  %466 = vmatpush2.bf16.msra.mxu0 %v382
  %467 = vmatprep.subr.bf16.mxu0 0
  %468 = vmatpush2.bf16.msra.mxu0 %v381
  %469 = vmatprep.subr.bf16.mxu0 0
  %470 = vmatpush2.bf16.msra.mxu0 %v380
  %471 = vmatprep.subr.bf16.mxu0 0
  %472 = vmatpush2.bf16.msra.mxu0 %v379
  %473 = vmatprep.subr.bf16.mxu0 0
  %474 = vmatpush2.bf16.msra.mxu0 %v378
  %475 = vmatprep.subr.bf16.mxu0 0
  %476 = vmatpush2.bf16.msra.mxu0 %v377
  %477 = vmatprep.subr.bf16.mxu0 0
  %478 = vmatpush2.bf16.msra.mxu0 %v376
  %479 = vmatprep.mubr.bf16.mxu0 %v205
  %480 = vmatmul.mubr.bf16.gmra.mxu0 %v204
  %v481 = vpop.f32.mrf.mxu0
  %v482 = vadd.f32 %v106, %v481
  %v483 = vpop.f32.mrf.mxu0
  %v484 = vpop.f32.mrf.mxu0
  %v485 = vadd.f32 %v106, %v484
  %v486 = vpop.f32.mrf.mxu0
  %487 = vmatprep.mubr.bf16.mxu0 %v209
  %488 = vmatmul.mubr.bf16.gmra.mxu0 %v208
  %v489 = vpop.f32.mrf.mxu0
  %v490 = vadd.f32 %v106, %v489
  %v491 = vpop.f32.mrf.mxu0
  %v492 = vpop.f32.mrf.mxu0
  %v493 = vadd.f32 %v106, %v492
  %v494 = vpop.f32.mrf.mxu0
  %495 = vmatprep.mubr.bf16.mxu0 %v213
  %496 = vmatmul.mubr.bf16.gmra.mxu0 %v212
  %v497 = vpop.f32.mrf.mxu0
  %v498 = vadd.f32 %v106, %v497
  %v499 = vpop.f32.mrf.mxu0
  %v500 = vpop.f32.mrf.mxu0
  %v501 = vadd.f32 %v106, %v500
  %v502 = vpop.f32.mrf.mxu0
  %503 = vmatprep.mubr.bf16.mxu0 %v217
  %504 = vmatmul.mubr.bf16.gmra.mxu0 %v216
  %v505 = vpop.f32.mrf.mxu0
  %v506 = vadd.f32 %v106, %v505
  %v507 = vpop.f32.mrf.mxu0
  %v508 = vpop.f32.mrf.mxu0
  %v509 = vadd.f32 %v106, %v508
  %v510 = vpop.f32.mrf.mxu0
  %511 = vmatprep.mubr.bf16.mxu0 %v221
  %512 = vmatmul.mubr.bf16.gmra.mxu0 %v220
  %v513 = vpop.f32.mrf.mxu0
  %v514 = vadd.f32 %v106, %v513
  %v515 = vpop.f32.mrf.mxu0
  %v516 = vpop.f32.mrf.mxu0
  %v517 = vadd.f32 %v106, %v516
  %v518 = vpop.f32.mrf.mxu0
  %519 = vmatprep.mubr.bf16.mxu0 %v225
  %520 = vmatmul.mubr.bf16.gmra.mxu0 %v224
  %v521 = vpop.f32.mrf.mxu0
  %v522 = vadd.f32 %v106, %v521
  %v523 = vpop.f32.mrf.mxu0
  %v524 = vpop.f32.mrf.mxu0
  %v525 = vadd.f32 %v106, %v524
  %v526 = vpop.f32.mrf.mxu0
  %527 = vmatprep.mubr.bf16.mxu0 %v229
  %528 = vmatmul.mubr.bf16.gmra.mxu0 %v228
  %v529 = vpop.f32.mrf.mxu0
  %v530 = vadd.f32 %v106, %v529
  %v531 = vpop.f32.mrf.mxu0
  %v532 = vpop.f32.mrf.mxu0
  %v533 = vadd.f32 %v106, %v532
  %v534 = vpop.f32.mrf.mxu0
  %535 = vmatprep.mubr.bf16.mxu0 %v233
  %536 = vmatmul.mubr.bf16.gmra.mxu0 %v232
  %v537 = vpop.f32.mrf.mxu0
  %v538 = vadd.f32 %v106, %v537
  %v539 = vpop.f32.mrf.mxu0
  %v540 = vpop.f32.mrf.mxu0
  %v541 = vadd.f32 %v106, %v540
  %v542 = vpop.f32.mrf.mxu0
  %543 = vdwg.mxu0
  %544 = vmatprep.subr.bf16.mxu0 0
  %545 = vmatpush1.bf16.msra.mxu0 %v391
  %546 = vmatprep.subr.bf16.mxu0 0
  %547 = vmatpush1.bf16.msra.mxu0 %v390
  %548 = vmatprep.subr.bf16.mxu0 0
  %549 = vmatpush1.bf16.msra.mxu0 %v389
  %550 = vmatprep.subr.bf16.mxu0 0
  %551 = vmatpush1.bf16.msra.mxu0 %v388
  %552 = vmatprep.subr.bf16.mxu0 0
  %553 = vmatpush1.bf16.msra.mxu0 %v387
  %554 = vmatprep.subr.bf16.mxu0 0
  %555 = vmatpush1.bf16.msra.mxu0 %v386
  %556 = vmatprep.subr.bf16.mxu0 0
  %557 = vmatpush1.bf16.msra.mxu0 %v385
  %558 = vmatprep.subr.bf16.mxu0 0
  %559 = vmatpush1.bf16.msra.mxu0 %v384
  %560 = vmatprep.subr.bf16.mxu0 0
  %561 = vmatpush2.bf16.msra.mxu0 0
  %562 = vmatprep.subr.bf16.mxu0 0
  %563 = vmatpush2.bf16.msra.mxu0 0
  %564 = vmatprep.subr.bf16.mxu0 0
  %565 = vmatpush2.bf16.msra.mxu0 0
  %566 = vmatprep.subr.bf16.mxu0 0
  %567 = vmatpush2.bf16.msra.mxu0 0
  %568 = vmatprep.subr.bf16.mxu0 0
  %569 = vmatpush2.bf16.msra.mxu0 0
  %570 = vmatprep.subr.bf16.mxu0 0
  %571 = vmatpush2.bf16.msra.mxu0 %v394
  %572 = vmatprep.subr.bf16.mxu0 0
  %573 = vmatpush2.bf16.msra.mxu0 %v393
  %574 = vmatprep.subr.bf16.mxu0 0
  %575 = vmatpush2.bf16.msra.mxu0 %v392
  %576 = vmatprep.mubr.bf16.mxu0 %v424
  %577 = vmatmul.mubr.bf16.gmra.mxu0 %v206
  %v578 = vpop.f32.mrf.mxu0
  %v579 = vadd.f32 %v482, %v578
  %v580 = vpop.f32.mrf.mxu0
  %v581 = vpop.f32.mrf.mxu0
  %v582 = vadd.f32 %v485, %v581
  %v583 = vpop.f32.mrf.mxu0
  %584 = vmatprep.mubr.bf16.mxu0 %v427
  %585 = vmatmul.mubr.bf16.gmra.mxu0 %v210
  %v586 = vpop.f32.mrf.mxu0
  %v587 = vadd.f32 %v490, %v586
  %v588 = vpop.f32.mrf.mxu0
  %v589 = vpop.f32.mrf.mxu0
  %v590 = vadd.f32 %v493, %v589
  %v591 = vpop.f32.mrf.mxu0
  %592 = vmatprep.mubr.bf16.mxu0 %v430
  %593 = vmatmul.mubr.bf16.gmra.mxu0 %v214
  %v594 = vpop.f32.mrf.mxu0
  %v595 = vadd.f32 %v498, %v594
  %v596 = vpop.f32.mrf.mxu0
  %v597 = vpop.f32.mrf.mxu0
  %v598 = vadd.f32 %v501, %v597
  %v599 = vpop.f32.mrf.mxu0
  %600 = vmatprep.mubr.bf16.mxu0 %v433
  %601 = vmatmul.mubr.bf16.gmra.mxu0 %v218
  %v602 = vpop.f32.mrf.mxu0
  %v603 = vadd.f32 %v506, %v602
  %v604 = vpop.f32.mrf.mxu0
  %v605 = vpop.f32.mrf.mxu0
  %v606 = vadd.f32 %v509, %v605
  %v607 = vpop.f32.mrf.mxu0
  %608 = vmatprep.mubr.bf16.mxu0 %v436
  %609 = vmatmul.mubr.bf16.gmra.mxu0 %v222
  %v610 = vpop.f32.mrf.mxu0
  %v611 = vadd.f32 %v514, %v610
  %v612 = vpop.f32.mrf.mxu0
  %v613 = vpop.f32.mrf.mxu0
  %v614 = vadd.f32 %v517, %v613
  %v615 = vpop.f32.mrf.mxu0
  %616 = vmatprep.mubr.bf16.mxu0 %v439
  %617 = vmatmul.mubr.bf16.gmra.mxu0 %v226
  %v618 = vpop.f32.mrf.mxu0
  %v619 = vadd.f32 %v522, %v618
  %v620 = vpop.f32.mrf.mxu0
  %v621 = vpop.f32.mrf.mxu0
  %v622 = vadd.f32 %v525, %v621
  %v623 = vpop.f32.mrf.mxu0
  %624 = vmatprep.mubr.bf16.mxu0 %v442
  %625 = vmatmul.mubr.bf16.gmra.mxu0 %v230
  %v626 = vpop.f32.mrf.mxu0
  %v627 = vadd.f32 %v530, %v626
  %v628 = vpop.f32.mrf.mxu0
  %v629 = vpop.f32.mrf.mxu0
  %v630 = vadd.f32 %v533, %v629
  %v631 = vpop.f32.mrf.mxu0
  %632 = vmatprep.mubr.bf16.mxu0 %v445
  %633 = vmatmul.mubr.bf16.gmra.mxu0 %v234
  %v634 = vpop.f32.mrf.mxu0
  %v635 = vadd.f32 %v538, %v634
  %v636 = vpop.f32.mrf.mxu0
  %v637 = vpop.f32.mrf.mxu0
  %v638 = vadd.f32 %v541, %v637
  %v639 = vpop.f32.mrf.mxu0
  %640 = vdwg.mxu0
  %vm641 = vcmp.ge.f32.partialorder %v579, 0.0
  %vm642 = vcmp.ge.f32.partialorder %v582, 0.0
  %vm643 = vcmp.ge.f32.partialorder %v587, 0.0
  %vm644 = vcmp.ge.f32.partialorder %v590, 0.0
  %vm645 = vcmp.ge.f32.partialorder %v595, 0.0
  %vm646 = vcmp.ge.f32.partialorder %v598, 0.0
  %vm647 = vcmp.ge.f32.partialorder %v603, 0.0
  %vm648 = vcmp.ge.f32.partialorder %v606, 0.0
  %vm649 = vcmp.ge.f32.partialorder %v611, 0.0
  %vm650 = vcmp.ge.f32.partialorder %v614, 0.0
  %vm651 = vcmp.ge.f32.partialorder %v619, 0.0
  %vm652 = vcmp.ge.f32.partialorder %v622, 0.0
  %vm653 = vcmp.ge.f32.partialorder %v627, 0.0
  %vm654 = vcmp.ge.f32.partialorder %v630, 0.0
  %vm655 = vcmp.ge.f32.partialorder %v635, 0.0
  %vm656 = vcmp.ge.f32.partialorder %v638, 0.0
  %v657 = vmul.f32 %v579, 0.2
  %v658 = vmul.f32 %v582, 0.2
  %v659 = vmul.f32 %v587, 0.2
  %v660 = vmul.f32 %v590, 0.2
  %v661 = vmul.f32 %v595, 0.2
  %v662 = vmul.f32 %v598, 0.2
  %v663 = vmul.f32 %v603, 0.2
  %v664 = vmul.f32 %v606, 0.2
  %v665 = vmul.f32 %v611, 0.2
  %v666 = vmul.f32 %v614, 0.2
  %v667 = vmul.f32 %v619, 0.2
  %v668 = vmul.f32 %v622, 0.2
  %v669 = vmul.f32 %v627, 0.2
  %v670 = vmul.f32 %v630, 0.2
  %v671 = vmul.f32 %v635, 0.2
  %v672 = vmul.f32 %v638, 0.2
  %v673 = vsel %vm641, %v579, %v657
  %v674 = vsel %vm642, %v582, %v658
  %v675 = vsel %vm643, %v587, %v659
  %v676 = vsel %vm644, %v590, %v660
  %v677 = vsel %vm645, %v595, %v661
  %v678 = vsel %vm646, %v598, %v662
  %v679 = vsel %vm647, %v603, %v663
  %v680 = vsel %vm648, %v606, %v664
  %v681 = vsel %vm649, %v611, %v665
  %v682 = vsel %vm650, %v614, %v666
  %v683 = vsel %vm651, %v619, %v667
  %v684 = vsel %vm652, %v622, %v668
  %v685 = vsel %vm653, %v627, %v669
  %v686 = vsel %vm654, %v630, %v670
  %v687 = vsel %vm655, %v635, %v671
  %v688 = vsel %vm656, %v638, %v672
  %v689 = vpack.c.bf16 %v674, %v673
  %v690 = vpack.c.bf16 %v676, %v675
  %v691 = vpack.c.bf16 %v678, %v677
  %v692 = vpack.c.bf16 %v680, %v679
  %v693 = vpack.c.bf16 %v682, %v681
  %v694 = vpack.c.bf16 %v684, %v683
  %v695 = vpack.c.bf16 %v686, %v685
  %v696 = vpack.c.bf16 %v688, %v687
  %v705 = vunpack.c.l.b16 %v689
  %v706 = vunpack.c.h.b16 %v689
  %v707 = vunpack.c.l.b16 %v690
  %v708 = vunpack.c.h.b16 %v690
  %v709 = vunpack.c.l.b16 %v691
  %v710 = vunpack.c.h.b16 %v691
  %v711 = vunpack.c.l.b16 %v692
  %v712 = vunpack.c.h.b16 %v692
  %v713 = vunpack.c.l.b16 %v693
  %v714 = vunpack.c.h.b16 %v693
  %v715 = vunpack.c.l.b16 %v694
  %v716 = vunpack.c.h.b16 %v694
  %v717 = vunpack.c.l.b16 %v695
  %v718 = vunpack.c.h.b16 %v695
  %v719 = vunpack.c.l.b16 %v696
  %v720 = vunpack.c.h.b16 %v696
  %v721 = vpack.c.b16 %v705, %v705
  %v722 = vpack.c.b16 %v706, %v706
  %v723 = vpack.c.b16 %v707, %v707
  %v724 = vpack.c.b16 %v708, %v708
  %v725 = vpack.c.b16 %v709, %v709
  %v726 = vpack.c.b16 %v710, %v710
  %v727 = vpack.c.b16 %v711, %v711
  %v728 = vpack.c.b16 %v712, %v712
  %v729 = vpack.c.b16 %v713, %v713
  %v730 = vpack.c.b16 %v714, %v714
  %v731 = vpack.c.b16 %v715, %v715
  %v732 = vpack.c.b16 %v716, %v716
  %v733 = vpack.c.b16 %v717, %v717
  %v734 = vpack.c.b16 %v718, %v718
  %v735 = vpack.c.b16 %v719, %v719
  %v736 = vpack.c.b16 %v720, %v720
  %753 = vst [vmem:[%s3] sm:$0xf] %v721
  %754 = vst [vmem:[%s3 + $0x4] sm:$0xf] %v722
  %755 = vst [vmem:[%s3 + $0x8] sm:$0xf] %v723
  %756 = vst [vmem:[%s3 + $0xc] sm:$0xf] %v724
  %757 = vst [vmem:[%s3 + $0x10] sm:$0xf] %v725
  %758 = vst [vmem:[%s3 + $0x14] sm:$0xf] %v726
  %759 = vst [vmem:[%s3 + $0x18] sm:$0xf] %v727
  %760 = vst [vmem:[%s3 + $0x1c] sm:$0xf] %v728
  %761 = vst [vmem:[%s3 + $0x20] sm:$0xf] %v729
  %762 = vst [vmem:[%s3 + $0x24] sm:$0xf] %v730
  %763 = vst [vmem:[%s3 + $0x28] sm:$0xf] %v731
  %764 = vst [vmem:[%s3 + $0x2c] sm:$0xf] %v732
  %765 = vst [vmem:[%s3 + $0x30] sm:$0xf] %v733
  %766 = vst [vmem:[%s3 + $0x34] sm:$0xf] %v734
  %767 = vst [vmem:[%s3 + $0x38] sm:$0xf] %v735
  %768 = vst [vmem:[%s3 + $0x3c] sm:$0xf] %v736
  // Predicated region
  $region14: #{d4_forward.7} parent=0 // pred_check
    _
  $region15: #{d4_forward.7} parent=0 // pred_check_branch
    %770 = sbr.rel (0) target = $region17
  $region16: #{d4_forward.7} parent=0 // pred_region
    _
  $region17: #{d4_forward.7} parent=0 // pred_fallthru
    _
  // Predicated region
  $region18: #{d4_forward.7} parent=0 // pred_check
    _
  $region19: #{d4_forward.7} parent=0 // pred_check_branch
    %772 = sbr.rel (0) target = $region21
  $region20: #{d4_forward.7} parent=0 // pred_region
    _
  $region21: #{d4_forward.7} parent=0 // pred_fallthru
    _

// kernel: d4_forward.8
$region0: #{d4_forward.8}
  #allocation0 [shape = 'u32[]', space=smem, size = 0x4, offset = 0x4, fixed_abs, tag = 'smem constant byte address 0x4 - core index']
  #allocation1 [shape = 'u32[144,128]{1,0:T(1,128)}', space=vmem, size = 0x12000, scoped, tag = 'internal scratch']
  %s0 = inlined_call_operand.vmem [shape: bf16[1,1,32,864], index: 0, kind: input, shape index: {}]
  %s1 = inlined_call_operand.vmem [shape: bf16[1,864,128], index: 1, kind: input, shape index: {}]
  %s2 = inlined_call_operand.vmem [shape: f32[1,128], index: 2, kind: input, shape index: {}]
  %s3 = inlined_call_operand.vmem [shape: bf16[1,1,32,128], index: 3, kind: output, shape index: {}]
  %s4 = sld [smem:[#allocation0]]
  $region22: #{d4_forward.8} parent=0
    _
  %s6 = ssub.s32 1, %s4
  %s7 = scalar_select 0, %s6, %s4
  // Predicated region
  $region2: #{d4_forward.8} parent=0 // pred_check
    _
  $region3: #{d4_forward.8} parent=0 // pred_check_branch
    %9 = sbr.rel (0) target = $region5
  $region4: #{d4_forward.8} parent=0 // pred_region
    _
  $region5: #{d4_forward.8} parent=0 // pred_fallthru
    _
  // Predicated region
  $region6: #{d4_forward.8} parent=0 // pred_check
    _
  $region7: #{d4_forward.8} parent=0 // pred_check_branch
    %11 = sbr.rel (0) target = $region9
  $region8: #{d4_forward.8} parent=0 // pred_region
    _
  $region9: #{d4_forward.8} parent=0 // pred_fallthru
    _
  // Predicated region
  $region10: #{d4_forward.8} parent=0 // pred_check
    _
  $region11: #{d4_forward.8} parent=0 // pred_check_branch
    %13 = sbr.rel (0) target = $region13
  $region12: #{d4_forward.8} parent=0 // pred_region
    _
  $region13: #{d4_forward.8} parent=0 // pred_fallthru
    _
  %v15 = vld [vmem:[%s0] sm:$0xff]
  %v16 = vld [vmem:[%s0 + $0x8] sm:$0xff]
  %v17 = vld [vmem:[%s0 + $0x10] sm:$0xff]
  %v18 = vld [vmem:[%s0 + $0x18] sm:$0xf]
  %v19 = vld [vmem:[%s0 + $0x1c] sm:$0xff]
  %v20 = vld [vmem:[%s0 + $0x24] sm:$0xff]
  %v21 = vld [vmem:[%s0 + $0x2c] sm:$0xff]
  %v22 = vld [vmem:[%s0 + $0x34] sm:$0xf]
  %v23 = vld [vmem:[%s0 + $0x38] sm:$0xff]
  %v24 = vld [vmem:[%s0 + $0x40] sm:$0xff]
  %v25 = vld [vmem:[%s0 + $0x48] sm:$0xff]
  %v26 = vld [vmem:[%s0 + $0x50] sm:$0xf]
  %v27 = vld [vmem:[%s0 + $0x54] sm:$0xff]
  %v28 = vld [vmem:[%s0 + $0x5c] sm:$0xff]
  %v29 = vld [vmem:[%s0 + $0x64] sm:$0xff]
  %v30 = vld [vmem:[%s0 + $0x6c] sm:$0xf]
  %v31 = vld [vmem:[%s1] sm:$0xf]
  %v32 = vld [vmem:[%s1 + $0x4] sm:$0xf]
  %v33 = vld [vmem:[%s1 + $0x8] sm:$0xf]
  %v34 = vld [vmem:[%s1 + $0xc] sm:$0xf]
  %v35 = vld [vmem:[%s1 + $0x10] sm:$0xf]
  %v36 = vld [vmem:[%s1 + $0x14] sm:$0xf]
  %v37 = vld [vmem:[%s1 + $0x18] sm:$0xf]
  %v38 = vld [vmem:[%s1 + $0x1c] sm:$0xf]
  %v39 = vld [vmem:[%s1 + $0x20] sm:$0xf]
  %v40 = vld [vmem:[%s1 + $0x24] sm:$0xf]
  %v41 = vld [vmem:[%s1 + $0x28] sm:$0xf]
  %v42 = vld [vmem:[%s1 + $0x2c] sm:$0xf]
  %v43 = vld [vmem:[%s1 + $0x30] sm:$0xf]
  %v44 = vld [vmem:[%s1 + $0x34] sm:$0xf]
  %v45 = vld [vmem:[%s1 + $0x38] sm:$0xf]
  %v46 = vld [vmem:[%s1 + $0x3c] sm:$0xf]
  %v47 = vld [vmem:[%s1 + $0x40] sm:$0xf]
  %v48 = vld [vmem:[%s1 + $0x44] sm:$0xf]
  %v49 = vld [vmem:[%s1 + $0x48] sm:$0xf]
  %v50 = vld [vmem:[%s1 + $0x4c] sm:$0xf]
  %v51 = vld [vmem:[%s1 + $0x50] sm:$0xf]
  %v52 = vld [vmem:[%s1 + $0x54] sm:$0xf]
  %v53 = vld [vmem:[%s1 + $0x58] sm:$0xf]
  %v54 = vld [vmem:[%s1 + $0x5c] sm:$0xf]
  %v55 = vld [vmem:[%s1 + $0x60] sm:$0xf]
  %v56 = vld [vmem:[%s1 + $0x64] sm:$0xf]
  %v57 = vld [vmem:[%s1 + $0x68] sm:$0xf]
  %v58 = vld [vmem:[%s1 + $0x6c] sm:$0xf]
  %v59 = vld [vmem:[%s1 + $0x70] sm:$0xf]
  %v60 = vld [vmem:[%s1 + $0x74] sm:$0xf]
  %v61 = vld [vmem:[%s1 + $0x78] sm:$0xf]
  %v62 = vld [vmem:[%s1 + $0x7c] sm:$0xf]
  %v63 = vld [vmem:[%s1 + $0x80] sm:$0xf]
  %v64 = vld [vmem:[%s1 + $0x84] sm:$0xf]
  %v65 = vld [vmem:[%s1 + $0x88] sm:$0xf]
  %v66 = vld [vmem:[%s1 + $0x8c] sm:$0xf]
  %v67 = vld [vmem:[%s1 + $0x90] sm:$0xf]
  %v68 = vld [vmem:[%s1 + $0x94] sm:$0xf]
  %v69 = vld [vmem:[%s1 + $0x98] sm:$0xf]
  %v70 = vld [vmem:[%s1 + $0x9c] sm:$0xf]
  %v71 = vld [vmem:[%s1 + $0xa0] sm:$0xf]
  %v72 = vld [vmem:[%s1 + $0xa4] sm:$0xf]
  %v73 = vld [vmem:[%s1 + $0xa8] sm:$0xf]
  %v74 = vld [vmem:[%s1 + $0xac] sm:$0xf]
  %v75 = vld [vmem:[%s1 + $0xb0] sm:$0xf]
  %v76 = vld [vmem:[%s1 + $0xb4] sm:$0xf]
  %v77 = vld [vmem:[%s1 + $0xb8] sm:$0xf]
  %v78 = vld [vmem:[%s1 + $0xbc] sm:$0xf]
  %v79 = vld [vmem:[%s1 + $0xc0] sm:$0xf]
  %v80 = vld [vmem:[%s1 + $0xc4] sm:$0xf]
  %v81 = vld [vmem:[%s1 + $0xc8] sm:$0xf]
  %v82 = vld [vmem:[%s1 + $0xcc] sm:$0xf]
  %v83 = vld [vmem:[%s1 + $0xd0] sm:$0xf]
  %v84 = vld [vmem:[%s1 + $0xd4] sm:$0xf]
  %v85 = vld [vmem:[%s1 + $0xd8] sm:$0xf]
  %v86 = vld [vmem:[%s1 + $0xdc] sm:$0xf]
  %v87 = vld [vmem:[%s1 + $0xe0] sm:$0xf]
  %v88 = vld [vmem:[%s1 + $0xe4] sm:$0xf]
  %v89 = vld [vmem:[%s1 + $0xe8] sm:$0xf]
  %v90 = vld [vmem:[%s1 + $0xec] sm:$0xf]
  %v91 = vld [vmem:[%s1 + $0xf0] sm:$0xf]
  %v92 = vld [vmem:[%s1 + $0xf4] sm:$0xf]
  %v93 = vld [vmem:[%s1 + $0xf8] sm:$0xf]
  %v94 = vld [vmem:[%s1 + $0xfc] sm:$0xf]
  %v95 = vld [vmem:[%s1 + $0x100] sm:$0xf]
  %v96 = vld [vmem:[%s1 + $0x104] sm:$0xf]
  %v97 = vld [vmem:[%s1 + $0x108] sm:$0xf]
  %v98 = vld [vmem:[%s1 + $0x10c] sm:$0xf]
  %v99 = vld [vmem:[%s1 + $0x110] sm:$0xf]
  %v100 = vld [vmem:[%s1 + $0x114] sm:$0xf]
  %v101 = vld [vmem:[%s1 + $0x118] sm:$0xf]
  %v102 = vld [vmem:[%s1 + $0x11c] sm:$0xf]
  %v103 = vld [vmem:[%s1 + $0x120] sm:$0xf]
  %v104 = vld [vmem:[%s1 + $0x124] sm:$0xf]
  %v105 = vld [vmem:[%s1 + $0x128] sm:$0xf]
  %v106 = vld [vmem:[%s1 + $0x12c] sm:$0xf]
  %v107 = vld [vmem:[%s1 + $0x130] sm:$0xf]
  %v108 = vld [vmem:[%s1 + $0x134] sm:$0xf]
  %v109 = vld [vmem:[%s1 + $0x138] sm:$0xf]
  %v110 = vld [vmem:[%s1 + $0x13c] sm:$0xf]
  %v111 = vld [vmem:[%s1 + $0x140] sm:$0xf]
  %v112 = vld [vmem:[%s1 + $0x144] sm:$0xf]
  %v113 = vld [vmem:[%s1 + $0x148] sm:$0xf]
  %v114 = vld [vmem:[%s1 + $0x14c] sm:$0xf]
  %v115 = vld [vmem:[%s1 + $0x150] sm:$0xf]
  %v116 = vld [vmem:[%s1 + $0x154] sm:$0xf]
  %v117 = vld [vmem:[%s1 + $0x158] sm:$0xf]
  %v118 = vld [vmem:[%s1 + $0x15c] sm:$0xf]
  %v119 = vld [vmem:[%s1 + $0x160] sm:$0xf]
  %v120 = vld [vmem:[%s1 + $0x164] sm:$0xf]
  %v121 = vld [vmem:[%s1 + $0x168] sm:$0xf]
  %v122 = vld [vmem:[%s1 + $0x16c] sm:$0xf]
  %v123 = vld [vmem:[%s1 + $0x170] sm:$0xf]
  %v124 = vld [vmem:[%s1 + $0x174] sm:$0xf]
  %v125 = vld [vmem:[%s1 + $0x178] sm:$0xf]
  %v126 = vld [vmem:[%s1 + $0x17c] sm:$0xf]
  %v127 = vld [vmem:[%s1 + $0x180] sm:$0xf]
  %v128 = vld [vmem:[%s1 + $0x184] sm:$0xf]
  %v129 = vld [vmem:[%s1 + $0x188] sm:$0xf]
  %v130 = vld [vmem:[%s1 + $0x18c] sm:$0xf]
  %v131 = vld [vmem:[%s1 + $0x190] sm:$0xf]
  %v132 = vld [vmem:[%s1 + $0x194] sm:$0xf]
  %v133 = vld [vmem:[%s1 + $0x198] sm:$0xf]
  %v134 = vld [vmem:[%s1 + $0x19c] sm:$0xf]
  %v135 = vld [vmem:[%s1 + $0x1a0] sm:$0xf]
  %v136 = vld [vmem:[%s1 + $0x1a4] sm:$0xf]
  %v137 = vld [vmem:[%s1 + $0x1a8] sm:$0xf]
  %v138 = vld [vmem:[%s1 + $0x1ac] sm:$0xf]
  %v139 = vld [vmem:[%s2] sm:$0x1]
  %v141 = vlaneseq
  %v142 = vshrl.u32 %v141, 7
  %v143 = vsub.s32 0, %v142
  %v144 = vrot.slane %v139, %v143
  %v162 = vunpack.c.l.b16 %v15
  %v163 = vunpack.c.h.b16 %v15
  %v164 = vunpack.c.l.b16 %v16
  %v165 = vunpack.c.h.b16 %v16
  %v166 = vunpack.c.l.b16 %v17
  %v167 = vunpack.c.h.b16 %v17
  %v168 = vunpack.c.l.b16 %v18
  %v169 = vunpack.c.l.b16 %v19
  %v170 = vunpack.c.h.b16 %v19
  %v171 = vunpack.c.l.b16 %v20
  %v172 = vunpack.c.h.b16 %v20
  %v173 = vunpack.c.l.b16 %v21
  %v174 = vunpack.c.h.b16 %v21
  %v175 = vunpack.c.l.b16 %v22
  %v176 = vunpack.c.l.b16 %v23
  %v177 = vunpack.c.h.b16 %v23
  %v178 = vunpack.c.l.b16 %v24
  %v179 = vunpack.c.h.b16 %v24
  %v180 = vunpack.c.l.b16 %v25
  %v181 = vunpack.c.h.b16 %v25
  %v182 = vunpack.c.l.b16 %v26
  %v183 = vunpack.c.l.b16 %v27
  %v184 = vunpack.c.h.b16 %v27
  %v185 = vunpack.c.l.b16 %v28
  %v186 = vunpack.c.h.b16 %v28
  %v187 = vunpack.c.l.b16 %v29
  %v188 = vunpack.c.h.b16 %v29
  %v189 = vunpack.c.l.b16 %v30
  %v190 = vpack.c.b16 %v169, %v162
  %v191 = vpack.c.b16 %v170, %v163
  %v192 = vpack.c.b16 %v171, %v164
  %v193 = vpack.c.b16 %v172, %v165
  %v194 = vpack.c.b16 %v173, %v166
  %v195 = vpack.c.b16 %v174, %v167
  %v196 = vpack.c.b16 %v175, %v168
  %v197 = vpack.c.b16 %v183, %v176
  %v198 = vpack.c.b16 %v184, %v177
  %v199 = vpack.c.b16 %v185, %v178
  %v200 = vpack.c.b16 %v186, %v179
  %v201 = vpack.c.b16 %v187, %v180
  %v202 = vpack.c.b16 %v188, %v181
  %v203 = vpack.c.b16 %v189, %v182
  %v324 = vunpack.c.l.b16 %v31
  %v325 = vunpack.c.l.b16 %v32
  %v326 = vunpack.c.l.b16 %v33
  %v327 = vunpack.c.l.b16 %v34
  %v328 = vunpack.c.l.b16 %v35
  %v329 = vunpack.c.l.b16 %v36
  %v330 = vunpack.c.l.b16 %v37
  %v331 = vunpack.c.l.b16 %v38
  %v332 = vunpack.c.l.b16 %v39
  %v333 = vunpack.c.l.b16 %v40
  %v334 = vunpack.c.l.b16 %v41
  %v335 = vunpack.c.l.b16 %v42
  %v336 = vunpack.c.l.b16 %v43
  %v337 = vunpack.c.l.b16 %v44
  %v338 = vunpack.c.l.b16 %v45
  %v339 = vunpack.c.l.b16 %v46
  %v340 = vunpack.c.l.b16 %v47
  %v341 = vunpack.c.l.b16 %v48
  %v342 = vunpack.c.l.b16 %v49
  %v343 = vunpack.c.l.b16 %v50
  %v344 = vunpack.c.l.b16 %v51
  %v345 = vunpack.c.l.b16 %v52
  %v346 = vunpack.c.l.b16 %v53
  %v347 = vunpack.c.l.b16 %v54
  %v348 = vunpack.c.l.b16 %v55
  %v349 = vunpack.c.l.b16 %v56
  %v350 = vunpack.c.l.b16 %v57
  %v351 = vunpack.c.l.b16 %v58
  %v352 = vunpack.c.l.b16 %v59
  %v353 = vunpack.c.l.b16 %v60
  %v354 = vunpack.c.l.b16 %v61
  %v355 = vunpack.c.l.b16 %v62
  %v356 = vunpack.c.l.b16 %v63
  %v357 = vunpack.c.l.b16 %v64
  %v358 = vunpack.c.l.b16 %v65
  %v359 = vunpack.c.l.b16 %v66
  %v360 = vunpack.c.l.b16 %v67
  %v361 = vunpack.c.l.b16 %v68
  %v362 = vunpack.c.l.b16 %v69
  %v363 = vunpack.c.l.b16 %v70
  %v364 = vunpack.c.l.b16 %v71
  %v365 = vunpack.c.l.b16 %v72
  %v366 = vunpack.c.l.b16 %v73
  %v367 = vunpack.c.l.b16 %v74
  %v368 = vunpack.c.l.b16 %v75
  %v369 = vunpack.c.l.b16 %v76
  %v370 = vunpack.c.l.b16 %v77
  %v371 = vunpack.c.l.b16 %v78
  %v372 = vunpack.c.l.b16 %v79
  %v373 = vunpack.c.l.b16 %v80
  %v374 = vunpack.c.l.b16 %v81
  %v375 = vunpack.c.l.b16 %v82
  %v376 = vunpack.c.l.b16 %v83
  %v377 = vunpack.c.l.b16 %v84
  %v378 = vunpack.c.l.b16 %v85
  %v379 = vunpack.c.l.b16 %v86
  %v380 = vunpack.c.l.b16 %v87
  %v381 = vunpack.c.l.b16 %v88
  %v382 = vunpack.c.l.b16 %v89
  %v383 = vunpack.c.l.b16 %v90
  %v384 = vunpack.c.l.b16 %v91
  %v385 = vunpack.c.l.b16 %v92
  %v386 = vunpack.c.l.b16 %v93
  %v387 = vunpack.c.l.b16 %v94
  %v388 = vunpack.c.l.b16 %v95
  %v389 = vunpack.c.l.b16 %v96
  %v390 = vunpack.c.l.b16 %v97
  %v391 = vunpack.c.l.b16 %v98
  %v392 = vunpack.c.l.b16 %v99
  %v393 = vunpack.c.l.b16 %v100
  %v394 = vunpack.c.l.b16 %v101
  %v395 = vunpack.c.l.b16 %v102
  %v396 = vunpack.c.l.b16 %v103
  %v397 = vunpack.c.l.b16 %v104
  %v398 = vunpack.c.l.b16 %v105
  %v399 = vunpack.c.l.b16 %v106
  %v400 = vunpack.c.l.b16 %v107
  %v401 = vunpack.c.l.b16 %v108
  %v402 = vunpack.c.l.b16 %v109
  %v403 = vunpack.c.l.b16 %v110
  %v404 = vunpack.c.l.b16 %v111
  %v405 = vunpack.c.l.b16 %v112
  %v406 = vunpack.c.l.b16 %v113
  %v407 = vunpack.c.l.b16 %v114
  %v408 = vunpack.c.l.b16 %v115
  %v409 = vunpack.c.l.b16 %v116
  %v410 = vunpack.c.l.b16 %v117
  %v411 = vunpack.c.l.b16 %v118
  %v412 = vunpack.c.l.b16 %v119
  %v413 = vunpack.c.l.b16 %v120
  %v414 = vunpack.c.l.b16 %v121
  %v415 = vunpack.c.l.b16 %v122
  %v416 = vunpack.c.l.b16 %v123
  %v417 = vunpack.c.l.b16 %v124
  %v418 = vunpack.c.l.b16 %v125
  %v419 = vunpack.c.l.b16 %v126
  %v420 = vunpack.c.l.b16 %v127
  %v421 = vunpack.c.l.b16 %v128
  %v422 = vunpack.c.l.b16 %v129
  %v423 = vunpack.c.l.b16 %v130
  %v424 = vunpack.c.l.b16 %v131
  %v425 = vunpack.c.l.b16 %v132
  %v426 = vunpack.c.l.b16 %v133
  %v427 = vunpack.c.l.b16 %v134
  %v428 = vunpack.c.l.b16 %v135
  %v429 = vunpack.c.l.b16 %v136
  %v430 = vunpack.c.l.b16 %v137
  %v431 = vunpack.c.l.b16 %v138
  %v432 = vpack.c.b16 %v325, %v324
  %v433 = vpack.c.b16 %v327, %v326
  %v434 = vpack.c.b16 %v329, %v328
  %v435 = vpack.c.b16 %v331, %v330
  %v436 = vpack.c.b16 %v333, %v332
  %v437 = vpack.c.b16 %v335, %v334
  %v438 = vpack.c.b16 %v337, %v336
  %v439 = vpack.c.b16 %v339, %v338
  %v440 = vpack.c.b16 %v341, %v340
  %v441 = vpack.c.b16 %v343, %v342
  %v442 = vpack.c.b16 %v345, %v344
  %v443 = vpack.c.b16 %v347, %v346
  %v444 = vpack.c.b16 %v349, %v348
  %v445 = vpack.c.b16 %v351, %v350
  %v446 = vpack.c.b16 %v353, %v352
  %v447 = vpack.c.b16 %v355, %v354
  %v448 = vpack.c.b16 %v357, %v356
  %v449 = vpack.c.b16 %v359, %v358
  %v450 = vpack.c.b16 %v361, %v360
  %v451 = vpack.c.b16 %v363, %v362
  %v452 = vpack.c.b16 %v365, %v364
  %v453 = vpack.c.b16 %v367, %v366
  %v454 = vpack.c.b16 %v369, %v368
  %v455 = vpack.c.b16 %v371, %v370
  %v456 = vpack.c.b16 %v373, %v372
  %v457 = vpack.c.b16 %v375, %v374
  %v458 = vpack.c.b16 %v377, %v376
  %v459 = vpack.c.b16 %v379, %v378
  %v460 = vpack.c.b16 %v381, %v380
  %v461 = vpack.c.b16 %v383, %v382
  %v462 = vpack.c.b16 %v385, %v384
  %v463 = vpack.c.b16 %v387, %v386
  %v464 = vpack.c.b16 %v389, %v388
  %v465 = vpack.c.b16 %v391, %v390
  %v466 = vpack.c.b16 %v393, %v392
  %v467 = vpack.c.b16 %v395, %v394
  %v468 = vpack.c.b16 %v397, %v396
  %v469 = vpack.c.b16 %v399, %v398
  %v470 = vpack.c.b16 %v401, %v400
  %v471 = vpack.c.b16 %v403, %v402
  %v472 = vpack.c.b16 %v405, %v404
  %v473 = vpack.c.b16 %v407, %v406
  %v474 = vpack.c.b16 %v409, %v408
  %v475 = vpack.c.b16 %v411, %v410
  %v476 = vpack.c.b16 %v413, %v412
  %v477 = vpack.c.b16 %v415, %v414
  %v478 = vpack.c.b16 %v417, %v416
  %v479 = vpack.c.b16 %v419, %v418
  %v480 = vpack.c.b16 %v421, %v420
  %v481 = vpack.c.b16 %v423, %v422
  %v482 = vpack.c.b16 %v425, %v424
  %v483 = vpack.c.b16 %v427, %v426
  %v484 = vpack.c.b16 %v429, %v428
  %v485 = vpack.c.b16 %v431, %v430
  %vm540 = vcmask 785408
  %v542 = vsel %vm540, %v196, 0
  %v545 = vsel %vm540, %v203, 0
  %547 = vmatprep.subr.bf16.mxu0 0
  %548 = vmatpush1.bf16.msra.mxu0 %v439
  %549 = vmatprep.subr.bf16.mxu0 0
  %550 = vmatpush1.bf16.msra.mxu0 %v438
  %551 = vmatprep.subr.bf16.mxu0 0
  %552 = vmatpush1.bf16.msra.mxu0 %v437
  %553 = vmatprep.subr.bf16.mxu0 0
  %554 = vmatpush1.bf16.msra.mxu0 %v436
  %555 = vmatprep.subr.bf16.mxu0 0
  %556 = vmatpush1.bf16.msra.mxu0 %v435
  %557 = vmatprep.subr.bf16.mxu0 0
  %558 = vmatpush1.bf16.msra.mxu0 %v434
  %559 = vmatprep.subr.bf16.mxu0 0
  %560 = vmatpush1.bf16.msra.mxu0 %v433
  %561 = vmatprep.subr.bf16.mxu0 0
  %562 = vmatpush1.bf16.msra.mxu0 %v432
  %563 = vmatprep.subr.bf16.mxu0 0
  %564 = vmatpush2.bf16.msra.mxu0 %v447
  %565 = vmatprep.subr.bf16.mxu0 0
  %566 = vmatpush2.bf16.msra.mxu0 %v446
  %567 = vmatprep.subr.bf16.mxu0 0
  %568 = vmatpush2.bf16.msra.mxu0 %v445
  %569 = vmatprep.subr.bf16.mxu0 0
  %570 = vmatpush2.bf16.msra.mxu0 %v444
  %571 = vmatprep.subr.bf16.mxu0 0
  %572 = vmatpush2.bf16.msra.mxu0 %v443
  %573 = vmatprep.subr.bf16.mxu0 0
  %574 = vmatpush2.bf16.msra.mxu0 %v442
  %575 = vmatprep.subr.bf16.mxu0 0
  %576 = vmatpush2.bf16.msra.mxu0 %v441
  %577 = vmatprep.subr.bf16.mxu0 0
  %578 = vmatpush2.bf16.msra.mxu0 %v440
  %579 = vmatprep.mubr.bf16.mxu0 %v191
  %580 = vmatmul.mubr.bf16.gmra.mxu0 %v190
  %v581 = vpop.f32.mrf.mxu0
  %v582 = vadd.f32 %v144, %v581
  %v583 = vpop.f32.mrf.mxu0
  %v584 = vpop.f32.mrf.mxu0
  %v585 = vadd.f32 %v144, %v584
  %v586 = vpop.f32.mrf.mxu0
  %587 = vmatprep.mubr.bf16.mxu0 %v198
  %588 = vmatmul.mubr.bf16.gmra.mxu0 %v197
  %v589 = vpop.f32.mrf.mxu0
  %v590 = vadd.f32 %v144, %v589
  %v591 = vpop.f32.mrf.mxu0
  %v592 = vpop.f32.mrf.mxu0
  %v593 = vadd.f32 %v144, %v592
  %v594 = vpop.f32.mrf.mxu0
  %595 = vdwg.mxu0
  %596 = vmatprep.subr.bf16.mxu0 0
  %597 = vmatpush1.bf16.msra.mxu0 %v455
  %598 = vmatprep.subr.bf16.mxu0 0
  %599 = vmatpush1.bf16.msra.mxu0 %v454
  %600 = vmatprep.subr.bf16.mxu0 0
  %601 = vmatpush1.bf16.msra.mxu0 %v453
  %602 = vmatprep.subr.bf16.mxu0 0
  %603 = vmatpush1.bf16.msra.mxu0 %v452
  %604 = vmatprep.subr.bf16.mxu0 0
  %605 = vmatpush1.bf16.msra.mxu0 %v451
  %606 = vmatprep.subr.bf16.mxu0 0
  %607 = vmatpush1.bf16.msra.mxu0 %v450
  %608 = vmatprep.subr.bf16.mxu0 0
  %609 = vmatpush1.bf16.msra.mxu0 %v449
  %610 = vmatprep.subr.bf16.mxu0 0
  %611 = vmatpush1.bf16.msra.mxu0 %v448
  %612 = vmatprep.subr.bf16.mxu0 0
  %613 = vmatpush2.bf16.msra.mxu0 %v463
  %614 = vmatprep.subr.bf16.mxu0 0
  %615 = vmatpush2.bf16.msra.mxu0 %v462
  %616 = vmatprep.subr.bf16.mxu0 0
  %617 = vmatpush2.bf16.msra.mxu0 %v461
  %618 = vmatprep.subr.bf16.mxu0 0
  %619 = vmatpush2.bf16.msra.mxu0 %v460
  %620 = vmatprep.subr.bf16.mxu0 0
  %621 = vmatpush2.bf16.msra.mxu0 %v459
  %622 = vmatprep.subr.bf16.mxu0 0
  %623 = vmatpush2.bf16.msra.mxu0 %v458
  %624 = vmatprep.subr.bf16.mxu0 0
  %625 = vmatpush2.bf16.msra.mxu0 %v457
  %626 = vmatprep.subr.bf16.mxu0 0
  %627 = vmatpush2.bf16.msra.mxu0 %v456
  %628 = vmatprep.mubr.bf16.mxu0 %v193
  %629 = vmatmul.mubr.bf16.gmra.mxu0 %v192
  %v630 = vpop.f32.mrf.mxu0
  %v631 = vadd.f32 %v582, %v630
  %v632 = vpop.f32.mrf.mxu0
  %v633 = vpop.f32.mrf.mxu0
  %v634 = vadd.f32 %v585, %v633
  %v635 = vpop.f32.mrf.mxu0
  %636 = vmatprep.mubr.bf16.mxu0 %v200
  %637 = vmatmul.mubr.bf16.gmra.mxu0 %v199
  %v638 = vpop.f32.mrf.mxu0
  %v639 = vadd.f32 %v590, %v638
  %v640 = vpop.f32.mrf.mxu0
  %v641 = vpop.f32.mrf.mxu0
  %v642 = vadd.f32 %v593, %v641
  %v643 = vpop.f32.mrf.mxu0
  %644 = vdwg.mxu0
  %645 = vmatprep.subr.bf16.mxu0 0
  %646 = vmatpush1.bf16.msra.mxu0 %v471
  %647 = vmatprep.subr.bf16.mxu0 0
  %648 = vmatpush1.bf16.msra.mxu0 %v470
  %649 = vmatprep.subr.bf16.mxu0 0
  %650 = vmatpush1.bf16.msra.mxu0 %v469
  %651 = vmatprep.subr.bf16.mxu0 0
  %652 = vmatpush1.bf16.msra.mxu0 %v468
  %653 = vmatprep.subr.bf16.mxu0 0
  %654 = vmatpush1.bf16.msra.mxu0 %v467
  %655 = vmatprep.subr.bf16.mxu0 0
  %656 = vmatpush1.bf16.msra.mxu0 %v466
  %657 = vmatprep.subr.bf16.mxu0 0
  %658 = vmatpush1.bf16.msra.mxu0 %v465
  %659 = vmatprep.subr.bf16.mxu0 0
  %660 = vmatpush1.bf16.msra.mxu0 %v464
  %661 = vmatprep.subr.bf16.mxu0 0
  %662 = vmatpush2.bf16.msra.mxu0 %v479
  %663 = vmatprep.subr.bf16.mxu0 0
  %664 = vmatpush2.bf16.msra.mxu0 %v478
  %665 = vmatprep.subr.bf16.mxu0 0
  %666 = vmatpush2.bf16.msra.mxu0 %v477
  %667 = vmatprep.subr.bf16.mxu0 0
  %668 = vmatpush2.bf16.msra.mxu0 %v476
  %669 = vmatprep.subr.bf16.mxu0 0
  %670 = vmatpush2.bf16.msra.mxu0 %v475
  %671 = vmatprep.subr.bf16.mxu0 0
  %672 = vmatpush2.bf16.msra.mxu0 %v474
  %673 = vmatprep.subr.bf16.mxu0 0
  %674 = vmatpush2.bf16.msra.mxu0 %v473
  %675 = vmatprep.subr.bf16.mxu0 0
  %676 = vmatpush2.bf16.msra.mxu0 %v472
  %677 = vmatprep.mubr.bf16.mxu0 %v195
  %678 = vmatmul.mubr.bf16.gmra.mxu0 %v194
  %v679 = vpop.f32.mrf.mxu0
  %v680 = vadd.f32 %v631, %v679
  %v681 = vpop.f32.mrf.mxu0
  %v682 = vpop.f32.mrf.mxu0
  %v683 = vadd.f32 %v634, %v682
  %v684 = vpop.f32.mrf.mxu0
  %685 = vmatprep.mubr.bf16.mxu0 %v202
  %686 = vmatmul.mubr.bf16.gmra.mxu0 %v201
  %v687 = vpop.f32.mrf.mxu0
  %v688 = vadd.f32 %v639, %v687
  %v689 = vpop.f32.mrf.mxu0
  %v690 = vpop.f32.mrf.mxu0
  %v691 = vadd.f32 %v642, %v690
  %v692 = vpop.f32.mrf.mxu0
  %693 = vdwg.mxu0
  %694 = vmatprep.subr.bf16.mxu0 0
  %695 = vmatpush1.bf16.msra.mxu0 0
  %696 = vmatprep.subr.bf16.mxu0 0
  %697 = vmatpush1.bf16.msra.mxu0 0
  %698 = vmatprep.subr.bf16.mxu0 0
  %699 = vmatpush1.bf16.msra.mxu0 %v485
  %700 = vmatprep.subr.bf16.mxu0 0
  %701 = vmatpush1.bf16.msra.mxu0 %v484
  %702 = vmatprep.subr.bf16.mxu0 0
  %703 = vmatpush1.bf16.msra.mxu0 %v483
  %704 = vmatprep.subr.bf16.mxu0 0
  %705 = vmatpush1.bf16.msra.mxu0 %v482
  %706 = vmatprep.subr.bf16.mxu0 0
  %707 = vmatpush1.bf16.msra.mxu0 %v481
  %708 = vmatprep.subr.bf16.mxu0 0
  %709 = vmatpush1.bf16.msra.mxu0 %v480
  %710 = vmatprep.subr.bf16.mxu0 0
  %711 = vmatpush2.bf16.msra.mxu0 0
  %712 = vmatprep.subr.bf16.mxu0 0
  %713 = vmatpush2.bf16.msra.mxu0 0
  %714 = vmatprep.subr.bf16.mxu0 0
  %715 = vmatpush2.bf16.msra.mxu0 0
  %716 = vmatprep.subr.bf16.mxu0 0
  %717 = vmatpush2.bf16.msra.mxu0 0
  %718 = vmatprep.subr.bf16.mxu0 0
  %719 = vmatpush2.bf16.msra.mxu0 0
  %720 = vmatprep.subr.bf16.mxu0 0
  %721 = vmatpush2.bf16.msra.mxu0 0
  %722 = vmatprep.subr.bf16.mxu0 0
  %723 = vmatpush2.bf16.msra.mxu0 0
  %724 = vmatprep.subr.bf16.mxu0 0
  %725 = vmatpush2.bf16.msra.mxu0 0
  %726 = vmatprep.mubr.bf16.mxu0 0
  %727 = vmatmul.mubr.bf16.gmra.mxu0 %v542
  %v728 = vpop.f32.mrf.mxu0
  %v729 = vadd.f32 %v680, %v728
  %v730 = vpop.f32.mrf.mxu0
  %v731 = vpop.f32.mrf.mxu0
  %v732 = vadd.f32 %v683, %v731
  %v733 = vpop.f32.mrf.mxu0
  %734 = vmatprep.mubr.bf16.mxu0 0
  %735 = vmatmul.mubr.bf16.gmra.mxu0 %v545
  %v736 = vpop.f32.mrf.mxu0
  %v737 = vadd.f32 %v688, %v736
  %v738 = vpop.f32.mrf.mxu0
  %v739 = vpop.f32.mrf.mxu0
  %v740 = vadd.f32 %v691, %v739
  %v741 = vpop.f32.mrf.mxu0
  %742 = vdwg.mxu0
  %vm743 = vcmp.ge.f32.partialorder %v729, 0.0
  %vm744 = vcmp.ge.f32.partialorder %v732, 0.0
  %vm745 = vcmp.ge.f32.partialorder %v737, 0.0
  %vm746 = vcmp.ge.f32.partialorder %v740, 0.0
  %v747 = vmul.f32 %v729, 0.2
  %v748 = vmul.f32 %v732, 0.2
  %v749 = vmul.f32 %v737, 0.2
  %v750 = vmul.f32 %v740, 0.2
  %v751 = vsel %vm743, %v729, %v747
  %v752 = vsel %vm744, %v732, %v748
  %v753 = vsel %vm745, %v737, %v749
  %v754 = vsel %vm746, %v740, %v750
  %v755 = vpack.c.bf16 %v752, %v751
  %v756 = vpack.c.bf16 %v754, %v753
  %v759 = vunpack.c.l.b16 %v755
  %v760 = vunpack.c.h.b16 %v755
  %v761 = vunpack.c.l.b16 %v756
  %v762 = vunpack.c.h.b16 %v756
  %v763 = vpack.c.b16 %v759, %v759
  %v764 = vpack.c.b16 %v760, %v760
  %v765 = vpack.c.b16 %v761, %v761
  %v766 = vpack.c.b16 %v762, %v762
  %771 = vst [vmem:[%s3] sm:$0xf] %v763
  %772 = vst [vmem:[%s3 + $0x4] sm:$0xf] %v764
  %773 = vst [vmem:[%s3 + $0x8] sm:$0xf] %v765
  %774 = vst [vmem:[%s3 + $0xc] sm:$0xf] %v766
  // Predicated region
  $region14: #{d4_forward.8} parent=0 // pred_check
    _
  $region15: #{d4_forward.8} parent=0 // pred_check_branch
    %776 = sbr.rel (0) target = $region17
  $region16: #{d4_forward.8} parent=0 // pred_region
    _
  $region17: #{d4_forward.8} parent=0 // pred_fallthru
    _
  // Predicated region
  $region18: #{d4_forward.8} parent=0 // pred_check
    _
  $region19: #{d4_forward.8} parent=0 // pred_check_branch
    %778 = sbr.rel (0) target = $region21
  $region20: #{d4_forward.8} parent=0 // pred_region
    _
  $region21: #{d4_forward.8} parent=0 // pred_fallthru
    _

// kernel: d4_forward.9
$region0: #{d4_forward.9}
  #allocation0 [shape = 'u32[]', space=smem, size = 0x4, offset = 0x4, fixed_abs, tag = 'smem constant byte address 0x4 - core index']
  #allocation1 [shape = 'u32[144,128]{1,0:T(1,128)}', space=vmem, size = 0x12000, scoped, tag = 'internal scratch']
  %s0 = inlined_call_operand.vmem [shape: bf16[1,1,8,3456], index: 0, kind: input, shape index: {}]
  %s1 = inlined_call_operand.vmem [shape: bf16[1,3456,128], index: 1, kind: input, shape index: {}]
  %s2 = inlined_call_operand.vmem [shape: f32[1,128], index: 2, kind: input, shape index: {}]
  %s3 = inlined_call_operand.vmem [shape: f32[1,1,8,128], index: 3, kind: output, shape index: {}]
  %s4 = sld [smem:[#allocation0]]
  $region22: #{d4_forward.9} parent=0
    _
  %s6 = ssub.s32 1, %s4
  %s7 = scalar_select 0, %s6, %s4
  // Predicated region
  $region2: #{d4_forward.9} parent=0 // pred_check
    _
  $region3: #{d4_forward.9} parent=0 // pred_check_branch
    %9 = sbr.rel (0) target = $region5
  $region4: #{d4_forward.9} parent=0 // pred_region
    _
  $region5: #{d4_forward.9} parent=0 // pred_fallthru
    _
  // Predicated region
  $region6: #{d4_forward.9} parent=0 // pred_check
    _
  $region7: #{d4_forward.9} parent=0 // pred_check_branch
    %11 = sbr.rel (0) target = $region9
  $region8: #{d4_forward.9} parent=0 // pred_region
    _
  $region9: #{d4_forward.9} parent=0 // pred_fallthru
    _
  // Predicated region
  $region10: #{d4_forward.9} parent=0 // pred_check
    _
  $region11: #{d4_forward.9} parent=0 // pred_check_branch
    %13 = sbr.rel (0) target = $region13
  $region12: #{d4_forward.9} parent=0 // pred_region
    _
  $region13: #{d4_forward.9} parent=0 // pred_fallthru
    _
  %v15 = vld [vmem:[%s0] sm:$0xff]
  %v16 = vld [vmem:[%s0 + $0x8] sm:$0xff]
  %v17 = vld [vmem:[%s0 + $0x10] sm:$0xff]
  %v18 = vld [vmem:[%s0 + $0x18] sm:$0xff]
  %v19 = vld [vmem:[%s0 + $0x20] sm:$0xff]
  %v20 = vld [vmem:[%s0 + $0x28] sm:$0xff]
  %v21 = vld [vmem:[%s0 + $0x30] sm:$0xff]
  %v22 = vld [vmem:[%s0 + $0x38] sm:$0xff]
  %v23 = vld [vmem:[%s0 + $0x40] sm:$0xff]
  %v24 = vld [vmem:[%s0 + $0x48] sm:$0xff]
  %v25 = vld [vmem:[%s0 + $0x50] sm:$0xff]
  %v26 = vld [vmem:[%s0 + $0x58] sm:$0xff]
  %v27 = vld [vmem:[%s0 + $0x60] sm:$0xff]
  %v28 = vld [vmem:[%s0 + $0x68] sm:$0xf]
  %v29 = vld [vmem:[%s1] sm:$0xf]
  %v30 = vld [vmem:[%s1 + $0x4] sm:$0xf]
  %v31 = vld [vmem:[%s1 + $0x8] sm:$0xf]
  %v32 = vld [vmem:[%s1 + $0xc] sm:$0xf]
  %v33 = vld [vmem:[%s1 + $0x10] sm:$0xf]
  %v34 = vld [vmem:[%s1 + $0x14] sm:$0xf]
  %v35 = vld [vmem:[%s1 + $0x18] sm:$0xf]
  %v36 = vld [vmem:[%s1 + $0x1c] sm:$0xf]
  %v37 = vld [vmem:[%s1 + $0x20] sm:$0xf]
  %v38 = vld [vmem:[%s1 + $0x24] sm:$0xf]
  %v39 = vld [vmem:[%s1 + $0x28] sm:$0xf]
  %v40 = vld [vmem:[%s1 + $0x2c] sm:$0xf]
  %v41 = vld [vmem:[%s1 + $0x30] sm:$0xf]
  %v42 = vld [vmem:[%s1 + $0x34] sm:$0xf]
  %v43 = vld [vmem:[%s1 + $0x38] sm:$0xf]
  %v44 = vld [vmem:[%s1 + $0x3c] sm:$0xf]
  %v45 = vld [vmem:[%s1 + $0x40] sm:$0xf]
  %v46 = vld [vmem:[%s1 + $0x44] sm:$0xf]
  %v47 = vld [vmem:[%s1 + $0x48] sm:$0xf]
  %v48 = vld [vmem:[%s1 + $0x4c] sm:$0xf]
  %v49 = vld [vmem:[%s1 + $0x50] sm:$0xf]
  %v50 = vld [vmem:[%s1 + $0x54] sm:$0xf]
  %v51 = vld [vmem:[%s1 + $0x58] sm:$0xf]
  %v52 = vld [vmem:[%s1 + $0x5c] sm:$0xf]
  %v53 = vld [vmem:[%s1 + $0x60] sm:$0xf]
  %v54 = vld [vmem:[%s1 + $0x64] sm:$0xf]
  %v55 = vld [vmem:[%s1 + $0x68] sm:$0xf]
  %v56 = vld [vmem:[%s1 + $0x6c] sm:$0xf]
  %v57 = vld [vmem:[%s1 + $0x70] sm:$0xf]
  %v58 = vld [vmem:[%s1 + $0x74] sm:$0xf]
  %v59 = vld [vmem:[%s1 + $0x78] sm:$0xf]
  %v60 = vld [vmem:[%s1 + $0x7c] sm:$0xf]
  %v61 = vld [vmem:[%s1 + $0x80] sm:$0xf]
  %v62 = vld [vmem:[%s1 + $0x84] sm:$0xf]
  %v63 = vld [vmem:[%s1 + $0x88] sm:$0xf]
  %v64 = vld [vmem:[%s1 + $0x8c] sm:$0xf]
  %v65 = vld [vmem:[%s1 + $0x90] sm:$0xf]
  %v66 = vld [vmem:[%s1 + $0x94] sm:$0xf]
  %v67 = vld [vmem:[%s1 + $0x98] sm:$0xf]
  %v68 = vld [vmem:[%s1 + $0x9c] sm:$0xf]
  %v69 = vld [vmem:[%s1 + $0xa0] sm:$0xf]
  %v70 = vld [vmem:[%s1 + $0xa4] sm:$0xf]
  %v71 = vld [vmem:[%s1 + $0xa8] sm:$0xf]
  %v72 = vld [vmem:[%s1 + $0xac] sm:$0xf]
  %v73 = vld [vmem:[%s1 + $0xb0] sm:$0xf]
  %v74 = vld [vmem:[%s1 + $0xb4] sm:$0xf]
  %v75 = vld [vmem:[%s1 + $0xb8] sm:$0xf]
  %v76 = vld [vmem:[%s1 + $0xbc] sm:$0xf]
  %v77 = vld [vmem:[%s1 + $0xc0] sm:$0xf]
  %v78 = vld [vmem:[%s1 + $0xc4] sm:$0xf]
  %v79 = vld [vmem:[%s1 + $0xc8] sm:$0xf]
  %v80 = vld [vmem:[%s1 + $0xcc] sm:$0xf]
  %v81 = vld [vmem:[%s1 + $0xd0] sm:$0xf]
  %v82 = vld [vmem:[%s1 + $0xd4] sm:$0xf]
  %v83 = vld [vmem:[%s1 + $0xd8] sm:$0xf]
  %v84 = vld [vmem:[%s1 + $0xdc] sm:$0xf]
  %v85 = vld [vmem:[%s1 + $0xe0] sm:$0xf]
  %v86 = vld [vmem:[%s1 + $0xe4] sm:$0xf]
  %v87 = vld [vmem:[%s1 + $0xe8] sm:$0xf]
  %v88 = vld [vmem:[%s1 + $0xec] sm:$0xf]
  %v89 = vld [vmem:[%s1 + $0xf0] sm:$0xf]
  %v90 = vld [vmem:[%s1 + $0xf4] sm:$0xf]
  %v91 = vld [vmem:[%s1 + $0xf8] sm:$0xf]
  %v92 = vld [vmem:[%s1 + $0xfc] sm:$0xf]
  %v93 = vld [vmem:[%s1 + $0x100] sm:$0xf]
  %v94 = vld [vmem:[%s1 + $0x104] sm:$0xf]
  %v95 = vld [vmem:[%s1 + $0x108] sm:$0xf]
  %v96 = vld [vmem:[%s1 + $0x10c] sm:$0xf]
  %v97 = vld [vmem:[%s1 + $0x110] sm:$0xf]
  %v98 = vld [vmem:[%s1 + $0x114] sm:$0xf]
  %v99 = vld [vmem:[%s1 + $0x118] sm:$0xf]
  %v100 = vld [vmem:[%s1 + $0x11c] sm:$0xf]
  %v101 = vld [vmem:[%s1 + $0x120] sm:$0xf]
  %v102 = vld [vmem:[%s1 + $0x124] sm:$0xf]
  %v103 = vld [vmem:[%s1 + $0x128] sm:$0xf]
  %v104 = vld [vmem:[%s1 + $0x12c] sm:$0xf]
  %v105 = vld [vmem:[%s1 + $0x130] sm:$0xf]
  %v106 = vld [vmem:[%s1 + $0x134] sm:$0xf]
  %v107 = vld [vmem:[%s1 + $0x138] sm:$0xf]
  %v108 = vld [vmem:[%s1 + $0x13c] sm:$0xf]
  %v109 = vld [vmem:[%s1 + $0x140] sm:$0xf]
  %v110 = vld [vmem:[%s1 + $0x144] sm:$0xf]
  %v111 = vld [vmem:[%s1 + $0x148] sm:$0xf]
  %v112 = vld [vmem:[%s1 + $0x14c] sm:$0xf]
  %v113 = vld [vmem:[%s1 + $0x150] sm:$0xf]
  %v114 = vld [vmem:[%s1 + $0x154] sm:$0xf]
  %v115 = vld [vmem:[%s1 + $0x158] sm:$0xf]
  %v116 = vld [vmem:[%s1 + $0x15c] sm:$0xf]
  %v117 = vld [vmem:[%s1 + $0x160] sm:$0xf]
  %v118 = vld [vmem:[%s1 + $0x164] sm:$0xf]
  %v119 = vld [vmem:[%s1 + $0x168] sm:$0xf]
  %v120 = vld [vmem:[%s1 + $0x16c] sm:$0xf]
  %v121 = vld [vmem:[%s1 + $0x170] sm:$0xf]
  %v122 = vld [vmem:[%s1 + $0x174] sm:$0xf]
  %v123 = vld [vmem:[%s1 + $0x178] sm:$0xf]
  %v124 = vld [vmem:[%s1 + $0x17c] sm:$0xf]
  %v125 = vld [vmem:[%s1 + $0x180] sm:$0xf]
  %v126 = vld [vmem:[%s1 + $0x184] sm:$0xf]
  %v127 = vld [vmem:[%s1 + $0x188] sm:$0xf]
  %v128 = vld [vmem:[%s1 + $0x18c] sm:$0xf]
  %v129 = vld [vmem:[%s1 + $0x190] sm:$0xf]
  %v130 = vld [vmem:[%s1 + $0x194] sm:$0xf]
  %v131 = vld [vmem:[%s1 + $0x198] sm:$0xf]
  %v132 = vld [vmem:[%s1 + $0x19c] sm:$0xf]
  %v133 = vld [vmem:[%s1 + $0x1a0] sm:$0xf]
  %v134 = vld [vmem:[%s1 + $0x1a4] sm:$0xf]
  %v135 = vld [vmem:[%s1 + $0x1a8] sm:$0xf]
  %v136 = vld [vmem:[%s1 + $0x1ac] sm:$0xf]
  %v137 = vld [vmem:[%s1 + $0x1b0] sm:$0xf]
  %v138 = vld [vmem:[%s1 + $0x1b4] sm:$0xf]
  %v139 = vld [vmem:[%s1 + $0x1b8] sm:$0xf]
  %v140 = vld [vmem:[%s1 + $0x1bc] sm:$0xf]
  %v141 = vld [vmem:[%s1 + $0x1c0] sm:$0xf]
  %v142 = vld [vmem:[%s1 + $0x1c4] sm:$0xf]
  %v143 = vld [vmem:[%s1 + $0x1c8] sm:$0xf]
  %v144 = vld [vmem:[%s1 + $0x1cc] sm:$0xf]
  %v145 = vld [vmem:[%s1 + $0x1d0] sm:$0xf]
  %v146 = vld [vmem:[%s1 + $0x1d4] sm:$0xf]
  %v147 = vld [vmem:[%s1 + $0x1d8] sm:$0xf]
  %v148 = vld [vmem:[%s1 + $0x1dc] sm:$0xf]
  %v149 = vld [vmem:[%s1 + $0x1e0] sm:$0xf]
  %v150 = vld [vmem:[%s1 + $0x1e4] sm:$0xf]
  %v151 = vld [vmem:[%s1 + $0x1e8] sm:$0xf]
  %v152 = vld [vmem:[%s1 + $0x1ec] sm:$0xf]
  %v153 = vld [vmem:[%s1 + $0x1f0] sm:$0xf]
  %v154 = vld [vmem:[%s1 + $0x1f4] sm:$0xf]
  %v155 = vld [vmem:[%s1 + $0x1f8] sm:$0xf]
  %v156 = vld [vmem:[%s1 + $0x1fc] sm:$0xf]
  %v157 = vld [vmem:[%s1 + $0x200] sm:$0xf]
  %v158 = vld [vmem:[%s1 + $0x204] sm:$0xf]
  %v159 = vld [vmem:[%s1 + $0x208] sm:$0xf]
  %v160 = vld [vmem:[%s1 + $0x20c] sm:$0xf]
  %v161 = vld [vmem:[%s1 + $0x210] sm:$0xf]
  %v162 = vld [vmem:[%s1 + $0x214] sm:$0xf]
  %v163 = vld [vmem:[%s1 + $0x218] sm:$0xf]
  %v164 = vld [vmem:[%s1 + $0x21c] sm:$0xf]
  %v165 = vld [vmem:[%s1 + $0x220] sm:$0xf]
  %v166 = vld [vmem:[%s1 + $0x224] sm:$0xf]
  %v167 = vld [vmem:[%s1 + $0x228] sm:$0xf]
  %v168 = vld [vmem:[%s1 + $0x22c] sm:$0xf]
  %v169 = vld [vmem:[%s1 + $0x230] sm:$0xf]
  %v170 = vld [vmem:[%s1 + $0x234] sm:$0xf]
  %v171 = vld [vmem:[%s1 + $0x238] sm:$0xf]
  %v172 = vld [vmem:[%s1 + $0x23c] sm:$0xf]
  %v173 = vld [vmem:[%s1 + $0x240] sm:$0xf]
  %v174 = vld [vmem:[%s1 + $0x244] sm:$0xf]
  %v175 = vld [vmem:[%s1 + $0x248] sm:$0xf]
  %v176 = vld [vmem:[%s1 + $0x24c] sm:$0xf]
  %v177 = vld [vmem:[%s1 + $0x250] sm:$0xf]
  %v178 = vld [vmem:[%s1 + $0x254] sm:$0xf]
  %v179 = vld [vmem:[%s1 + $0x258] sm:$0xf]
  %v180 = vld [vmem:[%s1 + $0x25c] sm:$0xf]
  %v181 = vld [vmem:[%s1 + $0x260] sm:$0xf]
  %v182 = vld [vmem:[%s1 + $0x264] sm:$0xf]
  %v183 = vld [vmem:[%s1 + $0x268] sm:$0xf]
  %v184 = vld [vmem:[%s1 + $0x26c] sm:$0xf]
  %v185 = vld [vmem:[%s1 + $0x270] sm:$0xf]
  %v186 = vld [vmem:[%s1 + $0x274] sm:$0xf]
  %v187 = vld [vmem:[%s1 + $0x278] sm:$0xf]
  %v188 = vld [vmem:[%s1 + $0x27c] sm:$0xf]
  %v189 = vld [vmem:[%s1 + $0x280] sm:$0xf]
  %v190 = vld [vmem:[%s1 + $0x284] sm:$0xf]
  %v191 = vld [vmem:[%s1 + $0x288] sm:$0xf]
  %v192 = vld [vmem:[%s1 + $0x28c] sm:$0xf]
  %v193 = vld [vmem:[%s1 + $0x290] sm:$0xf]
  %v194 = vld [vmem:[%s1 + $0x294] sm:$0xf]
  %v195 = vld [vmem:[%s1 + $0x298] sm:$0xf]
  %v196 = vld [vmem:[%s1 + $0x29c] sm:$0xf]
  %v197 = vld [vmem:[%s1 + $0x2a0] sm:$0xf]
  %v198 = vld [vmem:[%s1 + $0x2a4] sm:$0xf]
  %v199 = vld [vmem:[%s1 + $0x2a8] sm:$0xf]
  %v200 = vld [vmem:[%s1 + $0x2ac] sm:$0xf]
  %v201 = vld [vmem:[%s1 + $0x2b0] sm:$0xf]
  %v202 = vld [vmem:[%s1 + $0x2b4] sm:$0xf]
  %v203 = vld [vmem:[%s1 + $0x2b8] sm:$0xf]
  %v204 = vld [vmem:[%s1 + $0x2bc] sm:$0xf]
  %v205 = vld [vmem:[%s1 + $0x2c0] sm:$0xf]
  %v206 = vld [vmem:[%s1 + $0x2c4] sm:$0xf]
  %v207 = vld [vmem:[%s1 + $0x2c8] sm:$0xf]
  %v208 = vld [vmem:[%s1 + $0x2cc] sm:$0xf]
  %v209 = vld [vmem:[%s1 + $0x2d0] sm:$0xf]
  %v210 = vld [vmem:[%s1 + $0x2d4] sm:$0xf]
  %v211 = vld [vmem:[%s1 + $0x2d8] sm:$0xf]
  %v212 = vld [vmem:[%s1 + $0x2dc] sm:$0xf]
  %v213 = vld [vmem:[%s1 + $0x2e0] sm:$0xf]
  %v214 = vld [vmem:[%s1 + $0x2e4] sm:$0xf]
  %v215 = vld [vmem:[%s1 + $0x2e8] sm:$0xf]
  %v216 = vld [vmem:[%s1 + $0x2ec] sm:$0xf]
  %v217 = vld [vmem:[%s1 + $0x2f0] sm:$0xf]
  %v218 = vld [vmem:[%s1 + $0x2f4] sm:$0xf]
  %v219 = vld [vmem:[%s1 + $0x2f8] sm:$0xf]
  %v220 = vld [vmem:[%s1 + $0x2fc] sm:$0xf]
  %v221 = vld [vmem:[%s1 + $0x300] sm:$0xf]
  %v222 = vld [vmem:[%s1 + $0x304] sm:$0xf]
  %v223 = vld [vmem:[%s1 + $0x308] sm:$0xf]
  %v224 = vld [vmem:[%s1 + $0x30c] sm:$0xf]
  %v225 = vld [vmem:[%s1 + $0x310] sm:$0xf]
  %v226 = vld [vmem:[%s1 + $0x314] sm:$0xf]
  %v227 = vld [vmem:[%s1 + $0x318] sm:$0xf]
  %v228 = vld [vmem:[%s1 + $0x31c] sm:$0xf]
  %v229 = vld [vmem:[%s1 + $0x320] sm:$0xf]
  %v230 = vld [vmem:[%s1 + $0x324] sm:$0xf]
  %v231 = vld [vmem:[%s1 + $0x328] sm:$0xf]
  %v232 = vld [vmem:[%s1 + $0x32c] sm:$0xf]
  %v233 = vld [vmem:[%s1 + $0x330] sm:$0xf]
  %v234 = vld [vmem:[%s1 + $0x334] sm:$0xf]
  %v235 = vld [vmem:[%s1 + $0x338] sm:$0xf]
  %v236 = vld [vmem:[%s1 + $0x33c] sm:$0xf]
  %v237 = vld [vmem:[%s1 + $0x340] sm:$0xf]
  %v238 = vld [vmem:[%s1 + $0x344] sm:$0xf]
  %v239 = vld [vmem:[%s1 + $0x348] sm:$0xf]
  %v240 = vld [vmem:[%s1 + $0x34c] sm:$0xf]
  %v241 = vld [vmem:[%s1 + $0x350] sm:$0xf]
  %v242 = vld [vmem:[%s1 + $0x354] sm:$0xf]
  %v243 = vld [vmem:[%s1 + $0x358] sm:$0xf]
  %v244 = vld [vmem:[%s1 + $0x35c] sm:$0xf]
  %v245 = vld [vmem:[%s1 + $0x360] sm:$0xf]
  %v246 = vld [vmem:[%s1 + $0x364] sm:$0xf]
  %v247 = vld [vmem:[%s1 + $0x368] sm:$0xf]
  %v248 = vld [vmem:[%s1 + $0x36c] sm:$0xf]
  %v249 = vld [vmem:[%s1 + $0x370] sm:$0xf]
  %v250 = vld [vmem:[%s1 + $0x374] sm:$0xf]
  %v251 = vld [vmem:[%s1 + $0x378] sm:$0xf]
  %v252 = vld [vmem:[%s1 + $0x37c] sm:$0xf]
  %v253 = vld [vmem:[%s1 + $0x380] sm:$0xf]
  %v254 = vld [vmem:[%s1 + $0x384] sm:$0xf]
  %v255 = vld [vmem:[%s1 + $0x388] sm:$0xf]
  %v256 = vld [vmem:[%s1 + $0x38c] sm:$0xf]
  %v257 = vld [vmem:[%s1 + $0x390] sm:$0xf]
  %v258 = vld [vmem:[%s1 + $0x394] sm:$0xf]
  %v259 = vld [vmem:[%s1 + $0x398] sm:$0xf]
  %v260 = vld [vmem:[%s1 + $0x39c] sm:$0xf]
  %v261 = vld [vmem:[%s1 + $0x3a0] sm:$0xf]
  %v262 = vld [vmem:[%s1 + $0x3a4] sm:$0xf]
  %v263 = vld [vmem:[%s1 + $0x3a8] sm:$0xf]
  %v264 = vld [vmem:[%s1 + $0x3ac] sm:$0xf]
  %v265 = vld [vmem:[%s1 + $0x3b0] sm:$0xf]
  %v266 = vld [vmem:[%s1 + $0x3b4] sm:$0xf]
  %v267 = vld [vmem:[%s1 + $0x3b8] sm:$0xf]
  %v268 = vld [vmem:[%s1 + $0x3bc] sm:$0xf]
  %v269 = vld [vmem:[%s1 + $0x3c0] sm:$0xf]
  %v270 = vld [vmem:[%s1 + $0x3c4] sm:$0xf]
  %v271 = vld [vmem:[%s1 + $0x3c8] sm:$0xf]
  %v272 = vld [vmem:[%s1 + $0x3cc] sm:$0xf]
  %v273 = vld [vmem:[%s1 + $0x3d0] sm:$0xf]
  %v274 = vld [vmem:[%s1 + $0x3d4] sm:$0xf]
  %v275 = vld [vmem:[%s1 + $0x3d8] sm:$0xf]
  %v276 = vld [vmem:[%s1 + $0x3dc] sm:$0xf]
  %v277 = vld [vmem:[%s1 + $0x3e0] sm:$0xf]
  %v278 = vld [vmem:[%s1 + $0x3e4] sm:$0xf]
  %v279 = vld [vmem:[%s1 + $0x3e8] sm:$0xf]
  %v280 = vld [vmem:[%s1 + $0x3ec] sm:$0xf]
  %v281 = vld [vmem:[%s1 + $0x3f0] sm:$0xf]
  %v282 = vld [vmem:[%s1 + $0x3f4] sm:$0xf]
  %v283 = vld [vmem:[%s1 + $0x3f8] sm:$0xf]
  %v284 = vld [vmem:[%s1 + $0x3fc] sm:$0xf]
  %v285 = vld [vmem:[%s1 + $0x400] sm:$0xf]
  %v286 = vld [vmem:[%s1 + $0x404] sm:$0xf]
  %v287 = vld [vmem:[%s1 + $0x408] sm:$0xf]
  %v288 = vld [vmem:[%s1 + $0x40c] sm:$0xf]
  %v289 = vld [vmem:[%s1 + $0x410] sm:$0xf]
  %v290 = vld [vmem:[%s1 + $0x414] sm:$0xf]
  %v291 = vld [vmem:[%s1 + $0x418] sm:$0xf]
  %v292 = vld [vmem:[%s1 + $0x41c] sm:$0xf]
  %v293 = vld [vmem:[%s1 + $0x420] sm:$0xf]
  %v294 = vld [vmem:[%s1 + $0x424] sm:$0xf]
  %v295 = vld [vmem:[%s1 + $0x428] sm:$0xf]
  %v296 = vld [vmem:[%s1 + $0x42c] sm:$0xf]
  %v297 = vld [vmem:[%s1 + $0x430] sm:$0xf]
  %v298 = vld [vmem:[%s1 + $0x434] sm:$0xf]
  %v299 = vld [vmem:[%s1 + $0x438] sm:$0xf]
  %v300 = vld [vmem:[%s1 + $0x43c] sm:$0xf]
  %v301 = vld [vmem:[%s1 + $0x440] sm:$0xf]
  %v302 = vld [vmem:[%s1 + $0x444] sm:$0xf]
  %v303 = vld [vmem:[%s1 + $0x448] sm:$0xf]
  %v304 = vld [vmem:[%s1 + $0x44c] sm:$0xf]
  %v305 = vld [vmem:[%s1 + $0x450] sm:$0xf]
  %v306 = vld [vmem:[%s1 + $0x454] sm:$0xf]
  %v307 = vld [vmem:[%s1 + $0x458] sm:$0xf]
  %v308 = vld [vmem:[%s1 + $0x45c] sm:$0xf]
  %v309 = vld [vmem:[%s1 + $0x460] sm:$0xf]
  %v310 = vld [vmem:[%s1 + $0x464] sm:$0xf]
  %v311 = vld [vmem:[%s1 + $0x468] sm:$0xf]
  %v312 = vld [vmem:[%s1 + $0x46c] sm:$0xf]
  %v313 = vld [vmem:[%s1 + $0x470] sm:$0xf]
  %v314 = vld [vmem:[%s1 + $0x474] sm:$0xf]
  %v315 = vld [vmem:[%s1 + $0x478] sm:$0xf]
  %v316 = vld [vmem:[%s1 + $0x47c] sm:$0xf]
  %v317 = vld [vmem:[%s1 + $0x480] sm:$0xf]
  %v318 = vld [vmem:[%s1 + $0x484] sm:$0xf]
  %v319 = vld [vmem:[%s1 + $0x488] sm:$0xf]
  %v320 = vld [vmem:[%s1 + $0x48c] sm:$0xf]
  %v321 = vld [vmem:[%s1 + $0x490] sm:$0xf]
  %v322 = vld [vmem:[%s1 + $0x494] sm:$0xf]
  %v323 = vld [vmem:[%s1 + $0x498] sm:$0xf]
  %v324 = vld [vmem:[%s1 + $0x49c] sm:$0xf]
  %v325 = vld [vmem:[%s1 + $0x4a0] sm:$0xf]
  %v326 = vld [vmem:[%s1 + $0x4a4] sm:$0xf]
  %v327 = vld [vmem:[%s1 + $0x4a8] sm:$0xf]
  %v328 = vld [vmem:[%s1 + $0x4ac] sm:$0xf]
  %v329 = vld [vmem:[%s1 + $0x4b0] sm:$0xf]
  %v330 = vld [vmem:[%s1 + $0x4b4] sm:$0xf]
  %v331 = vld [vmem:[%s1 + $0x4b8] sm:$0xf]
  %v332 = vld [vmem:[%s1 + $0x4bc] sm:$0xf]
  %v333 = vld [vmem:[%s1 + $0x4c0] sm:$0xf]
  %v334 = vld [vmem:[%s1 + $0x4c4] sm:$0xf]
  %v335 = vld [vmem:[%s1 + $0x4c8] sm:$0xf]
  %v336 = vld [vmem:[%s1 + $0x4cc] sm:$0xf]
  %v337 = vld [vmem:[%s1 + $0x4d0] sm:$0xf]
  %v338 = vld [vmem:[%s1 + $0x4d4] sm:$0xf]
  %v339 = vld [vmem:[%s1 + $0x4d8] sm:$0xf]
  %v340 = vld [vmem:[%s1 + $0x4dc] sm:$0xf]
  %v341 = vld [vmem:[%s1 + $0x4e0] sm:$0xf]
  %v342 = vld [vmem:[%s1 + $0x4e4] sm:$0xf]
  %v343 = vld [vmem:[%s1 + $0x4e8] sm:$0xf]
  %v344 = vld [vmem:[%s1 + $0x4ec] sm:$0xf]
  %v345 = vld [vmem:[%s1 + $0x4f0] sm:$0xf]
  %v346 = vld [vmem:[%s1 + $0x4f4] sm:$0xf]
  %v347 = vld [vmem:[%s1 + $0x4f8] sm:$0xf]
  %v348 = vld [vmem:[%s1 + $0x4fc] sm:$0xf]
  %v349 = vld [vmem:[%s1 + $0x500] sm:$0xf]
  %v350 = vld [vmem:[%s1 + $0x504] sm:$0xf]
  %v351 = vld [vmem:[%s1 + $0x508] sm:$0xf]
  %v352 = vld [vmem:[%s1 + $0x50c] sm:$0xf]
  %v353 = vld [vmem:[%s1 + $0x510] sm:$0xf]
  %v354 = vld [vmem:[%s1 + $0x514] sm:$0xf]
  %v355 = vld [vmem:[%s1 + $0x518] sm:$0xf]
  %v356 = vld [vmem:[%s1 + $0x51c] sm:$0xf]
  %v357 = vld [vmem:[%s1 + $0x520] sm:$0xf]
  %v358 = vld [vmem:[%s1 + $0x524] sm:$0xf]
  %v359 = vld [vmem:[%s1 + $0x528] sm:$0xf]
  %v360 = vld [vmem:[%s1 + $0x52c] sm:$0xf]
  %v361 = vld [vmem:[%s1 + $0x530] sm:$0xf]
  %v362 = vld [vmem:[%s1 + $0x534] sm:$0xf]
  %v363 = vld [vmem:[%s1 + $0x538] sm:$0xf]
  %v364 = vld [vmem:[%s1 + $0x53c] sm:$0xf]
  %v365 = vld [vmem:[%s1 + $0x540] sm:$0xf]
  %v366 = vld [vmem:[%s1 + $0x544] sm:$0xf]
  %v367 = vld [vmem:[%s1 + $0x548] sm:$0xf]
  %v368 = vld [vmem:[%s1 + $0x54c] sm:$0xf]
  %v369 = vld [vmem:[%s1 + $0x550] sm:$0xf]
  %v370 = vld [vmem:[%s1 + $0x554] sm:$0xf]
  %v371 = vld [vmem:[%s1 + $0x558] sm:$0xf]
  %v372 = vld [vmem:[%s1 + $0x55c] sm:$0xf]
  %v373 = vld [vmem:[%s1 + $0x560] sm:$0xf]
  %v374 = vld [vmem:[%s1 + $0x564] sm:$0xf]
  %v375 = vld [vmem:[%s1 + $0x568] sm:$0xf]
  %v376 = vld [vmem:[%s1 + $0x56c] sm:$0xf]
  %v377 = vld [vmem:[%s1 + $0x570] sm:$0xf]
  %v378 = vld [vmem:[%s1 + $0x574] sm:$0xf]
  %v379 = vld [vmem:[%s1 + $0x578] sm:$0xf]
  %v380 = vld [vmem:[%s1 + $0x57c] sm:$0xf]
  %v381 = vld [vmem:[%s1 + $0x580] sm:$0xf]
  %v382 = vld [vmem:[%s1 + $0x584] sm:$0xf]
  %v383 = vld [vmem:[%s1 + $0x588] sm:$0xf]
  %v384 = vld [vmem:[%s1 + $0x58c] sm:$0xf]
  %v385 = vld [vmem:[%s1 + $0x590] sm:$0xf]
  %v386 = vld [vmem:[%s1 + $0x594] sm:$0xf]
  %v387 = vld [vmem:[%s1 + $0x598] sm:$0xf]
  %v388 = vld [vmem:[%s1 + $0x59c] sm:$0xf]
  %v389 = vld [vmem:[%s1 + $0x5a0] sm:$0xf]
  %v390 = vld [vmem:[%s1 + $0x5a4] sm:$0xf]
  %v391 = vld [vmem:[%s1 + $0x5a8] sm:$0xf]
  %v392 = vld [vmem:[%s1 + $0x5ac] sm:$0xf]
  %v393 = vld [vmem:[%s1 + $0x5b0] sm:$0xf]
  %v394 = vld [vmem:[%s1 + $0x5b4] sm:$0xf]
  %v395 = vld [vmem:[%s1 + $0x5b8] sm:$0xf]
  %v396 = vld [vmem:[%s1 + $0x5bc] sm:$0xf]
  %v397 = vld [vmem:[%s1 + $0x5c0] sm:$0xf]
  %v398 = vld [vmem:[%s1 + $0x5c4] sm:$0xf]
  %v399 = vld [vmem:[%s1 + $0x5c8] sm:$0xf]
  %v400 = vld [vmem:[%s1 + $0x5cc] sm:$0xf]
  %v401 = vld [vmem:[%s1 + $0x5d0] sm:$0xf]
  %v402 = vld [vmem:[%s1 + $0x5d4] sm:$0xf]
  %v403 = vld [vmem:[%s1 + $0x5d8] sm:$0xf]
  %v404 = vld [vmem:[%s1 + $0x5dc] sm:$0xf]
  %v405 = vld [vmem:[%s1 + $0x5e0] sm:$0xf]
  %v406 = vld [vmem:[%s1 + $0x5e4] sm:$0xf]
  %v407 = vld [vmem:[%s1 + $0x5e8] sm:$0xf]
  %v408 = vld [vmem:[%s1 + $0x5ec] sm:$0xf]
  %v409 = vld [vmem:[%s1 + $0x5f0] sm:$0xf]
  %v410 = vld [vmem:[%s1 + $0x5f4] sm:$0xf]
  %v411 = vld [vmem:[%s1 + $0x5f8] sm:$0xf]
  %v412 = vld [vmem:[%s1 + $0x5fc] sm:$0xf]
  %v413 = vld [vmem:[%s1 + $0x600] sm:$0xf]
  %v414 = vld [vmem:[%s1 + $0x604] sm:$0xf]
  %v415 = vld [vmem:[%s1 + $0x608] sm:$0xf]
  %v416 = vld [vmem:[%s1 + $0x60c] sm:$0xf]
  %v417 = vld [vmem:[%s1 + $0x610] sm:$0xf]
  %v418 = vld [vmem:[%s1 + $0x614] sm:$0xf]
  %v419 = vld [vmem:[%s1 + $0x618] sm:$0xf]
  %v420 = vld [vmem:[%s1 + $0x61c] sm:$0xf]
  %v421 = vld [vmem:[%s1 + $0x620] sm:$0xf]
  %v422 = vld [vmem:[%s1 + $0x624] sm:$0xf]
  %v423 = vld [vmem:[%s1 + $0x628] sm:$0xf]
  %v424 = vld [vmem:[%s1 + $0x62c] sm:$0xf]
  %v425 = vld [vmem:[%s1 + $0x630] sm:$0xf]
  %v426 = vld [vmem:[%s1 + $0x634] sm:$0xf]
  %v427 = vld [vmem:[%s1 + $0x638] sm:$0xf]
  %v428 = vld [vmem:[%s1 + $0x63c] sm:$0xf]
  %v429 = vld [vmem:[%s1 + $0x640] sm:$0xf]
  %v430 = vld [vmem:[%s1 + $0x644] sm:$0xf]
  %v431 = vld [vmem:[%s1 + $0x648] sm:$0xf]
  %v432 = vld [vmem:[%s1 + $0x64c] sm:$0xf]
  %v433 = vld [vmem:[%s1 + $0x650] sm:$0xf]
  %v434 = vld [vmem:[%s1 + $0x654] sm:$0xf]
  %v435 = vld [vmem:[%s1 + $0x658] sm:$0xf]
  %v436 = vld [vmem:[%s1 + $0x65c] sm:$0xf]
  %v437 = vld [vmem:[%s1 + $0x660] sm:$0xf]
  %v438 = vld [vmem:[%s1 + $0x664] sm:$0xf]
  %v439 = vld [vmem:[%s1 + $0x668] sm:$0xf]
  %v440 = vld [vmem:[%s1 + $0x66c] sm:$0xf]
  %v441 = vld [vmem:[%s1 + $0x670] sm:$0xf]
  %v442 = vld [vmem:[%s1 + $0x674] sm:$0xf]
  %v443 = vld [vmem:[%s1 + $0x678] sm:$0xf]
  %v444 = vld [vmem:[%s1 + $0x67c] sm:$0xf]
  %v445 = vld [vmem:[%s1 + $0x680] sm:$0xf]
  %v446 = vld [vmem:[%s1 + $0x684] sm:$0xf]
  %v447 = vld [vmem:[%s1 + $0x688] sm:$0xf]
  %v448 = vld [vmem:[%s1 + $0x68c] sm:$0xf]
  %v449 = vld [vmem:[%s1 + $0x690] sm:$0xf]
  %v450 = vld [vmem:[%s1 + $0x694] sm:$0xf]
  %v451 = vld [vmem:[%s1 + $0x698] sm:$0xf]
  %v452 = vld [vmem:[%s1 + $0x69c] sm:$0xf]
  %v453 = vld [vmem:[%s1 + $0x6a0] sm:$0xf]
  %v454 = vld [vmem:[%s1 + $0x6a4] sm:$0xf]
  %v455 = vld [vmem:[%s1 + $0x6a8] sm:$0xf]
  %v456 = vld [vmem:[%s1 + $0x6ac] sm:$0xf]
  %v457 = vld [vmem:[%s1 + $0x6b0] sm:$0xf]
  %v458 = vld [vmem:[%s1 + $0x6b4] sm:$0xf]
  %v459 = vld [vmem:[%s1 + $0x6b8] sm:$0xf]
  %v460 = vld [vmem:[%s1 + $0x6bc] sm:$0xf]
  %v461 = vld [vmem:[%s2] sm:$0x1]
  %v463 = vlaneseq
  %v464 = vshrl.u32 %v463, 7
  %v465 = vsub.s32 0, %v464
  %v466 = vrot.slane %v461, %v465
  %v482 = vunpack.c.l.b16 %v15
  %v483 = vunpack.c.h.b16 %v15
  %v484 = vunpack.c.l.b16 %v16
  %v485 = vunpack.c.h.b16 %v16
  %v486 = vunpack.c.l.b16 %v17
  %v487 = vunpack.c.h.b16 %v17
  %v488 = vunpack.c.l.b16 %v18
  %v489 = vunpack.c.h.b16 %v18
  %v490 = vunpack.c.l.b16 %v19
  %v491 = vunpack.c.h.b16 %v19
  %v492 = vunpack.c.l.b16 %v20
  %v493 = vunpack.c.h.b16 %v20
  %v494 = vunpack.c.l.b16 %v21
  %v495 = vunpack.c.h.b16 %v21
  %v496 = vunpack.c.l.b16 %v22
  %v497 = vunpack.c.h.b16 %v22
  %v498 = vunpack.c.l.b16 %v23
  %v499 = vunpack.c.h.b16 %v23
  %v500 = vunpack.c.l.b16 %v24
  %v501 = vunpack.c.h.b16 %v24
  %v502 = vunpack.c.l.b16 %v25
  %v503 = vunpack.c.h.b16 %v25
  %v504 = vunpack.c.l.b16 %v26
  %v505 = vunpack.c.h.b16 %v26
  %v506 = vunpack.c.l.b16 %v27
  %v507 = vunpack.c.h.b16 %v27
  %v508 = vunpack.c.l.b16 %v28
  %v509 = vpack.c.b16 %v482, %v482
  %v510 = vpack.c.b16 %v483, %v483
  %v511 = vpack.c.b16 %v484, %v484
  %v512 = vpack.c.b16 %v485, %v485
  %v513 = vpack.c.b16 %v486, %v486
  %v514 = vpack.c.b16 %v487, %v487
  %v515 = vpack.c.b16 %v488, %v488
  %v516 = vpack.c.b16 %v489, %v489
  %v517 = vpack.c.b16 %v490, %v490
  %v518 = vpack.c.b16 %v491, %v491
  %v519 = vpack.c.b16 %v492, %v492
  %v520 = vpack.c.b16 %v493, %v493
  %v521 = vpack.c.b16 %v494, %v494
  %v522 = vpack.c.b16 %v495, %v495
  %v523 = vpack.c.b16 %v496, %v496
  %v524 = vpack.c.b16 %v497, %v497
  %v525 = vpack.c.b16 %v498, %v498
  %v526 = vpack.c.b16 %v499, %v499
  %v527 = vpack.c.b16 %v500, %v500
  %v528 = vpack.c.b16 %v501, %v501
  %v529 = vpack.c.b16 %v502, %v502
  %v530 = vpack.c.b16 %v503, %v503
  %v531 = vpack.c.b16 %v504, %v504
  %v532 = vpack.c.b16 %v505, %v505
  %v533 = vpack.c.b16 %v506, %v506
  %v534 = vpack.c.b16 %v507, %v507
  %v535 = vpack.c.b16 %v508, %v508
  %v995 = vunpack.c.l.b16 %v29
  %v996 = vunpack.c.l.b16 %v30
  %v997 = vunpack.c.l.b16 %v31
  %v998 = vunpack.c.l.b16 %v32
  %v999 = vunpack.c.l.b16 %v33
  %v1000 = vunpack.c.l.b16 %v34
  %v1001 = vunpack.c.l.b16 %v35
  %v1002 = vunpack.c.l.b16 %v36
  %v1003 = vunpack.c.l.b16 %v37
  %v1004 = vunpack.c.l.b16 %v38
  %v1005 = vunpack.c.l.b16 %v39
  %v1006 = vunpack.c.l.b16 %v40
  %v1007 = vunpack.c.l.b16 %v41
  %v1008 = vunpack.c.l.b16 %v42
  %v1009 = vunpack.c.l.b16 %v43
  %v1010 = vunpack.c.l.b16 %v44
  %v1011 = vunpack.c.l.b16 %v45
  %v1012 = vunpack.c.l.b16 %v46
  %v1013 = vunpack.c.l.b16 %v47
  %v1014 = vunpack.c.l.b16 %v48
  %v1015 = vunpack.c.l.b16 %v49
  %v1016 = vunpack.c.l.b16 %v50
  %v1017 = vunpack.c.l.b16 %v51
  %v1018 = vunpack.c.l.b16 %v52
  %v1019 = vunpack.c.l.b16 %v53
  %v1020 = vunpack.c.l.b16 %v54
  %v1021 = vunpack.c.l.b16 %v55
  %v1022 = vunpack.c.l.b16 %v56
  %v1023 = vunpack.c.l.b16 %v57
  %v1024 = vunpack.c.l.b16 %v58
  %v1025 = vunpack.c.l.b16 %v59
  %v1026 = vunpack.c.l.b16 %v60
  %v1027 = vunpack.c.l.b16 %v61
  %v1028 = vunpack.c.l.b16 %v62
  %v1029 = vunpack.c.l.b16 %v63
  %v1030 = vunpack.c.l.b16 %v64
  %v1031 = vunpack.c.l.b16 %v65
  %v1032 = vunpack.c.l.b16 %v66
  %v1033 = vunpack.c.l.b16 %v67
  %v1034 = vunpack.c.l.b16 %v68
  %v1035 = vunpack.c.l.b16 %v69
  %v1036 = vunpack.c.l.b16 %v70
  %v1037 = vunpack.c.l.b16 %v71
  %v1038 = vunpack.c.l.b16 %v72
  %v1039 = vunpack.c.l.b16 %v73
  %v1040 = vunpack.c.l.b16 %v74
  %v1041 = vunpack.c.l.b16 %v75
  %v1042 = vunpack.c.l.b16 %v76
  %v1043 = vunpack.c.l.b16 %v77
  %v1044 = vunpack.c.l.b16 %v78
  %v1045 = vunpack.c.l.b16 %v79
  %v1046 = vunpack.c.l.b16 %v80
  %v1047 = vunpack.c.l.b16 %v81
  %v1048 = vunpack.c.l.b16 %v82
  %v1049 = vunpack.c.l.b16 %v83
  %v1050 = vunpack.c.l.b16 %v84
  %v1051 = vunpack.c.l.b16 %v85
  %v1052 = vunpack.c.l.b16 %v86
  %v1053 = vunpack.c.l.b16 %v87
  %v1054 = vunpack.c.l.b16 %v88
  %v1055 = vunpack.c.l.b16 %v89
  %v1056 = vunpack.c.l.b16 %v90
  %v1057 = vunpack.c.l.b16 %v91
  %v1058 = vunpack.c.l.b16 %v92
  %v1059 = vunpack.c.l.b16 %v93
  %v1060 = vunpack.c.l.b16 %v94
  %v1061 = vunpack.c.l.b16 %v95
  %v1062 = vunpack.c.l.b16 %v96
  %v1063 = vunpack.c.l.b16 %v97
  %v1064 = vunpack.c.l.b16 %v98
  %v1065 = vunpack.c.l.b16 %v99
  %v1066 = vunpack.c.l.b16 %v100
  %v1067 = vunpack.c.l.b16 %v101
  %v1068 = vunpack.c.l.b16 %v102
  %v1069 = vunpack.c.l.b16 %v103
  %v1070 = vunpack.c.l.b16 %v104
  %v1071 = vunpack.c.l.b16 %v105
  %v1072 = vunpack.c.l.b16 %v106
  %v1073 = vunpack.c.l.b16 %v107
  %v1074 = vunpack.c.l.b16 %v108
  %v1075 = vunpack.c.l.b16 %v109
  %v1076 = vunpack.c.l.b16 %v110
  %v1077 = vunpack.c.l.b16 %v111
  %v1078 = vunpack.c.l.b16 %v112
  %v1079 = vunpack.c.l.b16 %v113
  %v1080 = vunpack.c.l.b16 %v114
  %v1081 = vunpack.c.l.b16 %v115
  %v1082 = vunpack.c.l.b16 %v116
  %v1083 = vunpack.c.l.b16 %v117
  %v1084 = vunpack.c.l.b16 %v118
  %v1085 = vunpack.c.l.b16 %v119
  %v1086 = vunpack.c.l.b16 %v120
  %v1087 = vunpack.c.l.b16 %v121
  %v1088 = vunpack.c.l.b16 %v122
  %v1089 = vunpack.c.l.b16 %v123
  %v1090 = vunpack.c.l.b16 %v124
  %v1091 = vunpack.c.l.b16 %v125
  %v1092 = vunpack.c.l.b16 %v126
  %v1093 = vunpack.c.l.b16 %v127
  %v1094 = vunpack.c.l.b16 %v128
  %v1095 = vunpack.c.l.b16 %v129
  %v1096 = vunpack.c.l.b16 %v130
  %v1097 = vunpack.c.l.b16 %v131
  %v1098 = vunpack.c.l.b16 %v132
  %v1099 = vunpack.c.l.b16 %v133
  %v1100 = vunpack.c.l.b16 %v134
  %v1101 = vunpack.c.l.b16 %v135
  %v1102 = vunpack.c.l.b16 %v136
  %v1103 = vunpack.c.l.b16 %v137
  %v1104 = vunpack.c.l.b16 %v138
  %v1105 = vunpack.c.l.b16 %v139
  %v1106 = vunpack.c.l.b16 %v140
  %v1107 = vunpack.c.l.b16 %v141
  %v1108 = vunpack.c.l.b16 %v142
  %v1109 = vunpack.c.l.b16 %v143
  %v1110 = vunpack.c.l.b16 %v144
  %v1111 = vunpack.c.l.b16 %v145
  %v1112 = vunpack.c.l.b16 %v146
  %v1113 = vunpack.c.l.b16 %v147
  %v1114 = vunpack.c.l.b16 %v148
  %v1115 = vunpack.c.l.b16 %v149
  %v1116 = vunpack.c.l.b16 %v150
  %v1117 = vunpack.c.l.b16 %v151
  %v1118 = vunpack.c.l.b16 %v152
  %v1119 = vunpack.c.l.b16 %v153
  %v1120 = vunpack.c.l.b16 %v154
  %v1121 = vunpack.c.l.b16 %v155
  %v1122 = vunpack.c.l.b16 %v156
  %v1123 = vunpack.c.l.b16 %v157
  %v1124 = vunpack.c.l.b16 %v158
  %v1125 = vunpack.c.l.b16 %v159
  %v1126 = vunpack.c.l.b16 %v160
  %v1127 = vunpack.c.l.b16 %v161
  %v1128 = vunpack.c.l.b16 %v162
  %v1129 = vunpack.c.l.b16 %v163
  %v1130 = vunpack.c.l.b16 %v164
  %v1131 = vunpack.c.l.b16 %v165
  %v1132 = vunpack.c.l.b16 %v166
  %v1133 = vunpack.c.l.b16 %v167
  %v1134 = vunpack.c.l.b16 %v168
  %v1135 = vunpack.c.l.b16 %v169
  %v1136 = vunpack.c.l.b16 %v170
  %v1137 = vunpack.c.l.b16 %v171
  %v1138 = vunpack.c.l.b16 %v172
  %v1139 = vunpack.c.l.b16 %v173
  %v1140 = vunpack.c.l.b16 %v174
  %v1141 = vunpack.c.l.b16 %v175
  %v1142 = vunpack.c.l.b16 %v176
  %v1143 = vunpack.c.l.b16 %v177
  %v1144 = vunpack.c.l.b16 %v178
  %v1145 = vunpack.c.l.b16 %v179
  %v1146 = vunpack.c.l.b16 %v180
  %v1147 = vunpack.c.l.b16 %v181
  %v1148 = vunpack.c.l.b16 %v182
  %v1149 = vunpack.c.l.b16 %v183
  %v1150 = vunpack.c.l.b16 %v184
  %v1151 = vunpack.c.l.b16 %v185
  %v1152 = vunpack.c.l.b16 %v186
  %v1153 = vunpack.c.l.b16 %v187
  %v1154 = vunpack.c.l.b16 %v188
  %v1155 = vunpack.c.l.b16 %v189
  %v1156 = vunpack.c.l.b16 %v190
  %v1157 = vunpack.c.l.b16 %v191
  %v1158 = vunpack.c.l.b16 %v192
  %v1159 = vunpack.c.l.b16 %v193
  %v1160 = vunpack.c.l.b16 %v194
  %v1161 = vunpack.c.l.b16 %v195
  %v1162 = vunpack.c.l.b16 %v196
  %v1163 = vunpack.c.l.b16 %v197
  %v1164 = vunpack.c.l.b16 %v198
  %v1165 = vunpack.c.l.b16 %v199
  %v1166 = vunpack.c.l.b16 %v200
  %v1167 = vunpack.c.l.b16 %v201
  %v1168 = vunpack.c.l.b16 %v202
  %v1169 = vunpack.c.l.b16 %v203
  %v1170 = vunpack.c.l.b16 %v204
  %v1171 = vunpack.c.l.b16 %v205
  %v1172 = vunpack.c.l.b16 %v206
  %v1173 = vunpack.c.l.b16 %v207
  %v1174 = vunpack.c.l.b16 %v208
  %v1175 = vunpack.c.l.b16 %v209
  %v1176 = vunpack.c.l.b16 %v210
  %v1177 = vunpack.c.l.b16 %v211
  %v1178 = vunpack.c.l.b16 %v212
  %v1179 = vunpack.c.l.b16 %v213
  %v1180 = vunpack.c.l.b16 %v214
  %v1181 = vunpack.c.l.b16 %v215
  %v1182 = vunpack.c.l.b16 %v216
  %v1183 = vunpack.c.l.b16 %v217
  %v1184 = vunpack.c.l.b16 %v218
  %v1185 = vunpack.c.l.b16 %v219
  %v1186 = vunpack.c.l.b16 %v220
  %v1187 = vunpack.c.l.b16 %v221
  %v1188 = vunpack.c.l.b16 %v222
  %v1189 = vunpack.c.l.b16 %v223
  %v1190 = vunpack.c.l.b16 %v224
  %v1191 = vunpack.c.l.b16 %v225
  %v1192 = vunpack.c.l.b16 %v226
  %v1193 = vunpack.c.l.b16 %v227
  %v1194 = vunpack.c.l.b16 %v228
  %v1195 = vunpack.c.l.b16 %v229
  %v1196 = vunpack.c.l.b16 %v230
  %v1197 = vunpack.c.l.b16 %v231
  %v1198 = vunpack.c.l.b16 %v232
  %v1199 = vunpack.c.l.b16 %v233
  %v1200 = vunpack.c.l.b16 %v234
  %v1201 = vunpack.c.l.b16 %v235
  %v1202 = vunpack.c.l.b16 %v236
  %v1203 = vunpack.c.l.b16 %v237
  %v1204 = vunpack.c.l.b16 %v238
  %v1205 = vunpack.c.l.b16 %v239
  %v1206 = vunpack.c.l.b16 %v240
  %v1207 = vunpack.c.l.b16 %v241
  %v1208 = vunpack.c.l.b16 %v242
  %v1209 = vunpack.c.l.b16 %v243
  %v1210 = vunpack.c.l.b16 %v244
  %v1211 = vunpack.c.l.b16 %v245
  %v1212 = vunpack.c.l.b16 %v246
  %v1213 = vunpack.c.l.b16 %v247
  %v1214 = vunpack.c.l.b16 %v248
  %v1215 = vunpack.c.l.b16 %v249
  %v1216 = vunpack.c.l.b16 %v250
  %v1217 = vunpack.c.l.b16 %v251
  %v1218 = vunpack.c.l.b16 %v252
  %v1219 = vunpack.c.l.b16 %v253
  %v1220 = vunpack.c.l.b16 %v254
  %v1221 = vunpack.c.l.b16 %v255
  %v1222 = vunpack.c.l.b16 %v256
  %v1223 = vunpack.c.l.b16 %v257
  %v1224 = vunpack.c.l.b16 %v258
  %v1225 = vunpack.c.l.b16 %v259
  %v1226 = vunpack.c.l.b16 %v260
  %v1227 = vunpack.c.l.b16 %v261
  %v1228 = vunpack.c.l.b16 %v262
  %v1229 = vunpack.c.l.b16 %v263
  %v1230 = vunpack.c.l.b16 %v264
  %v1231 = vunpack.c.l.b16 %v265
  %v1232 = vunpack.c.l.b16 %v266
  %v1233 = vunpack.c.l.b16 %v267
  %v1234 = vunpack.c.l.b16 %v268
  %v1235 = vunpack.c.l.b16 %v269
  %v1236 = vunpack.c.l.b16 %v270
  %v1237 = vunpack.c.l.b16 %v271
  %v1238 = vunpack.c.l.b16 %v272
  %v1239 = vunpack.c.l.b16 %v273
  %v1240 = vunpack.c.l.b16 %v274
  %v1241 = vunpack.c.l.b16 %v275
  %v1242 = vunpack.c.l.b16 %v276
  %v1243 = vunpack.c.l.b16 %v277
  %v1244 = vunpack.c.l.b16 %v278
  %v1245 = vunpack.c.l.b16 %v279
  %v1246 = vunpack.c.l.b16 %v280
  %v1247 = vunpack.c.l.b16 %v281
  %v1248 = vunpack.c.l.b16 %v282
  %v1249 = vunpack.c.l.b16 %v283
  %v1250 = vunpack.c.l.b16 %v284
  %v1251 = vunpack.c.l.b16 %v285
  %v1252 = vunpack.c.l.b16 %v286
  %v1253 = vunpack.c.l.b16 %v287
  %v1254 = vunpack.c.l.b16 %v288
  %v1255 = vunpack.c.l.b16 %v289
  %v1256 = vunpack.c.l.b16 %v290
  %v1257 = vunpack.c.l.b16 %v291
  %v1258 = vunpack.c.l.b16 %v292
  %v1259 = vunpack.c.l.b16 %v293
  %v1260 = vunpack.c.l.b16 %v294
  %v1261 = vunpack.c.l.b16 %v295
  %v1262 = vunpack.c.l.b16 %v296
  %v1263 = vunpack.c.l.b16 %v297
  %v1264 = vunpack.c.l.b16 %v298
  %v1265 = vunpack.c.l.b16 %v299
  %v1266 = vunpack.c.l.b16 %v300
  %v1267 = vunpack.c.l.b16 %v301
  %v1268 = vunpack.c.l.b16 %v302
  %v1269 = vunpack.c.l.b16 %v303
  %v1270 = vunpack.c.l.b16 %v304
  %v1271 = vunpack.c.l.b16 %v305
  %v1272 = vunpack.c.l.b16 %v306
  %v1273 = vunpack.c.l.b16 %v307
  %v1274 = vunpack.c.l.b16 %v308
  %v1275 = vunpack.c.l.b16 %v309
  %v1276 = vunpack.c.l.b16 %v310
  %v1277 = vunpack.c.l.b16 %v311
  %v1278 = vunpack.c.l.b16 %v312
  %v1279 = vunpack.c.l.b16 %v313
  %v1280 = vunpack.c.l.b16 %v314
  %v1281 = vunpack.c.l.b16 %v315
  %v1282 = vunpack.c.l.b16 %v316
  %v1283 = vunpack.c.l.b16 %v317
  %v1284 = vunpack.c.l.b16 %v318
  %v1285 = vunpack.c.l.b16 %v319
  %v1286 = vunpack.c.l.b16 %v320
  %v1287 = vunpack.c.l.b16 %v321
  %v1288 = vunpack.c.l.b16 %v322
  %v1289 = vunpack.c.l.b16 %v323
  %v1290 = vunpack.c.l.b16 %v324
  %v1291 = vunpack.c.l.b16 %v325
  %v1292 = vunpack.c.l.b16 %v326
  %v1293 = vunpack.c.l.b16 %v327
  %v1294 = vunpack.c.l.b16 %v328
  %v1295 = vunpack.c.l.b16 %v329
  %v1296 = vunpack.c.l.b16 %v330
  %v1297 = vunpack.c.l.b16 %v331
  %v1298 = vunpack.c.l.b16 %v332
  %v1299 = vunpack.c.l.b16 %v333
  %v1300 = vunpack.c.l.b16 %v334
  %v1301 = vunpack.c.l.b16 %v335
  %v1302 = vunpack.c.l.b16 %v336
  %v1303 = vunpack.c.l.b16 %v337
  %v1304 = vunpack.c.l.b16 %v338
  %v1305 = vunpack.c.l.b16 %v339
  %v1306 = vunpack.c.l.b16 %v340
  %v1307 = vunpack.c.l.b16 %v341
  %v1308 = vunpack.c.l.b16 %v342
  %v1309 = vunpack.c.l.b16 %v343
  %v1310 = vunpack.c.l.b16 %v344
  %v1311 = vunpack.c.l.b16 %v345
  %v1312 = vunpack.c.l.b16 %v346
  %v1313 = vunpack.c.l.b16 %v347
  %v1314 = vunpack.c.l.b16 %v348
  %v1315 = vunpack.c.l.b16 %v349
  %v1316 = vunpack.c.l.b16 %v350
  %v1317 = vunpack.c.l.b16 %v351
  %v1318 = vunpack.c.l.b16 %v352
  %v1319 = vunpack.c.l.b16 %v353
  %v1320 = vunpack.c.l.b16 %v354
  %v1321 = vunpack.c.l.b16 %v355
  %v1322 = vunpack.c.l.b16 %v356
  %v1323 = vunpack.c.l.b16 %v357
  %v1324 = vunpack.c.l.b16 %v358
  %v1325 = vunpack.c.l.b16 %v359
  %v1326 = vunpack.c.l.b16 %v360
  %v1327 = vunpack.c.l.b16 %v361
  %v1328 = vunpack.c.l.b16 %v362
  %v1329 = vunpack.c.l.b16 %v363
  %v1330 = vunpack.c.l.b16 %v364
  %v1331 = vunpack.c.l.b16 %v365
  %v1332 = vunpack.c.l.b16 %v366
  %v1333 = vunpack.c.l.b16 %v367
  %v1334 = vunpack.c.l.b16 %v368
  %v1335 = vunpack.c.l.b16 %v369
  %v1336 = vunpack.c.l.b16 %v370
  %v1337 = vunpack.c.l.b16 %v371
  %v1338 = vunpack.c.l.b16 %v372
  %v1339 = vunpack.c.l.b16 %v373
  %v1340 = vunpack.c.l.b16 %v374
  %v1341 = vunpack.c.l.b16 %v375
  %v1342 = vunpack.c.l.b16 %v376
  %v1343 = vunpack.c.l.b16 %v377
  %v1344 = vunpack.c.l.b16 %v378
  %v1345 = vunpack.c.l.b16 %v379
  %v1346 = vunpack.c.l.b16 %v380
  %v1347 = vunpack.c.l.b16 %v381
  %v1348 = vunpack.c.l.b16 %v382
  %v1349 = vunpack.c.l.b16 %v383
  %v1350 = vunpack.c.l.b16 %v384
  %v1351 = vunpack.c.l.b16 %v385
  %v1352 = vunpack.c.l.b16 %v386
  %v1353 = vunpack.c.l.b16 %v387
  %v1354 = vunpack.c.l.b16 %v388
  %v1355 = vunpack.c.l.b16 %v389
  %v1356 = vunpack.c.l.b16 %v390
  %v1357 = vunpack.c.l.b16 %v391
  %v1358 = vunpack.c.l.b16 %v392
  %v1359 = vunpack.c.l.b16 %v393
  %v1360 = vunpack.c.l.b16 %v394
  %v1361 = vunpack.c.l.b16 %v395
  %v1362 = vunpack.c.l.b16 %v396
  %v1363 = vunpack.c.l.b16 %v397
  %v1364 = vunpack.c.l.b16 %v398
  %v1365 = vunpack.c.l.b16 %v399
  %v1366 = vunpack.c.l.b16 %v400
  %v1367 = vunpack.c.l.b16 %v401
  %v1368 = vunpack.c.l.b16 %v402
  %v1369 = vunpack.c.l.b16 %v403
  %v1370 = vunpack.c.l.b16 %v404
  %v1371 = vunpack.c.l.b16 %v405
  %v1372 = vunpack.c.l.b16 %v406
  %v1373 = vunpack.c.l.b16 %v407
  %v1374 = vunpack.c.l.b16 %v408
  %v1375 = vunpack.c.l.b16 %v409
  %v1376 = vunpack.c.l.b16 %v410
  %v1377 = vunpack.c.l.b16 %v411
  %v1378 = vunpack.c.l.b16 %v412
  %v1379 = vunpack.c.l.b16 %v413
  %v1380 = vunpack.c.l.b16 %v414
  %v1381 = vunpack.c.l.b16 %v415
  %v1382 = vunpack.c.l.b16 %v416
  %v1383 = vunpack.c.l.b16 %v417
  %v1384 = vunpack.c.l.b16 %v418
  %v1385 = vunpack.c.l.b16 %v419
  %v1386 = vunpack.c.l.b16 %v420
  %v1387 = vunpack.c.l.b16 %v421
  %v1388 = vunpack.c.l.b16 %v422
  %v1389 = vunpack.c.l.b16 %v423
  %v1390 = vunpack.c.l.b16 %v424
  %v1391 = vunpack.c.l.b16 %v425
  %v1392 = vunpack.c.l.b16 %v426
  %v1393 = vunpack.c.l.b16 %v427
  %v1394 = vunpack.c.l.b16 %v428
  %v1395 = vunpack.c.l.b16 %v429
  %v1396 = vunpack.c.l.b16 %v430
  %v1397 = vunpack.c.l.b16 %v431
  %v1398 = vunpack.c.l.b16 %v432
  %v1399 = vunpack.c.l.b16 %v433
  %v1400 = vunpack.c.l.b16 %v434
  %v1401 = vunpack.c.l.b16 %v435
  %v1402 = vunpack.c.l.b16 %v436
  %v1403 = vunpack.c.l.b16 %v437
  %v1404 = vunpack.c.l.b16 %v438
  %v1405 = vunpack.c.l.b16 %v439
  %v1406 = vunpack.c.l.b16 %v440
  %v1407 = vunpack.c.l.b16 %v441
  %v1408 = vunpack.c.l.b16 %v442
  %v1409 = vunpack.c.l.b16 %v443
  %v1410 = vunpack.c.l.b16 %v444
  %v1411 = vunpack.c.l.b16 %v445
  %v1412 = vunpack.c.l.b16 %v446
  %v1413 = vunpack.c.l.b16 %v447
  %v1414 = vunpack.c.l.b16 %v448
  %v1415 = vunpack.c.l.b16 %v449
  %v1416 = vunpack.c.l.b16 %v450
  %v1417 = vunpack.c.l.b16 %v451
  %v1418 = vunpack.c.l.b16 %v452
  %v1419 = vunpack.c.l.b16 %v453
  %v1420 = vunpack.c.l.b16 %v454
  %v1421 = vunpack.c.l.b16 %v455
  %v1422 = vunpack.c.l.b16 %v456
  %v1423 = vunpack.c.l.b16 %v457
  %v1424 = vunpack.c.l.b16 %v458
  %v1425 = vunpack.c.l.b16 %v459
  %v1426 = vunpack.c.l.b16 %v460
  %v1427 = vpack.c.b16 %v996, %v995
  %v1428 = vpack.c.b16 %v998, %v997
  %v1429 = vpack.c.b16 %v1000, %v999
  %v1430 = vpack.c.b16 %v1002, %v1001
  %v1431 = vpack.c.b16 %v1004, %v1003
  %v1432 = vpack.c.b16 %v1006, %v1005
  %v1433 = vpack.c.b16 %v1008, %v1007
  %v1434 = vpack.c.b16 %v1010, %v1009
  %v1435 = vpack.c.b16 %v1012, %v1011
  %v1436 = vpack.c.b16 %v1014, %v1013
  %v1437 = vpack.c.b16 %v1016, %v1015
  %v1438 = vpack.c.b16 %v1018, %v1017
  %v1439 = vpack.c.b16 %v1020, %v1019
  %v1440 = vpack.c.b16 %v1022, %v1021
  %v1441 = vpack.c.b16 %v1024, %v1023
  %v1442 = vpack.c.b16 %v1026, %v1025
  %v1443 = vpack.c.b16 %v1028, %v1027
  %v1444 = vpack.c.b16 %v1030, %v1029
  %v1445 = vpack.c.b16 %v1032, %v1031
  %v1446 = vpack.c.b16 %v1034, %v1033
  %v1447 = vpack.c.b16 %v1036, %v1035
  %v1448 = vpack.c.b16 %v1038, %v1037
  %v1449 = vpack.c.b16 %v1040, %v1039
  %v1450 = vpack.c.b16 %v1042, %v1041
  %v1451 = vpack.c.b16 %v1044, %v1043
  %v1452 = vpack.c.b16 %v1046, %v1045
  %v1453 = vpack.c.b16 %v1048, %v1047
  %v1454 = vpack.c.b16 %v1050, %v1049
  %v1455 = vpack.c.b16 %v1052, %v1051
  %v1456 = vpack.c.b16 %v1054, %v1053
  %v1457 = vpack.c.b16 %v1056, %v1055
  %v1458 = vpack.c.b16 %v1058, %v1057
  %v1459 = vpack.c.b16 %v1060, %v1059
  %v1460 = vpack.c.b16 %v1062, %v1061
  %v1461 = vpack.c.b16 %v1064, %v1063
  %v1462 = vpack.c.b16 %v1066, %v1065
  %v1463 = vpack.c.b16 %v1068, %v1067
  %v1464 = vpack.c.b16 %v1070, %v1069
  %v1465 = vpack.c.b16 %v1072, %v1071
  %v1466 = vpack.c.b16 %v1074, %v1073
  %v1467 = vpack.c.b16 %v1076, %v1075
  %v1468 = vpack.c.b16 %v1078, %v1077
  %v1469 = vpack.c.b16 %v1080, %v1079
  %v1470 = vpack.c.b16 %v1082, %v1081
  %v1471 = vpack.c.b16 %v1084, %v1083
  %v1472 = vpack.c.b16 %v1086, %v1085
  %v1473 = vpack.c.b16 %v1088, %v1087
  %v1474 = vpack.c.b16 %v1090, %v1089
  %v1475 = vpack.c.b16 %v1092, %v1091
  %v1476 = vpack.c.b16 %v1094, %v1093
  %v1477 = vpack.c.b16 %v1096, %v1095
  %v1478 = vpack.c.b16 %v1098, %v1097
  %v1479 = vpack.c.b16 %v1100, %v1099
  %v1480 = vpack.c.b16 %v1102, %v1101
  %v1481 = vpack.c.b16 %v1104, %v1103
  %v1482 = vpack.c.b16 %v1106, %v1105
  %v1483 = vpack.c.b16 %v1108, %v1107
  %v1484 = vpack.c.b16 %v1110, %v1109
  %v1485 = vpack.c.b16 %v1112, %v1111
  %v1486 = vpack.c.b16 %v1114, %v1113
  %v1487 = vpack.c.b16 %v1116, %v1115
  %v1488 = vpack.c.b16 %v1118, %v1117
  %v1489 = vpack.c.b16 %v1120, %v1119
  %v1490 = vpack.c.b16 %v1122, %v1121
  %v1491 = vpack.c.b16 %v1124, %v1123
  %v1492 = vpack.c.b16 %v1126, %v1125
  %v1493 = vpack.c.b16 %v1128, %v1127
  %v1494 = vpack.c.b16 %v1130, %v1129
  %v1495 = vpack.c.b16 %v1132, %v1131
  %v1496 = vpack.c.b16 %v1134, %v1133
  %v1497 = vpack.c.b16 %v1136, %v1135
  %v1498 = vpack.c.b16 %v1138, %v1137
  %v1499 = vpack.c.b16 %v1140, %v1139
  %v1500 = vpack.c.b16 %v1142, %v1141
  %v1501 = vpack.c.b16 %v1144, %v1143
  %v1502 = vpack.c.b16 %v1146, %v1145
  %v1503 = vpack.c.b16 %v1148, %v1147
  %v1504 = vpack.c.b16 %v1150, %v1149
  %v1505 = vpack.c.b16 %v1152, %v1151
  %v1506 = vpack.c.b16 %v1154, %v1153
  %v1507 = vpack.c.b16 %v1156, %v1155
  %v1508 = vpack.c.b16 %v1158, %v1157
  %v1509 = vpack.c.b16 %v1160, %v1159
  %v1510 = vpack.c.b16 %v1162, %v1161
  %v1511 = vpack.c.b16 %v1164, %v1163
  %v1512 = vpack.c.b16 %v1166, %v1165
  %v1513 = vpack.c.b16 %v1168, %v1167
  %v1514 = vpack.c.b16 %v1170, %v1169
  %v1515 = vpack.c.b16 %v1172, %v1171
  %v1516 = vpack.c.b16 %v1174, %v1173
  %v1517 = vpack.c.b16 %v1176, %v1175
  %v1518 = vpack.c.b16 %v1178, %v1177
  %v1519 = vpack.c.b16 %v1180, %v1179
  %v1520 = vpack.c.b16 %v1182, %v1181
  %v1521 = vpack.c.b16 %v1184, %v1183
  %v1522 = vpack.c.b16 %v1186, %v1185
  %v1523 = vpack.c.b16 %v1188, %v1187
  %v1524 = vpack.c.b16 %v1190, %v1189
  %v1525 = vpack.c.b16 %v1192, %v1191
  %v1526 = vpack.c.b16 %v1194, %v1193
  %v1527 = vpack.c.b16 %v1196, %v1195
  %v1528 = vpack.c.b16 %v1198, %v1197
  %v1529 = vpack.c.b16 %v1200, %v1199
  %v1530 = vpack.c.b16 %v1202, %v1201
  %v1531 = vpack.c.b16 %v1204, %v1203
  %v1532 = vpack.c.b16 %v1206, %v1205
  %v1533 = vpack.c.b16 %v1208, %v1207
  %v1534 = vpack.c.b16 %v1210, %v1209
  %v1535 = vpack.c.b16 %v1212, %v1211
  %v1536 = vpack.c.b16 %v1214, %v1213
  %v1537 = vpack.c.b16 %v1216, %v1215
  %v1538 = vpack.c.b16 %v1218, %v1217
  %v1539 = vpack.c.b16 %v1220, %v1219
  %v1540 = vpack.c.b16 %v1222, %v1221
  %v1541 = vpack.c.b16 %v1224, %v1223
  %v1542 = vpack.c.b16 %v1226, %v1225
  %v1543 = vpack.c.b16 %v1228, %v1227
  %v1544 = vpack.c.b16 %v1230, %v1229
  %v1545 = vpack.c.b16 %v1232, %v1231
  %v1546 = vpack.c.b16 %v1234, %v1233
  %v1547 = vpack.c.b16 %v1236, %v1235
  %v1548 = vpack.c.b16 %v1238, %v1237
  %v1549 = vpack.c.b16 %v1240, %v1239
  %v1550 = vpack.c.b16 %v1242, %v1241
  %v1551 = vpack.c.b16 %v1244, %v1243
  %v1552 = vpack.c.b16 %v1246, %v1245
  %v1553 = vpack.c.b16 %v1248, %v1247
  %v1554 = vpack.c.b16 %v1250, %v1249
  %v1555 = vpack.c.b16 %v1252, %v1251
  %v1556 = vpack.c.b16 %v1254, %v1253
  %v1557 = vpack.c.b16 %v1256, %v1255
  %v1558 = vpack.c.b16 %v1258, %v1257
  %v1559 = vpack.c.b16 %v1260, %v1259
  %v1560 = vpack.c.b16 %v1262, %v1261
  %v1561 = vpack.c.b16 %v1264, %v1263
  %v1562 = vpack.c.b16 %v1266, %v1265
  %v1563 = vpack.c.b16 %v1268, %v1267
  %v1564 = vpack.c.b16 %v1270, %v1269
  %v1565 = vpack.c.b16 %v1272, %v1271
  %v1566 = vpack.c.b16 %v1274, %v1273
  %v1567 = vpack.c.b16 %v1276, %v1275
  %v1568 = vpack.c.b16 %v1278, %v1277
  %v1569 = vpack.c.b16 %v1280, %v1279
  %v1570 = vpack.c.b16 %v1282, %v1281
  %v1571 = vpack.c.b16 %v1284, %v1283
  %v1572 = vpack.c.b16 %v1286, %v1285
  %v1573 = vpack.c.b16 %v1288, %v1287
  %v1574 = vpack.c.b16 %v1290, %v1289
  %v1575 = vpack.c.b16 %v1292, %v1291
  %v1576 = vpack.c.b16 %v1294, %v1293
  %v1577 = vpack.c.b16 %v1296, %v1295
  %v1578 = vpack.c.b16 %v1298, %v1297
  %v1579 = vpack.c.b16 %v1300, %v1299
  %v1580 = vpack.c.b16 %v1302, %v1301
  %v1581 = vpack.c.b16 %v1304, %v1303
  %v1582 = vpack.c.b16 %v1306, %v1305
  %v1583 = vpack.c.b16 %v1308, %v1307
  %v1584 = vpack.c.b16 %v1310, %v1309
  %v1585 = vpack.c.b16 %v1312, %v1311
  %v1586 = vpack.c.b16 %v1314, %v1313
  %v1587 = vpack.c.b16 %v1316, %v1315
  %v1588 = vpack.c.b16 %v1318, %v1317
  %v1589 = vpack.c.b16 %v1320, %v1319
  %v1590 = vpack.c.b16 %v1322, %v1321
  %v1591 = vpack.c.b16 %v1324, %v1323
  %v1592 = vpack.c.b16 %v1326, %v1325
  %v1593 = vpack.c.b16 %v1328, %v1327
  %v1594 = vpack.c.b16 %v1330, %v1329
  %v1595 = vpack.c.b16 %v1332, %v1331
  %v1596 = vpack.c.b16 %v1334, %v1333
  %v1597 = vpack.c.b16 %v1336, %v1335
  %v1598 = vpack.c.b16 %v1338, %v1337
  %v1599 = vpack.c.b16 %v1340, %v1339
  %v1600 = vpack.c.b16 %v1342, %v1341
  %v1601 = vpack.c.b16 %v1344, %v1343
  %v1602 = vpack.c.b16 %v1346, %v1345
  %v1603 = vpack.c.b16 %v1348, %v1347
  %v1604 = vpack.c.b16 %v1350, %v1349
  %v1605 = vpack.c.b16 %v1352, %v1351
  %v1606 = vpack.c.b16 %v1354, %v1353
  %v1607 = vpack.c.b16 %v1356, %v1355
  %v1608 = vpack.c.b16 %v1358, %v1357
  %v1609 = vpack.c.b16 %v1360, %v1359
  %v1610 = vpack.c.b16 %v1362, %v1361
  %v1611 = vpack.c.b16 %v1364, %v1363
  %v1612 = vpack.c.b16 %v1366, %v1365
  %v1613 = vpack.c.b16 %v1368, %v1367
  %v1614 = vpack.c.b16 %v1370, %v1369
  %v1615 = vpack.c.b16 %v1372, %v1371
  %v1616 = vpack.c.b16 %v1374, %v1373
  %v1617 = vpack.c.b16 %v1376, %v1375
  %v1618 = vpack.c.b16 %v1378, %v1377
  %v1619 = vpack.c.b16 %v1380, %v1379
  %v1620 = vpack.c.b16 %v1382, %v1381
  %v1621 = vpack.c.b16 %v1384, %v1383
  %v1622 = vpack.c.b16 %v1386, %v1385
  %v1623 = vpack.c.b16 %v1388, %v1387
  %v1624 = vpack.c.b16 %v1390, %v1389
  %v1625 = vpack.c.b16 %v1392, %v1391
  %v1626 = vpack.c.b16 %v1394, %v1393
  %v1627 = vpack.c.b16 %v1396, %v1395
  %v1628 = vpack.c.b16 %v1398, %v1397
  %v1629 = vpack.c.b16 %v1400, %v1399
  %v1630 = vpack.c.b16 %v1402, %v1401
  %v1631 = vpack.c.b16 %v1404, %v1403
  %v1632 = vpack.c.b16 %v1406, %v1405
  %v1633 = vpack.c.b16 %v1408, %v1407
  %v1634 = vpack.c.b16 %v1410, %v1409
  %v1635 = vpack.c.b16 %v1412, %v1411
  %v1636 = vpack.c.b16 %v1414, %v1413
  %v1637 = vpack.c.b16 %v1416, %v1415
  %v1638 = vpack.c.b16 %v1418, %v1417
  %v1639 = vpack.c.b16 %v1420, %v1419
  %v1640 = vpack.c.b16 %v1422, %v1421
  %v1641 = vpack.c.b16 %v1424, %v1423
  %v1642 = vpack.c.b16 %v1426, %v1425
  %1859 = vmatprep.subr.bf16.mxu0 0
  %1860 = vmatpush1.bf16.msra.mxu0 %v1434
  %1861 = vmatprep.subr.bf16.mxu0 0
  %1862 = vmatpush1.bf16.msra.mxu0 %v1433
  %1863 = vmatprep.subr.bf16.mxu0 0
  %1864 = vmatpush1.bf16.msra.mxu0 %v1432
  %1865 = vmatprep.subr.bf16.mxu0 0
  %1866 = vmatpush1.bf16.msra.mxu0 %v1431
  %1867 = vmatprep.subr.bf16.mxu0 0
  %1868 = vmatpush1.bf16.msra.mxu0 %v1430
  %1869 = vmatprep.subr.bf16.mxu0 0
  %1870 = vmatpush1.bf16.msra.mxu0 %v1429
  %1871 = vmatprep.subr.bf16.mxu0 0
  %1872 = vmatpush1.bf16.msra.mxu0 %v1428
  %1873 = vmatprep.subr.bf16.mxu0 0
  %1874 = vmatpush1.bf16.msra.mxu0 %v1427
  %1875 = vmatprep.subr.bf16.mxu0 0
  %1876 = vmatpush2.bf16.msra.mxu0 %v1442
  %1877 = vmatprep.subr.bf16.mxu0 0
  %1878 = vmatpush2.bf16.msra.mxu0 %v1441
  %1879 = vmatprep.subr.bf16.mxu0 0
  %1880 = vmatpush2.bf16.msra.mxu0 %v1440
  %1881 = vmatprep.subr.bf16.mxu0 0
  %1882 = vmatpush2.bf16.msra.mxu0 %v1439
  %1883 = vmatprep.subr.bf16.mxu0 0
  %1884 = vmatpush2.bf16.msra.mxu0 %v1438
  %1885 = vmatprep.subr.bf16.mxu0 0
  %1886 = vmatpush2.bf16.msra.mxu0 %v1437
  %1887 = vmatprep.subr.bf16.mxu0 0
  %1888 = vmatpush2.bf16.msra.mxu0 %v1436
  %1889 = vmatprep.subr.bf16.mxu0 0
  %1890 = vmatpush2.bf16.msra.mxu0 %v1435
  %1891 = vmatprep.mubr.bf16.mxu0 %v510
  %1892 = vmatmul.mubr.bf16.gmra.mxu0 %v509
  %v1893 = vpop.f32.mrf.mxu0
  %v1894 = vadd.f32 %v466, %v1893
  %v1895 = vpop.f32.mrf.mxu0
  %v1896 = vpop.f32.mrf.mxu0
  %v1897 = vpop.f32.mrf.mxu0
  %1898 = vdwg.mxu0
  %1899 = vmatprep.subr.bf16.mxu0 0
  %1900 = vmatpush1.bf16.msra.mxu0 %v1450
  %1901 = vmatprep.subr.bf16.mxu0 0
  %1902 = vmatpush1.bf16.msra.mxu0 %v1449
  %1903 = vmatprep.subr.bf16.mxu0 0
  %1904 = vmatpush1.bf16.msra.mxu0 %v1448
  %1905 = vmatprep.subr.bf16.mxu0 0
  %1906 = vmatpush1.bf16.msra.mxu0 %v1447
  %1907 = vmatprep.subr.bf16.mxu0 0
  %1908 = vmatpush1.bf16.msra.mxu0 %v1446
  %1909 = vmatprep.subr.bf16.mxu0 0
  %1910 = vmatpush1.bf16.msra.mxu0 %v1445
  %1911 = vmatprep.subr.bf16.mxu0 0
  %1912 = vmatpush1.bf16.msra.mxu0 %v1444
  %1913 = vmatprep.subr.bf16.mxu0 0
  %1914 = vmatpush1.bf16.msra.mxu0 %v1443
  %1915 = vmatprep.subr.bf16.mxu0 0
  %1916 = vmatpush2.bf16.msra.mxu0 %v1458
  %1917 = vmatprep.subr.bf16.mxu0 0
  %1918 = vmatpush2.bf16.msra.mxu0 %v1457
  %1919 = vmatprep.subr.bf16.mxu0 0
  %1920 = vmatpush2.bf16.msra.mxu0 %v1456
  %1921 = vmatprep.subr.bf16.mxu0 0
  %1922 = vmatpush2.bf16.msra.mxu0 %v1455
  %1923 = vmatprep.subr.bf16.mxu0 0
  %1924 = vmatpush2.bf16.msra.mxu0 %v1454
  %1925 = vmatprep.subr.bf16.mxu0 0
  %1926 = vmatpush2.bf16.msra.mxu0 %v1453
  %1927 = vmatprep.subr.bf16.mxu0 0
  %1928 = vmatpush2.bf16.msra.mxu0 %v1452
  %1929 = vmatprep.subr.bf16.mxu0 0
  %1930 = vmatpush2.bf16.msra.mxu0 %v1451
  %1931 = vmatprep.mubr.bf16.mxu0 %v512
  %1932 = vmatmul.mubr.bf16.gmra.mxu0 %v511
  %v1933 = vpop.f32.mrf.mxu0
  %v1934 = vadd.f32 %v1894, %v1933
  %v1935 = vpop.f32.mrf.mxu0
  %v1936 = vpop.f32.mrf.mxu0
  %v1937 = vpop.f32.mrf.mxu0
  %1938 = vdwg.mxu0
  %1939 = vmatprep.subr.bf16.mxu0 0
  %1940 = vmatpush1.bf16.msra.mxu0 %v1466
  %1941 = vmatprep.subr.bf16.mxu0 0
  %1942 = vmatpush1.bf16.msra.mxu0 %v1465
  %1943 = vmatprep.subr.bf16.mxu0 0
  %1944 = vmatpush1.bf16.msra.mxu0 %v1464
  %1945 = vmatprep.subr.bf16.mxu0 0
  %1946 = vmatpush1.bf16.msra.mxu0 %v1463
  %1947 = vmatprep.subr.bf16.mxu0 0
  %1948 = vmatpush1.bf16.msra.mxu0 %v1462
  %1949 = vmatprep.subr.bf16.mxu0 0
  %1950 = vmatpush1.bf16.msra.mxu0 %v1461
  %1951 = vmatprep.subr.bf16.mxu0 0
  %1952 = vmatpush1.bf16.msra.mxu0 %v1460
  %1953 = vmatprep.subr.bf16.mxu0 0
  %1954 = vmatpush1.bf16.msra.mxu0 %v1459
  %1955 = vmatprep.subr.bf16.mxu0 0
  %1956 = vmatpush2.bf16.msra.mxu0 %v1474
  %1957 = vmatprep.subr.bf16.mxu0 0
  %1958 = vmatpush2.bf16.msra.mxu0 %v1473
  %1959 = vmatprep.subr.bf16.mxu0 0
  %1960 = vmatpush2.bf16.msra.mxu0 %v1472
  %1961 = vmatprep.subr.bf16.mxu0 0
  %1962 = vmatpush2.bf16.msra.mxu0 %v1471
  %1963 = vmatprep.subr.bf16.mxu0 0
  %1964 = vmatpush2.bf16.msra.mxu0 %v1470
  %1965 = vmatprep.subr.bf16.mxu0 0
  %1966 = vmatpush2.bf16.msra.mxu0 %v1469
  %1967 = vmatprep.subr.bf16.mxu0 0
  %1968 = vmatpush2.bf16.msra.mxu0 %v1468
  %1969 = vmatprep.subr.bf16.mxu0 0
  %1970 = vmatpush2.bf16.msra.mxu0 %v1467
  %1971 = vmatprep.mubr.bf16.mxu0 %v514
  %1972 = vmatmul.mubr.bf16.gmra.mxu0 %v513
  %v1973 = vpop.f32.mrf.mxu0
  %v1974 = vadd.f32 %v1934, %v1973
  %v1975 = vpop.f32.mrf.mxu0
  %v1976 = vpop.f32.mrf.mxu0
  %v1977 = vpop.f32.mrf.mxu0
  %1978 = vdwg.mxu0
  %1979 = vmatprep.subr.bf16.mxu0 0
  %1980 = vmatpush1.bf16.msra.mxu0 %v1482
  %1981 = vmatprep.subr.bf16.mxu0 0
  %1982 = vmatpush1.bf16.msra.mxu0 %v1481
  %1983 = vmatprep.subr.bf16.mxu0 0
  %1984 = vmatpush1.bf16.msra.mxu0 %v1480
  %1985 = vmatprep.subr.bf16.mxu0 0
  %1986 = vmatpush1.bf16.msra.mxu0 %v1479
  %1987 = vmatprep.subr.bf16.mxu0 0
  %1988 = vmatpush1.bf16.msra.mxu0 %v1478
  %1989 = vmatprep.subr.bf16.mxu0 0
  %1990 = vmatpush1.bf16.msra.mxu0 %v1477
  %1991 = vmatprep.subr.bf16.mxu0 0
  %1992 = vmatpush1.bf16.msra.mxu0 %v1476
  %1993 = vmatprep.subr.bf16.mxu0 0
  %1994 = vmatpush1.bf16.msra.mxu0 %v1475
  %1995 = vmatprep.subr.bf16.mxu0 0
  %1996 = vmatpush2.bf16.msra.mxu0 %v1490
  %1997 = vmatprep.subr.bf16.mxu0 0
  %1998 = vmatpush2.bf16.msra.mxu0 %v1489
  %1999 = vmatprep.subr.bf16.mxu0 0
  %2000 = vmatpush2.bf16.msra.mxu0 %v1488
  %2001 = vmatprep.subr.bf16.mxu0 0
  %2002 = vmatpush2.bf16.msra.mxu0 %v1487
  %2003 = vmatprep.subr.bf16.mxu0 0
  %2004 = vmatpush2.bf16.msra.mxu0 %v1486
  %2005 = vmatprep.subr.bf16.mxu0 0
  %2006 = vmatpush2.bf16.msra.mxu0 %v1485
  %2007 = vmatprep.subr.bf16.mxu0 0
  %2008 = vmatpush2.bf16.msra.mxu0 %v1484
  %2009 = vmatprep.subr.bf16.mxu0 0
  %2010 = vmatpush2.bf16.msra.mxu0 %v1483
  %2011 = vmatprep.mubr.bf16.mxu0 %v516
  %2012 = vmatmul.mubr.bf16.gmra.mxu0 %v515
  %v2013 = vpop.f32.mrf.mxu0
  %v2014 = vadd.f32 %v1974, %v2013
  %v2015 = vpop.f32.mrf.mxu0
  %v2016 = vpop.f32.mrf.mxu0
  %v2017 = vpop.f32.mrf.mxu0
  %2018 = vdwg.mxu0
  %2019 = vmatprep.subr.bf16.mxu0 0
  %2020 = vmatpush1.bf16.msra.mxu0 %v1498
  %2021 = vmatprep.subr.bf16.mxu0 0
  %2022 = vmatpush1.bf16.msra.mxu0 %v1497
  %2023 = vmatprep.subr.bf16.mxu0 0
  %2024 = vmatpush1.bf16.msra.mxu0 %v1496
  %2025 = vmatprep.subr.bf16.mxu0 0
  %2026 = vmatpush1.bf16.msra.mxu0 %v1495
  %2027 = vmatprep.subr.bf16.mxu0 0
  %2028 = vmatpush1.bf16.msra.mxu0 %v1494
  %2029 = vmatprep.subr.bf16.mxu0 0
  %2030 = vmatpush1.bf16.msra.mxu0 %v1493
  %2031 = vmatprep.subr.bf16.mxu0 0
  %2032 = vmatpush1.bf16.msra.mxu0 %v1492
  %2033 = vmatprep.subr.bf16.mxu0 0
  %2034 = vmatpush1.bf16.msra.mxu0 %v1491
  %2035 = vmatprep.subr.bf16.mxu0 0
  %2036 = vmatpush2.bf16.msra.mxu0 %v1506
  %2037 = vmatprep.subr.bf16.mxu0 0
  %2038 = vmatpush2.bf16.msra.mxu0 %v1505
  %2039 = vmatprep.subr.bf16.mxu0 0
  %2040 = vmatpush2.bf16.msra.mxu0 %v1504
  %2041 = vmatprep.subr.bf16.mxu0 0
  %2042 = vmatpush2.bf16.msra.mxu0 %v1503
  %2043 = vmatprep.subr.bf16.mxu0 0
  %2044 = vmatpush2.bf16.msra.mxu0 %v1502
  %2045 = vmatprep.subr.bf16.mxu0 0
  %2046 = vmatpush2.bf16.msra.mxu0 %v1501
  %2047 = vmatprep.subr.bf16.mxu0 0
  %2048 = vmatpush2.bf16.msra.mxu0 %v1500
  %2049 = vmatprep.subr.bf16.mxu0 0
  %2050 = vmatpush2.bf16.msra.mxu0 %v1499
  %2051 = vmatprep.mubr.bf16.mxu0 %v518
  %2052 = vmatmul.mubr.bf16.gmra.mxu0 %v517
  %v2053 = vpop.f32.mrf.mxu0
  %v2054 = vadd.f32 %v2014, %v2053
  %v2055 = vpop.f32.mrf.mxu0
  %v2056 = vpop.f32.mrf.mxu0
  %v2057 = vpop.f32.mrf.mxu0
  %2058 = vdwg.mxu0
  %2059 = vmatprep.subr.bf16.mxu0 0
  %2060 = vmatpush1.bf16.msra.mxu0 %v1514
  %2061 = vmatprep.subr.bf16.mxu0 0
  %2062 = vmatpush1.bf16.msra.mxu0 %v1513
  %2063 = vmatprep.subr.bf16.mxu0 0
  %2064 = vmatpush1.bf16.msra.mxu0 %v1512
  %2065 = vmatprep.subr.bf16.mxu0 0
  %2066 = vmatpush1.bf16.msra.mxu0 %v1511
  %2067 = vmatprep.subr.bf16.mxu0 0
  %2068 = vmatpush1.bf16.msra.mxu0 %v1510
  %2069 = vmatprep.subr.bf16.mxu0 0
  %2070 = vmatpush1.bf16.msra.mxu0 %v1509
  %2071 = vmatprep.subr.bf16.mxu0 0
  %2072 = vmatpush1.bf16.msra.mxu0 %v1508
  %2073 = vmatprep.subr.bf16.mxu0 0
  %2074 = vmatpush1.bf16.msra.mxu0 %v1507
  %2075 = vmatprep.subr.bf16.mxu0 0
  %2076 = vmatpush2.bf16.msra.mxu0 %v1522
  %2077 = vmatprep.subr.bf16.mxu0 0
  %2078 = vmatpush2.bf16.msra.mxu0 %v1521
  %2079 = vmatprep.subr.bf16.mxu0 0
  %2080 = vmatpush2.bf16.msra.mxu0 %v1520
  %2081 = vmatprep.subr.bf16.mxu0 0
  %2082 = vmatpush2.bf16.msra.mxu0 %v1519
  %2083 = vmatprep.subr.bf16.mxu0 0
  %2084 = vmatpush2.bf16.msra.mxu0 %v1518
  %2085 = vmatprep.subr.bf16.mxu0 0
  %2086 = vmatpush2.bf16.msra.mxu0 %v1517
  %2087 = vmatprep.subr.bf16.mxu0 0
  %2088 = vmatpush2.bf16.msra.mxu0 %v1516
  %2089 = vmatprep.subr.bf16.mxu0 0
  %2090 = vmatpush2.bf16.msra.mxu0 %v1515
  %2091 = vmatprep.mubr.bf16.mxu0 %v520
  %2092 = vmatmul.mubr.bf16.gmra.mxu0 %v519
  %v2093 = vpop.f32.mrf.mxu0
  %v2094 = vadd.f32 %v2054, %v2093
  %v2095 = vpop.f32.mrf.mxu0
  %v2096 = vpop.f32.mrf.mxu0
  %v2097 = vpop.f32.mrf.mxu0
  %2098 = vdwg.mxu0
  %2099 = vmatprep.subr.bf16.mxu0 0
  %2100 = vmatpush1.bf16.msra.mxu0 %v1530
  %2101 = vmatprep.subr.bf16.mxu0 0
  %2102 = vmatpush1.bf16.msra.mxu0 %v1529
  %2103 = vmatprep.subr.bf16.mxu0 0
  %2104 = vmatpush1.bf16.msra.mxu0 %v1528
  %2105 = vmatprep.subr.bf16.mxu0 0
  %2106 = vmatpush1.bf16.msra.mxu0 %v1527
  %2107 = vmatprep.subr.bf16.mxu0 0
  %2108 = vmatpush1.bf16.msra.mxu0 %v1526
  %2109 = vmatprep.subr.bf16.mxu0 0
  %2110 = vmatpush1.bf16.msra.mxu0 %v1525
  %2111 = vmatprep.subr.bf16.mxu0 0
  %2112 = vmatpush1.bf16.msra.mxu0 %v1524
  %2113 = vmatprep.subr.bf16.mxu0 0
  %2114 = vmatpush1.bf16.msra.mxu0 %v1523
  %2115 = vmatprep.subr.bf16.mxu0 0
  %2116 = vmatpush2.bf16.msra.mxu0 %v1538
  %2117 = vmatprep.subr.bf16.mxu0 0
  %2118 = vmatpush2.bf16.msra.mxu0 %v1537
  %2119 = vmatprep.subr.bf16.mxu0 0
  %2120 = vmatpush2.bf16.msra.mxu0 %v1536
  %2121 = vmatprep.subr.bf16.mxu0 0
  %2122 = vmatpush2.bf16.msra.mxu0 %v1535
  %2123 = vmatprep.subr.bf16.mxu0 0
  %2124 = vmatpush2.bf16.msra.mxu0 %v1534
  %2125 = vmatprep.subr.bf16.mxu0 0
  %2126 = vmatpush2.bf16.msra.mxu0 %v1533
  %2127 = vmatprep.subr.bf16.mxu0 0
  %2128 = vmatpush2.bf16.msra.mxu0 %v1532
  %2129 = vmatprep.subr.bf16.mxu0 0
  %2130 = vmatpush2.bf16.msra.mxu0 %v1531
  %2131 = vmatprep.mubr.bf16.mxu0 %v522
  %2132 = vmatmul.mubr.bf16.gmra.mxu0 %v521
  %v2133 = vpop.f32.mrf.mxu0
  %v2134 = vadd.f32 %v2094, %v2133
  %v2135 = vpop.f32.mrf.mxu0
  %v2136 = vpop.f32.mrf.mxu0
  %v2137 = vpop.f32.mrf.mxu0
  %2138 = vdwg.mxu0
  %2139 = vmatprep.subr.bf16.mxu0 0
  %2140 = vmatpush1.bf16.msra.mxu0 %v1546
  %2141 = vmatprep.subr.bf16.mxu0 0
  %2142 = vmatpush1.bf16.msra.mxu0 %v1545
  %2143 = vmatprep.subr.bf16.mxu0 0
  %2144 = vmatpush1.bf16.msra.mxu0 %v1544
  %2145 = vmatprep.subr.bf16.mxu0 0
  %2146 = vmatpush1.bf16.msra.mxu0 %v1543
  %2147 = vmatprep.subr.bf16.mxu0 0
  %2148 = vmatpush1.bf16.msra.mxu0 %v1542
  %2149 = vmatprep.subr.bf16.mxu0 0
  %2150 = vmatpush1.bf16.msra.mxu0 %v1541
  %2151 = vmatprep.subr.bf16.mxu0 0
  %2152 = vmatpush1.bf16.msra.mxu0 %v1540
  %2153 = vmatprep.subr.bf16.mxu0 0
  %2154 = vmatpush1.bf16.msra.mxu0 %v1539
  %2155 = vmatprep.subr.bf16.mxu0 0
  %2156 = vmatpush2.bf16.msra.mxu0 %v1554
  %2157 = vmatprep.subr.bf16.mxu0 0
  %2158 = vmatpush2.bf16.msra.mxu0 %v1553
  %2159 = vmatprep.subr.bf16.mxu0 0
  %2160 = vmatpush2.bf16.msra.mxu0 %v1552
  %2161 = vmatprep.subr.bf16.mxu0 0
  %2162 = vmatpush2.bf16.msra.mxu0 %v1551
  %2163 = vmatprep.subr.bf16.mxu0 0
  %2164 = vmatpush2.bf16.msra.mxu0 %v1550
  %2165 = vmatprep.subr.bf16.mxu0 0
  %2166 = vmatpush2.bf16.msra.mxu0 %v1549
  %2167 = vmatprep.subr.bf16.mxu0 0
  %2168 = vmatpush2.bf16.msra.mxu0 %v1548
  %2169 = vmatprep.subr.bf16.mxu0 0
  %2170 = vmatpush2.bf16.msra.mxu0 %v1547
  %2171 = vmatprep.mubr.bf16.mxu0 %v524
  %2172 = vmatmul.mubr.bf16.gmra.mxu0 %v523
  %v2173 = vpop.f32.mrf.mxu0
  %v2174 = vadd.f32 %v2134, %v2173
  %v2175 = vpop.f32.mrf.mxu0
  %v2176 = vpop.f32.mrf.mxu0
  %v2177 = vpop.f32.mrf.mxu0
  %2178 = vdwg.mxu0
  %2179 = vmatprep.subr.bf16.mxu0 0
  %2180 = vmatpush1.bf16.msra.mxu0 %v1562
  %2181 = vmatprep.subr.bf16.mxu0 0
  %2182 = vmatpush1.bf16.msra.mxu0 %v1561
  %2183 = vmatprep.subr.bf16.mxu0 0
  %2184 = vmatpush1.bf16.msra.mxu0 %v1560
  %2185 = vmatprep.subr.bf16.mxu0 0
  %2186 = vmatpush1.bf16.msra.mxu0 %v1559
  %2187 = vmatprep.subr.bf16.mxu0 0
  %2188 = vmatpush1.bf16.msra.mxu0 %v1558
  %2189 = vmatprep.subr.bf16.mxu0 0
  %2190 = vmatpush1.bf16.msra.mxu0 %v1557
  %2191 = vmatprep.subr.bf16.mxu0 0
  %2192 = vmatpush1.bf16.msra.mxu0 %v1556
  %2193 = vmatprep.subr.bf16.mxu0 0
  %2194 = vmatpush1.bf16.msra.mxu0 %v1555
  %2195 = vmatprep.subr.bf16.mxu0 0
  %2196 = vmatpush2.bf16.msra.mxu0 %v1570
  %2197 = vmatprep.subr.bf16.mxu0 0
  %2198 = vmatpush2.bf16.msra.mxu0 %v1569
  %2199 = vmatprep.subr.bf16.mxu0 0
  %2200 = vmatpush2.bf16.msra.mxu0 %v1568
  %2201 = vmatprep.subr.bf16.mxu0 0
  %2202 = vmatpush2.bf16.msra.mxu0 %v1567
  %2203 = vmatprep.subr.bf16.mxu0 0
  %2204 = vmatpush2.bf16.msra.mxu0 %v1566
  %2205 = vmatprep.subr.bf16.mxu0 0
  %2206 = vmatpush2.bf16.msra.mxu0 %v1565
  %2207 = vmatprep.subr.bf16.mxu0 0
  %2208 = vmatpush2.bf16.msra.mxu0 %v1564
  %2209 = vmatprep.subr.bf16.mxu0 0
  %2210 = vmatpush2.bf16.msra.mxu0 %v1563
  %2211 = vmatprep.mubr.bf16.mxu0 %v526
  %2212 = vmatmul.mubr.bf16.gmra.mxu0 %v525
  %v2213 = vpop.f32.mrf.mxu0
  %v2214 = vadd.f32 %v2174, %v2213
  %v2215 = vpop.f32.mrf.mxu0
  %v2216 = vpop.f32.mrf.mxu0
  %v2217 = vpop.f32.mrf.mxu0
  %2218 = vdwg.mxu0
  %2219 = vmatprep.subr.bf16.mxu0 0
  %2220 = vmatpush1.bf16.msra.mxu0 %v1578
  %2221 = vmatprep.subr.bf16.mxu0 0
  %2222 = vmatpush1.bf16.msra.mxu0 %v1577
  %2223 = vmatprep.subr.bf16.mxu0 0
  %2224 = vmatpush1.bf16.msra.mxu0 %v1576
  %2225 = vmatprep.subr.bf16.mxu0 0
  %2226 = vmatpush1.bf16.msra.mxu0 %v1575
  %2227 = vmatprep.subr.bf16.mxu0 0
  %2228 = vmatpush1.bf16.msra.mxu0 %v1574
  %2229 = vmatprep.subr.bf16.mxu0 0
  %2230 = vmatpush1.bf16.msra.mxu0 %v1573
  %2231 = vmatprep.subr.bf16.mxu0 0
  %2232 = vmatpush1.bf16.msra.mxu0 %v1572
  %2233 = vmatprep.subr.bf16.mxu0 0
  %2234 = vmatpush1.bf16.msra.mxu0 %v1571
  %2235 = vmatprep.subr.bf16.mxu0 0
  %2236 = vmatpush2.bf16.msra.mxu0 %v1586
  %2237 = vmatprep.subr.bf16.mxu0 0
  %2238 = vmatpush2.bf16.msra.mxu0 %v1585
  %2239 = vmatprep.subr.bf16.mxu0 0
  %2240 = vmatpush2.bf16.msra.mxu0 %v1584
  %2241 = vmatprep.subr.bf16.mxu0 0
  %2242 = vmatpush2.bf16.msra.mxu0 %v1583
  %2243 = vmatprep.subr.bf16.mxu0 0
  %2244 = vmatpush2.bf16.msra.mxu0 %v1582
  %2245 = vmatprep.subr.bf16.mxu0 0
  %2246 = vmatpush2.bf16.msra.mxu0 %v1581
  %2247 = vmatprep.subr.bf16.mxu0 0
  %2248 = vmatpush2.bf16.msra.mxu0 %v1580
  %2249 = vmatprep.subr.bf16.mxu0 0
  %2250 = vmatpush2.bf16.msra.mxu0 %v1579
  %2251 = vmatprep.mubr.bf16.mxu0 %v528
  %2252 = vmatmul.mubr.bf16.gmra.mxu0 %v527
  %v2253 = vpop.f32.mrf.mxu0
  %v2254 = vadd.f32 %v2214, %v2253
  %v2255 = vpop.f32.mrf.mxu0
  %v2256 = vpop.f32.mrf.mxu0
  %v2257 = vpop.f32.mrf.mxu0
  %2258 = vdwg.mxu0
  %2259 = vmatprep.subr.bf16.mxu0 0
  %2260 = vmatpush1.bf16.msra.mxu0 %v1594
  %2261 = vmatprep.subr.bf16.mxu0 0
  %2262 = vmatpush1.bf16.msra.mxu0 %v1593
  %2263 = vmatprep.subr.bf16.mxu0 0
  %2264 = vmatpush1.bf16.msra.mxu0 %v1592
  %2265 = vmatprep.subr.bf16.mxu0 0
  %2266 = vmatpush1.bf16.msra.mxu0 %v1591
  %2267 = vmatprep.subr.bf16.mxu0 0
  %2268 = vmatpush1.bf16.msra.mxu0 %v1590
  %2269 = vmatprep.subr.bf16.mxu0 0
  %2270 = vmatpush1.bf16.msra.mxu0 %v1589
  %2271 = vmatprep.subr.bf16.mxu0 0
  %2272 = vmatpush1.bf16.msra.mxu0 %v1588
  %2273 = vmatprep.subr.bf16.mxu0 0
  %2274 = vmatpush1.bf16.msra.mxu0 %v1587
  %2275 = vmatprep.subr.bf16.mxu0 0
  %2276 = vmatpush2.bf16.msra.mxu0 %v1602
  %2277 = vmatprep.subr.bf16.mxu0 0
  %2278 = vmatpush2.bf16.msra.mxu0 %v1601
  %2279 = vmatprep.subr.bf16.mxu0 0
  %2280 = vmatpush2.bf16.msra.mxu0 %v1600
  %2281 = vmatprep.subr.bf16.mxu0 0
  %2282 = vmatpush2.bf16.msra.mxu0 %v1599
  %2283 = vmatprep.subr.bf16.mxu0 0
  %2284 = vmatpush2.bf16.msra.mxu0 %v1598
  %2285 = vmatprep.subr.bf16.mxu0 0
  %2286 = vmatpush2.bf16.msra.mxu0 %v1597
  %2287 = vmatprep.subr.bf16.mxu0 0
  %2288 = vmatpush2.bf16.msra.mxu0 %v1596
  %2289 = vmatprep.subr.bf16.mxu0 0
  %2290 = vmatpush2.bf16.msra.mxu0 %v1595
  %2291 = vmatprep.mubr.bf16.mxu0 %v530
  %2292 = vmatmul.mubr.bf16.gmra.mxu0 %v529
  %v2293 = vpop.f32.mrf.mxu0
  %v2294 = vadd.f32 %v2254, %v2293
  %v2295 = vpop.f32.mrf.mxu0
  %v2296 = vpop.f32.mrf.mxu0
  %v2297 = vpop.f32.mrf.mxu0
  %2298 = vdwg.mxu0
  %2299 = vmatprep.subr.bf16.mxu0 0
  %2300 = vmatpush1.bf16.msra.mxu0 %v1610
  %2301 = vmatprep.subr.bf16.mxu0 0
  %2302 = vmatpush1.bf16.msra.mxu0 %v1609
  %2303 = vmatprep.subr.bf16.mxu0 0
  %2304 = vmatpush1.bf16.msra.mxu0 %v1608
  %2305 = vmatprep.subr.bf16.mxu0 0
  %2306 = vmatpush1.bf16.msra.mxu0 %v1607
  %2307 = vmatprep.subr.bf16.mxu0 0
  %2308 = vmatpush1.bf16.msra.mxu0 %v1606
  %2309 = vmatprep.subr.bf16.mxu0 0
  %2310 = vmatpush1.bf16.msra.mxu0 %v1605
  %2311 = vmatprep.subr.bf16.mxu0 0
  %2312 = vmatpush1.bf16.msra.mxu0 %v1604
  %2313 = vmatprep.subr.bf16.mxu0 0
  %2314 = vmatpush1.bf16.msra.mxu0 %v1603
  %2315 = vmatprep.subr.bf16.mxu0 0
  %2316 = vmatpush2.bf16.msra.mxu0 %v1618
  %2317 = vmatprep.subr.bf16.mxu0 0
  %2318 = vmatpush2.bf16.msra.mxu0 %v1617
  %2319 = vmatprep.subr.bf16.mxu0 0
  %2320 = vmatpush2.bf16.msra.mxu0 %v1616
  %2321 = vmatprep.subr.bf16.mxu0 0
  %2322 = vmatpush2.bf16.msra.mxu0 %v1615
  %2323 = vmatprep.subr.bf16.mxu0 0
  %2324 = vmatpush2.bf16.msra.mxu0 %v1614
  %2325 = vmatprep.subr.bf16.mxu0 0
  %2326 = vmatpush2.bf16.msra.mxu0 %v1613
  %2327 = vmatprep.subr.bf16.mxu0 0
  %2328 = vmatpush2.bf16.msra.mxu0 %v1612
  %2329 = vmatprep.subr.bf16.mxu0 0
  %2330 = vmatpush2.bf16.msra.mxu0 %v1611
  %2331 = vmatprep.mubr.bf16.mxu0 %v532
  %2332 = vmatmul.mubr.bf16.gmra.mxu0 %v531
  %v2333 = vpop.f32.mrf.mxu0
  %v2334 = vadd.f32 %v2294, %v2333
  %v2335 = vpop.f32.mrf.mxu0
  %v2336 = vpop.f32.mrf.mxu0
  %v2337 = vpop.f32.mrf.mxu0
  %2338 = vdwg.mxu0
  %2339 = vmatprep.subr.bf16.mxu0 0
  %2340 = vmatpush1.bf16.msra.mxu0 %v1626
  %2341 = vmatprep.subr.bf16.mxu0 0
  %2342 = vmatpush1.bf16.msra.mxu0 %v1625
  %2343 = vmatprep.subr.bf16.mxu0 0
  %2344 = vmatpush1.bf16.msra.mxu0 %v1624
  %2345 = vmatprep.subr.bf16.mxu0 0
  %2346 = vmatpush1.bf16.msra.mxu0 %v1623
  %2347 = vmatprep.subr.bf16.mxu0 0
  %2348 = vmatpush1.bf16.msra.mxu0 %v1622
  %2349 = vmatprep.subr.bf16.mxu0 0
  %2350 = vmatpush1.bf16.msra.mxu0 %v1621
  %2351 = vmatprep.subr.bf16.mxu0 0
  %2352 = vmatpush1.bf16.msra.mxu0 %v1620
  %2353 = vmatprep.subr.bf16.mxu0 0
  %2354 = vmatpush1.bf16.msra.mxu0 %v1619
  %2355 = vmatprep.subr.bf16.mxu0 0
  %2356 = vmatpush2.bf16.msra.mxu0 %v1634
  %2357 = vmatprep.subr.bf16.mxu0 0
  %2358 = vmatpush2.bf16.msra.mxu0 %v1633
  %2359 = vmatprep.subr.bf16.mxu0 0
  %2360 = vmatpush2.bf16.msra.mxu0 %v1632
  %2361 = vmatprep.subr.bf16.mxu0 0
  %2362 = vmatpush2.bf16.msra.mxu0 %v1631
  %2363 = vmatprep.subr.bf16.mxu0 0
  %2364 = vmatpush2.bf16.msra.mxu0 %v1630
  %2365 = vmatprep.subr.bf16.mxu0 0
  %2366 = vmatpush2.bf16.msra.mxu0 %v1629
  %2367 = vmatprep.subr.bf16.mxu0 0
  %2368 = vmatpush2.bf16.msra.mxu0 %v1628
  %2369 = vmatprep.subr.bf16.mxu0 0
  %2370 = vmatpush2.bf16.msra.mxu0 %v1627
  %2371 = vmatprep.mubr.bf16.mxu0 %v534
  %2372 = vmatmul.mubr.bf16.gmra.mxu0 %v533
  %v2373 = vpop.f32.mrf.mxu0
  %v2374 = vadd.f32 %v2334, %v2373
  %v2375 = vpop.f32.mrf.mxu0
  %v2376 = vpop.f32.mrf.mxu0
  %v2377 = vpop.f32.mrf.mxu0
  %2378 = vdwg.mxu0
  %2379 = vmatprep.subr.bf16.mxu0 0
  %2380 = vmatpush1.bf16.msra.mxu0 %v1642
  %2381 = vmatprep.subr.bf16.mxu0 0
  %2382 = vmatpush1.bf16.msra.mxu0 %v1641
  %2383 = vmatprep.subr.bf16.mxu0 0
  %2384 = vmatpush1.bf16.msra.mxu0 %v1640
  %2385 = vmatprep.subr.bf16.mxu0 0
  %2386 = vmatpush1.bf16.msra.mxu0 %v1639
  %2387 = vmatprep.subr.bf16.mxu0 0
  %2388 = vmatpush1.bf16.msra.mxu0 %v1638
  %2389 = vmatprep.subr.bf16.mxu0 0
  %2390 = vmatpush1.bf16.msra.mxu0 %v1637
  %2391 = vmatprep.subr.bf16.mxu0 0
  %2392 = vmatpush1.bf16.msra.mxu0 %v1636
  %2393 = vmatprep.subr.bf16.mxu0 0
  %2394 = vmatpush1.bf16.msra.mxu0 %v1635
  %2395 = vmatprep.subr.bf16.mxu0 0
  %2396 = vmatpush2.bf16.msra.mxu0 0
  %2397 = vmatprep.subr.bf16.mxu0 0
  %2398 = vmatpush2.bf16.msra.mxu0 0
  %2399 = vmatprep.subr.bf16.mxu0 0
  %2400 = vmatpush2.bf16.msra.mxu0 0
  %2401 = vmatprep.subr.bf16.mxu0 0
  %2402 = vmatpush2.bf16.msra.mxu0 0
  %2403 = vmatprep.subr.bf16.mxu0 0
  %2404 = vmatpush2.bf16.msra.mxu0 0
  %2405 = vmatprep.subr.bf16.mxu0 0
  %2406 = vmatpush2.bf16.msra.mxu0 0
  %2407 = vmatprep.subr.bf16.mxu0 0
  %2408 = vmatpush2.bf16.msra.mxu0 0
  %2409 = vmatprep.subr.bf16.mxu0 0
  %2410 = vmatpush2.bf16.msra.mxu0 0
  %2411 = vmatprep.mubr.bf16.mxu0 0
  %2412 = vmatmul.mubr.bf16.gmra.mxu0 %v535
  %v2413 = vpop.f32.mrf.mxu0
  %v2414 = vadd.f32 %v2374, %v2413
  %v2415 = vpop.f32.mrf.mxu0
  %v2416 = vpop.f32.mrf.mxu0
  %v2417 = vpop.f32.mrf.mxu0
  %2418 = vdwg.mxu0
  %2419 = vst [vmem:[%s3] sm:$0xff] %v2414
  // Predicated region
  $region14: #{d4_forward.9} parent=0 // pred_check
    _
  $region15: #{d4_forward.9} parent=0 // pred_check_branch
    %2421 = sbr.rel (0) target = $region17
  $region16: #{d4_forward.9} parent=0 // pred_region
    _
  $region17: #{d4_forward.9} parent=0 // pred_fallthru
    _
  // Predicated region
  $region18: #{d4_forward.9} parent=0 // pred_check
    _
  $region19: #{d4_forward.9} parent=0 // pred_check_branch
    %2423 = sbr.rel (0) target = $region21
  $region20: #{d4_forward.9} parent=0 // pred_region
    _
  $region21: #{d4_forward.9} parent=0 // pred_fallthru
    _

</llo_original>
